<compile_context>
chip_gen: v7x
topology: tpu7x:2x2x1
jax: 0.10.0
libtpu: 0.0.40
codegen_flags: <defaults>
</compile_context>

<pallas_src>
import functools

import jax
import jax.numpy as jnp
from jax.experimental import pallas as pl
from jax.experimental.pallas import tpu as pltpu


_INV_SQRT2 = 0.7071067811865476


def _gelu_exact(y):
    # Exact (erf) GELU, matches torch.nn.GELU() default.
    return 0.5 * y * (1.0 + jax.lax.erf(y * _INV_SQRT2))


def _pad1_zero(x, H, W, C):
    """In-kernel 1-pixel zero halo: (H, W, C) -> (H+2, W+2, C).

    Built with concatenations along the H/W (non-lane) dims only, so no HBM
    padding copy and no lane-dim relayout.
    """
    zrow = jnp.zeros((1, W, C), x.dtype)
    zcol = jnp.zeros((H + 2, 1, C), x.dtype)
    xp = jnp.concatenate([zrow, x, zrow], axis=0)    # (H+2, W,   C)
    xp = jnp.concatenate([zcol, xp, zcol], axis=1)   # (H+2, W+2, C)
    return xp


def _up_block_kernel(x_ref, w_ref, b_ref, o_ref, *, H, W):
    """Fused: conv3x3(pad=1) + bias + exact GELU + nearest 2x upsample.

    x_ref: (1, H, W, Cin)      bf16 NHWC input tile (one batch image)
    w_ref: (3, 3, Cin, Cout)   bf16 HWIO weights
    b_ref: (1, Cout)           f32 bias
    o_ref: (1, 2H, 2W, Cout)   bf16 NHWC output tile (upsample fused, stored once)
    """
    Cin = x_ref.shape[-1]
    Cout = o_ref.shape[-1]

    xp = _pad1_zero(x_ref[0], H, W, Cin)             # (H+2, W+2, Cin), bf16

    # 9 shifted-window matmuls on the MXU, bf16 operands, f32 accumulation.
    acc = jnp.zeros((H * W, Cout), jnp.float32)
    for ky in range(3):
        for kx in range(3):
            patch = xp[ky:ky + H, kx:kx + W, :].reshape(H * W, Cin)
            acc = acc + jnp.dot(patch, w_ref[ky, kx],
                                preferred_element_type=jnp.float32)

    y = _gelu_exact(acc + b_ref[...])                # (H*W, Cout), f32
    y = y.reshape(H, W, Cout).astype(o_ref.dtype)    # bf16

    # Fused nearest-neighbor 2x upsample: duplicate W, then H
    # (broadcast + reshape; channel/lane dim untouched).
    y = jnp.broadcast_to(y[:, :, None, :], (H, W, 2, Cout)).reshape(H, 2 * W, Cout)
    y = jnp.broadcast_to(y[:, None, :, :], (H, 2, 2 * W, Cout)).reshape(2 * H, 2 * W, Cout)
    o_ref[0] = y


def _final_conv_kernel(x_ref, wt_ref, b_ref, o_ref, *, H, W):
    """Final conv3x3(pad=1) + bias with a lane-dense NCHW output.

    x_ref:  (1, H, W, Cin)     bf16 NHWC input tile
    wt_ref: (3, 3, Cout, Cin)  bf16 weights (HWOI)
    b_ref:  (Cout,)            f32 bias in SMEM
    o_ref:  (1, Cout, H, W)    f32 NCHW output tile (lane axis = W, not Cout=1)
    """
    Cin = x_ref.shape[-1]
    Cout = o_ref.shape[1]

    xp = _pad1_zero(x_ref[0], H, W, Cin).astype(jnp.float32)   # (H+2, W+2, Cin)

    outs = []
    for o in range(Cout):
        y = jnp.zeros((H, W), jnp.float32)
        for ky in range(3):
            for kx in range(3):
                wv = wt_ref[ky, kx, o:o + 1, :].astype(jnp.float32).reshape(1, 1, Cin)
                tap = xp[ky:ky + H, kx:kx + W, :]
                y = y + jnp.sum(tap * wv, axis=-1)   # VPU multiply + lane reduce
        outs.append(y + b_ref[o])
    o_ref[0] = jnp.stack(outs, axis=0)               # (Cout, H, W)


def conv3x3_gelu_up2_pallas(x_nhwc, w_hwio, bias):
    """One up-block: fused conv3x3(pad=1) + bias + GELU + nearest 2x upsample."""
    N, H, W, Cin = x_nhwc.shape
    Cout = w_hwio.shape[-1]
    kernel = functools.partial(_up_block_kernel, H=H, W=W)
    return pl.pallas_call(
        kernel,
        out_shape=jax.ShapeDtypeStruct((N, 2 * H, 2 * W, Cout), jnp.bfloat16),
        grid=(N,),
        in_specs=[
            pl.BlockSpec((1, H, W, Cin), lambda n: (n, 0, 0, 0)),
            pl.BlockSpec((3, 3, Cin, Cout), lambda n: (0, 0, 0, 0)),
            pl.BlockSpec((1, Cout), lambda n: (0, 0)),
        ],
        out_specs=pl.BlockSpec((1, 2 * H, 2 * W, Cout), lambda n: (n, 0, 0, 0)),
        compiler_params=pltpu.CompilerParams(
            dimension_semantics=("parallel",),          # batch across cores (v7x 2 TCs)
            vmem_limit_bytes=64 * 1024 * 1024,          # above default scoped limit
        ),
    )(x_nhwc.astype(jnp.bfloat16),
      w_hwio.astype(jnp.bfloat16),
      bias.reshape(1, Cout).astype(jnp.float32))


def conv3x3_final_pallas(x_nhwc, w_hwio, bias):
    """Final conv3x3(pad=1) + bias; emits NCHW f32 directly (lane-dense store)."""
    N, H, W, Cin = x_nhwc.shape
    Cout = w_hwio.shape[-1]
    w_hwoi = jnp.transpose(w_hwio, (0, 1, 3, 2)).astype(jnp.bfloat16)
    kernel = functools.partial(_final_conv_kernel, H=H, W=W)
    return pl.pallas_call(
        kernel,
        out_shape=jax.ShapeDtypeStruct((N, Cout, H, W), jnp.float32),
        grid=(N,),
        in_specs=[
            pl.BlockSpec((1, H, W, Cin), lambda n: (n, 0, 0, 0)),
            pl.BlockSpec((3, 3, Cout, Cin), lambda n: (0, 0, 0, 0)),
            pl.BlockSpec(memory_space=pltpu.MemorySpace.SMEM),   # bias scalars
        ],
        out_specs=pl.BlockSpec((1, Cout, H, W), lambda n: (n, 0, 0, 0)),
        compiler_params=pltpu.CompilerParams(
            dimension_semantics=("parallel",),
            vmem_limit_bytes=64 * 1024 * 1024,
        ),
    )(x_nhwc.astype(jnp.bfloat16), w_hwoi, bias.astype(jnp.float32))


def init_decoder_params(key, out_channels=1, latent_sizes=(32, 16, 8)):
    """Deterministic synthetic parameters. Weights HWIO (f32 master copies)."""
    params = {"ups": [], "last": None}
    for i in range(len(latent_sizes) - 1):
        cin, cout = latent_sizes[i], latent_sizes[i] // 2
        key, kw, kb = jax.random.split(key, 3)
        w = jax.random.normal(kw, (3, 3, cin, cout), jnp.float32) * 0.1
        b = jax.random.normal(kb, (cout,), jnp.float32) * 0.1
        params["ups"].append((w, b))
    cin = latent_sizes[-1]
    key, kw, kb = jax.random.split(key, 3)
    w = jax.random.normal(kw, (3, 3, cin, out_channels), jnp.float32) * 0.1
    b = jax.random.normal(kb, (out_channels,), jnp.float32) * 0.1
    params["last"] = (w, b)
    return params


@jax.jit
def decoder_forward(x_nchw, params):
    """Pallas implementation of Decoder.forward. Input/output NCHW like PyTorch."""
    x = jnp.transpose(x_nchw, (0, 2, 3, 1))           # NCHW -> NHWC (input glue only)
    for (w, b) in params["ups"]:
        x = conv3x3_gelu_up2_pallas(x, w, b)          # fused conv+bias+GELU+up2, bf16
    w, b = params["last"]
    return conv3x3_final_pallas(x, w, b)              # NCHW f32, no output transpose


# ---------------------------- references (pure JAX) ----------------------------

def _conv_nchw(x, w, b):
    dn = jax.lax.conv_dimension_numbers(x.shape, w.shape, ("NCHW", "HWIO", "NCHW"))
    y = jax.lax.conv_general_dilated(
        x, w, window_strides=(1, 1), padding=((1, 1), (1, 1)),
        dimension_numbers=dn, preferred_element_type=jnp.float32)
    return y + b.reshape(1, -1, 1, 1)


def decoder_forward_reference_f32(x_nchw, params):
    """Pure-f32 module semantics (lax.conv) for a loose sanity check."""
    x = x_nchw
    for (w, b) in params["ups"]:
        x = _gelu_exact(_conv_nchw(x, w, b))
        x = jnp.repeat(jnp.repeat(x, 2, axis=2), 2, axis=3)
    w, b = params["last"]
    return _conv_nchw(x, w, b)


def decoder_forward_reference_bf16(x_nchw, params):
    """Mimics the kernel arithmetic (bf16 operands/storage, f32 accumulation)."""
    x = x_nchw.astype(jnp.bfloat16)
    for (w, b) in params["ups"]:
        y = _gelu_exact(_conv_nchw(x, w.astype(jnp.bfloat16), b))
        x = jnp.repeat(jnp.repeat(y.astype(jnp.bfloat16), 2, axis=2), 2, axis=3)
    w, b = params["last"]
    return _conv_nchw(x, w.astype(jnp.bfloat16), b)


if __name__ == "__main__":
    key = jax.random.PRNGKey(0)
    latent_sizes = (32, 16, 8)   # scaled-down stand-in for [512, 256, 128, 64, 32]
    out_channels = 1
    batch, spatial = 2, 4

    key, kx, kp = jax.random.split(key, 3)
    x = jax.random.normal(kx, (batch, latent_sizes[0], spatial, spatial), jnp.float32)
    params = init_decoder_params(kp, out_channels=out_channels,
                                 latent_sizes=latent_sizes)

    out = jax.block_until_ready(decoder_forward(x, params))

    expected_hw = spatial * (2 ** (len(latent_sizes) - 1))
    assert out.shape == (batch, out_channels, expected_hw, expected_hw), out.shape

    # Tight check vs. a reference that mimics the kernel's bf16/f32 arithmetic.
    ref_bf16 = jax.block_until_ready(decoder_forward_reference_bf16(x, params))
    err_b = float(jnp.max(jnp.abs(out - ref_bf16)))
    assert jnp.allclose(out, ref_bf16, atol=2e-2, rtol=2e-2), err_b

    # Loose sanity check vs. pure-f32 module semantics (tolerance = bf16 storage).
    ref_f32 = jax.block_until_ready(decoder_forward_reference_f32(x, params))
    err_f = float(jnp.max(jnp.abs(out - ref_f32)))
    assert jnp.allclose(out, ref_f32, atol=1e-1, rtol=1e-1), err_f

    print("KERNEL_OK")
</pallas_src>

<mosaic_0001>
module attributes {stable_mosaic.version = 11 : i64} {
  func.func @_up_block_kernel(%arg0: i32, %arg1: memref<1x4x4x32xbf16, #tpu.memory_space<vmem>>, %arg2: memref<3x3x32x16xbf16, #tpu.memory_space<vmem>>, %arg3: memref<1x16xf32, #tpu.memory_space<vmem>>, %arg4: memref<1x8x8x16xbf16, #tpu.memory_space<vmem>>) attributes {dimension_semantics = [#tpu.dimension_semantics<parallel>], iteration_bounds = array<i64: 2>, scalar_prefetch = 0 : i64, scratch_operands = 0 : i64, tpu.core_type = #tpu.core_type<tc>, window_params = [{transform_indices = @transform_0, window_bounds = array<i64: 1, 4, 4, 32>}, {pipeline_mode = #tpu.pipeline_mode<synchronous>, transform_indices = @transform_1, window_bounds = array<i64: 3, 3, 32, 16>}, {pipeline_mode = #tpu.pipeline_mode<synchronous>, transform_indices = @transform_2, window_bounds = array<i64: 1, 16>}, {transform_indices = @transform_3, window_bounds = array<i64: 1, 8, 8, 16>}]} {
    %c0 = arith.constant 0 : index
    %c0_0 = arith.constant 0 : index
    %c0_1 = arith.constant 0 : index
    %c0_2 = arith.constant 0 : index
    %0 = vector.load %arg1[%c0, %c0_0, %c0_1, %c0_2] : memref<1x4x4x32xbf16, #tpu.memory_space<vmem>>, vector<1x4x4x32xbf16>
    %1 = vector.shape_cast %0 : vector<1x4x4x32xbf16> to vector<4x4x32xbf16>
    %cst = arith.constant 0.000000e+00 : bf16
    %2 = vector.broadcast %cst : bf16 to vector<1x4x32xbf16>
    %cst_3 = arith.constant 0.000000e+00 : bf16
    %3 = vector.broadcast %cst_3 : bf16 to vector<6x1x32xbf16>
    %4 = tpu.concatenate %2, %1, %2 in 0 : vector<1x4x32xbf16>, vector<4x4x32xbf16>, vector<1x4x32xbf16> -> vector<6x4x32xbf16>
    %5 = tpu.concatenate %3, %4, %3 in 1 : vector<6x1x32xbf16>, vector<6x4x32xbf16>, vector<6x1x32xbf16> -> vector<6x6x32xbf16>
    %cst_4 = arith.constant 0.000000e+00 : f32
    %6 = vector.broadcast %cst_4 : f32 to vector<16x16xf32>
    %7 = vector.extract_strided_slice %5 {offsets = [0, 0, 0], sizes = [4, 4, 32], strides = [1, 1, 1]} : vector<6x6x32xbf16> to vector<4x4x32xbf16>
    %8 = vector.shape_cast %7 : vector<4x4x32xbf16> to vector<16x32xbf16>
    %c0_5 = arith.constant 0 : index
    %c0_6 = arith.constant 0 : index
    %c0_7 = arith.constant 0 : index
    %c0_8 = arith.constant 0 : index
    %9 = vector.load %arg2[%c0_5, %c0_6, %c0_7, %c0_8] : memref<3x3x32x16xbf16, #tpu.memory_space<vmem>>, vector<1x1x32x16xbf16>
    %10 = vector.shape_cast %9 : vector<1x1x32x16xbf16> to vector<32x16xbf16>
    %cst_9 = arith.constant dense<0.000000e+00> : vector<16x16xf32>
    %11 = tpu.matmul %8, %10, %cst_9 {dimension_numbers = #tpu.dot_dimension_numbers<[1], [0], [0], [1], [0, 0, 1, 1], [], []>} : vector<16x32xbf16>, vector<32x16xbf16>, vector<16x16xf32> -> vector<16x16xf32>
    %12 = arith.addf %6, %11 : vector<16x16xf32>
    %13 = vector.extract_strided_slice %5 {offsets = [0, 1, 0], sizes = [4, 4, 32], strides = [1, 1, 1]} : vector<6x6x32xbf16> to vector<4x4x32xbf16>
    %14 = vector.shape_cast %13 : vector<4x4x32xbf16> to vector<16x32xbf16>
    %c0_10 = arith.constant 0 : index
    %c1 = arith.constant 1 : index
    %c0_11 = arith.constant 0 : index
    %c0_12 = arith.constant 0 : index
    %15 = vector.load %arg2[%c0_10, %c1, %c0_11, %c0_12] : memref<3x3x32x16xbf16, #tpu.memory_space<vmem>>, vector<1x1x32x16xbf16>
    %16 = vector.shape_cast %15 : vector<1x1x32x16xbf16> to vector<32x16xbf16>
    %cst_13 = arith.constant dense<0.000000e+00> : vector<16x16xf32>
    %17 = tpu.matmul %14, %16, %cst_13 {dimension_numbers = #tpu.dot_dimension_numbers<[1], [0], [0], [1], [0, 0, 1, 1], [], []>} : vector<16x32xbf16>, vector<32x16xbf16>, vector<16x16xf32> -> vector<16x16xf32>
    %18 = arith.addf %12, %17 : vector<16x16xf32>
    %19 = vector.extract_strided_slice %5 {offsets = [0, 2, 0], sizes = [4, 4, 32], strides = [1, 1, 1]} : vector<6x6x32xbf16> to vector<4x4x32xbf16>
    %20 = vector.shape_cast %19 : vector<4x4x32xbf16> to vector<16x32xbf16>
    %c0_14 = arith.constant 0 : index
    %c2 = arith.constant 2 : index
    %c0_15 = arith.constant 0 : index
    %c0_16 = arith.constant 0 : index
    %21 = vector.load %arg2[%c0_14, %c2, %c0_15, %c0_16] : memref<3x3x32x16xbf16, #tpu.memory_space<vmem>>, vector<1x1x32x16xbf16>
    %22 = vector.shape_cast %21 : vector<1x1x32x16xbf16> to vector<32x16xbf16>
    %cst_17 = arith.constant dense<0.000000e+00> : vector<16x16xf32>
    %23 = tpu.matmul %20, %22, %cst_17 {dimension_numbers = #tpu.dot_dimension_numbers<[1], [0], [0], [1], [0, 0, 1, 1], [], []>} : vector<16x32xbf16>, vector<32x16xbf16>, vector<16x16xf32> -> vector<16x16xf32>
    %24 = arith.addf %18, %23 : vector<16x16xf32>
    %25 = vector.extract_strided_slice %5 {offsets = [1, 0, 0], sizes = [4, 4, 32], strides = [1, 1, 1]} : vector<6x6x32xbf16> to vector<4x4x32xbf16>
    %26 = vector.shape_cast %25 : vector<4x4x32xbf16> to vector<16x32xbf16>
    %c1_18 = arith.constant 1 : index
    %c0_19 = arith.constant 0 : index
    %c0_20 = arith.constant 0 : index
    %c0_21 = arith.constant 0 : index
    %27 = vector.load %arg2[%c1_18, %c0_19, %c0_20, %c0_21] : memref<3x3x32x16xbf16, #tpu.memory_space<vmem>>, vector<1x1x32x16xbf16>
    %28 = vector.shape_cast %27 : vector<1x1x32x16xbf16> to vector<32x16xbf16>
    %cst_22 = arith.constant dense<0.000000e+00> : vector<16x16xf32>
    %29 = tpu.matmul %26, %28, %cst_22 {dimension_numbers = #tpu.dot_dimension_numbers<[1], [0], [0], [1], [0, 0, 1, 1], [], []>} : vector<16x32xbf16>, vector<32x16xbf16>, vector<16x16xf32> -> vector<16x16xf32>
    %30 = arith.addf %24, %29 : vector<16x16xf32>
    %31 = vector.extract_strided_slice %5 {offsets = [1, 1, 0], sizes = [4, 4, 32], strides = [1, 1, 1]} : vector<6x6x32xbf16> to vector<4x4x32xbf16>
    %32 = vector.shape_cast %31 : vector<4x4x32xbf16> to vector<16x32xbf16>
    %c1_23 = arith.constant 1 : index
    %c1_24 = arith.constant 1 : index
    %c0_25 = arith.constant 0 : index
    %c0_26 = arith.constant 0 : index
    %33 = vector.load %arg2[%c1_23, %c1_24, %c0_25, %c0_26] : memref<3x3x32x16xbf16, #tpu.memory_space<vmem>>, vector<1x1x32x16xbf16>
    %34 = vector.shape_cast %33 : vector<1x1x32x16xbf16> to vector<32x16xbf16>
    %cst_27 = arith.constant dense<0.000000e+00> : vector<16x16xf32>
    %35 = tpu.matmul %32, %34, %cst_27 {dimension_numbers = #tpu.dot_dimension_numbers<[1], [0], [0], [1], [0, 0, 1, 1], [], []>} : vector<16x32xbf16>, vector<32x16xbf16>, vector<16x16xf32> -> vector<16x16xf32>
    %36 = arith.addf %30, %35 : vector<16x16xf32>
    %37 = vector.extract_strided_slice %5 {offsets = [1, 2, 0], sizes = [4, 4, 32], strides = [1, 1, 1]} : vector<6x6x32xbf16> to vector<4x4x32xbf16>
    %38 = vector.shape_cast %37 : vector<4x4x32xbf16> to vector<16x32xbf16>
    %c1_28 = arith.constant 1 : index
    %c2_29 = arith.constant 2 : index
    %c0_30 = arith.constant 0 : index
    %c0_31 = arith.constant 0 : index
    %39 = vector.load %arg2[%c1_28, %c2_29, %c0_30, %c0_31] : memref<3x3x32x16xbf16, #tpu.memory_space<vmem>>, vector<1x1x32x16xbf16>
    %40 = vector.shape_cast %39 : vector<1x1x32x16xbf16> to vector<32x16xbf16>
    %cst_32 = arith.constant dense<0.000000e+00> : vector<16x16xf32>
    %41 = tpu.matmul %38, %40, %cst_32 {dimension_numbers = #tpu.dot_dimension_numbers<[1], [0], [0], [1], [0, 0, 1, 1], [], []>} : vector<16x32xbf16>, vector<32x16xbf16>, vector<16x16xf32> -> vector<16x16xf32>
    %42 = arith.addf %36, %41 : vector<16x16xf32>
    %43 = vector.extract_strided_slice %5 {offsets = [2, 0, 0], sizes = [4, 4, 32], strides = [1, 1, 1]} : vector<6x6x32xbf16> to vector<4x4x32xbf16>
    %44 = vector.shape_cast %43 : vector<4x4x32xbf16> to vector<16x32xbf16>
    %c2_33 = arith.constant 2 : index
    %c0_34 = arith.constant 0 : index
    %c0_35 = arith.constant 0 : index
    %c0_36 = arith.constant 0 : index
    %45 = vector.load %arg2[%c2_33, %c0_34, %c0_35, %c0_36] : memref<3x3x32x16xbf16, #tpu.memory_space<vmem>>, vector<1x1x32x16xbf16>
    %46 = vector.shape_cast %45 : vector<1x1x32x16xbf16> to vector<32x16xbf16>
    %cst_37 = arith.constant dense<0.000000e+00> : vector<16x16xf32>
    %47 = tpu.matmul %44, %46, %cst_37 {dimension_numbers = #tpu.dot_dimension_numbers<[1], [0], [0], [1], [0, 0, 1, 1], [], []>} : vector<16x32xbf16>, vector<32x16xbf16>, vector<16x16xf32> -> vector<16x16xf32>
    %48 = arith.addf %42, %47 : vector<16x16xf32>
    %49 = vector.extract_strided_slice %5 {offsets = [2, 1, 0], sizes = [4, 4, 32], strides = [1, 1, 1]} : vector<6x6x32xbf16> to vector<4x4x32xbf16>
    %50 = vector.shape_cast %49 : vector<4x4x32xbf16> to vector<16x32xbf16>
    %c2_38 = arith.constant 2 : index
    %c1_39 = arith.constant 1 : index
    %c0_40 = arith.constant 0 : index
    %c0_41 = arith.constant 0 : index
    %51 = vector.load %arg2[%c2_38, %c1_39, %c0_40, %c0_41] : memref<3x3x32x16xbf16, #tpu.memory_space<vmem>>, vector<1x1x32x16xbf16>
    %52 = vector.shape_cast %51 : vector<1x1x32x16xbf16> to vector<32x16xbf16>
    %cst_42 = arith.constant dense<0.000000e+00> : vector<16x16xf32>
    %53 = tpu.matmul %50, %52, %cst_42 {dimension_numbers = #tpu.dot_dimension_numbers<[1], [0], [0], [1], [0, 0, 1, 1], [], []>} : vector<16x32xbf16>, vector<32x16xbf16>, vector<16x16xf32> -> vector<16x16xf32>
    %54 = arith.addf %48, %53 : vector<16x16xf32>
    %55 = vector.extract_strided_slice %5 {offsets = [2, 2, 0], sizes = [4, 4, 32], strides = [1, 1, 1]} : vector<6x6x32xbf16> to vector<4x4x32xbf16>
    %56 = vector.shape_cast %55 : vector<4x4x32xbf16> to vector<16x32xbf16>
    %c2_43 = arith.constant 2 : index
    %c2_44 = arith.constant 2 : index
    %c0_45 = arith.constant 0 : index
    %c0_46 = arith.constant 0 : index
    %57 = vector.load %arg2[%c2_43, %c2_44, %c0_45, %c0_46] : memref<3x3x32x16xbf16, #tpu.memory_space<vmem>>, vector<1x1x32x16xbf16>
    %58 = vector.shape_cast %57 : vector<1x1x32x16xbf16> to vector<32x16xbf16>
    %cst_47 = arith.constant dense<0.000000e+00> : vector<16x16xf32>
    %59 = tpu.matmul %56, %58, %cst_47 {dimension_numbers = #tpu.dot_dimension_numbers<[1], [0], [0], [1], [0, 0, 1, 1], [], []>} : vector<16x32xbf16>, vector<32x16xbf16>, vector<16x16xf32> -> vector<16x16xf32>
    %60 = arith.addf %54, %59 : vector<16x16xf32>
    %c0_48 = arith.constant 0 : index
    %c0_49 = arith.constant 0 : index
    %61 = vector.load %arg3[%c0_48, %c0_49] : memref<1x16xf32, #tpu.memory_space<vmem>>, vector<1x16xf32>
    %62 = vector.broadcast %61 : vector<1x16xf32> to vector<16x16xf32>
    %63 = arith.addf %60, %62 : vector<16x16xf32>
    %cst_50 = arith.constant 5.000000e-01 : f32
    %64 = vector.broadcast %cst_50 : f32 to vector<16x16xf32>
    %65 = arith.mulf %64, %63 : vector<16x16xf32>
    %cst_51 = arith.constant 0.707106769 : f32
    %66 = vector.broadcast %cst_51 : f32 to vector<16x16xf32>
    %67 = arith.mulf %63, %66 : vector<16x16xf32>
    %68 = math.erf %67 : vector<16x16xf32>
    %cst_52 = arith.constant 1.000000e+00 : f32
    %69 = vector.broadcast %cst_52 : f32 to vector<16x16xf32>
    %70 = arith.addf %69, %68 : vector<16x16xf32>
    %71 = arith.mulf %65, %70 : vector<16x16xf32>
    %72 = vector.shape_cast %71 : vector<16x16xf32> to vector<4x4x16xf32>
    %73 = arith.truncf %72 : vector<4x4x16xf32> to vector<4x4x16xbf16>
    %74 = vector.shape_cast %73 : vector<4x4x16xbf16> to vector<4x4x1x16xbf16>
    %75 = vector.shape_cast %74 : vector<4x4x1x16xbf16> to vector<4x4x1x16xbf16>
    %76 = vector.broadcast %75 : vector<4x4x1x16xbf16> to vector<4x4x2x16xbf16>
    %77 = vector.shape_cast %76 : vector<4x4x2x16xbf16> to vector<4x8x16xbf16>
    %78 = vector.shape_cast %77 : vector<4x8x16xbf16> to vector<4x1x8x16xbf16>
    %79 = vector.shape_cast %78 : vector<4x1x8x16xbf16> to vector<4x1x8x16xbf16>
    %80 = vector.broadcast %79 : vector<4x1x8x16xbf16> to vector<4x2x8x16xbf16>
    %81 = vector.shape_cast %80 : vector<4x2x8x16xbf16> to vector<8x8x16xbf16>
    %c0_53 = arith.constant 0 : index
    %c0_54 = arith.constant 0 : index
    %c0_55 = arith.constant 0 : index
    %c0_56 = arith.constant 0 : index
    %82 = vector.load %arg4[%c0_53, %c0_54, %c0_55, %c0_56] : memref<1x8x8x16xbf16, #tpu.memory_space<vmem>>, vector<1x8x8x16xbf16>
    %83 = vector.shape_cast %82 : vector<1x8x8x16xbf16> to vector<8x8x16xbf16>
    %84 = vector.shape_cast %81 : vector<8x8x16xbf16> to vector<1x8x8x16xbf16>
    tpu.vector_store %arg4[%c0_53, %c0_54, %c0_55, %c0_56], %84 {strides = array<i32>} : memref<1x8x8x16xbf16, #tpu.memory_space<vmem>>, vector<1x8x8x16xbf16>,
    return
  }
  func.func @transform_0(%arg0: i32) -> (i32, i32, i32, i32) {
    %c0_i32 = arith.constant 0 : i32
    %c0_i32_0 = arith.constant 0 : i32
    %c0_i32_1 = arith.constant 0 : i32
    %c0_i32_2 = arith.constant 0 : i32
    return %arg0, %c0_i32, %c0_i32_0, %c0_i32_1 : i32, i32, i32, i32
  }
  func.func @transform_1(%arg0: i32) -> (i32, i32, i32, i32) {
    %c0_i32 = arith.constant 0 : i32
    %c0_i32_0 = arith.constant 0 : i32
    %c0_i32_1 = arith.constant 0 : i32
    %c0_i32_2 = arith.constant 0 : i32
    %c0_i32_3 = arith.constant 0 : i32
    return %c0_i32, %c0_i32_0, %c0_i32_1, %c0_i32_2 : i32, i32, i32, i32
  }
  func.func @transform_2(%arg0: i32) -> (i32, i32) {
    %c0_i32 = arith.constant 0 : i32
    %c0_i32_0 = arith.constant 0 : i32
    %c0_i32_1 = arith.constant 0 : i32
    return %c0_i32, %c0_i32_0 : i32, i32
  }
  func.func @transform_3(%arg0: i32) -> (i32, i32, i32, i32) {
    %c0_i32 = arith.constant 0 : i32
    %c0_i32_0 = arith.constant 0 : i32
    %c0_i32_1 = arith.constant 0 : i32
    %c0_i32_2 = arith.constant 0 : i32
    return %arg0, %c0_i32, %c0_i32_0, %c0_i32_1 : i32, i32, i32, i32
  }
}

module attributes {stable_mosaic.version = 11 : i64} {
  func.func @_up_block_kernel(%arg0: i32, %arg1: memref<1x8x8x16xbf16, #tpu.memory_space<vmem>>, %arg2: memref<3x3x16x8xbf16, #tpu.memory_space<vmem>>, %arg3: memref<1x8xf32, #tpu.memory_space<vmem>>, %arg4: memref<1x16x16x8xbf16, #tpu.memory_space<vmem>>) attributes {dimension_semantics = [#tpu.dimension_semantics<parallel>], iteration_bounds = array<i64: 2>, scalar_prefetch = 0 : i64, scratch_operands = 0 : i64, tpu.core_type = #tpu.core_type<tc>, window_params = [{transform_indices = @transform_0, window_bounds = array<i64: 1, 8, 8, 16>}, {pipeline_mode = #tpu.pipeline_mode<synchronous>, transform_indices = @transform_1, window_bounds = array<i64: 3, 3, 16, 8>}, {pipeline_mode = #tpu.pipeline_mode<synchronous>, transform_indices = @transform_2, window_bounds = array<i64: 1, 8>}, {transform_indices = @transform_3, window_bounds = array<i64: 1, 16, 16, 8>}]} {
    %c0 = arith.constant 0 : index
    %c0_0 = arith.constant 0 : index
    %c0_1 = arith.constant 0 : index
    %c0_2 = arith.constant 0 : index
    %0 = vector.load %arg1[%c0, %c0_0, %c0_1, %c0_2] : memref<1x8x8x16xbf16, #tpu.memory_space<vmem>>, vector<1x8x8x16xbf16>
    %1 = vector.shape_cast %0 : vector<1x8x8x16xbf16> to vector<8x8x16xbf16>
    %cst = arith.constant 0.000000e+00 : bf16
    %2 = vector.broadcast %cst : bf16 to vector<1x8x16xbf16>
    %cst_3 = arith.constant 0.000000e+00 : bf16
    %3 = vector.broadcast %cst_3 : bf16 to vector<10x1x16xbf16>
    %4 = tpu.concatenate %2, %1, %2 in 0 : vector<1x8x16xbf16>, vector<8x8x16xbf16>, vector<1x8x16xbf16> -> vector<10x8x16xbf16>
    %5 = tpu.concatenate %3, %4, %3 in 1 : vector<10x1x16xbf16>, vector<10x8x16xbf16>, vector<10x1x16xbf16> -> vector<10x10x16xbf16>
    %cst_4 = arith.constant 0.000000e+00 : f32
    %6 = vector.broadcast %cst_4 : f32 to vector<64x8xf32>
    %7 = vector.extract_strided_slice %5 {offsets = [0, 0, 0], sizes = [8, 8, 16], strides = [1, 1, 1]} : vector<10x10x16xbf16> to vector<8x8x16xbf16>
    %8 = vector.shape_cast %7 : vector<8x8x16xbf16> to vector<64x16xbf16>
    %c0_5 = arith.constant 0 : index
    %c0_6 = arith.constant 0 : index
    %c0_7 = arith.constant 0 : index
    %c0_8 = arith.constant 0 : index
    %9 = vector.load %arg2[%c0_5, %c0_6, %c0_7, %c0_8] : memref<3x3x16x8xbf16, #tpu.memory_space<vmem>>, vector<1x1x16x8xbf16>
    %10 = vector.shape_cast %9 : vector<1x1x16x8xbf16> to vector<16x8xbf16>
    %cst_9 = arith.constant dense<0.000000e+00> : vector<64x8xf32>
    %11 = tpu.matmul %8, %10, %cst_9 {dimension_numbers = #tpu.dot_dimension_numbers<[1], [0], [0], [1], [0, 0, 1, 1], [], []>} : vector<64x16xbf16>, vector<16x8xbf16>, vector<64x8xf32> -> vector<64x8xf32>
    %12 = arith.addf %6, %11 : vector<64x8xf32>
    %13 = vector.extract_strided_slice %5 {offsets = [0, 1, 0], sizes = [8, 8, 16], strides = [1, 1, 1]} : vector<10x10x16xbf16> to vector<8x8x16xbf16>
    %14 = vector.shape_cast %13 : vector<8x8x16xbf16> to vector<64x16xbf16>
    %c0_10 = arith.constant 0 : index
    %c1 = arith.constant 1 : index
    %c0_11 = arith.constant 0 : index
    %c0_12 = arith.constant 0 : index
    %15 = vector.load %arg2[%c0_10, %c1, %c0_11, %c0_12] : memref<3x3x16x8xbf16, #tpu.memory_space<vmem>>, vector<1x1x16x8xbf16>
    %16 = vector.shape_cast %15 : vector<1x1x16x8xbf16> to vector<16x8xbf16>
    %cst_13 = arith.constant dense<0.000000e+00> : vector<64x8xf32>
    %17 = tpu.matmul %14, %16, %cst_13 {dimension_numbers = #tpu.dot_dimension_numbers<[1], [0], [0], [1], [0, 0, 1, 1], [], []>} : vector<64x16xbf16>, vector<16x8xbf16>, vector<64x8xf32> -> vector<64x8xf32>
    %18 = arith.addf %12, %17 : vector<64x8xf32>
    %19 = vector.extract_strided_slice %5 {offsets = [0, 2, 0], sizes = [8, 8, 16], strides = [1, 1, 1]} : vector<10x10x16xbf16> to vector<8x8x16xbf16>
    %20 = vector.shape_cast %19 : vector<8x8x16xbf16> to vector<64x16xbf16>
    %c0_14 = arith.constant 0 : index
    %c2 = arith.constant 2 : index
    %c0_15 = arith.constant 0 : index
    %c0_16 = arith.constant 0 : index
    %21 = vector.load %arg2[%c0_14, %c2, %c0_15, %c0_16] : memref<3x3x16x8xbf16, #tpu.memory_space<vmem>>, vector<1x1x16x8xbf16>
    %22 = vector.shape_cast %21 : vector<1x1x16x8xbf16> to vector<16x8xbf16>
    %cst_17 = arith.constant dense<0.000000e+00> : vector<64x8xf32>
    %23 = tpu.matmul %20, %22, %cst_17 {dimension_numbers = #tpu.dot_dimension_numbers<[1], [0], [0], [1], [0, 0, 1, 1], [], []>} : vector<64x16xbf16>, vector<16x8xbf16>, vector<64x8xf32> -> vector<64x8xf32>
    %24 = arith.addf %18, %23 : vector<64x8xf32>
    %25 = vector.extract_strided_slice %5 {offsets = [1, 0, 0], sizes = [8, 8, 16], strides = [1, 1, 1]} : vector<10x10x16xbf16> to vector<8x8x16xbf16>
    %26 = vector.shape_cast %25 : vector<8x8x16xbf16> to vector<64x16xbf16>
    %c1_18 = arith.constant 1 : index
    %c0_19 = arith.constant 0 : index
    %c0_20 = arith.constant 0 : index
    %c0_21 = arith.constant 0 : index
    %27 = vector.load %arg2[%c1_18, %c0_19, %c0_20, %c0_21] : memref<3x3x16x8xbf16, #tpu.memory_space<vmem>>, vector<1x1x16x8xbf16>
    %28 = vector.shape_cast %27 : vector<1x1x16x8xbf16> to vector<16x8xbf16>
    %cst_22 = arith.constant dense<0.000000e+00> : vector<64x8xf32>
    %29 = tpu.matmul %26, %28, %cst_22 {dimension_numbers = #tpu.dot_dimension_numbers<[1], [0], [0], [1], [0, 0, 1, 1], [], []>} : vector<64x16xbf16>, vector<16x8xbf16>, vector<64x8xf32> -> vector<64x8xf32>
    %30 = arith.addf %24, %29 : vector<64x8xf32>
    %31 = vector.extract_strided_slice %5 {offsets = [1, 1, 0], sizes = [8, 8, 16], strides = [1, 1, 1]} : vector<10x10x16xbf16> to vector<8x8x16xbf16>
    %32 = vector.shape_cast %31 : vector<8x8x16xbf16> to vector<64x16xbf16>
    %c1_23 = arith.constant 1 : index
    %c1_24 = arith.constant 1 : index
    %c0_25 = arith.constant 0 : index
    %c0_26 = arith.constant 0 : index
    %33 = vector.load %arg2[%c1_23, %c1_24, %c0_25, %c0_26] : memref<3x3x16x8xbf16, #tpu.memory_space<vmem>>, vector<1x1x16x8xbf16>
    %34 = vector.shape_cast %33 : vector<1x1x16x8xbf16> to vector<16x8xbf16>
    %cst_27 = arith.constant dense<0.000000e+00> : vector<64x8xf32>
    %35 = tpu.matmul %32, %34, %cst_27 {dimension_numbers = #tpu.dot_dimension_numbers<[1], [0], [0], [1], [0, 0, 1, 1], [], []>} : vector<64x16xbf16>, vector<16x8xbf16>, vector<64x8xf32> -> vector<64x8xf32>
    %36 = arith.addf %30, %35 : vector<64x8xf32>
    %37 = vector.extract_strided_slice %5 {offsets = [1, 2, 0], sizes = [8, 8, 16], strides = [1, 1, 1]} : vector<10x10x16xbf16> to vector<8x8x16xbf16>
    %38 = vector.shape_cast %37 : vector<8x8x16xbf16> to vector<64x16xbf16>
    %c1_28 = arith.constant 1 : index
    %c2_29 = arith.constant 2 : index
    %c0_30 = arith.constant 0 : index
    %c0_31 = arith.constant 0 : index
    %39 = vector.load %arg2[%c1_28, %c2_29, %c0_30, %c0_31] : memref<3x3x16x8xbf16, #tpu.memory_space<vmem>>, vector<1x1x16x8xbf16>
    %40 = vector.shape_cast %39 : vector<1x1x16x8xbf16> to vector<16x8xbf16>
    %cst_32 = arith.constant dense<0.000000e+00> : vector<64x8xf32>
    %41 = tpu.matmul %38, %40, %cst_32 {dimension_numbers = #tpu.dot_dimension_numbers<[1], [0], [0], [1], [0, 0, 1, 1], [], []>} : vector<64x16xbf16>, vector<16x8xbf16>, vector<64x8xf32> -> vector<64x8xf32>
    %42 = arith.addf %36, %41 : vector<64x8xf32>
    %43 = vector.extract_strided_slice %5 {offsets = [2, 0, 0], sizes = [8, 8, 16], strides = [1, 1, 1]} : vector<10x10x16xbf16> to vector<8x8x16xbf16>
    %44 = vector.shape_cast %43 : vector<8x8x16xbf16> to vector<64x16xbf16>
    %c2_33 = arith.constant 2 : index
    %c0_34 = arith.constant 0 : index
    %c0_35 = arith.constant 0 : index
    %c0_36 = arith.constant 0 : index
    %45 = vector.load %arg2[%c2_33, %c0_34, %c0_35, %c0_36] : memref<3x3x16x8xbf16, #tpu.memory_space<vmem>>, vector<1x1x16x8xbf16>
    %46 = vector.shape_cast %45 : vector<1x1x16x8xbf16> to vector<16x8xbf16>
    %cst_37 = arith.constant dense<0.000000e+00> : vector<64x8xf32>
    %47 = tpu.matmul %44, %46, %cst_37 {dimension_numbers = #tpu.dot_dimension_numbers<[1], [0], [0], [1], [0, 0, 1, 1], [], []>} : vector<64x16xbf16>, vector<16x8xbf16>, vector<64x8xf32> -> vector<64x8xf32>
    %48 = arith.addf %42, %47 : vector<64x8xf32>
    %49 = vector.extract_strided_slice %5 {offsets = [2, 1, 0], sizes = [8, 8, 16], strides = [1, 1, 1]} : vector<10x10x16xbf16> to vector<8x8x16xbf16>
    %50 = vector.shape_cast %49 : vector<8x8x16xbf16> to vector<64x16xbf16>
    %c2_38 = arith.constant 2 : index
    %c1_39 = arith.constant 1 : index
    %c0_40 = arith.constant 0 : index
    %c0_41 = arith.constant 0 : index
    %51 = vector.load %arg2[%c2_38, %c1_39, %c0_40, %c0_41] : memref<3x3x16x8xbf16, #tpu.memory_space<vmem>>, vector<1x1x16x8xbf16>
    %52 = vector.shape_cast %51 : vector<1x1x16x8xbf16> to vector<16x8xbf16>
    %cst_42 = arith.constant dense<0.000000e+00> : vector<64x8xf32>
    %53 = tpu.matmul %50, %52, %cst_42 {dimension_numbers = #tpu.dot_dimension_numbers<[1], [0], [0], [1], [0, 0, 1, 1], [], []>} : vector<64x16xbf16>, vector<16x8xbf16>, vector<64x8xf32> -> vector<64x8xf32>
    %54 = arith.addf %48, %53 : vector<64x8xf32>
    %55 = vector.extract_strided_slice %5 {offsets = [2, 2, 0], sizes = [8, 8, 16], strides = [1, 1, 1]} : vector<10x10x16xbf16> to vector<8x8x16xbf16>
    %56 = vector.shape_cast %55 : vector<8x8x16xbf16> to vector<64x16xbf16>
    %c2_43 = arith.constant 2 : index
    %c2_44 = arith.constant 2 : index
    %c0_45 = arith.constant 0 : index
    %c0_46 = arith.constant 0 : index
    %57 = vector.load %arg2[%c2_43, %c2_44, %c0_45, %c0_46] : memref<3x3x16x8xbf16, #tpu.memory_space<vmem>>, vector<1x1x16x8xbf16>
    %58 = vector.shape_cast %57 : vector<1x1x16x8xbf16> to vector<16x8xbf16>
    %cst_47 = arith.constant dense<0.000000e+00> : vector<64x8xf32>
    %59 = tpu.matmul %56, %58, %cst_47 {dimension_numbers = #tpu.dot_dimension_numbers<[1], [0], [0], [1], [0, 0, 1, 1], [], []>} : vector<64x16xbf16>, vector<16x8xbf16>, vector<64x8xf32> -> vector<64x8xf32>
    %60 = arith.addf %54, %59 : vector<64x8xf32>
    %c0_48 = arith.constant 0 : index
    %c0_49 = arith.constant 0 : index
    %61 = vector.load %arg3[%c0_48, %c0_49] : memref<1x8xf32, #tpu.memory_space<vmem>>, vector<1x8xf32>
    %62 = vector.broadcast %61 : vector<1x8xf32> to vector<64x8xf32>
    %63 = arith.addf %60, %62 : vector<64x8xf32>
    %cst_50 = arith.constant 5.000000e-01 : f32
    %64 = vector.broadcast %cst_50 : f32 to vector<64x8xf32>
    %65 = arith.mulf %64, %63 : vector<64x8xf32>
    %cst_51 = arith.constant 0.707106769 : f32
    %66 = vector.broadcast %cst_51 : f32 to vector<64x8xf32>
    %67 = arith.mulf %63, %66 : vector<64x8xf32>
    %68 = math.erf %67 : vector<64x8xf32>
    %cst_52 = arith.constant 1.000000e+00 : f32
    %69 = vector.broadcast %cst_52 : f32 to vector<64x8xf32>
    %70 = arith.addf %69, %68 : vector<64x8xf32>
    %71 = arith.mulf %65, %70 : vector<64x8xf32>
    %72 = vector.shape_cast %71 : vector<64x8xf32> to vector<8x8x8xf32>
    %73 = arith.truncf %72 : vector<8x8x8xf32> to vector<8x8x8xbf16>
    %74 = vector.shape_cast %73 : vector<8x8x8xbf16> to vector<8x8x1x8xbf16>
    %75 = vector.shape_cast %74 : vector<8x8x1x8xbf16> to vector<8x8x1x8xbf16>
    %76 = vector.broadcast %75 : vector<8x8x1x8xbf16> to vector<8x8x2x8xbf16>
    %77 = vector.shape_cast %76 : vector<8x8x2x8xbf16> to vector<8x16x8xbf16>
    %78 = vector.shape_cast %77 : vector<8x16x8xbf16> to vector<8x1x16x8xbf16>
    %79 = vector.shape_cast %78 : vector<8x1x16x8xbf16> to vector<8x1x16x8xbf16>
    %80 = vector.broadcast %79 : vector<8x1x16x8xbf16> to vector<8x2x16x8xbf16>
    %81 = vector.shape_cast %80 : vector<8x2x16x8xbf16> to vector<16x16x8xbf16>
    %c0_53 = arith.constant 0 : index
    %c0_54 = arith.constant 0 : index
    %c0_55 = arith.constant 0 : index
    %c0_56 = arith.constant 0 : index
    %82 = vector.load %arg4[%c0_53, %c0_54, %c0_55, %c0_56] : memref<1x16x16x8xbf16, #tpu.memory_space<vmem>>, vector<1x16x16x8xbf16>
    %83 = vector.shape_cast %82 : vector<1x16x16x8xbf16> to vector<16x16x8xbf16>
    %84 = vector.shape_cast %81 : vector<16x16x8xbf16> to vector<1x16x16x8xbf16>
    tpu.vector_store %arg4[%c0_53, %c0_54, %c0_55, %c0_56], %84 {strides = array<i32>} : memref<1x16x16x8xbf16, #tpu.memory_space<vmem>>, vector<1x16x16x8xbf16>,
    return
  }
  func.func @transform_0(%arg0: i32) -> (i32, i32, i32, i32) {
    %c0_i32 = arith.constant 0 : i32
    %c0_i32_0 = arith.constant 0 : i32
    %c0_i32_1 = arith.constant 0 : i32
    %c0_i32_2 = arith.constant 0 : i32
    return %arg0, %c0_i32, %c0_i32_0, %c0_i32_1 : i32, i32, i32, i32
  }
  func.func @transform_1(%arg0: i32) -> (i32, i32, i32, i32) {
    %c0_i32 = arith.constant 0 : i32
    %c0_i32_0 = arith.constant 0 : i32
    %c0_i32_1 = arith.constant 0 : i32
    %c0_i32_2 = arith.constant 0 : i32
    %c0_i32_3 = arith.constant 0 : i32
    return %c0_i32, %c0_i32_0, %c0_i32_1, %c0_i32_2 : i32, i32, i32, i32
  }
  func.func @transform_2(%arg0: i32) -> (i32, i32) {
    %c0_i32 = arith.constant 0 : i32
    %c0_i32_0 = arith.constant 0 : i32
    %c0_i32_1 = arith.constant 0 : i32
    return %c0_i32, %c0_i32_0 : i32, i32
  }
  func.func @transform_3(%arg0: i32) -> (i32, i32, i32, i32) {
    %c0_i32 = arith.constant 0 : i32
    %c0_i32_0 = arith.constant 0 : i32
    %c0_i32_1 = arith.constant 0 : i32
    %c0_i32_2 = arith.constant 0 : i32
    return %arg0, %c0_i32, %c0_i32_0, %c0_i32_1 : i32, i32, i32, i32
  }
}

module attributes {stable_mosaic.version = 11 : i64} {
  func.func @_final_conv_kernel(%arg0: i32, %arg1: memref<1x16x16x8xbf16, #tpu.memory_space<vmem>>, %arg2: memref<3x3x1x8xbf16, #tpu.memory_space<vmem>>, %arg3: memref<1xf32, #tpu.memory_space<smem>>, %arg4: memref<1x1x16x16xf32, #tpu.memory_space<vmem>>) attributes {dimension_semantics = [#tpu.dimension_semantics<parallel>], iteration_bounds = array<i64: 2>, scalar_prefetch = 0 : i64, scratch_operands = 0 : i64, tpu.core_type = #tpu.core_type<tc>, window_params = [{transform_indices = @transform_0, window_bounds = array<i64: 1, 16, 16, 8>}, {pipeline_mode = #tpu.pipeline_mode<synchronous>, transform_indices = @transform_1, window_bounds = array<i64: 3, 3, 1, 8>}, {transform_indices = @transform_2, window_bounds = array<i64: 1>}, {transform_indices = @transform_3, window_bounds = array<i64: 1, 1, 16, 16>}]} {
    %c0 = arith.constant 0 : index
    %c0_0 = arith.constant 0 : index
    %c0_1 = arith.constant 0 : index
    %c0_2 = arith.constant 0 : index
    %0 = vector.load %arg1[%c0, %c0_0, %c0_1, %c0_2] : memref<1x16x16x8xbf16, #tpu.memory_space<vmem>>, vector<1x16x16x8xbf16>
    %1 = vector.shape_cast %0 : vector<1x16x16x8xbf16> to vector<16x16x8xbf16>
    %cst = arith.constant 0.000000e+00 : bf16
    %2 = vector.broadcast %cst : bf16 to vector<1x16x8xbf16>
    %cst_3 = arith.constant 0.000000e+00 : bf16
    %3 = vector.broadcast %cst_3 : bf16 to vector<18x1x8xbf16>
    %4 = tpu.concatenate %2, %1, %2 in 0 : vector<1x16x8xbf16>, vector<16x16x8xbf16>, vector<1x16x8xbf16> -> vector<18x16x8xbf16>
    %5 = tpu.concatenate %3, %4, %3 in 1 : vector<18x1x8xbf16>, vector<18x16x8xbf16>, vector<18x1x8xbf16> -> vector<18x18x8xbf16>
    %6 = arith.extf %5 : vector<18x18x8xbf16> to vector<18x18x8xf32>
    %cst_4 = arith.constant 0.000000e+00 : f32
    %7 = vector.broadcast %cst_4 : f32 to vector<16x16xf32>
    %c0_5 = arith.constant 0 : index
    %c0_6 = arith.constant 0 : index
    %c0_7 = arith.constant 0 : index
    %c0_8 = arith.constant 0 : index
    %8 = vector.load %arg2[%c0_5, %c0_6, %c0_7, %c0_8] : memref<3x3x1x8xbf16, #tpu.memory_space<vmem>>, vector<1x1x1x8xbf16>
    %9 = vector.shape_cast %8 : vector<1x1x1x8xbf16> to vector<1x8xbf16>
    %10 = arith.extf %9 : vector<1x8xbf16> to vector<1x8xf32>
    %11 = vector.shape_cast %10 : vector<1x8xf32> to vector<1x1x8xf32>
    %12 = vector.extract_strided_slice %6 {offsets = [0, 0, 0], sizes = [16, 16, 8], strides = [1, 1, 1]} : vector<18x18x8xf32> to vector<16x16x8xf32>
    %13 = vector.broadcast %11 : vector<1x1x8xf32> to vector<16x16x8xf32>
    %14 = arith.mulf %12, %13 : vector<16x16x8xf32>
    %cst_9 = arith.constant dense<0.000000e+00> : vector<16x16xf32>
    %15 = vector.multi_reduction <add>, %14, %cst_9 [2] : vector<16x16x8xf32> to vector<16x16xf32>
    %16 = arith.addf %7, %15 : vector<16x16xf32>
    %c0_10 = arith.constant 0 : index
    %c1 = arith.constant 1 : index
    %c0_11 = arith.constant 0 : index
    %c0_12 = arith.constant 0 : index
    %17 = vector.load %arg2[%c0_10, %c1, %c0_11, %c0_12] : memref<3x3x1x8xbf16, #tpu.memory_space<vmem>>, vector<1x1x1x8xbf16>
    %18 = vector.shape_cast %17 : vector<1x1x1x8xbf16> to vector<1x8xbf16>
    %19 = arith.extf %18 : vector<1x8xbf16> to vector<1x8xf32>
    %20 = vector.shape_cast %19 : vector<1x8xf32> to vector<1x1x8xf32>
    %21 = vector.extract_strided_slice %6 {offsets = [0, 1, 0], sizes = [16, 16, 8], strides = [1, 1, 1]} : vector<18x18x8xf32> to vector<16x16x8xf32>
    %22 = vector.broadcast %20 : vector<1x1x8xf32> to vector<16x16x8xf32>
    %23 = arith.mulf %21, %22 : vector<16x16x8xf32>
    %cst_13 = arith.constant dense<0.000000e+00> : vector<16x16xf32>
    %24 = vector.multi_reduction <add>, %23, %cst_13 [2] : vector<16x16x8xf32> to vector<16x16xf32>
    %25 = arith.addf %16, %24 : vector<16x16xf32>
    %c0_14 = arith.constant 0 : index
    %c2 = arith.constant 2 : index
    %c0_15 = arith.constant 0 : index
    %c0_16 = arith.constant 0 : index
    %26 = vector.load %arg2[%c0_14, %c2, %c0_15, %c0_16] : memref<3x3x1x8xbf16, #tpu.memory_space<vmem>>, vector<1x1x1x8xbf16>
    %27 = vector.shape_cast %26 : vector<1x1x1x8xbf16> to vector<1x8xbf16>
    %28 = arith.extf %27 : vector<1x8xbf16> to vector<1x8xf32>
    %29 = vector.shape_cast %28 : vector<1x8xf32> to vector<1x1x8xf32>
    %30 = vector.extract_strided_slice %6 {offsets = [0, 2, 0], sizes = [16, 16, 8], strides = [1, 1, 1]} : vector<18x18x8xf32> to vector<16x16x8xf32>
    %31 = vector.broadcast %29 : vector<1x1x8xf32> to vector<16x16x8xf32>
    %32 = arith.mulf %30, %31 : vector<16x16x8xf32>
    %cst_17 = arith.constant dense<0.000000e+00> : vector<16x16xf32>
    %33 = vector.multi_reduction <add>, %32, %cst_17 [2] : vector<16x16x8xf32> to vector<16x16xf32>
    %34 = arith.addf %25, %33 : vector<16x16xf32>
    %c1_18 = arith.constant 1 : index
    %c0_19 = arith.constant 0 : index
    %c0_20 = arith.constant 0 : index
    %c0_21 = arith.constant 0 : index
    %35 = vector.load %arg2[%c1_18, %c0_19, %c0_20, %c0_21] : memref<3x3x1x8xbf16, #tpu.memory_space<vmem>>, vector<1x1x1x8xbf16>
    %36 = vector.shape_cast %35 : vector<1x1x1x8xbf16> to vector<1x8xbf16>
    %37 = arith.extf %36 : vector<1x8xbf16> to vector<1x8xf32>
    %38 = vector.shape_cast %37 : vector<1x8xf32> to vector<1x1x8xf32>
    %39 = vector.extract_strided_slice %6 {offsets = [1, 0, 0], sizes = [16, 16, 8], strides = [1, 1, 1]} : vector<18x18x8xf32> to vector<16x16x8xf32>
    %40 = vector.broadcast %38 : vector<1x1x8xf32> to vector<16x16x8xf32>
    %41 = arith.mulf %39, %40 : vector<16x16x8xf32>
    %cst_22 = arith.constant dense<0.000000e+00> : vector<16x16xf32>
    %42 = vector.multi_reduction <add>, %41, %cst_22 [2] : vector<16x16x8xf32> to vector<16x16xf32>
    %43 = arith.addf %34, %42 : vector<16x16xf32>
    %c1_23 = arith.constant 1 : index
    %c1_24 = arith.constant 1 : index
    %c0_25 = arith.constant 0 : index
    %c0_26 = arith.constant 0 : index
    %44 = vector.load %arg2[%c1_23, %c1_24, %c0_25, %c0_26] : memref<3x3x1x8xbf16, #tpu.memory_space<vmem>>, vector<1x1x1x8xbf16>
    %45 = vector.shape_cast %44 : vector<1x1x1x8xbf16> to vector<1x8xbf16>
    %46 = arith.extf %45 : vector<1x8xbf16> to vector<1x8xf32>
    %47 = vector.shape_cast %46 : vector<1x8xf32> to vector<1x1x8xf32>
    %48 = vector.extract_strided_slice %6 {offsets = [1, 1, 0], sizes = [16, 16, 8], strides = [1, 1, 1]} : vector<18x18x8xf32> to vector<16x16x8xf32>
    %49 = vector.broadcast %47 : vector<1x1x8xf32> to vector<16x16x8xf32>
    %50 = arith.mulf %48, %49 : vector<16x16x8xf32>
    %cst_27 = arith.constant dense<0.000000e+00> : vector<16x16xf32>
    %51 = vector.multi_reduction <add>, %50, %cst_27 [2] : vector<16x16x8xf32> to vector<16x16xf32>
    %52 = arith.addf %43, %51 : vector<16x16xf32>
    %c1_28 = arith.constant 1 : index
    %c2_29 = arith.constant 2 : index
    %c0_30 = arith.constant 0 : index
    %c0_31 = arith.constant 0 : index
    %53 = vector.load %arg2[%c1_28, %c2_29, %c0_30, %c0_31] : memref<3x3x1x8xbf16, #tpu.memory_space<vmem>>, vector<1x1x1x8xbf16>
    %54 = vector.shape_cast %53 : vector<1x1x1x8xbf16> to vector<1x8xbf16>
    %55 = arith.extf %54 : vector<1x8xbf16> to vector<1x8xf32>
    %56 = vector.shape_cast %55 : vector<1x8xf32> to vector<1x1x8xf32>
    %57 = vector.extract_strided_slice %6 {offsets = [1, 2, 0], sizes = [16, 16, 8], strides = [1, 1, 1]} : vector<18x18x8xf32> to vector<16x16x8xf32>
    %58 = vector.broadcast %56 : vector<1x1x8xf32> to vector<16x16x8xf32>
    %59 = arith.mulf %57, %58 : vector<16x16x8xf32>
    %cst_32 = arith.constant dense<0.000000e+00> : vector<16x16xf32>
    %60 = vector.multi_reduction <add>, %59, %cst_32 [2] : vector<16x16x8xf32> to vector<16x16xf32>
    %61 = arith.addf %52, %60 : vector<16x16xf32>
    %c2_33 = arith.constant 2 : index
    %c0_34 = arith.constant 0 : index
    %c0_35 = arith.constant 0 : index
    %c0_36 = arith.constant 0 : index
    %62 = vector.load %arg2[%c2_33, %c0_34, %c0_35, %c0_36] : memref<3x3x1x8xbf16, #tpu.memory_space<vmem>>, vector<1x1x1x8xbf16>
    %63 = vector.shape_cast %62 : vector<1x1x1x8xbf16> to vector<1x8xbf16>
    %64 = arith.extf %63 : vector<1x8xbf16> to vector<1x8xf32>
    %65 = vector.shape_cast %64 : vector<1x8xf32> to vector<1x1x8xf32>
    %66 = vector.extract_strided_slice %6 {offsets = [2, 0, 0], sizes = [16, 16, 8], strides = [1, 1, 1]} : vector<18x18x8xf32> to vector<16x16x8xf32>
    %67 = vector.broadcast %65 : vector<1x1x8xf32> to vector<16x16x8xf32>
    %68 = arith.mulf %66, %67 : vector<16x16x8xf32>
    %cst_37 = arith.constant dense<0.000000e+00> : vector<16x16xf32>
    %69 = vector.multi_reduction <add>, %68, %cst_37 [2] : vector<16x16x8xf32> to vector<16x16xf32>
    %70 = arith.addf %61, %69 : vector<16x16xf32>
    %c2_38 = arith.constant 2 : index
    %c1_39 = arith.constant 1 : index
    %c0_40 = arith.constant 0 : index
    %c0_41 = arith.constant 0 : index
    %71 = vector.load %arg2[%c2_38, %c1_39, %c0_40, %c0_41] : memref<3x3x1x8xbf16, #tpu.memory_space<vmem>>, vector<1x1x1x8xbf16>
    %72 = vector.shape_cast %71 : vector<1x1x1x8xbf16> to vector<1x8xbf16>
    %73 = arith.extf %72 : vector<1x8xbf16> to vector<1x8xf32>
    %74 = vector.shape_cast %73 : vector<1x8xf32> to vector<1x1x8xf32>
    %75 = vector.extract_strided_slice %6 {offsets = [2, 1, 0], sizes = [16, 16, 8], strides = [1, 1, 1]} : vector<18x18x8xf32> to vector<16x16x8xf32>
    %76 = vector.broadcast %74 : vector<1x1x8xf32> to vector<16x16x8xf32>
    %77 = arith.mulf %75, %76 : vector<16x16x8xf32>
    %cst_42 = arith.constant dense<0.000000e+00> : vector<16x16xf32>
    %78 = vector.multi_reduction <add>, %77, %cst_42 [2] : vector<16x16x8xf32> to vector<16x16xf32>
    %79 = arith.addf %70, %78 : vector<16x16xf32>
    %c2_43 = arith.constant 2 : index
    %c2_44 = arith.constant 2 : index
    %c0_45 = arith.constant 0 : index
    %c0_46 = arith.constant 0 : index
    %80 = vector.load %arg2[%c2_43, %c2_44, %c0_45, %c0_46] : memref<3x3x1x8xbf16, #tpu.memory_space<vmem>>, vector<1x1x1x8xbf16>
    %81 = vector.shape_cast %80 : vector<1x1x1x8xbf16> to vector<1x8xbf16>
    %82 = arith.extf %81 : vector<1x8xbf16> to vector<1x8xf32>
    %83 = vector.shape_cast %82 : vector<1x8xf32> to vector<1x1x8xf32>
    %84 = vector.extract_strided_slice %6 {offsets = [2, 2, 0], sizes = [16, 16, 8], strides = [1, 1, 1]} : vector<18x18x8xf32> to vector<16x16x8xf32>
    %85 = vector.broadcast %83 : vector<1x1x8xf32> to vector<16x16x8xf32>
    %86 = arith.mulf %84, %85 : vector<16x16x8xf32>
    %cst_47 = arith.constant dense<0.000000e+00> : vector<16x16xf32>
    %87 = vector.multi_reduction <add>, %86, %cst_47 [2] : vector<16x16x8xf32> to vector<16x16xf32>
    %88 = arith.addf %79, %87 : vector<16x16xf32>
    %c0_48 = arith.constant 0 : index
    %89 = memref.load %arg3[%c0_48] : memref<1xf32, #tpu.memory_space<smem>>
    %90 = vector.broadcast %89 : f32 to vector<16x16xf32>
    %91 = arith.addf %88, %90 : vector<16x16xf32>
    %92 = vector.shape_cast %91 : vector<16x16xf32> to vector<1x16x16xf32>
    %c0_49 = arith.constant 0 : index
    %c0_50 = arith.constant 0 : index
    %c0_51 = arith.constant 0 : index
    %c0_52 = arith.constant 0 : index
    %93 = vector.load %arg4[%c0_49, %c0_50, %c0_51, %c0_52] : memref<1x1x16x16xf32, #tpu.memory_space<vmem>>, vector<1x1x16x16xf32>
    %94 = vector.shape_cast %93 : vector<1x1x16x16xf32> to vector<1x16x16xf32>
    %95 = vector.shape_cast %92 : vector<1x16x16xf32> to vector<1x1x16x16xf32>
    tpu.vector_store %arg4[%c0_49, %c0_50, %c0_51, %c0_52], %95 {strides = array<i32>} : memref<1x1x16x16xf32, #tpu.memory_space<vmem>>, vector<1x1x16x16xf32>,
    return
  }
  func.func @transform_0(%arg0: i32) -> (i32, i32, i32, i32) {
    %c0_i32 = arith.constant 0 : i32
    %c0_i32_0 = arith.constant 0 : i32
    %c0_i32_1 = arith.constant 0 : i32
    %c0_i32_2 = arith.constant 0 : i32
    return %arg0, %c0_i32, %c0_i32_0, %c0_i32_1 : i32, i32, i32, i32
  }
  func.func @transform_1(%arg0: i32) -> (i32, i32, i32, i32) {
    %c0_i32 = arith.constant 0 : i32
    %c0_i32_0 = arith.constant 0 : i32
    %c0_i32_1 = arith.constant 0 : i32
    %c0_i32_2 = arith.constant 0 : i32
    %c0_i32_3 = arith.constant 0 : i32
    return %c0_i32, %c0_i32_0, %c0_i32_1, %c0_i32_2 : i32, i32, i32, i32
  }
  func.func @transform_2(%arg0: i32) -> i32 {
    %c0_i32 = arith.constant 0 : i32
    %c0_i32_0 = arith.constant 0 : i32
    return %c0_i32 : i32
  }
  func.func @transform_3(%arg0: i32) -> (i32, i32, i32, i32) {
    %c0_i32 = arith.constant 0 : i32
    %c0_i32_0 = arith.constant 0 : i32
    %c0_i32_1 = arith.constant 0 : i32
    %c0_i32_2 = arith.constant 0 : i32
    return %arg0, %c0_i32, %c0_i32_0, %c0_i32_1 : i32, i32, i32, i32
  }
}

</mosaic_0001>

<llo_original>
// kernel: decoder_forward.3
$region0: #{decoder_forward.3}
  #allocation0 [shape = 'u32[]', space=smem, size = 0x4, offset = 0x4, fixed_abs, tag = 'smem constant byte address 0x4 - core index']
  #allocation1 [shape = 'u32[144,128]{1,0:T(1,128)}', space=vmem, size = 0x12000, scoped, tag = 'internal scratch']
  %s0 = inlined_call_operand.hbm [shape: bf16[2,4,4,32], index: 0, kind: input, shape index: {}]
  %s1 = inlined_call_operand.hbm [shape: bf16[3,3,32,16], index: 1, kind: input, shape index: {}]
  %s2 = inlined_call_operand.hbm [shape: f32[1,16], index: 2, kind: input, shape index: {}]
  %s3 = inlined_call_operand.hbm [shape: bf16[2,8,8,16], index: 3, kind: output, shape index: {}]
  %s4 = sld [smem:[#allocation0]]
  $region57: #{decoder_forward.3} parent=0
    _
  %s6 = ssub.s32 1, %s4
  %s7 = scalar_select 0, %s6, %s4
  $region1: #{decoder_forward.3} parent=0
    #allocation2 [shape = 'u8[8192]{0}', space=vmem, size = 0x2000, scoped, tag = 'input window, operand 0']
    #allocation3 [shape = 's32[2]{0}', space=sflag, size = 0x8, scoped, tag = 'scoped memory for decoder_forward.3']
    #allocation4 [shape = 's32[2]{0}', space=sflag, size = 0x8, scoped, tag = 'scoped memory for decoder_forward.3']
    #allocation5 [shape = 'u8[73728]{0}', space=vmem, size = 0x12000, scoped, tag = 'input window, operand 1, single buffered']
    #allocation6 [shape = 's32[1]{0}', space=sflag, size = 0x4, scoped, tag = 'scoped memory for decoder_forward.3']
    #allocation7 [shape = 'u8[512]{0}', space=vmem, size = 0x400, scoped, tag = 'input window, operand 2, single buffered']
    #allocation8 [shape = 'u8[32768]{0}', space=vmem, size = 0x8000, scoped, tag = 'output window, operand 0']
    %8 = vsyncpa [#allocation3], 0
    %s9 = scalar_lea.sflag [#allocation3], 1
    %10 = vsyncpa %s9, 0
    %11 = vsyncpa [#allocation6], 0
    %12 = vsyncpa [#allocation4], 0
    %s13 = scalar_lea.sflag [#allocation4], 1
    %14 = vsyncpa %s13, 0
    loop: start=0, step=1, limit=4
    $region2: #{decoder_forward.3} parent=1 // loop_pre_header
      _
    $region3: #{decoder_forward.3} parent=1 // loop_header
      %s16 = sphi 0, %s20
      %p17 = scmp.ge.s32.totalorder %s16, 4
      %s26 = sphi 0, %s28
      %s29 = sphi 0, %s26
      %s30 = sphi 0, %s29
      %s46 = sphi 0, %s30
      %s50 = sphi 0, %s50
      %s52 = sphi 0, %s50
      %s53 = sphi 0, %s52
      %s67 = sphi 0, %s53
      %s71 = sphi 0, %s71
      %s73 = sphi 0, %s71
      %s74 = sphi 0, %s73
      %s88 = sphi 0, %s74
      %s94 = sphi 0, %s96
      %s97 = sphi 0, %s94
      %s98 = sphi 0, %s97
      %s114 = sphi 0, %s98
    $region4: #{decoder_forward.3} parent=1 // loop_header_branch
      %19 = sbr.rel (%p17) target = $region8
    $region5: #{decoder_forward.3} parent=1 // loop_body
      %s21 = ssub.s32 %s16, 1
      %s22 = ssub.s32 %s16, 2
      %s23 = sadd.s32 %s16, 1
      %s24 = ssub.s32 %s16, %s23
      %p25 = scmp.eq.s32.totalorder %s24, 0
      %s27 = sadd.s32 %s26, 1
      %s28 = scalar_select %p25, %s26, %s27
      %p31 = pneg %p25
      %p32 = scmp.eq.s32.totalorder %s16, 1
      %p33 = por %p31, %p32
      %p34 = scmp.ne.s32.totalorder %s26, %s29
      %p35 = scmp.eq.s32.totalorder %s16, 0
      %p36 = por %p34, %p35
      %p37 = scmp.ne.s32.totalorder %s26, %s29
      %p38 = scmp.eq.s32.totalorder %s21, 1
      %p39 = por %p37, %p38
      %p40 = scmp.ne.s32.totalorder %s29, %s30
      %p41 = scmp.eq.s32.totalorder %s21, 0
      %p42 = por %p40, %p41
      %p43 = scmp.ne.s32.totalorder %s29, %s30
      %p44 = scmp.eq.s32.totalorder %s22, 1
      %p45 = por %p43, %p44
      %p47 = scmp.ne.s32.totalorder %s30, %s46
      %p48 = scmp.eq.s32.totalorder %s22, 0
      %p49 = por %p47, %p48
      %s51 = sadd.s32 %s50, 1
      %p54 = scmp.eq.s32.totalorder %s16, 1
      %p55 = scmp.ne.s32.totalorder %s50, %s52
      %p56 = scmp.eq.s32.totalorder %s16, 0
      %p57 = por %p55, %p56
      %p58 = scmp.ne.s32.totalorder %s50, %s52
      %p59 = scmp.eq.s32.totalorder %s21, 1
      %p60 = por %p58, %p59
      %p61 = scmp.ne.s32.totalorder %s52, %s53
      %p62 = scmp.eq.s32.totalorder %s21, 0
      %p63 = por %p61, %p62
      %p64 = scmp.ne.s32.totalorder %s52, %s53
      %p65 = scmp.eq.s32.totalorder %s22, 1
      %p66 = por %p64, %p65
      %p68 = scmp.ne.s32.totalorder %s53, %s67
      %p69 = scmp.eq.s32.totalorder %s22, 0
      %p70 = por %p68, %p69
      %s72 = sadd.s32 %s71, 1
      %p75 = scmp.eq.s32.totalorder %s16, 1
      %p76 = scmp.ne.s32.totalorder %s71, %s73
      %p77 = scmp.eq.s32.totalorder %s16, 0
      %p78 = por %p76, %p77
      %p79 = scmp.ne.s32.totalorder %s71, %s73
      %p80 = scmp.eq.s32.totalorder %s21, 1
      %p81 = por %p79, %p80
      %p82 = scmp.ne.s32.totalorder %s73, %s74
      %p83 = scmp.eq.s32.totalorder %s21, 0
      %p84 = por %p82, %p83
      %p85 = scmp.ne.s32.totalorder %s73, %s74
      %p86 = scmp.eq.s32.totalorder %s22, 1
      %p87 = por %p85, %p86
      %p89 = scmp.ne.s32.totalorder %s74, %s88
      %p90 = scmp.eq.s32.totalorder %s22, 0
      %p91 = por %p89, %p90
      %s92 = ssub.s32 %s16, %s23
      %p93 = scmp.eq.s32.totalorder %s92, 0
      %s95 = sadd.s32 %s94, 1
      %s96 = scalar_select %p93, %s94, %s95
      %p99 = pneg %p93
      %p100 = scmp.eq.s32.totalorder %s16, 1
      %p101 = por %p99, %p100
      %p102 = scmp.ne.s32.totalorder %s94, %s97
      %p103 = scmp.eq.s32.totalorder %s16, 0
      %p104 = por %p102, %p103
      %p105 = scmp.ne.s32.totalorder %s94, %s97
      %p106 = scmp.eq.s32.totalorder %s21, 1
      %p107 = por %p105, %p106
      %p108 = scmp.ne.s32.totalorder %s97, %s98
      %p109 = scmp.eq.s32.totalorder %s21, 0
      %p110 = por %p108, %p109
      %p111 = scmp.ne.s32.totalorder %s97, %s98
      %p112 = scmp.eq.s32.totalorder %s22, 1
      %p113 = por %p111, %p112
      %p115 = scmp.ne.s32.totalorder %s98, %s114
      %p116 = scmp.eq.s32.totalorder %s22, 0
      %p117 = por %p115, %p116
      %p118 = scmp.le.s32.totalorder 1, %s16
      %p119 = scmp.lt.s32.totalorder %s16, 3
      %p120 = pnand %p118, %p119
      %p121 = pneg %p120
      // Predicated region
      $region9: #{decoder_forward.3} parent=5 // pred_check
        _
      $region10: #{decoder_forward.3} parent=5 // pred_check_branch
        %123 = sbr.rel (%p120) target = $region12
      $region11: #{decoder_forward.3} parent=5 // pred_region
        %s124 = ssub.s32 %s16, 1
        // Predicated region
        $region13: #{decoder_forward.3} parent=11 // pred_check
          %p125 = pneg %p63
        $region14: #{decoder_forward.3} parent=11 // pred_check_branch
          %127 = sbr.rel (%p125) target = $region16
        $region15: #{decoder_forward.3} parent=11 // pred_region
          %s129 = ssub.s32 2304, 2304
          %130 = vsyncadd [#allocation6], %s129
          %s131 = sshll.u32 [#allocation5], 4
          %s132 = int_to_ptr.vmem [resolvable:$true] %s131
          %137 = dma.hbm_to_vmem [thread:$0]  %s1, 2304, %s132, [#allocation6], 64, 64, 4
        $region16: #{decoder_forward.3} parent=11 // pred_fallthru
          _
        // Predicated region
        $region17: #{decoder_forward.3} parent=11 // pred_check
          %p138 = pneg %p84
        $region18: #{decoder_forward.3} parent=11 // pred_check_branch
          %140 = sbr.rel (%p138) target = $region20
        $region19: #{decoder_forward.3} parent=11 // pred_region
          %s142 = ssub.s32 16, 16
          %143 = vsyncadd [#allocation6], %s142
          %s145 = sshll.u32 [#allocation7], 4
          %s146 = int_to_ptr.vmem [resolvable:$true] %s145
          %148 = dma.hbm_to_vmem [thread:$0]  %s2, 16, %s146, [#allocation6]
        $region20: #{decoder_forward.3} parent=11 // pred_fallthru
          _
      $region12: #{decoder_forward.3} parent=5 // pred_fallthru
        _
      %p149 = scmp.lt.s32.totalorder %s16, 2
      // Predicated region
      $region21: #{decoder_forward.3} parent=5 // pred_check
        %p150 = pneg %p149
      $region22: #{decoder_forward.3} parent=5 // pred_check_branch
        %152 = sbr.rel (%p150) target = $region24
      $region23: #{decoder_forward.3} parent=5 // pred_region
        // Predicated region
        $region25: #{decoder_forward.3} parent=23 // pred_check
          %p153 = pneg %p36
        $region26: #{decoder_forward.3} parent=23 // pred_check_branch
          %155 = sbr.rel (%p153) target = $region28
        $region27: #{decoder_forward.3} parent=23 // pred_region
          %s156 = sand.u32 %s26, 1
          %s157 = scalar_lea.sflag [#allocation3], %s156
          %s158 = sand.u32 %s26, 1
          %s159 = smul.addr %s158, 8
          %s160 = scalar_lea.vmem [#allocation2], %s159
          %s162 = ssub.s32 128, 128
          %163 = vsyncadd %s157, %s162
          %s164 = smul.addr %s16, 4
          %s165 = smul.addr %s164, 32
          %s166 = scalar_lea.hbm %s0, %s165
          %s167 = sshll.u32 %s160, 4
          %s168 = int_to_ptr.vmem [resolvable:$true] %s167
          %173 = dma.hbm_to_vmem [thread:$0]  %s166, 128, %s168, %s157, 32, 32, 2
        $region28: #{decoder_forward.3} parent=23 // pred_fallthru
          _
      $region24: #{decoder_forward.3} parent=5 // pred_fallthru
        _
      %p174 = scmp.le.s32.totalorder 1, %s16
      %p175 = scmp.lt.s32.totalorder %s16, 3
      %p176 = pnand %p174, %p175
      %p177 = pneg %p176
      // Predicated region
      $region29: #{decoder_forward.3} parent=5 // pred_check
        _
      $region30: #{decoder_forward.3} parent=5 // pred_check_branch
        %179 = sbr.rel (%p176) target = $region32
      $region31: #{decoder_forward.3} parent=5 // pred_region
        %s180 = ssub.s32 %s16, 1
        %s181 = sand.u32 %s29, 1
        %s182 = scalar_lea.sflag [#allocation3], %s181
        %s183 = sand.u32 %s29, 1
        %s184 = smul.addr %s183, 8
        %s185 = scalar_lea.vmem [#allocation2], %s184
        // Predicated region
        $region33: #{decoder_forward.3} parent=31 // pred_check
          %p186 = pneg %p42
        $region34: #{decoder_forward.3} parent=31 // pred_check_branch
          %188 = sbr.rel (%p186) target = $region36
        $region35: #{decoder_forward.3} parent=31 // pred_region
          %189 = dma.done %s182, 128
        $region36: #{decoder_forward.3} parent=31 // pred_fallthru
          _
        // Predicated region
        $region37: #{decoder_forward.3} parent=31 // pred_check
          %p190 = pneg %p63
        $region38: #{decoder_forward.3} parent=31 // pred_check_branch
          %192 = sbr.rel (%p190) target = $region40
        $region39: #{decoder_forward.3} parent=31 // pred_region
          %193 = dma.done [#allocation6], 2304
        $region40: #{decoder_forward.3} parent=31 // pred_fallthru
          _
        // Predicated region
        $region41: #{decoder_forward.3} parent=31 // pred_check
          %p194 = pneg %p84
        $region42: #{decoder_forward.3} parent=31 // pred_check_branch
          %196 = sbr.rel (%p194) target = $region44
        $region43: #{decoder_forward.3} parent=31 // pred_region
          %197 = dma.done [#allocation6], 16
        $region44: #{decoder_forward.3} parent=31 // pred_fallthru
          _
        %s198 = sand.u32 %s29, 1
        %s199 = scalar_lea.sflag [#allocation3], %s198
        %s200 = sand.u32 %s29, 1
        %s201 = smul.addr %s200, 8
        %s202 = scalar_lea.vmem [#allocation2], %s201
        %p203 = pneg %p42
        %p204 = pneg %p39
        %p205 = pneg %p63
        %p206 = pneg %p60
        %p207 = pneg %p84
        %p208 = pneg %p81
        %p209 = pneg %p110
        %p210 = pneg %p107
        %s211 = sand.u32 %s97, 1
        %s212 = scalar_lea.sflag [#allocation4], %s211
        %s213 = sand.u32 %s97, 1
        %s214 = smul.addr %s213, 32
        %s215 = scalar_lea.vmem [#allocation8], %s214
        %v217 = vld [vmem:[%s185] sm:$0x3]
        %v218 = vld [vmem:[%s185 + $0x2] sm:$0x3]
        %v219 = vld [vmem:[%s185 + $0x4] sm:$0x3]
        %v220 = vld [vmem:[%s185 + $0x6] sm:$0x3]
        %v222 = vshrl.u32 0, 16
        %v224 = vrot.slane %v222, 7
        %v225 = vshll.u32 0, 16
        %v227 = vor.u32 %v224, %v225
        %v229 = vshrl.u32 %v217, 16
        %v231 = vrot.slane %v229, 7
        %v232 = vshll.u32 %v217, 16
        %v234 = vor.u32 %v231, %v232
        %v236 = vshrl.u32 %v218, 16
        %v238 = vrot.slane %v236, 7
        %v239 = vshll.u32 %v218, 16
        %v241 = vor.u32 %v238, %v239
        %v243 = vshrl.u32 %v219, 16
        %v245 = vrot.slane %v243, 7
        %v246 = vshll.u32 %v219, 16
        %v248 = vor.u32 %v245, %v246
        %v250 = vshrl.u32 %v220, 16
        %v252 = vrot.slane %v250, 7
        %v253 = vshll.u32 %v220, 16
        %v255 = vor.u32 %v252, %v253
        %vm261 = vcmask 1040384
        %vm262 = vsmask.f32 256
        %vm263 = vmand %vm261, %vm262
        %v264 = vsel %vm263, 0, %v227
        %v265 = vsel %vm263, 0, %v234
        %v266 = vsel %vm263, 0, %v241
        %v267 = vsel %vm263, 0, %v248
        %v268 = vsel %vm263, 0, %v255
        %vm269 = vcmask 1042432
        %vm270 = vsmask.f32 2304
        %vm271 = vmand %vm269, %vm270
        %v272 = vsel %vm271, %v264, 0
        %v273 = vsel %vm271, %v265, 0
        %v274 = vsel %vm271, %v266, 0
        %v275 = vsel %vm271, %v267, 0
        %v276 = vsel %vm271, %v268, 0
        %v277 = vld [vmem:[#allocation5] sm:$0xf]
        %v278 = vld [vmem:[#allocation5 + $0x4] sm:$0xf]
        %v279 = vld [vmem:[#allocation5 + $0x8] sm:$0xf]
        %v280 = vld [vmem:[#allocation5 + $0xc] sm:$0xf]
        %v286 = vunpack.c.l.s4 1983009808
        %v287 = vunpack.c.0.s8 %v286
        %v288 = vlaneseq
        %v289 = vshrl.u32 %v288, 7
        %v290 = vsub.s32 %v287, %v289
        %v291 = vrot.slane %v272, %v290
        %v292 = vcombine.high %v291, %v291
        %v294 = vunpack.c.l.s4 1983009808
        %v295 = vunpack.c.0.s8 %v294
        %v296 = vlaneseq
        %v297 = vshrl.u32 %v296, 7
        %v298 = vsub.s32 %v295, %v297
        %v299 = vrot.slane %v273, %v298
        %v300 = vcombine.high %v299, %v299
        %v302 = vunpack.c.l.s4 1983009808
        %v303 = vunpack.c.0.s8 %v302
        %v304 = vlaneseq
        %v305 = vshrl.u32 %v304, 7
        %v306 = vsub.s32 %v303, %v305
        %v307 = vrot.slane %v274, %v306
        %v308 = vcombine.high %v307, %v307
        %v310 = vunpack.c.l.s4 1983009808
        %v311 = vunpack.c.0.s8 %v310
        %v312 = vlaneseq
        %v313 = vshrl.u32 %v312, 7
        %v314 = vsub.s32 %v311, %v313
        %v315 = vrot.slane %v275, %v314
        %v316 = vcombine.high %v315, %v315
        %vm317 = vsmask.f32 1280
        %vm318 = vsmask.f32 3336
        %vm319 = vmor %vm317, %vm318
        %vm320 = vsmask.f32 5392
        %vm321 = vmor %vm319, %vm320
        %vm322 = vsmask.f32 7448
        %vm323 = vmor %vm321, %vm322
        %v325 = vshrl.u32 %v291, 16
        %v327 = vrot.slane %v325, 6
        %v328 = vshll.u32 %v291, 16
        %v330 = vrot.slane %v328, 7
        %v331 = vor.u32 %v327, %v330
        %v332 = vrot.slane %v331, 2
        %v334 = vshll.u32 %v292, 16
        %v336 = vrot.slane %v334, 7
        %v337 = vsel %vm323, %v332, %v336
        %v339 = vshrl.u32 %v299, 16
        %v341 = vrot.slane %v339, 6
        %v342 = vshll.u32 %v299, 16
        %v344 = vrot.slane %v342, 7
        %v345 = vor.u32 %v341, %v344
        %v346 = vrot.slane %v345, 2
        %v348 = vshll.u32 %v300, 16
        %v350 = vrot.slane %v348, 7
        %v351 = vsel %vm323, %v346, %v350
        %v353 = vshrl.u32 %v307, 16
        %v355 = vrot.slane %v353, 6
        %v356 = vshll.u32 %v307, 16
        %v358 = vrot.slane %v356, 7
        %v359 = vor.u32 %v355, %v358
        %v360 = vrot.slane %v359, 2
        %v362 = vshll.u32 %v308, 16
        %v364 = vrot.slane %v362, 7
        %v365 = vsel %vm323, %v360, %v364
        %v367 = vshrl.u32 %v315, 16
        %v369 = vrot.slane %v367, 6
        %v370 = vshll.u32 %v315, 16
        %v372 = vrot.slane %v370, 7
        %v373 = vor.u32 %v369, %v372
        %v374 = vrot.slane %v373, 2
        %v376 = vshll.u32 %v316, 16
        %v378 = vrot.slane %v376, 7
        %v379 = vsel %vm323, %v374, %v378
        %s380 = scalar_lea.vmem [#allocation5], 16
        %v381 = vld [vmem:[%s380] sm:$0xf]
        %v382 = vld [vmem:[%s380 + $0x4] sm:$0xf]
        %v383 = vld [vmem:[%s380 + $0x8] sm:$0xf]
        %v384 = vld [vmem:[%s380 + $0xc] sm:$0xf]
        %v385 = vcombine.low %v337, %v351
        %v386 = vcombine.low %v365, %v379
        %v388 = vunpack.c.l.s4 1983009808
        %v389 = vunpack.c.0.s8 %v388
        %v390 = vlaneseq
        %v391 = vshrl.u32 %v390, 7
        %v392 = vsub.s32 %v389, %v391
        %v393 = vrot.slane %v385, %v392
        %v395 = vunpack.c.l.s4 1983009808
        %v396 = vunpack.c.0.s8 %v395
        %v397 = vlaneseq
        %v398 = vshrl.u32 %v397, 7
        %v399 = vsub.s32 %v396, %v398
        %v400 = vrot.slane %v386, %v399
        %v401 = vcombine.low %v393, %v400
        %v406 = vunpack.c.l.b16 %v381
        %v407 = vunpack.c.l.b16 %v382
        %v408 = vunpack.c.l.b16 %v383
        %v409 = vunpack.c.l.b16 %v384
        %v410 = vpack.c.b16 %v407, %v406
        %v411 = vpack.c.b16 %v409, %v408
        %vm414 = vcmask 261120
        %v416 = vsel %vm414, %v401, 0
        %418 = vmatprep.subr.bf16.mxu0 0
        %419 = vmatpush1.bf16.msra.mxu0 %v410
        %420 = vmatprep.subr.bf16.mxu0 0
        %421 = vmatpush1.bf16.msra.mxu0 %v411
        %422 = vmatprep.subr.bf16.mxu0 0
        %423 = vmatpush1.bf16.msra.mxu0 0
        %424 = vmatprep.subr.bf16.mxu0 0
        %425 = vmatpush1.bf16.msra.mxu0 0
        %426 = vmatprep.subr.bf16.mxu0 0
        %427 = vmatpush1.bf16.msra.mxu0 0
        %428 = vmatprep.subr.bf16.mxu0 0
        %429 = vmatpush1.bf16.msra.mxu0 0
        %430 = vmatprep.subr.bf16.mxu0 0
        %431 = vmatpush1.bf16.msra.mxu0 0
        %432 = vmatprep.subr.bf16.mxu0 0
        %433 = vmatpush1.bf16.msra.mxu0 0
        %434 = vmatprep.subr.bf16.mxu0 0
        %435 = vmatpush1.bf16.msra.mxu0 0
        %436 = vmatprep.subr.bf16.mxu0 0
        %437 = vmatpush1.bf16.msra.mxu0 0
        %438 = vmatprep.subr.bf16.mxu0 0
        %439 = vmatpush1.bf16.msra.mxu0 0
        %440 = vmatprep.subr.bf16.mxu0 0
        %441 = vmatpush1.bf16.msra.mxu0 0
        %442 = vmatprep.subr.bf16.mxu0 0
        %443 = vmatpush1.bf16.msra.mxu0 0
        %444 = vmatprep.subr.bf16.mxu0 0
        %445 = vmatpush1.bf16.msra.mxu0 0
        %446 = vmatprep.subr.bf16.mxu0 0
        %447 = vmatpush1.bf16.msra.mxu0 0
        %448 = vmatprep.subr.bf16.mxu0 0
        %449 = vmatpush1.bf16.msra.mxu0 0
        %450 = vmatprep.mubr.bf16.mxu0 0
        %451 = vmatmul.mubr.bf16.gmra.mrb[0].mxu0 %v416
        %v452 = vpop.f32.mrb[0].mxu0
        %v453 = vadd.f32 0.0, %v452
        %v454 = vpop.f32.mrb[0].mxu0
        %v455 = vpop.f32.mrb[0].mxu0
        %v456 = vadd.f32 0.0, %v455
        %v457 = vpop.f32.mrb[0].mxu0
        %458 = vdwg.mxu0
        %v459 = vcombine.low %v272, %v273
        %v460 = vcombine.low %v274, %v275
        %v462 = vunpack.c.l.s4 1983009808
        %v463 = vunpack.c.0.s8 %v462
        %v464 = vlaneseq
        %v465 = vshrl.u32 %v464, 7
        %v466 = vsub.s32 %v463, %v465
        %v467 = vrot.slane %v459, %v466
        %v469 = vunpack.c.l.s4 1983009808
        %v470 = vunpack.c.0.s8 %v469
        %v471 = vlaneseq
        %v472 = vshrl.u32 %v471, 7
        %v473 = vsub.s32 %v470, %v472
        %v474 = vrot.slane %v460, %v473
        %v475 = vcombine.low %v467, %v474
        %v480 = vunpack.c.l.b16 %v277
        %v481 = vunpack.c.l.b16 %v278
        %v482 = vunpack.c.l.b16 %v279
        %v483 = vunpack.c.l.b16 %v280
        %v484 = vpack.c.b16 %v481, %v480
        %v485 = vpack.c.b16 %v483, %v482
        %v489 = vsel %vm414, %v475, 0
        %491 = vmatprep.subr.bf16.mxu0 0
        %492 = vmatpush1.bf16.msra.mxu0 %v484
        %493 = vmatprep.subr.bf16.mxu0 0
        %494 = vmatpush1.bf16.msra.mxu0 %v485
        %495 = vmatprep.subr.bf16.mxu0 0
        %496 = vmatpush1.bf16.msra.mxu0 0
        %497 = vmatprep.subr.bf16.mxu0 0
        %498 = vmatpush1.bf16.msra.mxu0 0
        %499 = vmatprep.subr.bf16.mxu0 0
        %500 = vmatpush1.bf16.msra.mxu0 0
        %501 = vmatprep.subr.bf16.mxu0 0
        %502 = vmatpush1.bf16.msra.mxu0 0
        %503 = vmatprep.subr.bf16.mxu0 0
        %504 = vmatpush1.bf16.msra.mxu0 0
        %505 = vmatprep.subr.bf16.mxu0 0
        %506 = vmatpush1.bf16.msra.mxu0 0
        %507 = vmatprep.subr.bf16.mxu0 0
        %508 = vmatpush1.bf16.msra.mxu0 0
        %509 = vmatprep.subr.bf16.mxu0 0
        %510 = vmatpush1.bf16.msra.mxu0 0
        %511 = vmatprep.subr.bf16.mxu0 0
        %512 = vmatpush1.bf16.msra.mxu0 0
        %513 = vmatprep.subr.bf16.mxu0 0
        %514 = vmatpush1.bf16.msra.mxu0 0
        %515 = vmatprep.subr.bf16.mxu0 0
        %516 = vmatpush1.bf16.msra.mxu0 0
        %517 = vmatprep.subr.bf16.mxu0 0
        %518 = vmatpush1.bf16.msra.mxu0 0
        %519 = vmatprep.subr.bf16.mxu0 0
        %520 = vmatpush1.bf16.msra.mxu0 0
        %521 = vmatprep.subr.bf16.mxu0 0
        %522 = vmatpush1.bf16.msra.mxu0 0
        %523 = vmatprep.mubr.bf16.mxu0 0
        %524 = vmatmul.mubr.bf16.gmra.mrb[0].mxu0 %v489
        %v525 = vpop.f32.mrb[0].mxu0
        %v526 = vadd.f32 %v453, %v525
        %v527 = vpop.f32.mrb[0].mxu0
        %v528 = vpop.f32.mrb[0].mxu0
        %v529 = vadd.f32 %v456, %v528
        %v530 = vpop.f32.mrb[0].mxu0
        %531 = vdwg.mxu0
        %vm532 = vcmask 1042434
        %vm533 = vmor %vm261, %vm532
        %vm534 = vcmask 1044484
        %vm535 = vmor %vm533, %vm534
        %vm536 = vcmask 1046534
        %vm537 = vmor %vm535, %vm536
        %v538 = vrot.slane %v291, 7
        %v539 = vrot.slane %v538, 2
        %v540 = vrot.slane %v292, 7
        %v541 = vsel %vm537, %v539, %v540
        %v542 = vrot.slane %v299, 7
        %v543 = vrot.slane %v542, 2
        %v544 = vrot.slane %v300, 7
        %v545 = vsel %vm537, %v543, %v544
        %v546 = vrot.slane %v307, 7
        %v547 = vrot.slane %v546, 2
        %v548 = vrot.slane %v308, 7
        %v549 = vsel %vm537, %v547, %v548
        %v550 = vrot.slane %v315, 7
        %v551 = vrot.slane %v550, 2
        %v552 = vrot.slane %v316, 7
        %v553 = vsel %vm537, %v551, %v552
        %s554 = scalar_lea.vmem [#allocation5], 32
        %v555 = vld [vmem:[%s554] sm:$0xf]
        %v556 = vld [vmem:[%s554 + $0x4] sm:$0xf]
        %v557 = vld [vmem:[%s554 + $0x8] sm:$0xf]
        %v558 = vld [vmem:[%s554 + $0xc] sm:$0xf]
        %v559 = vcombine.low %v541, %v545
        %v560 = vcombine.low %v549, %v553
        %v562 = vunpack.c.l.s4 1983009808
        %v563 = vunpack.c.0.s8 %v562
        %v564 = vlaneseq
        %v565 = vshrl.u32 %v564, 7
        %v566 = vsub.s32 %v563, %v565
        %v567 = vrot.slane %v559, %v566
        %v569 = vunpack.c.l.s4 1983009808
        %v570 = vunpack.c.0.s8 %v569
        %v571 = vlaneseq
        %v572 = vshrl.u32 %v571, 7
        %v573 = vsub.s32 %v570, %v572
        %v574 = vrot.slane %v560, %v573
        %v575 = vcombine.low %v567, %v574
        %v580 = vunpack.c.l.b16 %v555
        %v581 = vunpack.c.l.b16 %v556
        %v582 = vunpack.c.l.b16 %v557
        %v583 = vunpack.c.l.b16 %v558
        %v584 = vpack.c.b16 %v581, %v580
        %v585 = vpack.c.b16 %v583, %v582
        %v589 = vsel %vm414, %v575, 0
        %591 = vmatprep.subr.bf16.mxu0 0
        %592 = vmatpush1.bf16.msra.mxu0 %v584
        %593 = vmatprep.subr.bf16.mxu0 0
        %594 = vmatpush1.bf16.msra.mxu0 %v585
        %595 = vmatprep.subr.bf16.mxu0 0
        %596 = vmatpush1.bf16.msra.mxu0 0
        %597 = vmatprep.subr.bf16.mxu0 0
        %598 = vmatpush1.bf16.msra.mxu0 0
        %599 = vmatprep.subr.bf16.mxu0 0
        %600 = vmatpush1.bf16.msra.mxu0 0
        %601 = vmatprep.subr.bf16.mxu0 0
        %602 = vmatpush1.bf16.msra.mxu0 0
        %603 = vmatprep.subr.bf16.mxu0 0
        %604 = vmatpush1.bf16.msra.mxu0 0
        %605 = vmatprep.subr.bf16.mxu0 0
        %606 = vmatpush1.bf16.msra.mxu0 0
        %607 = vmatprep.subr.bf16.mxu0 0
        %608 = vmatpush1.bf16.msra.mxu0 0
        %609 = vmatprep.subr.bf16.mxu0 0
        %610 = vmatpush1.bf16.msra.mxu0 0
        %611 = vmatprep.subr.bf16.mxu0 0
        %612 = vmatpush1.bf16.msra.mxu0 0
        %613 = vmatprep.subr.bf16.mxu0 0
        %614 = vmatpush1.bf16.msra.mxu0 0
        %615 = vmatprep.subr.bf16.mxu0 0
        %616 = vmatpush1.bf16.msra.mxu0 0
        %617 = vmatprep.subr.bf16.mxu0 0
        %618 = vmatpush1.bf16.msra.mxu0 0
        %619 = vmatprep.subr.bf16.mxu0 0
        %620 = vmatpush1.bf16.msra.mxu0 0
        %621 = vmatprep.subr.bf16.mxu0 0
        %622 = vmatpush1.bf16.msra.mxu0 0
        %623 = vmatprep.mubr.bf16.mxu0 0
        %624 = vmatmul.mubr.bf16.gmra.mrb[0].mxu0 %v589
        %v625 = vpop.f32.mrb[0].mxu0
        %v626 = vadd.f32 0.0, %v625
        %v627 = vpop.f32.mrb[0].mxu0
        %v628 = vpop.f32.mrb[0].mxu0
        %v629 = vadd.f32 0.0, %v628
        %v630 = vpop.f32.mrb[0].mxu0
        %631 = vdwg.mxu0
        %v632 = vadd.f32 %v526, %v626
        %v633 = vadd.f32 %v529, %v629
        %s634 = scalar_lea.vmem [#allocation5], 48
        %v635 = vld [vmem:[%s634] sm:$0xf]
        %v636 = vld [vmem:[%s634 + $0x4] sm:$0xf]
        %v637 = vld [vmem:[%s634 + $0x8] sm:$0xf]
        %v638 = vld [vmem:[%s634 + $0xc] sm:$0xf]
        %v640 = vcombine.low %v273, %v274
        %v641 = vcombine.low %v275, %v276
        %v643 = vunpack.c.l.s4 1983009808
        %v644 = vunpack.c.0.s8 %v643
        %v645 = vlaneseq
        %v646 = vshrl.u32 %v645, 7
        %v647 = vsub.s32 %v644, %v646
        %v648 = vrot.slane %v640, %v647
        %v650 = vunpack.c.l.s4 1983009808
        %v651 = vunpack.c.0.s8 %v650
        %v652 = vlaneseq
        %v653 = vshrl.u32 %v652, 7
        %v654 = vsub.s32 %v651, %v653
        %v655 = vrot.slane %v641, %v654
        %v656 = vcombine.low %v648, %v655
        %v661 = vunpack.c.l.b16 %v635
        %v662 = vunpack.c.l.b16 %v636
        %v663 = vunpack.c.l.b16 %v637
        %v664 = vunpack.c.l.b16 %v638
        %v665 = vpack.c.b16 %v662, %v661
        %v666 = vpack.c.b16 %v664, %v663
        %v670 = vsel %vm414, %v656, 0
        %672 = vmatprep.subr.bf16.mxu0 0
        %673 = vmatpush1.bf16.msra.mxu0 %v665
        %674 = vmatprep.subr.bf16.mxu0 0
        %675 = vmatpush1.bf16.msra.mxu0 %v666
        %676 = vmatprep.subr.bf16.mxu0 0
        %677 = vmatpush1.bf16.msra.mxu0 0
        %678 = vmatprep.subr.bf16.mxu0 0
        %679 = vmatpush1.bf16.msra.mxu0 0
        %680 = vmatprep.subr.bf16.mxu0 0
        %681 = vmatpush1.bf16.msra.mxu0 0
        %682 = vmatprep.subr.bf16.mxu0 0
        %683 = vmatpush1.bf16.msra.mxu0 0
        %684 = vmatprep.subr.bf16.mxu0 0
        %685 = vmatpush1.bf16.msra.mxu0 0
        %686 = vmatprep.subr.bf16.mxu0 0
        %687 = vmatpush1.bf16.msra.mxu0 0
        %688 = vmatprep.subr.bf16.mxu0 0
        %689 = vmatpush1.bf16.msra.mxu0 0
        %690 = vmatprep.subr.bf16.mxu0 0
        %691 = vmatpush1.bf16.msra.mxu0 0
        %692 = vmatprep.subr.bf16.mxu0 0
        %693 = vmatpush1.bf16.msra.mxu0 0
        %694 = vmatprep.subr.bf16.mxu0 0
        %695 = vmatpush1.bf16.msra.mxu0 0
        %696 = vmatprep.subr.bf16.mxu0 0
        %697 = vmatpush1.bf16.msra.mxu0 0
        %698 = vmatprep.subr.bf16.mxu0 0
        %699 = vmatpush1.bf16.msra.mxu0 0
        %700 = vmatprep.subr.bf16.mxu0 0
        %701 = vmatpush1.bf16.msra.mxu0 0
        %702 = vmatprep.subr.bf16.mxu0 0
        %703 = vmatpush1.bf16.msra.mxu0 0
        %704 = vmatprep.mubr.bf16.mxu0 0
        %705 = vmatmul.mubr.bf16.gmra.mrb[0].mxu0 %v670
        %v706 = vpop.f32.mrb[0].mxu0
        %v707 = vadd.f32 0.0, %v706
        %v708 = vpop.f32.mrb[0].mxu0
        %v709 = vpop.f32.mrb[0].mxu0
        %v710 = vadd.f32 0.0, %v709
        %v711 = vpop.f32.mrb[0].mxu0
        %712 = vdwg.mxu0
        %v713 = vadd.f32 %v632, %v707
        %v714 = vadd.f32 %v633, %v710
        %v716 = vunpack.c.l.s4 1983009808
        %v717 = vunpack.c.0.s8 %v716
        %v718 = vlaneseq
        %v719 = vshrl.u32 %v718, 7
        %v720 = vsub.s32 %v717, %v719
        %v721 = vrot.slane %v276, %v720
        %v722 = vcombine.high %v721, %v721
        %v724 = vshrl.u32 %v721, 16
        %v726 = vrot.slane %v724, 6
        %v727 = vshll.u32 %v721, 16
        %v729 = vrot.slane %v727, 7
        %v730 = vor.u32 %v726, %v729
        %v731 = vrot.slane %v730, 2
        %v733 = vshll.u32 %v722, 16
        %v735 = vrot.slane %v733, 7
        %v736 = vsel %vm323, %v731, %v735
        %s737 = scalar_lea.vmem [#allocation5], 64
        %v738 = vld [vmem:[%s737] sm:$0xf]
        %v739 = vld [vmem:[%s737 + $0x4] sm:$0xf]
        %v740 = vld [vmem:[%s737 + $0x8] sm:$0xf]
        %v741 = vld [vmem:[%s737 + $0xc] sm:$0xf]
        %v742 = vcombine.low %v351, %v365
        %v743 = vcombine.low %v379, %v736
        %v745 = vunpack.c.l.s4 1983009808
        %v746 = vunpack.c.0.s8 %v745
        %v747 = vlaneseq
        %v748 = vshrl.u32 %v747, 7
        %v749 = vsub.s32 %v746, %v748
        %v750 = vrot.slane %v742, %v749
        %v752 = vunpack.c.l.s4 1983009808
        %v753 = vunpack.c.0.s8 %v752
        %v754 = vlaneseq
        %v755 = vshrl.u32 %v754, 7
        %v756 = vsub.s32 %v753, %v755
        %v757 = vrot.slane %v743, %v756
        %v758 = vcombine.low %v750, %v757
        %v763 = vunpack.c.l.b16 %v738
        %v764 = vunpack.c.l.b16 %v739
        %v765 = vunpack.c.l.b16 %v740
        %v766 = vunpack.c.l.b16 %v741
        %v767 = vpack.c.b16 %v764, %v763
        %v768 = vpack.c.b16 %v766, %v765
        %v772 = vsel %vm414, %v758, 0
        %774 = vmatprep.subr.bf16.mxu0 0
        %775 = vmatpush1.bf16.msra.mxu0 %v767
        %776 = vmatprep.subr.bf16.mxu0 0
        %777 = vmatpush1.bf16.msra.mxu0 %v768
        %778 = vmatprep.subr.bf16.mxu0 0
        %779 = vmatpush1.bf16.msra.mxu0 0
        %780 = vmatprep.subr.bf16.mxu0 0
        %781 = vmatpush1.bf16.msra.mxu0 0
        %782 = vmatprep.subr.bf16.mxu0 0
        %783 = vmatpush1.bf16.msra.mxu0 0
        %784 = vmatprep.subr.bf16.mxu0 0
        %785 = vmatpush1.bf16.msra.mxu0 0
        %786 = vmatprep.subr.bf16.mxu0 0
        %787 = vmatpush1.bf16.msra.mxu0 0
        %788 = vmatprep.subr.bf16.mxu0 0
        %789 = vmatpush1.bf16.msra.mxu0 0
        %790 = vmatprep.subr.bf16.mxu0 0
        %791 = vmatpush1.bf16.msra.mxu0 0
        %792 = vmatprep.subr.bf16.mxu0 0
        %793 = vmatpush1.bf16.msra.mxu0 0
        %794 = vmatprep.subr.bf16.mxu0 0
        %795 = vmatpush1.bf16.msra.mxu0 0
        %796 = vmatprep.subr.bf16.mxu0 0
        %797 = vmatpush1.bf16.msra.mxu0 0
        %798 = vmatprep.subr.bf16.mxu0 0
        %799 = vmatpush1.bf16.msra.mxu0 0
        %800 = vmatprep.subr.bf16.mxu0 0
        %801 = vmatpush1.bf16.msra.mxu0 0
        %802 = vmatprep.subr.bf16.mxu0 0
        %803 = vmatpush1.bf16.msra.mxu0 0
        %804 = vmatprep.subr.bf16.mxu0 0
        %805 = vmatpush1.bf16.msra.mxu0 0
        %806 = vmatprep.mubr.bf16.mxu0 0
        %807 = vmatmul.mubr.bf16.gmra.mrb[0].mxu0 %v772
        %v808 = vpop.f32.mrb[0].mxu0
        %v809 = vadd.f32 0.0, %v808
        %v810 = vpop.f32.mrb[0].mxu0
        %v811 = vpop.f32.mrb[0].mxu0
        %v812 = vadd.f32 0.0, %v811
        %v813 = vpop.f32.mrb[0].mxu0
        %814 = vdwg.mxu0
        %v815 = vadd.f32 %v713, %v809
        %v816 = vadd.f32 %v714, %v812
        %v817 = vrot.slane %v721, 7
        %v818 = vrot.slane %v817, 2
        %v819 = vrot.slane %v722, 7
        %v820 = vsel %vm537, %v818, %v819
        %s821 = scalar_lea.vmem [#allocation5], 80
        %v822 = vld [vmem:[%s821] sm:$0xf]
        %v823 = vld [vmem:[%s821 + $0x4] sm:$0xf]
        %v824 = vld [vmem:[%s821 + $0x8] sm:$0xf]
        %v825 = vld [vmem:[%s821 + $0xc] sm:$0xf]
        %v826 = vcombine.low %v545, %v549
        %v827 = vcombine.low %v553, %v820
        %v829 = vunpack.c.l.s4 1983009808
        %v830 = vunpack.c.0.s8 %v829
        %v831 = vlaneseq
        %v832 = vshrl.u32 %v831, 7
        %v833 = vsub.s32 %v830, %v832
        %v834 = vrot.slane %v826, %v833
        %v836 = vunpack.c.l.s4 1983009808
        %v837 = vunpack.c.0.s8 %v836
        %v838 = vlaneseq
        %v839 = vshrl.u32 %v838, 7
        %v840 = vsub.s32 %v837, %v839
        %v841 = vrot.slane %v827, %v840
        %v842 = vcombine.low %v834, %v841
        %v847 = vunpack.c.l.b16 %v822
        %v848 = vunpack.c.l.b16 %v823
        %v849 = vunpack.c.l.b16 %v824
        %v850 = vunpack.c.l.b16 %v825
        %v851 = vpack.c.b16 %v848, %v847
        %v852 = vpack.c.b16 %v850, %v849
        %v856 = vsel %vm414, %v842, 0
        %858 = vmatprep.subr.bf16.mxu0 0
        %859 = vmatpush1.bf16.msra.mxu0 %v851
        %860 = vmatprep.subr.bf16.mxu0 0
        %861 = vmatpush1.bf16.msra.mxu0 %v852
        %862 = vmatprep.subr.bf16.mxu0 0
        %863 = vmatpush1.bf16.msra.mxu0 0
        %864 = vmatprep.subr.bf16.mxu0 0
        %865 = vmatpush1.bf16.msra.mxu0 0
        %866 = vmatprep.subr.bf16.mxu0 0
        %867 = vmatpush1.bf16.msra.mxu0 0
        %868 = vmatprep.subr.bf16.mxu0 0
        %869 = vmatpush1.bf16.msra.mxu0 0
        %870 = vmatprep.subr.bf16.mxu0 0
        %871 = vmatpush1.bf16.msra.mxu0 0
        %872 = vmatprep.subr.bf16.mxu0 0
        %873 = vmatpush1.bf16.msra.mxu0 0
        %874 = vmatprep.subr.bf16.mxu0 0
        %875 = vmatpush1.bf16.msra.mxu0 0
        %876 = vmatprep.subr.bf16.mxu0 0
        %877 = vmatpush1.bf16.msra.mxu0 0
        %878 = vmatprep.subr.bf16.mxu0 0
        %879 = vmatpush1.bf16.msra.mxu0 0
        %880 = vmatprep.subr.bf16.mxu0 0
        %881 = vmatpush1.bf16.msra.mxu0 0
        %882 = vmatprep.subr.bf16.mxu0 0
        %883 = vmatpush1.bf16.msra.mxu0 0
        %884 = vmatprep.subr.bf16.mxu0 0
        %885 = vmatpush1.bf16.msra.mxu0 0
        %886 = vmatprep.subr.bf16.mxu0 0
        %887 = vmatpush1.bf16.msra.mxu0 0
        %888 = vmatprep.subr.bf16.mxu0 0
        %889 = vmatpush1.bf16.msra.mxu0 0
        %890 = vmatprep.mubr.bf16.mxu0 0
        %891 = vmatmul.mubr.bf16.gmra.mrb[0].mxu0 %v856
        %v892 = vpop.f32.mrb[0].mxu0
        %v893 = vadd.f32 0.0, %v892
        %v894 = vpop.f32.mrb[0].mxu0
        %v895 = vpop.f32.mrb[0].mxu0
        %v896 = vadd.f32 0.0, %v895
        %v897 = vpop.f32.mrb[0].mxu0
        %898 = vdwg.mxu0
        %v899 = vadd.f32 %v815, %v893
        %v900 = vadd.f32 %v816, %v896
        %s901 = scalar_lea.vmem [#allocation5], 96
        %v902 = vld [vmem:[%s901] sm:$0xf]
        %v903 = vld [vmem:[%s901 + $0x4] sm:$0xf]
        %v904 = vld [vmem:[%s901 + $0x8] sm:$0xf]
        %v905 = vld [vmem:[%s901 + $0xc] sm:$0xf]
        %v906 = vcombine.low %v276, %v272
        %v908 = vunpack.c.l.s4 1983009808
        %v909 = vunpack.c.0.s8 %v908
        %v910 = vlaneseq
        %v911 = vshrl.u32 %v910, 7
        %v912 = vsub.s32 %v909, %v911
        %v913 = vrot.slane %v906, %v912
        %v914 = vcombine.low %v474, %v913
        %v919 = vunpack.c.l.b16 %v902
        %v920 = vunpack.c.l.b16 %v903
        %v921 = vunpack.c.l.b16 %v904
        %v922 = vunpack.c.l.b16 %v905
        %v923 = vpack.c.b16 %v920, %v919
        %v924 = vpack.c.b16 %v922, %v921
        %v928 = vsel %vm414, %v914, 0
        %930 = vmatprep.subr.bf16.mxu0 0
        %931 = vmatpush1.bf16.msra.mxu0 %v923
        %932 = vmatprep.subr.bf16.mxu0 0
        %933 = vmatpush1.bf16.msra.mxu0 %v924
        %934 = vmatprep.subr.bf16.mxu0 0
        %935 = vmatpush1.bf16.msra.mxu0 0
        %936 = vmatprep.subr.bf16.mxu0 0
        %937 = vmatpush1.bf16.msra.mxu0 0
        %938 = vmatprep.subr.bf16.mxu0 0
        %939 = vmatpush1.bf16.msra.mxu0 0
        %940 = vmatprep.subr.bf16.mxu0 0
        %941 = vmatpush1.bf16.msra.mxu0 0
        %942 = vmatprep.subr.bf16.mxu0 0
        %943 = vmatpush1.bf16.msra.mxu0 0
        %944 = vmatprep.subr.bf16.mxu0 0
        %945 = vmatpush1.bf16.msra.mxu0 0
        %946 = vmatprep.subr.bf16.mxu0 0
        %947 = vmatpush1.bf16.msra.mxu0 0
        %948 = vmatprep.subr.bf16.mxu0 0
        %949 = vmatpush1.bf16.msra.mxu0 0
        %950 = vmatprep.subr.bf16.mxu0 0
        %951 = vmatpush1.bf16.msra.mxu0 0
        %952 = vmatprep.subr.bf16.mxu0 0
        %953 = vmatpush1.bf16.msra.mxu0 0
        %954 = vmatprep.subr.bf16.mxu0 0
        %955 = vmatpush1.bf16.msra.mxu0 0
        %956 = vmatprep.subr.bf16.mxu0 0
        %957 = vmatpush1.bf16.msra.mxu0 0
        %958 = vmatprep.subr.bf16.mxu0 0
        %959 = vmatpush1.bf16.msra.mxu0 0
        %960 = vmatprep.subr.bf16.mxu0 0
        %961 = vmatpush1.bf16.msra.mxu0 0
        %962 = vmatprep.mubr.bf16.mxu0 0
        %963 = vmatmul.mubr.bf16.gmra.mrb[0].mxu0 %v928
        %v964 = vpop.f32.mrb[0].mxu0
        %v965 = vadd.f32 0.0, %v964
        %v966 = vpop.f32.mrb[0].mxu0
        %v967 = vpop.f32.mrb[0].mxu0
        %v968 = vadd.f32 0.0, %v967
        %v969 = vpop.f32.mrb[0].mxu0
        %970 = vdwg.mxu0
        %v971 = vadd.f32 %v899, %v965
        %v972 = vadd.f32 %v900, %v968
        %s973 = scalar_lea.vmem [#allocation5], 112
        %v974 = vld [vmem:[%s973] sm:$0xf]
        %v975 = vld [vmem:[%s973 + $0x4] sm:$0xf]
        %v976 = vld [vmem:[%s973 + $0x8] sm:$0xf]
        %v977 = vld [vmem:[%s973 + $0xc] sm:$0xf]
        %v978 = vcombine.low %v736, %v337
        %v980 = vunpack.c.l.s4 1983009808
        %v981 = vunpack.c.0.s8 %v980
        %v982 = vlaneseq
        %v983 = vshrl.u32 %v982, 7
        %v984 = vsub.s32 %v981, %v983
        %v985 = vrot.slane %v978, %v984
        %v986 = vcombine.low %v400, %v985
        %v991 = vunpack.c.l.b16 %v974
        %v992 = vunpack.c.l.b16 %v975
        %v993 = vunpack.c.l.b16 %v976
        %v994 = vunpack.c.l.b16 %v977
        %v995 = vpack.c.b16 %v992, %v991
        %v996 = vpack.c.b16 %v994, %v993
        %v1000 = vsel %vm414, %v986, 0
        %1002 = vmatprep.subr.bf16.mxu0 0
        %1003 = vmatpush1.bf16.msra.mxu0 %v995
        %1004 = vmatprep.subr.bf16.mxu0 0
        %1005 = vmatpush1.bf16.msra.mxu0 %v996
        %1006 = vmatprep.subr.bf16.mxu0 0
        %1007 = vmatpush1.bf16.msra.mxu0 0
        %1008 = vmatprep.subr.bf16.mxu0 0
        %1009 = vmatpush1.bf16.msra.mxu0 0
        %1010 = vmatprep.subr.bf16.mxu0 0
        %1011 = vmatpush1.bf16.msra.mxu0 0
        %1012 = vmatprep.subr.bf16.mxu0 0
        %1013 = vmatpush1.bf16.msra.mxu0 0
        %1014 = vmatprep.subr.bf16.mxu0 0
        %1015 = vmatpush1.bf16.msra.mxu0 0
        %1016 = vmatprep.subr.bf16.mxu0 0
        %1017 = vmatpush1.bf16.msra.mxu0 0
        %1018 = vmatprep.subr.bf16.mxu0 0
        %1019 = vmatpush1.bf16.msra.mxu0 0
        %1020 = vmatprep.subr.bf16.mxu0 0
        %1021 = vmatpush1.bf16.msra.mxu0 0
        %1022 = vmatprep.subr.bf16.mxu0 0
        %1023 = vmatpush1.bf16.msra.mxu0 0
        %1024 = vmatprep.subr.bf16.mxu0 0
        %1025 = vmatpush1.bf16.msra.mxu0 0
        %1026 = vmatprep.subr.bf16.mxu0 0
        %1027 = vmatpush1.bf16.msra.mxu0 0
        %1028 = vmatprep.subr.bf16.mxu0 0
        %1029 = vmatpush1.bf16.msra.mxu0 0
        %1030 = vmatprep.subr.bf16.mxu0 0
        %1031 = vmatpush1.bf16.msra.mxu0 0
        %1032 = vmatprep.subr.bf16.mxu0 0
        %1033 = vmatpush1.bf16.msra.mxu0 0
        %1034 = vmatprep.mubr.bf16.mxu0 0
        %1035 = vmatmul.mubr.bf16.gmra.mrb[0].mxu0 %v1000
        %v1036 = vpop.f32.mrb[0].mxu0
        %v1037 = vadd.f32 0.0, %v1036
        %v1038 = vpop.f32.mrb[0].mxu0
        %v1039 = vpop.f32.mrb[0].mxu0
        %v1040 = vadd.f32 0.0, %v1039
        %v1041 = vpop.f32.mrb[0].mxu0
        %1042 = vdwg.mxu0
        %v1043 = vadd.f32 %v971, %v1037
        %v1044 = vadd.f32 %v972, %v1040
        %s1045 = scalar_lea.vmem [#allocation5], 128
        %v1046 = vld [vmem:[%s1045] sm:$0xf]
        %v1047 = vld [vmem:[%s1045 + $0x4] sm:$0xf]
        %v1048 = vld [vmem:[%s1045 + $0x8] sm:$0xf]
        %v1049 = vld [vmem:[%s1045 + $0xc] sm:$0xf]
        %v1050 = vcombine.low %v820, %v541
        %v1052 = vunpack.c.l.s4 1983009808
        %v1053 = vunpack.c.0.s8 %v1052
        %v1054 = vlaneseq
        %v1055 = vshrl.u32 %v1054, 7
        %v1056 = vsub.s32 %v1053, %v1055
        %v1057 = vrot.slane %v1050, %v1056
        %v1058 = vcombine.low %v574, %v1057
        %v1063 = vunpack.c.l.b16 %v1046
        %v1064 = vunpack.c.l.b16 %v1047
        %v1065 = vunpack.c.l.b16 %v1048
        %v1066 = vunpack.c.l.b16 %v1049
        %v1067 = vpack.c.b16 %v1064, %v1063
        %v1068 = vpack.c.b16 %v1066, %v1065
        %v1072 = vsel %vm414, %v1058, 0
        %1074 = vmatprep.subr.bf16.mxu0 0
        %1075 = vmatpush1.bf16.msra.mxu0 %v1067
        %1076 = vmatprep.subr.bf16.mxu0 0
        %1077 = vmatpush1.bf16.msra.mxu0 %v1068
        %1078 = vmatprep.subr.bf16.mxu0 0
        %1079 = vmatpush1.bf16.msra.mxu0 0
        %1080 = vmatprep.subr.bf16.mxu0 0
        %1081 = vmatpush1.bf16.msra.mxu0 0
        %1082 = vmatprep.subr.bf16.mxu0 0
        %1083 = vmatpush1.bf16.msra.mxu0 0
        %1084 = vmatprep.subr.bf16.mxu0 0
        %1085 = vmatpush1.bf16.msra.mxu0 0
        %1086 = vmatprep.subr.bf16.mxu0 0
        %1087 = vmatpush1.bf16.msra.mxu0 0
        %1088 = vmatprep.subr.bf16.mxu0 0
        %1089 = vmatpush1.bf16.msra.mxu0 0
        %1090 = vmatprep.subr.bf16.mxu0 0
        %1091 = vmatpush1.bf16.msra.mxu0 0
        %1092 = vmatprep.subr.bf16.mxu0 0
        %1093 = vmatpush1.bf16.msra.mxu0 0
        %1094 = vmatprep.subr.bf16.mxu0 0
        %1095 = vmatpush1.bf16.msra.mxu0 0
        %1096 = vmatprep.subr.bf16.mxu0 0
        %1097 = vmatpush1.bf16.msra.mxu0 0
        %1098 = vmatprep.subr.bf16.mxu0 0
        %1099 = vmatpush1.bf16.msra.mxu0 0
        %1100 = vmatprep.subr.bf16.mxu0 0
        %1101 = vmatpush1.bf16.msra.mxu0 0
        %1102 = vmatprep.subr.bf16.mxu0 0
        %1103 = vmatpush1.bf16.msra.mxu0 0
        %1104 = vmatprep.subr.bf16.mxu0 0
        %1105 = vmatpush1.bf16.msra.mxu0 0
        %1106 = vmatprep.mubr.bf16.mxu0 0
        %1107 = vmatmul.mubr.bf16.gmra.mrb[0].mxu0 %v1072
        %v1108 = vpop.f32.mrb[0].mxu0
        %v1109 = vadd.f32 0.0, %v1108
        %v1110 = vpop.f32.mrb[0].mxu0
        %v1111 = vpop.f32.mrb[0].mxu0
        %v1112 = vadd.f32 0.0, %v1111
        %v1113 = vpop.f32.mrb[0].mxu0
        %1114 = vdwg.mxu0
        %v1115 = vadd.f32 %v1043, %v1109
        %v1116 = vadd.f32 %v1044, %v1112
        %v1117 = vld [vmem:[#allocation7] sm:$0x1]
        %v1119 = vlaneseq
        %v1120 = vshrl.u32 %v1119, 7
        %v1121 = vsub.s32 0, %v1120
        %v1122 = vrot.slane %v1117, %v1121
        %v1124 = vadd.f32 %v1115, %v1122
        %v1125 = vadd.f32 %v1116, %v1122
        %v1126 = vmul.f32 %v1124, 0.5
        %v1127 = vmul.f32 %v1125, 0.5
        %v1128 = vmul.f32 %v1124, 0.70710677
        %v1129 = vmul.f32 %v1125, 0.70710677
        %v1130 = verf.f32.pop %v1128
        %v1131 = verf.f32.pop %v1129
        %v1132 = vadd.f32 %v1130, 1.0
        %v1133 = vadd.f32 %v1131, 1.0
        %v1134 = vmul.f32 %v1126, %v1132
        %v1135 = vmul.f32 %v1127, %v1133
        %v1138 = vcombine.high %v1134, %v1134
        %v1139 = vcombine.high %v1135, %v1135
        %v1142 = vpack.c.bf16 %v1134, %v1134
        %v1143 = vpack.c.bf16 %v1138, %v1138
        %v1144 = vpack.c.bf16 %v1135, %v1135
        %v1145 = vpack.c.bf16 %v1139, %v1139
        %v1151 = vunpack.c.l.s4 1966171168
        %v1152 = vunpack.c.0.s8 %v1151
        %v1153 = vlaneseq
        %v1154 = vshrl.u32 %v1153, 7
        %v1155 = vsub.s32 %v1152, %v1154
        %v1156 = vrot.slane %v1142, %v1155
        %v1157 = vcombine.high %v1156, %v1156
        %v1159 = vunpack.c.l.s4 1966171168
        %v1160 = vunpack.c.0.s8 %v1159
        %v1161 = vlaneseq
        %v1162 = vshrl.u32 %v1161, 7
        %v1163 = vsub.s32 %v1160, %v1162
        %v1164 = vrot.slane %v1156, %v1163
        %v1166 = vunpack.c.l.s4 1966171168
        %v1167 = vunpack.c.0.s8 %v1166
        %v1168 = vlaneseq
        %v1169 = vshrl.u32 %v1168, 7
        %v1170 = vsub.s32 %v1167, %v1169
        %v1171 = vrot.slane %v1157, %v1170
        %v1173 = vunpack.c.l.s4 1966171168
        %v1174 = vunpack.c.0.s8 %v1173
        %v1175 = vlaneseq
        %v1176 = vshrl.u32 %v1175, 7
        %v1177 = vsub.s32 %v1174, %v1176
        %v1178 = vrot.slane %v1143, %v1177
        %v1179 = vcombine.high %v1178, %v1178
        %v1181 = vunpack.c.l.s4 1966171168
        %v1182 = vunpack.c.0.s8 %v1181
        %v1183 = vlaneseq
        %v1184 = vshrl.u32 %v1183, 7
        %v1185 = vsub.s32 %v1182, %v1184
        %v1186 = vrot.slane %v1178, %v1185
        %v1188 = vunpack.c.l.s4 1966171168
        %v1189 = vunpack.c.0.s8 %v1188
        %v1190 = vlaneseq
        %v1191 = vshrl.u32 %v1190, 7
        %v1192 = vsub.s32 %v1189, %v1191
        %v1193 = vrot.slane %v1179, %v1192
        %v1195 = vunpack.c.l.s4 1966171168
        %v1196 = vunpack.c.0.s8 %v1195
        %v1197 = vlaneseq
        %v1198 = vshrl.u32 %v1197, 7
        %v1199 = vsub.s32 %v1196, %v1198
        %v1200 = vrot.slane %v1144, %v1199
        %v1201 = vcombine.high %v1200, %v1200
        %v1203 = vunpack.c.l.s4 1966171168
        %v1204 = vunpack.c.0.s8 %v1203
        %v1205 = vlaneseq
        %v1206 = vshrl.u32 %v1205, 7
        %v1207 = vsub.s32 %v1204, %v1206
        %v1208 = vrot.slane %v1200, %v1207
        %v1210 = vunpack.c.l.s4 1966171168
        %v1211 = vunpack.c.0.s8 %v1210
        %v1212 = vlaneseq
        %v1213 = vshrl.u32 %v1212, 7
        %v1214 = vsub.s32 %v1211, %v1213
        %v1215 = vrot.slane %v1201, %v1214
        %v1217 = vunpack.c.l.s4 1966171168
        %v1218 = vunpack.c.0.s8 %v1217
        %v1219 = vlaneseq
        %v1220 = vshrl.u32 %v1219, 7
        %v1221 = vsub.s32 %v1218, %v1220
        %v1222 = vrot.slane %v1145, %v1221
        %v1223 = vcombine.high %v1222, %v1222
        %v1225 = vunpack.c.l.s4 1966171168
        %v1226 = vunpack.c.0.s8 %v1225
        %v1227 = vlaneseq
        %v1228 = vshrl.u32 %v1227, 7
        %v1229 = vsub.s32 %v1226, %v1228
        %v1230 = vrot.slane %v1222, %v1229
        %v1232 = vunpack.c.l.s4 1966171168
        %v1233 = vunpack.c.0.s8 %v1232
        %v1234 = vlaneseq
        %v1235 = vshrl.u32 %v1234, 7
        %v1236 = vsub.s32 %v1233, %v1235
        %v1237 = vrot.slane %v1223, %v1236
        %v1238 = vunpack.i.l.s16 %v1164
        %v1239 = vunpack.i.h.s16 %v1164
        %v1240 = vunpack.i.l.s16 %v1171
        %v1241 = vunpack.i.h.s16 %v1171
        %v1242 = vunpack.i.l.s16 %v1186
        %v1243 = vunpack.i.h.s16 %v1186
        %v1244 = vunpack.i.l.s16 %v1193
        %v1245 = vunpack.i.h.s16 %v1193
        %v1246 = vunpack.i.l.s16 %v1208
        %v1247 = vunpack.i.h.s16 %v1208
        %v1248 = vunpack.i.l.s16 %v1215
        %v1249 = vunpack.i.h.s16 %v1215
        %v1250 = vunpack.i.l.s16 %v1230
        %v1251 = vunpack.i.h.s16 %v1230
        %v1252 = vunpack.i.l.s16 %v1237
        %v1253 = vunpack.i.h.s16 %v1237
        %v1254 = vpack.i.b16 %v1238, %v1238
        %v1255 = vpack.i.b16 %v1239, %v1239
        %v1256 = vpack.i.b16 %v1240, %v1240
        %v1257 = vpack.i.b16 %v1241, %v1241
        %v1258 = vpack.i.b16 %v1242, %v1242
        %v1259 = vpack.i.b16 %v1243, %v1243
        %v1260 = vpack.i.b16 %v1244, %v1244
        %v1261 = vpack.i.b16 %v1245, %v1245
        %v1262 = vpack.i.b16 %v1246, %v1246
        %v1263 = vpack.i.b16 %v1247, %v1247
        %v1264 = vpack.i.b16 %v1248, %v1248
        %v1265 = vpack.i.b16 %v1249, %v1249
        %v1266 = vpack.i.b16 %v1250, %v1250
        %v1267 = vpack.i.b16 %v1251, %v1251
        %v1268 = vpack.i.b16 %v1252, %v1252
        %v1269 = vpack.i.b16 %v1253, %v1253
        %v1270 = vlaneseq
        %v1271 = vshrl.u32 %v1270, 7
        %v1272 = vsub.s32 0, %v1271
        %v1273 = vrot.slane %v1254, %v1272
        %v1274 = vlaneseq
        %v1275 = vshrl.u32 %v1274, 7
        %v1276 = vsub.s32 0, %v1275
        %v1277 = vrot.slane %v1255, %v1276
        %v1278 = vlaneseq
        %v1279 = vshrl.u32 %v1278, 7
        %v1280 = vsub.s32 0, %v1279
        %v1281 = vrot.slane %v1256, %v1280
        %v1282 = vlaneseq
        %v1283 = vshrl.u32 %v1282, 7
        %v1284 = vsub.s32 0, %v1283
        %v1285 = vrot.slane %v1257, %v1284
        %v1286 = vlaneseq
        %v1287 = vshrl.u32 %v1286, 7
        %v1288 = vsub.s32 0, %v1287
        %v1289 = vrot.slane %v1258, %v1288
        %v1290 = vlaneseq
        %v1291 = vshrl.u32 %v1290, 7
        %v1292 = vsub.s32 0, %v1291
        %v1293 = vrot.slane %v1259, %v1292
        %v1294 = vlaneseq
        %v1295 = vshrl.u32 %v1294, 7
        %v1296 = vsub.s32 0, %v1295
        %v1297 = vrot.slane %v1260, %v1296
        %v1298 = vlaneseq
        %v1299 = vshrl.u32 %v1298, 7
        %v1300 = vsub.s32 0, %v1299
        %v1301 = vrot.slane %v1261, %v1300
        %v1302 = vlaneseq
        %v1303 = vshrl.u32 %v1302, 7
        %v1304 = vsub.s32 0, %v1303
        %v1305 = vrot.slane %v1262, %v1304
        %v1306 = vlaneseq
        %v1307 = vshrl.u32 %v1306, 7
        %v1308 = vsub.s32 0, %v1307
        %v1309 = vrot.slane %v1263, %v1308
        %v1310 = vlaneseq
        %v1311 = vshrl.u32 %v1310, 7
        %v1312 = vsub.s32 0, %v1311
        %v1313 = vrot.slane %v1264, %v1312
        %v1314 = vlaneseq
        %v1315 = vshrl.u32 %v1314, 7
        %v1316 = vsub.s32 0, %v1315
        %v1317 = vrot.slane %v1265, %v1316
        %v1318 = vlaneseq
        %v1319 = vshrl.u32 %v1318, 7
        %v1320 = vsub.s32 0, %v1319
        %v1321 = vrot.slane %v1266, %v1320
        %v1322 = vlaneseq
        %v1323 = vshrl.u32 %v1322, 7
        %v1324 = vsub.s32 0, %v1323
        %v1325 = vrot.slane %v1267, %v1324
        %v1326 = vlaneseq
        %v1327 = vshrl.u32 %v1326, 7
        %v1328 = vsub.s32 0, %v1327
        %v1329 = vrot.slane %v1268, %v1328
        %v1330 = vlaneseq
        %v1331 = vshrl.u32 %v1330, 7
        %v1332 = vsub.s32 0, %v1331
        %v1333 = vrot.slane %v1269, %v1332
        %v1335 = vpack.i.b16 %v1273, %v1273
        %v1337 = vlaneseq
        %v1338 = vshrl.u32 %v1337, 7
        %v1339 = vsub.s32 0, %v1338
        %v1340 = vrot.slane %v1335, %v1339
        %v1342 = vpack.i.b16 %v1277, %v1277
        %v1344 = vlaneseq
        %v1345 = vshrl.u32 %v1344, 7
        %v1346 = vsub.s32 0, %v1345
        %v1347 = vrot.slane %v1342, %v1346
        %v1349 = vpack.i.b16 %v1281, %v1281
        %v1351 = vlaneseq
        %v1352 = vshrl.u32 %v1351, 7
        %v1353 = vsub.s32 0, %v1352
        %v1354 = vrot.slane %v1349, %v1353
        %v1356 = vpack.i.b16 %v1285, %v1285
        %v1358 = vlaneseq
        %v1359 = vshrl.u32 %v1358, 7
        %v1360 = vsub.s32 0, %v1359
        %v1361 = vrot.slane %v1356, %v1360
        %v1363 = vpack.i.b16 %v1289, %v1289
        %v1365 = vlaneseq
        %v1366 = vshrl.u32 %v1365, 7
        %v1367 = vsub.s32 0, %v1366
        %v1368 = vrot.slane %v1363, %v1367
        %v1370 = vpack.i.b16 %v1293, %v1293
        %v1372 = vlaneseq
        %v1373 = vshrl.u32 %v1372, 7
        %v1374 = vsub.s32 0, %v1373
        %v1375 = vrot.slane %v1370, %v1374
        %v1377 = vpack.i.b16 %v1297, %v1297
        %v1379 = vlaneseq
        %v1380 = vshrl.u32 %v1379, 7
        %v1381 = vsub.s32 0, %v1380
        %v1382 = vrot.slane %v1377, %v1381
        %v1384 = vpack.i.b16 %v1301, %v1301
        %v1386 = vlaneseq
        %v1387 = vshrl.u32 %v1386, 7
        %v1388 = vsub.s32 0, %v1387
        %v1389 = vrot.slane %v1384, %v1388
        %v1391 = vpack.i.b16 %v1305, %v1305
        %v1393 = vlaneseq
        %v1394 = vshrl.u32 %v1393, 7
        %v1395 = vsub.s32 0, %v1394
        %v1396 = vrot.slane %v1391, %v1395
        %v1398 = vpack.i.b16 %v1309, %v1309
        %v1400 = vlaneseq
        %v1401 = vshrl.u32 %v1400, 7
        %v1402 = vsub.s32 0, %v1401
        %v1403 = vrot.slane %v1398, %v1402
        %v1405 = vpack.i.b16 %v1313, %v1313
        %v1407 = vlaneseq
        %v1408 = vshrl.u32 %v1407, 7
        %v1409 = vsub.s32 0, %v1408
        %v1410 = vrot.slane %v1405, %v1409
        %v1412 = vpack.i.b16 %v1317, %v1317
        %v1414 = vlaneseq
        %v1415 = vshrl.u32 %v1414, 7
        %v1416 = vsub.s32 0, %v1415
        %v1417 = vrot.slane %v1412, %v1416
        %v1419 = vpack.i.b16 %v1321, %v1321
        %v1421 = vlaneseq
        %v1422 = vshrl.u32 %v1421, 7
        %v1423 = vsub.s32 0, %v1422
        %v1424 = vrot.slane %v1419, %v1423
        %v1426 = vpack.i.b16 %v1325, %v1325
        %v1428 = vlaneseq
        %v1429 = vshrl.u32 %v1428, 7
        %v1430 = vsub.s32 0, %v1429
        %v1431 = vrot.slane %v1426, %v1430
        %v1433 = vpack.i.b16 %v1329, %v1329
        %v1435 = vlaneseq
        %v1436 = vshrl.u32 %v1435, 7
        %v1437 = vsub.s32 0, %v1436
        %v1438 = vrot.slane %v1433, %v1437
        %v1440 = vpack.i.b16 %v1333, %v1333
        %v1442 = vlaneseq
        %v1443 = vshrl.u32 %v1442, 7
        %v1444 = vsub.s32 0, %v1443
        %v1445 = vrot.slane %v1440, %v1444
        %v1462 = vcombine.low %v1340, %v1354
        %v1463 = vcombine.low %v1347, %v1361
        %v1465 = vunpack.c.l.s4 1935823168
        %v1466 = vunpack.c.0.s8 %v1465
        %v1467 = vlaneseq
        %v1468 = vshrl.u32 %v1467, 7
        %v1469 = vsub.s32 %v1466, %v1468
        %v1470 = vrot.slane %v1462, %v1469
        %v1472 = vunpack.c.l.s4 1935823168
        %v1473 = vunpack.c.0.s8 %v1472
        %v1474 = vlaneseq
        %v1475 = vshrl.u32 %v1474, 7
        %v1476 = vsub.s32 %v1473, %v1475
        %v1477 = vrot.slane %v1463, %v1476
        %v1478 = vcombine.low %v1470, %v1477
        %v1480 = vunpack.c.l.s4 1935823168
        %v1481 = vunpack.c.0.s8 %v1480
        %v1482 = vlaneseq
        %v1483 = vshrl.u32 %v1482, 7
        %v1484 = vsub.s32 %v1481, %v1483
        %v1485 = vrot.slane %v1478, %v1484
        %v1486 = vcombine.low %v1368, %v1382
        %v1487 = vcombine.low %v1375, %v1389
        %v1489 = vunpack.c.l.s4 1935823168
        %v1490 = vunpack.c.0.s8 %v1489
        %v1491 = vlaneseq
        %v1492 = vshrl.u32 %v1491, 7
        %v1493 = vsub.s32 %v1490, %v1492
        %v1494 = vrot.slane %v1486, %v1493
        %v1496 = vunpack.c.l.s4 1935823168
        %v1497 = vunpack.c.0.s8 %v1496
        %v1498 = vlaneseq
        %v1499 = vshrl.u32 %v1498, 7
        %v1500 = vsub.s32 %v1497, %v1499
        %v1501 = vrot.slane %v1487, %v1500
        %v1502 = vcombine.low %v1494, %v1501
        %v1504 = vunpack.c.l.s4 1935823168
        %v1505 = vunpack.c.0.s8 %v1504
        %v1506 = vlaneseq
        %v1507 = vshrl.u32 %v1506, 7
        %v1508 = vsub.s32 %v1505, %v1507
        %v1509 = vrot.slane %v1502, %v1508
        %v1510 = vcombine.low %v1396, %v1410
        %v1511 = vcombine.low %v1403, %v1417
        %v1513 = vunpack.c.l.s4 1935823168
        %v1514 = vunpack.c.0.s8 %v1513
        %v1515 = vlaneseq
        %v1516 = vshrl.u32 %v1515, 7
        %v1517 = vsub.s32 %v1514, %v1516
        %v1518 = vrot.slane %v1510, %v1517
        %v1520 = vunpack.c.l.s4 1935823168
        %v1521 = vunpack.c.0.s8 %v1520
        %v1522 = vlaneseq
        %v1523 = vshrl.u32 %v1522, 7
        %v1524 = vsub.s32 %v1521, %v1523
        %v1525 = vrot.slane %v1511, %v1524
        %v1526 = vcombine.low %v1518, %v1525
        %v1528 = vunpack.c.l.s4 1935823168
        %v1529 = vunpack.c.0.s8 %v1528
        %v1530 = vlaneseq
        %v1531 = vshrl.u32 %v1530, 7
        %v1532 = vsub.s32 %v1529, %v1531
        %v1533 = vrot.slane %v1526, %v1532
        %v1534 = vcombine.low %v1424, %v1438
        %v1535 = vcombine.low %v1431, %v1445
        %v1537 = vunpack.c.l.s4 1935823168
        %v1538 = vunpack.c.0.s8 %v1537
        %v1539 = vlaneseq
        %v1540 = vshrl.u32 %v1539, 7
        %v1541 = vsub.s32 %v1538, %v1540
        %v1542 = vrot.slane %v1534, %v1541
        %v1544 = vunpack.c.l.s4 1935823168
        %v1545 = vunpack.c.0.s8 %v1544
        %v1546 = vlaneseq
        %v1547 = vshrl.u32 %v1546, 7
        %v1548 = vsub.s32 %v1545, %v1547
        %v1549 = vrot.slane %v1535, %v1548
        %v1550 = vcombine.low %v1542, %v1549
        %v1552 = vunpack.c.l.s4 1935823168
        %v1553 = vunpack.c.0.s8 %v1552
        %v1554 = vlaneseq
        %v1555 = vshrl.u32 %v1554, 7
        %v1556 = vsub.s32 %v1553, %v1555
        %v1557 = vrot.slane %v1550, %v1556
        %vm1562 = vcmask 125952
        %1563 = vst.msk [vmem:[%s215] sm:$0xf] %vm1562, %v1485
        %1564 = vst.msk [vmem:[%s215 + $0x4] sm:$0xf] %vm1562, %v1485
        %1565 = vst.msk [vmem:[%s215 + $0x8] sm:$0xf] %vm1562, %v1509
        %1566 = vst.msk [vmem:[%s215 + $0xc] sm:$0xf] %vm1562, %v1509
        %1567 = vst.msk [vmem:[%s215 + $0x10] sm:$0xf] %vm1562, %v1533
        %1568 = vst.msk [vmem:[%s215 + $0x14] sm:$0xf] %vm1562, %v1533
        %1569 = vst.msk [vmem:[%s215 + $0x18] sm:$0xf] %vm1562, %v1557
        %1570 = vst.msk [vmem:[%s215 + $0x1c] sm:$0xf] %vm1562, %v1557
        %s1571 = sand.u32 %s97, 1
        %s1572 = scalar_lea.sflag [#allocation4], %s1571
        %s1573 = sand.u32 %s97, 1
        %s1574 = smul.addr %s1573, 32
        %s1575 = scalar_lea.vmem [#allocation8], %s1574
        // Predicated region
        $region45: #{decoder_forward.3} parent=31 // pred_check
          %p1576 = pneg %p107
        $region46: #{decoder_forward.3} parent=31 // pred_check_branch
          %1578 = sbr.rel (%p1576) target = $region48
        $region47: #{decoder_forward.3} parent=31 // pred_region
          %s1580 = ssub.s32 512, 512
          %1581 = vsyncadd %s1572, %s1580
          %s1582 = smul.addr %s21, 8
          %s1583 = smul.addr %s1582, 64
          %s1584 = scalar_lea.hbm %s3, %s1583
          %s1585 = sshll.u32 %s1575, 4
          %s1586 = int_to_ptr.vmem [resolvable:$true] %s1585
          %1591 = dma.vmem_to_hbm [thread:$0]  %s1586, 512, %s1584, %s1572, 64, 64, 4
        $region48: #{decoder_forward.3} parent=31 // pred_fallthru
          _
      $region32: #{decoder_forward.3} parent=5 // pred_fallthru
        _
      %p1592 = scmp.le.s32.totalorder 2, %s16
      // Predicated region
      $region49: #{decoder_forward.3} parent=5 // pred_check
        %p1593 = pneg %p1592
      $region50: #{decoder_forward.3} parent=5 // pred_check_branch
        %1595 = sbr.rel (%p1593) target = $region52
      $region51: #{decoder_forward.3} parent=5 // pred_region
        %s1596 = ssub.s32 %s16, 2
        // Predicated region
        $region53: #{decoder_forward.3} parent=51 // pred_check
          %p1597 = pneg %p113
        $region54: #{decoder_forward.3} parent=51 // pred_check_branch
          %1599 = sbr.rel (%p1597) target = $region56
        $region55: #{decoder_forward.3} parent=51 // pred_region
          %s1600 = sand.u32 %s98, 1
          %s1601 = scalar_lea.sflag [#allocation4], %s1600
          %s1602 = sand.u32 %s98, 1
          %s1603 = smul.addr %s1602, 32
          %s1604 = scalar_lea.vmem [#allocation8], %s1603
          %1605 = dma.done %s1601, 512
        $region56: #{decoder_forward.3} parent=51 // pred_fallthru
          _
      $region52: #{decoder_forward.3} parent=5 // pred_fallthru
        _
    $region6: #{decoder_forward.3} parent=1 // loop_footer
      %s20 = sadd.s32 1, %s16
    $region7: #{decoder_forward.3} parent=1 // loop_footer_branch
      %15 = sbr.rel target = $region3
    $region8: #{decoder_forward.3} parent=1 // loop_exit
      _
    %1606 = vsyncpa [#allocation3], 1
    %s1607 = scalar_lea.sflag [#allocation3], 1
    %1608 = vsyncpa %s1607, 1
    %1609 = vsyncpa [#allocation6], 1
    %1610 = vsyncpa [#allocation4], 1
    %s1611 = scalar_lea.sflag [#allocation4], 1
    %1612 = vsyncpa %s1611, 1

// kernel: decoder_forward.4
$region0: #{decoder_forward.4}
  #allocation0 [shape = 'u32[]', space=smem, size = 0x4, offset = 0x4, fixed_abs, tag = 'smem constant byte address 0x4 - core index']
  #allocation1 [shape = 'u32[144,128]{1,0:T(1,128)}', space=vmem, size = 0x12000, scoped, tag = 'internal scratch']
  %s0 = inlined_call_operand.hbm [shape: bf16[2,8,8,16], index: 0, kind: input, shape index: {}]
  %s1 = inlined_call_operand.hbm [shape: bf16[3,3,16,8], index: 1, kind: input, shape index: {}]
  %s2 = inlined_call_operand.hbm [shape: f32[1,8], index: 2, kind: input, shape index: {}]
  %s3 = inlined_call_operand.hbm [shape: bf16[2,16,16,8], index: 3, kind: output, shape index: {}]
  %s4 = sld [smem:[#allocation0]]
  $region57: #{decoder_forward.4} parent=0
    _
  %s6 = ssub.s32 1, %s4
  %s7 = scalar_select 0, %s6, %s4
  $region1: #{decoder_forward.4} parent=0
    #allocation2 [shape = 'u8[32768]{0}', space=vmem, size = 0x8000, scoped, tag = 'input window, operand 0']
    #allocation3 [shape = 's32[2]{0}', space=sflag, size = 0x8, scoped, tag = 'scoped memory for decoder_forward.4']
    #allocation4 [shape = 's32[2]{0}', space=sflag, size = 0x8, scoped, tag = 'scoped memory for decoder_forward.4']
    #allocation5 [shape = 'u8[36864]{0}', space=vmem, size = 0x9000, scoped, tag = 'input window, operand 1, single buffered']
    #allocation6 [shape = 's32[1]{0}', space=sflag, size = 0x4, scoped, tag = 'scoped memory for decoder_forward.4']
    #allocation7 [shape = 'u8[512]{0}', space=vmem, size = 0x400, scoped, tag = 'input window, operand 2, single buffered']
    #allocation8 [shape = 'u8[131072]{0}', space=vmem, size = 0x20000, scoped, tag = 'output window, operand 0']
    %8 = vsyncpa [#allocation3], 0
    %s9 = scalar_lea.sflag [#allocation3], 1
    %10 = vsyncpa %s9, 0
    %11 = vsyncpa [#allocation6], 0
    %12 = vsyncpa [#allocation4], 0
    %s13 = scalar_lea.sflag [#allocation4], 1
    %14 = vsyncpa %s13, 0
    loop: start=0, step=1, limit=4
    $region2: #{decoder_forward.4} parent=1 // loop_pre_header
      _
    $region3: #{decoder_forward.4} parent=1 // loop_header
      %s16 = sphi 0, %s20
      %p17 = scmp.ge.s32.totalorder %s16, 4
      %s26 = sphi 0, %s28
      %s29 = sphi 0, %s26
      %s30 = sphi 0, %s29
      %s46 = sphi 0, %s30
      %s50 = sphi 0, %s50
      %s52 = sphi 0, %s50
      %s53 = sphi 0, %s52
      %s67 = sphi 0, %s53
      %s71 = sphi 0, %s71
      %s73 = sphi 0, %s71
      %s74 = sphi 0, %s73
      %s88 = sphi 0, %s74
      %s94 = sphi 0, %s96
      %s97 = sphi 0, %s94
      %s98 = sphi 0, %s97
      %s114 = sphi 0, %s98
    $region4: #{decoder_forward.4} parent=1 // loop_header_branch
      %19 = sbr.rel (%p17) target = $region8
    $region5: #{decoder_forward.4} parent=1 // loop_body
      %s21 = ssub.s32 %s16, 1
      %s22 = ssub.s32 %s16, 2
      %s23 = sadd.s32 %s16, 1
      %s24 = ssub.s32 %s16, %s23
      %p25 = scmp.eq.s32.totalorder %s24, 0
      %s27 = sadd.s32 %s26, 1
      %s28 = scalar_select %p25, %s26, %s27
      %p31 = pneg %p25
      %p32 = scmp.eq.s32.totalorder %s16, 1
      %p33 = por %p31, %p32
      %p34 = scmp.ne.s32.totalorder %s26, %s29
      %p35 = scmp.eq.s32.totalorder %s16, 0
      %p36 = por %p34, %p35
      %p37 = scmp.ne.s32.totalorder %s26, %s29
      %p38 = scmp.eq.s32.totalorder %s21, 1
      %p39 = por %p37, %p38
      %p40 = scmp.ne.s32.totalorder %s29, %s30
      %p41 = scmp.eq.s32.totalorder %s21, 0
      %p42 = por %p40, %p41
      %p43 = scmp.ne.s32.totalorder %s29, %s30
      %p44 = scmp.eq.s32.totalorder %s22, 1
      %p45 = por %p43, %p44
      %p47 = scmp.ne.s32.totalorder %s30, %s46
      %p48 = scmp.eq.s32.totalorder %s22, 0
      %p49 = por %p47, %p48
      %s51 = sadd.s32 %s50, 1
      %p54 = scmp.eq.s32.totalorder %s16, 1
      %p55 = scmp.ne.s32.totalorder %s50, %s52
      %p56 = scmp.eq.s32.totalorder %s16, 0
      %p57 = por %p55, %p56
      %p58 = scmp.ne.s32.totalorder %s50, %s52
      %p59 = scmp.eq.s32.totalorder %s21, 1
      %p60 = por %p58, %p59
      %p61 = scmp.ne.s32.totalorder %s52, %s53
      %p62 = scmp.eq.s32.totalorder %s21, 0
      %p63 = por %p61, %p62
      %p64 = scmp.ne.s32.totalorder %s52, %s53
      %p65 = scmp.eq.s32.totalorder %s22, 1
      %p66 = por %p64, %p65
      %p68 = scmp.ne.s32.totalorder %s53, %s67
      %p69 = scmp.eq.s32.totalorder %s22, 0
      %p70 = por %p68, %p69
      %s72 = sadd.s32 %s71, 1
      %p75 = scmp.eq.s32.totalorder %s16, 1
      %p76 = scmp.ne.s32.totalorder %s71, %s73
      %p77 = scmp.eq.s32.totalorder %s16, 0
      %p78 = por %p76, %p77
      %p79 = scmp.ne.s32.totalorder %s71, %s73
      %p80 = scmp.eq.s32.totalorder %s21, 1
      %p81 = por %p79, %p80
      %p82 = scmp.ne.s32.totalorder %s73, %s74
      %p83 = scmp.eq.s32.totalorder %s21, 0
      %p84 = por %p82, %p83
      %p85 = scmp.ne.s32.totalorder %s73, %s74
      %p86 = scmp.eq.s32.totalorder %s22, 1
      %p87 = por %p85, %p86
      %p89 = scmp.ne.s32.totalorder %s74, %s88
      %p90 = scmp.eq.s32.totalorder %s22, 0
      %p91 = por %p89, %p90
      %s92 = ssub.s32 %s16, %s23
      %p93 = scmp.eq.s32.totalorder %s92, 0
      %s95 = sadd.s32 %s94, 1
      %s96 = scalar_select %p93, %s94, %s95
      %p99 = pneg %p93
      %p100 = scmp.eq.s32.totalorder %s16, 1
      %p101 = por %p99, %p100
      %p102 = scmp.ne.s32.totalorder %s94, %s97
      %p103 = scmp.eq.s32.totalorder %s16, 0
      %p104 = por %p102, %p103
      %p105 = scmp.ne.s32.totalorder %s94, %s97
      %p106 = scmp.eq.s32.totalorder %s21, 1
      %p107 = por %p105, %p106
      %p108 = scmp.ne.s32.totalorder %s97, %s98
      %p109 = scmp.eq.s32.totalorder %s21, 0
      %p110 = por %p108, %p109
      %p111 = scmp.ne.s32.totalorder %s97, %s98
      %p112 = scmp.eq.s32.totalorder %s22, 1
      %p113 = por %p111, %p112
      %p115 = scmp.ne.s32.totalorder %s98, %s114
      %p116 = scmp.eq.s32.totalorder %s22, 0
      %p117 = por %p115, %p116
      %p118 = scmp.le.s32.totalorder 1, %s16
      %p119 = scmp.lt.s32.totalorder %s16, 3
      %p120 = pnand %p118, %p119
      %p121 = pneg %p120
      // Predicated region
      $region9: #{decoder_forward.4} parent=5 // pred_check
        _
      $region10: #{decoder_forward.4} parent=5 // pred_check_branch
        %123 = sbr.rel (%p120) target = $region12
      $region11: #{decoder_forward.4} parent=5 // pred_region
        %s124 = ssub.s32 %s16, 1
        // Predicated region
        $region13: #{decoder_forward.4} parent=11 // pred_check
          %p125 = pneg %p63
        $region14: #{decoder_forward.4} parent=11 // pred_check_branch
          %127 = sbr.rel (%p125) target = $region16
        $region15: #{decoder_forward.4} parent=11 // pred_region
          %s129 = ssub.s32 1152, 1152
          %130 = vsyncadd [#allocation6], %s129
          %s131 = sshll.u32 [#allocation5], 4
          %s132 = int_to_ptr.vmem [resolvable:$true] %s131
          %137 = dma.hbm_to_vmem [thread:$0]  %s1, 1152, %s132, [#allocation6], 64, 64, 4
        $region16: #{decoder_forward.4} parent=11 // pred_fallthru
          _
        // Predicated region
        $region17: #{decoder_forward.4} parent=11 // pred_check
          %p138 = pneg %p84
        $region18: #{decoder_forward.4} parent=11 // pred_check_branch
          %140 = sbr.rel (%p138) target = $region20
        $region19: #{decoder_forward.4} parent=11 // pred_region
          %s142 = ssub.s32 16, 16
          %143 = vsyncadd [#allocation6], %s142
          %s145 = sshll.u32 [#allocation7], 4
          %s146 = int_to_ptr.vmem [resolvable:$true] %s145
          %148 = dma.hbm_to_vmem [thread:$0]  %s2, 16, %s146, [#allocation6]
        $region20: #{decoder_forward.4} parent=11 // pred_fallthru
          _
      $region12: #{decoder_forward.4} parent=5 // pred_fallthru
        _
      %p149 = scmp.lt.s32.totalorder %s16, 2
      // Predicated region
      $region21: #{decoder_forward.4} parent=5 // pred_check
        %p150 = pneg %p149
      $region22: #{decoder_forward.4} parent=5 // pred_check_branch
        %152 = sbr.rel (%p150) target = $region24
      $region23: #{decoder_forward.4} parent=5 // pred_region
        // Predicated region
        $region25: #{decoder_forward.4} parent=23 // pred_check
          %p153 = pneg %p36
        $region26: #{decoder_forward.4} parent=23 // pred_check_branch
          %155 = sbr.rel (%p153) target = $region28
        $region27: #{decoder_forward.4} parent=23 // pred_region
          %s156 = sand.u32 %s26, 1
          %s157 = scalar_lea.sflag [#allocation3], %s156
          %s158 = sand.u32 %s26, 1
          %s159 = smul.addr %s158, 32
          %s160 = scalar_lea.vmem [#allocation2], %s159
          %s162 = ssub.s32 512, 512
          %163 = vsyncadd %s157, %s162
          %s164 = smul.addr %s16, 8
          %s165 = smul.addr %s164, 64
          %s166 = scalar_lea.hbm %s0, %s165
          %s167 = sshll.u32 %s160, 4
          %s168 = int_to_ptr.vmem [resolvable:$true] %s167
          %173 = dma.hbm_to_vmem [thread:$0]  %s166, 512, %s168, %s157, 64, 64, 4
        $region28: #{decoder_forward.4} parent=23 // pred_fallthru
          _
      $region24: #{decoder_forward.4} parent=5 // pred_fallthru
        _
      %p174 = scmp.le.s32.totalorder 1, %s16
      %p175 = scmp.lt.s32.totalorder %s16, 3
      %p176 = pnand %p174, %p175
      %p177 = pneg %p176
      // Predicated region
      $region29: #{decoder_forward.4} parent=5 // pred_check
        _
      $region30: #{decoder_forward.4} parent=5 // pred_check_branch
        %179 = sbr.rel (%p176) target = $region32
      $region31: #{decoder_forward.4} parent=5 // pred_region
        %s180 = ssub.s32 %s16, 1
        %s181 = sand.u32 %s29, 1
        %s182 = scalar_lea.sflag [#allocation3], %s181
        %s183 = sand.u32 %s29, 1
        %s184 = smul.addr %s183, 32
        %s185 = scalar_lea.vmem [#allocation2], %s184
        // Predicated region
        $region33: #{decoder_forward.4} parent=31 // pred_check
          %p186 = pneg %p42
        $region34: #{decoder_forward.4} parent=31 // pred_check_branch
          %188 = sbr.rel (%p186) target = $region36
        $region35: #{decoder_forward.4} parent=31 // pred_region
          %189 = dma.done %s182, 512
        $region36: #{decoder_forward.4} parent=31 // pred_fallthru
          _
        // Predicated region
        $region37: #{decoder_forward.4} parent=31 // pred_check
          %p190 = pneg %p63
        $region38: #{decoder_forward.4} parent=31 // pred_check_branch
          %192 = sbr.rel (%p190) target = $region40
        $region39: #{decoder_forward.4} parent=31 // pred_region
          %193 = dma.done [#allocation6], 1152
        $region40: #{decoder_forward.4} parent=31 // pred_fallthru
          _
        // Predicated region
        $region41: #{decoder_forward.4} parent=31 // pred_check
          %p194 = pneg %p84
        $region42: #{decoder_forward.4} parent=31 // pred_check_branch
          %196 = sbr.rel (%p194) target = $region44
        $region43: #{decoder_forward.4} parent=31 // pred_region
          %197 = dma.done [#allocation6], 16
        $region44: #{decoder_forward.4} parent=31 // pred_fallthru
          _
        %s198 = sand.u32 %s29, 1
        %s199 = scalar_lea.sflag [#allocation3], %s198
        %s200 = sand.u32 %s29, 1
        %s201 = smul.addr %s200, 32
        %s202 = scalar_lea.vmem [#allocation2], %s201
        %p203 = pneg %p42
        %p204 = pneg %p39
        %p205 = pneg %p63
        %p206 = pneg %p60
        %p207 = pneg %p84
        %p208 = pneg %p81
        %p209 = pneg %p110
        %p210 = pneg %p107
        %s211 = sand.u32 %s97, 1
        %s212 = scalar_lea.sflag [#allocation4], %s211
        %s213 = sand.u32 %s97, 1
        %s214 = smul.addr %s213, 128
        %s215 = scalar_lea.vmem [#allocation8], %s214
        %v217 = vld [vmem:[%s185] sm:$0xf]
        %v218 = vld [vmem:[%s185 + $0x4] sm:$0xf]
        %v219 = vld [vmem:[%s185 + $0x8] sm:$0xf]
        %v220 = vld [vmem:[%s185 + $0xc] sm:$0xf]
        %v221 = vld [vmem:[%s185 + $0x10] sm:$0xf]
        %v222 = vld [vmem:[%s185 + $0x14] sm:$0xf]
        %v223 = vld [vmem:[%s185 + $0x18] sm:$0xf]
        %v224 = vld [vmem:[%s185 + $0x1c] sm:$0xf]
        %v226 = vshrl.u32 0, 16
        %v228 = vrot.slane %v226, 7
        %v229 = vshll.u32 0, 16
        %v231 = vor.u32 %v228, %v229
        %v233 = vshrl.u32 %v217, 16
        %v235 = vrot.slane %v233, 7
        %v236 = vshll.u32 %v217, 16
        %v238 = vor.u32 %v235, %v236
        %v240 = vshrl.u32 %v218, 16
        %v242 = vrot.slane %v240, 7
        %v243 = vshll.u32 %v218, 16
        %v245 = vor.u32 %v242, %v243
        %v247 = vshrl.u32 %v219, 16
        %v249 = vrot.slane %v247, 7
        %v250 = vshll.u32 %v219, 16
        %v252 = vor.u32 %v249, %v250
        %v254 = vshrl.u32 %v220, 16
        %v256 = vrot.slane %v254, 7
        %v257 = vshll.u32 %v220, 16
        %v259 = vor.u32 %v256, %v257
        %v261 = vshrl.u32 %v221, 16
        %v263 = vrot.slane %v261, 7
        %v264 = vshll.u32 %v221, 16
        %v266 = vor.u32 %v263, %v264
        %v268 = vshrl.u32 %v222, 16
        %v270 = vrot.slane %v268, 7
        %v271 = vshll.u32 %v222, 16
        %v273 = vor.u32 %v270, %v271
        %v275 = vshrl.u32 %v223, 16
        %v277 = vrot.slane %v275, 7
        %v278 = vshll.u32 %v223, 16
        %v280 = vor.u32 %v277, %v278
        %v282 = vshrl.u32 %v224, 16
        %v284 = vrot.slane %v282, 7
        %v285 = vshll.u32 %v224, 16
        %v287 = vor.u32 %v284, %v285
        %vm297 = vcmask 1040384
        %vm298 = vsmask.f32 256
        %vm299 = vmand %vm297, %vm298
        %v300 = vsel %vm299, 0, %v231
        %v301 = vsel %vm299, 0, %v238
        %v302 = vsel %vm299, 0, %v245
        %v303 = vsel %vm299, 0, %v252
        %v304 = vsel %vm299, 0, %v259
        %v305 = vsel %vm299, 0, %v266
        %v306 = vsel %vm299, 0, %v273
        %v307 = vsel %vm299, 0, %v280
        %v308 = vsel %vm299, 0, %v287
        %vm309 = vcmask 1044480
        %vm310 = vsmask.f32 4352
        %vm311 = vmand %vm309, %vm310
        %v312 = vsel %vm311, %v300, 0
        %v313 = vsel %vm311, %v301, 0
        %v314 = vsel %vm311, %v302, 0
        %v315 = vsel %vm311, %v303, 0
        %v316 = vsel %vm311, %v304, 0
        %v317 = vsel %vm311, %v305, 0
        %v318 = vsel %vm311, %v306, 0
        %v319 = vsel %vm311, %v307, 0
        %v320 = vsel %vm311, %v308, 0
        %v321 = vld [vmem:[#allocation5] sm:$0xf]
        %v322 = vld [vmem:[#allocation5 + $0x4] sm:$0xf]
        %v331 = vunpack.c.l.b16 %v312
        %v332 = vunpack.c.h.b16 %v312
        %v333 = vunpack.c.l.b16 %v313
        %v334 = vunpack.c.h.b16 %v313
        %v335 = vunpack.c.l.b16 %v314
        %v336 = vunpack.c.h.b16 %v314
        %v337 = vunpack.c.l.b16 %v315
        %v338 = vunpack.c.h.b16 %v315
        %v339 = vunpack.c.l.b16 %v316
        %v340 = vunpack.c.h.b16 %v316
        %v341 = vunpack.c.l.b16 %v317
        %v342 = vunpack.c.h.b16 %v317
        %v343 = vunpack.c.l.b16 %v318
        %v344 = vunpack.c.h.b16 %v318
        %v345 = vunpack.c.l.b16 %v319
        %v346 = vunpack.c.h.b16 %v319
        %v347 = vpack.c.b16 %v331, %v331
        %v348 = vpack.c.b16 %v332, %v332
        %v349 = vpack.c.b16 %v333, %v333
        %v350 = vpack.c.b16 %v334, %v334
        %v351 = vpack.c.b16 %v335, %v335
        %v352 = vpack.c.b16 %v336, %v336
        %v353 = vpack.c.b16 %v337, %v337
        %v354 = vpack.c.b16 %v338, %v338
        %v355 = vpack.c.b16 %v339, %v339
        %v356 = vpack.c.b16 %v340, %v340
        %v357 = vpack.c.b16 %v341, %v341
        %v358 = vpack.c.b16 %v342, %v342
        %v359 = vpack.c.b16 %v343, %v343
        %v360 = vpack.c.b16 %v344, %v344
        %v361 = vpack.c.b16 %v345, %v345
        %v362 = vpack.c.b16 %v346, %v346
        %vm363 = vsmask.f32 3328
        %vm364 = vsmask.f32 7440
        %vm365 = vmor %vm363, %vm364
        %v367 = vshrl.u32 %v347, 16
        %v369 = vrot.slane %v367, 4
        %v370 = vshll.u32 %v347, 16
        %v372 = vrot.slane %v370, 5
        %v373 = vor.u32 %v369, %v372
        %v374 = vrot.slane %v373, 4
        %v376 = vshll.u32 %v348, 16
        %v378 = vrot.slane %v376, 5
        %v379 = vsel %vm365, %v374, %v378
        %v381 = vshrl.u32 %v349, 16
        %v383 = vrot.slane %v381, 4
        %v384 = vshll.u32 %v349, 16
        %v386 = vrot.slane %v384, 5
        %v387 = vor.u32 %v383, %v386
        %v388 = vrot.slane %v387, 4
        %v390 = vshll.u32 %v350, 16
        %v392 = vrot.slane %v390, 5
        %v393 = vsel %vm365, %v388, %v392
        %v395 = vshrl.u32 %v351, 16
        %v397 = vrot.slane %v395, 4
        %v398 = vshll.u32 %v351, 16
        %v400 = vrot.slane %v398, 5
        %v401 = vor.u32 %v397, %v400
        %v402 = vrot.slane %v401, 4
        %v404 = vshll.u32 %v352, 16
        %v406 = vrot.slane %v404, 5
        %v407 = vsel %vm365, %v402, %v406
        %v409 = vshrl.u32 %v353, 16
        %v411 = vrot.slane %v409, 4
        %v412 = vshll.u32 %v353, 16
        %v414 = vrot.slane %v412, 5
        %v415 = vor.u32 %v411, %v414
        %v416 = vrot.slane %v415, 4
        %v418 = vshll.u32 %v354, 16
        %v420 = vrot.slane %v418, 5
        %v421 = vsel %vm365, %v416, %v420
        %v423 = vshrl.u32 %v355, 16
        %v425 = vrot.slane %v423, 4
        %v426 = vshll.u32 %v355, 16
        %v428 = vrot.slane %v426, 5
        %v429 = vor.u32 %v425, %v428
        %v430 = vrot.slane %v429, 4
        %v432 = vshll.u32 %v356, 16
        %v434 = vrot.slane %v432, 5
        %v435 = vsel %vm365, %v430, %v434
        %v437 = vshrl.u32 %v357, 16
        %v439 = vrot.slane %v437, 4
        %v440 = vshll.u32 %v357, 16
        %v442 = vrot.slane %v440, 5
        %v443 = vor.u32 %v439, %v442
        %v444 = vrot.slane %v443, 4
        %v446 = vshll.u32 %v358, 16
        %v448 = vrot.slane %v446, 5
        %v449 = vsel %vm365, %v444, %v448
        %v451 = vshrl.u32 %v359, 16
        %v453 = vrot.slane %v451, 4
        %v454 = vshll.u32 %v359, 16
        %v456 = vrot.slane %v454, 5
        %v457 = vor.u32 %v453, %v456
        %v458 = vrot.slane %v457, 4
        %v460 = vshll.u32 %v360, 16
        %v462 = vrot.slane %v460, 5
        %v463 = vsel %vm365, %v458, %v462
        %v465 = vshrl.u32 %v361, 16
        %v467 = vrot.slane %v465, 4
        %v468 = vshll.u32 %v361, 16
        %v470 = vrot.slane %v468, 5
        %v471 = vor.u32 %v467, %v470
        %v472 = vrot.slane %v471, 4
        %v474 = vshll.u32 %v362, 16
        %v476 = vrot.slane %v474, 5
        %v477 = vsel %vm365, %v472, %v476
        %s478 = scalar_lea.vmem [#allocation5], 8
        %v479 = vld [vmem:[%s478] sm:$0xf]
        %v480 = vld [vmem:[%s478 + $0x4] sm:$0xf]
        %v481 = vunpack.c.l.b16 %v379
        %v482 = vunpack.c.l.b16 %v393
        %v483 = vunpack.c.l.b16 %v407
        %v484 = vunpack.c.l.b16 %v421
        %v485 = vunpack.c.l.b16 %v435
        %v486 = vunpack.c.l.b16 %v449
        %v487 = vunpack.c.l.b16 %v463
        %v488 = vunpack.c.l.b16 %v477
        %v489 = vpack.c.b16 %v482, %v481
        %v490 = vpack.c.b16 %v484, %v483
        %v491 = vpack.c.b16 %v486, %v485
        %v492 = vpack.c.b16 %v488, %v487
        %v495 = vunpack.c.l.b16 %v479
        %v496 = vunpack.c.l.b16 %v480
        %v497 = vpack.c.b16 %v496, %v495
        %vm499 = vcmask 130048
        %v501 = vsel %vm499, %v489, 0
        %v504 = vsel %vm499, %v490, 0
        %v507 = vsel %vm499, %v491, 0
        %v510 = vsel %vm499, %v492, 0
        %512 = vmatprep.subr.bf16.mxu0 0
        %513 = vmatpush1.bf16.msra.mxu0 %v497
        %514 = vmatprep.subr.bf16.mxu0 0
        %515 = vmatpush1.bf16.msra.mxu0 0
        %516 = vmatprep.subr.bf16.mxu0 0
        %517 = vmatpush1.bf16.msra.mxu0 0
        %518 = vmatprep.subr.bf16.mxu0 0
        %519 = vmatpush1.bf16.msra.mxu0 0
        %520 = vmatprep.subr.bf16.mxu0 0
        %521 = vmatpush1.bf16.msra.mxu0 0
        %522 = vmatprep.subr.bf16.mxu0 0
        %523 = vmatpush1.bf16.msra.mxu0 0
        %524 = vmatprep.subr.bf16.mxu0 0
        %525 = vmatpush1.bf16.msra.mxu0 0
        %526 = vmatprep.subr.bf16.mxu0 0
        %527 = vmatpush1.bf16.msra.mxu0 0
        %528 = vmatprep.subr.bf16.mxu0 0
        %529 = vmatpush1.bf16.msra.mxu0 0
        %530 = vmatprep.subr.bf16.mxu0 0
        %531 = vmatpush1.bf16.msra.mxu0 0
        %532 = vmatprep.subr.bf16.mxu0 0
        %533 = vmatpush1.bf16.msra.mxu0 0
        %534 = vmatprep.subr.bf16.mxu0 0
        %535 = vmatpush1.bf16.msra.mxu0 0
        %536 = vmatprep.subr.bf16.mxu0 0
        %537 = vmatpush1.bf16.msra.mxu0 0
        %538 = vmatprep.subr.bf16.mxu0 0
        %539 = vmatpush1.bf16.msra.mxu0 0
        %540 = vmatprep.subr.bf16.mxu0 0
        %541 = vmatpush1.bf16.msra.mxu0 0
        %542 = vmatprep.subr.bf16.mxu0 0
        %543 = vmatpush1.bf16.msra.mxu0 0
        %544 = vmatprep.mubr.bf16.mxu0 0
        %545 = vmatmul.mubr.bf16.gmra.mrb[0].mxu0 %v501
        %v546 = vpop.f32.mrb[0].mxu0
        %v547 = vadd.f32 0.0, %v546
        %v548 = vpop.f32.mrb[0].mxu0
        %v549 = vpop.f32.mrb[0].mxu0
        %v550 = vadd.f32 0.0, %v549
        %v551 = vpop.f32.mrb[0].mxu0
        %552 = vmatprep.mubr.bf16.mxu0 0
        %553 = vmatmul.mubr.bf16.gmra.mrb[0].mxu0 %v504
        %v554 = vpop.f32.mrb[0].mxu0
        %v555 = vadd.f32 0.0, %v554
        %v556 = vpop.f32.mrb[0].mxu0
        %v557 = vpop.f32.mrb[0].mxu0
        %v558 = vadd.f32 0.0, %v557
        %v559 = vpop.f32.mrb[0].mxu0
        %560 = vmatprep.mubr.bf16.mxu0 0
        %561 = vmatmul.mubr.bf16.gmra.mrb[0].mxu0 %v507
        %v562 = vpop.f32.mrb[0].mxu0
        %v563 = vadd.f32 0.0, %v562
        %v564 = vpop.f32.mrb[0].mxu0
        %v565 = vpop.f32.mrb[0].mxu0
        %v566 = vadd.f32 0.0, %v565
        %v567 = vpop.f32.mrb[0].mxu0
        %568 = vmatprep.mubr.bf16.mxu0 0
        %569 = vmatmul.mubr.bf16.gmra.mrb[0].mxu0 %v510
        %v570 = vpop.f32.mrb[0].mxu0
        %v571 = vadd.f32 0.0, %v570
        %v572 = vpop.f32.mrb[0].mxu0
        %v573 = vpop.f32.mrb[0].mxu0
        %v574 = vadd.f32 0.0, %v573
        %v575 = vpop.f32.mrb[0].mxu0
        %576 = vdwg.mxu0
        %v577 = vpack.c.b16 %v333, %v331
        %v578 = vpack.c.b16 %v337, %v335
        %v579 = vpack.c.b16 %v341, %v339
        %v580 = vpack.c.b16 %v345, %v343
        %v583 = vunpack.c.l.b16 %v321
        %v584 = vunpack.c.l.b16 %v322
        %v585 = vpack.c.b16 %v584, %v583
        %v588 = vsel %vm499, %v577, 0
        %v591 = vsel %vm499, %v578, 0
        %v594 = vsel %vm499, %v579, 0
        %v597 = vsel %vm499, %v580, 0
        %599 = vmatprep.subr.bf16.mxu0 0
        %600 = vmatpush1.bf16.msra.mxu0 %v585
        %601 = vmatprep.subr.bf16.mxu0 0
        %602 = vmatpush1.bf16.msra.mxu0 0
        %603 = vmatprep.subr.bf16.mxu0 0
        %604 = vmatpush1.bf16.msra.mxu0 0
        %605 = vmatprep.subr.bf16.mxu0 0
        %606 = vmatpush1.bf16.msra.mxu0 0
        %607 = vmatprep.subr.bf16.mxu0 0
        %608 = vmatpush1.bf16.msra.mxu0 0
        %609 = vmatprep.subr.bf16.mxu0 0
        %610 = vmatpush1.bf16.msra.mxu0 0
        %611 = vmatprep.subr.bf16.mxu0 0
        %612 = vmatpush1.bf16.msra.mxu0 0
        %613 = vmatprep.subr.bf16.mxu0 0
        %614 = vmatpush1.bf16.msra.mxu0 0
        %615 = vmatprep.subr.bf16.mxu0 0
        %616 = vmatpush1.bf16.msra.mxu0 0
        %617 = vmatprep.subr.bf16.mxu0 0
        %618 = vmatpush1.bf16.msra.mxu0 0
        %619 = vmatprep.subr.bf16.mxu0 0
        %620 = vmatpush1.bf16.msra.mxu0 0
        %621 = vmatprep.subr.bf16.mxu0 0
        %622 = vmatpush1.bf16.msra.mxu0 0
        %623 = vmatprep.subr.bf16.mxu0 0
        %624 = vmatpush1.bf16.msra.mxu0 0
        %625 = vmatprep.subr.bf16.mxu0 0
        %626 = vmatpush1.bf16.msra.mxu0 0
        %627 = vmatprep.subr.bf16.mxu0 0
        %628 = vmatpush1.bf16.msra.mxu0 0
        %629 = vmatprep.subr.bf16.mxu0 0
        %630 = vmatpush1.bf16.msra.mxu0 0
        %631 = vmatprep.mubr.bf16.mxu0 0
        %632 = vmatmul.mubr.bf16.gmra.mrb[0].mxu0 %v588
        %v633 = vpop.f32.mrb[0].mxu0
        %v634 = vadd.f32 %v547, %v633
        %v635 = vpop.f32.mrb[0].mxu0
        %v636 = vpop.f32.mrb[0].mxu0
        %v637 = vadd.f32 %v550, %v636
        %v638 = vpop.f32.mrb[0].mxu0
        %639 = vmatprep.mubr.bf16.mxu0 0
        %640 = vmatmul.mubr.bf16.gmra.mrb[0].mxu0 %v591
        %v641 = vpop.f32.mrb[0].mxu0
        %v642 = vadd.f32 %v555, %v641
        %v643 = vpop.f32.mrb[0].mxu0
        %v644 = vpop.f32.mrb[0].mxu0
        %v645 = vadd.f32 %v558, %v644
        %v646 = vpop.f32.mrb[0].mxu0
        %647 = vmatprep.mubr.bf16.mxu0 0
        %648 = vmatmul.mubr.bf16.gmra.mrb[0].mxu0 %v594
        %v649 = vpop.f32.mrb[0].mxu0
        %v650 = vadd.f32 %v563, %v649
        %v651 = vpop.f32.mrb[0].mxu0
        %v652 = vpop.f32.mrb[0].mxu0
        %v653 = vadd.f32 %v566, %v652
        %v654 = vpop.f32.mrb[0].mxu0
        %655 = vmatprep.mubr.bf16.mxu0 0
        %656 = vmatmul.mubr.bf16.gmra.mrb[0].mxu0 %v597
        %v657 = vpop.f32.mrb[0].mxu0
        %v658 = vadd.f32 %v571, %v657
        %v659 = vpop.f32.mrb[0].mxu0
        %v660 = vpop.f32.mrb[0].mxu0
        %v661 = vadd.f32 %v574, %v660
        %v662 = vpop.f32.mrb[0].mxu0
        %663 = vdwg.mxu0
        %vm664 = vcmask 1042432
        %vm665 = vcmask 1046532
        %vm666 = vmor %vm664, %vm665
        %v667 = vrot.slane %v347, 5
        %v668 = vrot.slane %v667, 4
        %v669 = vrot.slane %v348, 5
        %v670 = vsel %vm666, %v668, %v669
        %v671 = vrot.slane %v349, 5
        %v672 = vrot.slane %v671, 4
        %v673 = vrot.slane %v350, 5
        %v674 = vsel %vm666, %v672, %v673
        %v675 = vrot.slane %v351, 5
        %v676 = vrot.slane %v675, 4
        %v677 = vrot.slane %v352, 5
        %v678 = vsel %vm666, %v676, %v677
        %v679 = vrot.slane %v353, 5
        %v680 = vrot.slane %v679, 4
        %v681 = vrot.slane %v354, 5
        %v682 = vsel %vm666, %v680, %v681
        %v683 = vrot.slane %v355, 5
        %v684 = vrot.slane %v683, 4
        %v685 = vrot.slane %v356, 5
        %v686 = vsel %vm666, %v684, %v685
        %v687 = vrot.slane %v357, 5
        %v688 = vrot.slane %v687, 4
        %v689 = vrot.slane %v358, 5
        %v690 = vsel %vm666, %v688, %v689
        %v691 = vrot.slane %v359, 5
        %v692 = vrot.slane %v691, 4
        %v693 = vrot.slane %v360, 5
        %v694 = vsel %vm666, %v692, %v693
        %v695 = vrot.slane %v361, 5
        %v696 = vrot.slane %v695, 4
        %v697 = vrot.slane %v362, 5
        %v698 = vsel %vm666, %v696, %v697
        %s699 = scalar_lea.vmem [#allocation5], 16
        %v700 = vld [vmem:[%s699] sm:$0xf]
        %v701 = vld [vmem:[%s699 + $0x4] sm:$0xf]
        %v702 = vunpack.c.l.b16 %v670
        %v703 = vunpack.c.l.b16 %v674
        %v704 = vunpack.c.l.b16 %v678
        %v705 = vunpack.c.l.b16 %v682
        %v706 = vunpack.c.l.b16 %v686
        %v707 = vunpack.c.l.b16 %v690
        %v708 = vunpack.c.l.b16 %v694
        %v709 = vunpack.c.l.b16 %v698
        %v710 = vpack.c.b16 %v703, %v702
        %v711 = vpack.c.b16 %v705, %v704
        %v712 = vpack.c.b16 %v707, %v706
        %v713 = vpack.c.b16 %v709, %v708
        %v716 = vunpack.c.l.b16 %v700
        %v717 = vunpack.c.l.b16 %v701
        %v718 = vpack.c.b16 %v717, %v716
        %v721 = vsel %vm499, %v710, 0
        %v724 = vsel %vm499, %v711, 0
        %v727 = vsel %vm499, %v712, 0
        %v730 = vsel %vm499, %v713, 0
        %732 = vmatprep.subr.bf16.mxu0 0
        %733 = vmatpush1.bf16.msra.mxu0 %v718
        %734 = vmatprep.subr.bf16.mxu0 0
        %735 = vmatpush1.bf16.msra.mxu0 0
        %736 = vmatprep.subr.bf16.mxu0 0
        %737 = vmatpush1.bf16.msra.mxu0 0
        %738 = vmatprep.subr.bf16.mxu0 0
        %739 = vmatpush1.bf16.msra.mxu0 0
        %740 = vmatprep.subr.bf16.mxu0 0
        %741 = vmatpush1.bf16.msra.mxu0 0
        %742 = vmatprep.subr.bf16.mxu0 0
        %743 = vmatpush1.bf16.msra.mxu0 0
        %744 = vmatprep.subr.bf16.mxu0 0
        %745 = vmatpush1.bf16.msra.mxu0 0
        %746 = vmatprep.subr.bf16.mxu0 0
        %747 = vmatpush1.bf16.msra.mxu0 0
        %748 = vmatprep.subr.bf16.mxu0 0
        %749 = vmatpush1.bf16.msra.mxu0 0
        %750 = vmatprep.subr.bf16.mxu0 0
        %751 = vmatpush1.bf16.msra.mxu0 0
        %752 = vmatprep.subr.bf16.mxu0 0
        %753 = vmatpush1.bf16.msra.mxu0 0
        %754 = vmatprep.subr.bf16.mxu0 0
        %755 = vmatpush1.bf16.msra.mxu0 0
        %756 = vmatprep.subr.bf16.mxu0 0
        %757 = vmatpush1.bf16.msra.mxu0 0
        %758 = vmatprep.subr.bf16.mxu0 0
        %759 = vmatpush1.bf16.msra.mxu0 0
        %760 = vmatprep.subr.bf16.mxu0 0
        %761 = vmatpush1.bf16.msra.mxu0 0
        %762 = vmatprep.subr.bf16.mxu0 0
        %763 = vmatpush1.bf16.msra.mxu0 0
        %764 = vmatprep.mubr.bf16.mxu0 0
        %765 = vmatmul.mubr.bf16.gmra.mrb[0].mxu0 %v721
        %v766 = vpop.f32.mrb[0].mxu0
        %v767 = vadd.f32 0.0, %v766
        %v768 = vpop.f32.mrb[0].mxu0
        %v769 = vpop.f32.mrb[0].mxu0
        %v770 = vadd.f32 0.0, %v769
        %v771 = vpop.f32.mrb[0].mxu0
        %772 = vmatprep.mubr.bf16.mxu0 0
        %773 = vmatmul.mubr.bf16.gmra.mrb[0].mxu0 %v724
        %v774 = vpop.f32.mrb[0].mxu0
        %v775 = vadd.f32 0.0, %v774
        %v776 = vpop.f32.mrb[0].mxu0
        %v777 = vpop.f32.mrb[0].mxu0
        %v778 = vadd.f32 0.0, %v777
        %v779 = vpop.f32.mrb[0].mxu0
        %780 = vmatprep.mubr.bf16.mxu0 0
        %781 = vmatmul.mubr.bf16.gmra.mrb[0].mxu0 %v727
        %v782 = vpop.f32.mrb[0].mxu0
        %v783 = vadd.f32 0.0, %v782
        %v784 = vpop.f32.mrb[0].mxu0
        %v785 = vpop.f32.mrb[0].mxu0
        %v786 = vadd.f32 0.0, %v785
        %v787 = vpop.f32.mrb[0].mxu0
        %788 = vmatprep.mubr.bf16.mxu0 0
        %789 = vmatmul.mubr.bf16.gmra.mrb[0].mxu0 %v730
        %v790 = vpop.f32.mrb[0].mxu0
        %v791 = vadd.f32 0.0, %v790
        %v792 = vpop.f32.mrb[0].mxu0
        %v793 = vpop.f32.mrb[0].mxu0
        %v794 = vadd.f32 0.0, %v793
        %v795 = vpop.f32.mrb[0].mxu0
        %796 = vdwg.mxu0
        %v797 = vadd.f32 %v634, %v767
        %v798 = vadd.f32 %v637, %v770
        %v799 = vadd.f32 %v642, %v775
        %v800 = vadd.f32 %v645, %v778
        %v801 = vadd.f32 %v650, %v783
        %v802 = vadd.f32 %v653, %v786
        %v803 = vadd.f32 %v658, %v791
        %v804 = vadd.f32 %v661, %v794
        %s805 = scalar_lea.vmem [#allocation5], 24
        %v806 = vld [vmem:[%s805] sm:$0xf]
        %v807 = vld [vmem:[%s805 + $0x4] sm:$0xf]
        %v809 = vunpack.c.l.b16 %v320
        %v810 = vpack.c.b16 %v335, %v333
        %v811 = vpack.c.b16 %v339, %v337
        %v812 = vpack.c.b16 %v343, %v341
        %v813 = vpack.c.b16 %v809, %v345
        %v816 = vunpack.c.l.b16 %v806
        %v817 = vunpack.c.l.b16 %v807
        %v818 = vpack.c.b16 %v817, %v816
        %v821 = vsel %vm499, %v810, 0
        %v824 = vsel %vm499, %v811, 0
        %v827 = vsel %vm499, %v812, 0
        %v830 = vsel %vm499, %v813, 0
        %832 = vmatprep.subr.bf16.mxu0 0
        %833 = vmatpush1.bf16.msra.mxu0 %v818
        %834 = vmatprep.subr.bf16.mxu0 0
        %835 = vmatpush1.bf16.msra.mxu0 0
        %836 = vmatprep.subr.bf16.mxu0 0
        %837 = vmatpush1.bf16.msra.mxu0 0
        %838 = vmatprep.subr.bf16.mxu0 0
        %839 = vmatpush1.bf16.msra.mxu0 0
        %840 = vmatprep.subr.bf16.mxu0 0
        %841 = vmatpush1.bf16.msra.mxu0 0
        %842 = vmatprep.subr.bf16.mxu0 0
        %843 = vmatpush1.bf16.msra.mxu0 0
        %844 = vmatprep.subr.bf16.mxu0 0
        %845 = vmatpush1.bf16.msra.mxu0 0
        %846 = vmatprep.subr.bf16.mxu0 0
        %847 = vmatpush1.bf16.msra.mxu0 0
        %848 = vmatprep.subr.bf16.mxu0 0
        %849 = vmatpush1.bf16.msra.mxu0 0
        %850 = vmatprep.subr.bf16.mxu0 0
        %851 = vmatpush1.bf16.msra.mxu0 0
        %852 = vmatprep.subr.bf16.mxu0 0
        %853 = vmatpush1.bf16.msra.mxu0 0
        %854 = vmatprep.subr.bf16.mxu0 0
        %855 = vmatpush1.bf16.msra.mxu0 0
        %856 = vmatprep.subr.bf16.mxu0 0
        %857 = vmatpush1.bf16.msra.mxu0 0
        %858 = vmatprep.subr.bf16.mxu0 0
        %859 = vmatpush1.bf16.msra.mxu0 0
        %860 = vmatprep.subr.bf16.mxu0 0
        %861 = vmatpush1.bf16.msra.mxu0 0
        %862 = vmatprep.subr.bf16.mxu0 0
        %863 = vmatpush1.bf16.msra.mxu0 0
        %864 = vmatprep.mubr.bf16.mxu0 0
        %865 = vmatmul.mubr.bf16.gmra.mrb[0].mxu0 %v821
        %v866 = vpop.f32.mrb[0].mxu0
        %v867 = vadd.f32 0.0, %v866
        %v868 = vpop.f32.mrb[0].mxu0
        %v869 = vpop.f32.mrb[0].mxu0
        %v870 = vadd.f32 0.0, %v869
        %v871 = vpop.f32.mrb[0].mxu0
        %872 = vmatprep.mubr.bf16.mxu0 0
        %873 = vmatmul.mubr.bf16.gmra.mrb[0].mxu0 %v824
        %v874 = vpop.f32.mrb[0].mxu0
        %v875 = vadd.f32 0.0, %v874
        %v876 = vpop.f32.mrb[0].mxu0
        %v877 = vpop.f32.mrb[0].mxu0
        %v878 = vadd.f32 0.0, %v877
        %v879 = vpop.f32.mrb[0].mxu0
        %880 = vmatprep.mubr.bf16.mxu0 0
        %881 = vmatmul.mubr.bf16.gmra.mrb[0].mxu0 %v827
        %v882 = vpop.f32.mrb[0].mxu0
        %v883 = vadd.f32 0.0, %v882
        %v884 = vpop.f32.mrb[0].mxu0
        %v885 = vpop.f32.mrb[0].mxu0
        %v886 = vadd.f32 0.0, %v885
        %v887 = vpop.f32.mrb[0].mxu0
        %888 = vmatprep.mubr.bf16.mxu0 0
        %889 = vmatmul.mubr.bf16.gmra.mrb[0].mxu0 %v830
        %v890 = vpop.f32.mrb[0].mxu0
        %v891 = vadd.f32 0.0, %v890
        %v892 = vpop.f32.mrb[0].mxu0
        %v893 = vpop.f32.mrb[0].mxu0
        %v894 = vadd.f32 0.0, %v893
        %v895 = vpop.f32.mrb[0].mxu0
        %896 = vdwg.mxu0
        %v897 = vadd.f32 %v797, %v867
        %v898 = vadd.f32 %v798, %v870
        %v899 = vadd.f32 %v799, %v875
        %v900 = vadd.f32 %v800, %v878
        %v901 = vadd.f32 %v801, %v883
        %v902 = vadd.f32 %v802, %v886
        %v903 = vadd.f32 %v803, %v891
        %v904 = vadd.f32 %v804, %v894
        %v905 = vunpack.c.h.b16 %v320
        %v906 = vpack.c.b16 %v809, %v809
        %v907 = vpack.c.b16 %v905, %v905
        %v909 = vshrl.u32 %v906, 16
        %v911 = vrot.slane %v909, 4
        %v912 = vshll.u32 %v906, 16
        %v914 = vrot.slane %v912, 5
        %v915 = vor.u32 %v911, %v914
        %v916 = vrot.slane %v915, 4
        %v918 = vshll.u32 %v907, 16
        %v920 = vrot.slane %v918, 5
        %v921 = vsel %vm365, %v916, %v920
        %s922 = scalar_lea.vmem [#allocation5], 32
        %v923 = vld [vmem:[%s922] sm:$0xf]
        %v924 = vld [vmem:[%s922 + $0x4] sm:$0xf]
        %v925 = vunpack.c.l.b16 %v921
        %v926 = vpack.c.b16 %v483, %v482
        %v927 = vpack.c.b16 %v485, %v484
        %v928 = vpack.c.b16 %v487, %v486
        %v929 = vpack.c.b16 %v925, %v488
        %v932 = vunpack.c.l.b16 %v923
        %v933 = vunpack.c.l.b16 %v924
        %v934 = vpack.c.b16 %v933, %v932
        %v937 = vsel %vm499, %v926, 0
        %v940 = vsel %vm499, %v927, 0
        %v943 = vsel %vm499, %v928, 0
        %v946 = vsel %vm499, %v929, 0
        %948 = vmatprep.subr.bf16.mxu0 0
        %949 = vmatpush1.bf16.msra.mxu0 %v934
        %950 = vmatprep.subr.bf16.mxu0 0
        %951 = vmatpush1.bf16.msra.mxu0 0
        %952 = vmatprep.subr.bf16.mxu0 0
        %953 = vmatpush1.bf16.msra.mxu0 0
        %954 = vmatprep.subr.bf16.mxu0 0
        %955 = vmatpush1.bf16.msra.mxu0 0
        %956 = vmatprep.subr.bf16.mxu0 0
        %957 = vmatpush1.bf16.msra.mxu0 0
        %958 = vmatprep.subr.bf16.mxu0 0
        %959 = vmatpush1.bf16.msra.mxu0 0
        %960 = vmatprep.subr.bf16.mxu0 0
        %961 = vmatpush1.bf16.msra.mxu0 0
        %962 = vmatprep.subr.bf16.mxu0 0
        %963 = vmatpush1.bf16.msra.mxu0 0
        %964 = vmatprep.subr.bf16.mxu0 0
        %965 = vmatpush1.bf16.msra.mxu0 0
        %966 = vmatprep.subr.bf16.mxu0 0
        %967 = vmatpush1.bf16.msra.mxu0 0
        %968 = vmatprep.subr.bf16.mxu0 0
        %969 = vmatpush1.bf16.msra.mxu0 0
        %970 = vmatprep.subr.bf16.mxu0 0
        %971 = vmatpush1.bf16.msra.mxu0 0
        %972 = vmatprep.subr.bf16.mxu0 0
        %973 = vmatpush1.bf16.msra.mxu0 0
        %974 = vmatprep.subr.bf16.mxu0 0
        %975 = vmatpush1.bf16.msra.mxu0 0
        %976 = vmatprep.subr.bf16.mxu0 0
        %977 = vmatpush1.bf16.msra.mxu0 0
        %978 = vmatprep.subr.bf16.mxu0 0
        %979 = vmatpush1.bf16.msra.mxu0 0
        %980 = vmatprep.mubr.bf16.mxu0 0
        %981 = vmatmul.mubr.bf16.gmra.mrb[0].mxu0 %v937
        %v982 = vpop.f32.mrb[0].mxu0
        %v983 = vadd.f32 0.0, %v982
        %v984 = vpop.f32.mrb[0].mxu0
        %v985 = vpop.f32.mrb[0].mxu0
        %v986 = vadd.f32 0.0, %v985
        %v987 = vpop.f32.mrb[0].mxu0
        %988 = vmatprep.mubr.bf16.mxu0 0
        %989 = vmatmul.mubr.bf16.gmra.mrb[0].mxu0 %v940
        %v990 = vpop.f32.mrb[0].mxu0
        %v991 = vadd.f32 0.0, %v990
        %v992 = vpop.f32.mrb[0].mxu0
        %v993 = vpop.f32.mrb[0].mxu0
        %v994 = vadd.f32 0.0, %v993
        %v995 = vpop.f32.mrb[0].mxu0
        %996 = vmatprep.mubr.bf16.mxu0 0
        %997 = vmatmul.mubr.bf16.gmra.mrb[0].mxu0 %v943
        %v998 = vpop.f32.mrb[0].mxu0
        %v999 = vadd.f32 0.0, %v998
        %v1000 = vpop.f32.mrb[0].mxu0
        %v1001 = vpop.f32.mrb[0].mxu0
        %v1002 = vadd.f32 0.0, %v1001
        %v1003 = vpop.f32.mrb[0].mxu0
        %1004 = vmatprep.mubr.bf16.mxu0 0
        %1005 = vmatmul.mubr.bf16.gmra.mrb[0].mxu0 %v946
        %v1006 = vpop.f32.mrb[0].mxu0
        %v1007 = vadd.f32 0.0, %v1006
        %v1008 = vpop.f32.mrb[0].mxu0
        %v1009 = vpop.f32.mrb[0].mxu0
        %v1010 = vadd.f32 0.0, %v1009
        %v1011 = vpop.f32.mrb[0].mxu0
        %1012 = vdwg.mxu0
        %v1013 = vadd.f32 %v897, %v983
        %v1014 = vadd.f32 %v898, %v986
        %v1015 = vadd.f32 %v899, %v991
        %v1016 = vadd.f32 %v900, %v994
        %v1017 = vadd.f32 %v901, %v999
        %v1018 = vadd.f32 %v902, %v1002
        %v1019 = vadd.f32 %v903, %v1007
        %v1020 = vadd.f32 %v904, %v1010
        %v1021 = vrot.slane %v906, 5
        %v1022 = vrot.slane %v1021, 4
        %v1023 = vrot.slane %v907, 5
        %v1024 = vsel %vm666, %v1022, %v1023
        %s1025 = scalar_lea.vmem [#allocation5], 40
        %v1026 = vld [vmem:[%s1025] sm:$0xf]
        %v1027 = vld [vmem:[%s1025 + $0x4] sm:$0xf]
        %v1028 = vunpack.c.l.b16 %v1024
        %v1029 = vpack.c.b16 %v704, %v703
        %v1030 = vpack.c.b16 %v706, %v705
        %v1031 = vpack.c.b16 %v708, %v707
        %v1032 = vpack.c.b16 %v1028, %v709
        %v1035 = vunpack.c.l.b16 %v1026
        %v1036 = vunpack.c.l.b16 %v1027
        %v1037 = vpack.c.b16 %v1036, %v1035
        %v1040 = vsel %vm499, %v1029, 0
        %v1043 = vsel %vm499, %v1030, 0
        %v1046 = vsel %vm499, %v1031, 0
        %v1049 = vsel %vm499, %v1032, 0
        %1051 = vmatprep.subr.bf16.mxu0 0
        %1052 = vmatpush1.bf16.msra.mxu0 %v1037
        %1053 = vmatprep.subr.bf16.mxu0 0
        %1054 = vmatpush1.bf16.msra.mxu0 0
        %1055 = vmatprep.subr.bf16.mxu0 0
        %1056 = vmatpush1.bf16.msra.mxu0 0
        %1057 = vmatprep.subr.bf16.mxu0 0
        %1058 = vmatpush1.bf16.msra.mxu0 0
        %1059 = vmatprep.subr.bf16.mxu0 0
        %1060 = vmatpush1.bf16.msra.mxu0 0
        %1061 = vmatprep.subr.bf16.mxu0 0
        %1062 = vmatpush1.bf16.msra.mxu0 0
        %1063 = vmatprep.subr.bf16.mxu0 0
        %1064 = vmatpush1.bf16.msra.mxu0 0
        %1065 = vmatprep.subr.bf16.mxu0 0
        %1066 = vmatpush1.bf16.msra.mxu0 0
        %1067 = vmatprep.subr.bf16.mxu0 0
        %1068 = vmatpush1.bf16.msra.mxu0 0
        %1069 = vmatprep.subr.bf16.mxu0 0
        %1070 = vmatpush1.bf16.msra.mxu0 0
        %1071 = vmatprep.subr.bf16.mxu0 0
        %1072 = vmatpush1.bf16.msra.mxu0 0
        %1073 = vmatprep.subr.bf16.mxu0 0
        %1074 = vmatpush1.bf16.msra.mxu0 0
        %1075 = vmatprep.subr.bf16.mxu0 0
        %1076 = vmatpush1.bf16.msra.mxu0 0
        %1077 = vmatprep.subr.bf16.mxu0 0
        %1078 = vmatpush1.bf16.msra.mxu0 0
        %1079 = vmatprep.subr.bf16.mxu0 0
        %1080 = vmatpush1.bf16.msra.mxu0 0
        %1081 = vmatprep.subr.bf16.mxu0 0
        %1082 = vmatpush1.bf16.msra.mxu0 0
        %1083 = vmatprep.mubr.bf16.mxu0 0
        %1084 = vmatmul.mubr.bf16.gmra.mrb[0].mxu0 %v1040
        %v1085 = vpop.f32.mrb[0].mxu0
        %v1086 = vadd.f32 0.0, %v1085
        %v1087 = vpop.f32.mrb[0].mxu0
        %v1088 = vpop.f32.mrb[0].mxu0
        %v1089 = vadd.f32 0.0, %v1088
        %v1090 = vpop.f32.mrb[0].mxu0
        %1091 = vmatprep.mubr.bf16.mxu0 0
        %1092 = vmatmul.mubr.bf16.gmra.mrb[0].mxu0 %v1043
        %v1093 = vpop.f32.mrb[0].mxu0
        %v1094 = vadd.f32 0.0, %v1093
        %v1095 = vpop.f32.mrb[0].mxu0
        %v1096 = vpop.f32.mrb[0].mxu0
        %v1097 = vadd.f32 0.0, %v1096
        %v1098 = vpop.f32.mrb[0].mxu0
        %1099 = vmatprep.mubr.bf16.mxu0 0
        %1100 = vmatmul.mubr.bf16.gmra.mrb[0].mxu0 %v1046
        %v1101 = vpop.f32.mrb[0].mxu0
        %v1102 = vadd.f32 0.0, %v1101
        %v1103 = vpop.f32.mrb[0].mxu0
        %v1104 = vpop.f32.mrb[0].mxu0
        %v1105 = vadd.f32 0.0, %v1104
        %v1106 = vpop.f32.mrb[0].mxu0
        %1107 = vmatprep.mubr.bf16.mxu0 0
        %1108 = vmatmul.mubr.bf16.gmra.mrb[0].mxu0 %v1049
        %v1109 = vpop.f32.mrb[0].mxu0
        %v1110 = vadd.f32 0.0, %v1109
        %v1111 = vpop.f32.mrb[0].mxu0
        %v1112 = vpop.f32.mrb[0].mxu0
        %v1113 = vadd.f32 0.0, %v1112
        %v1114 = vpop.f32.mrb[0].mxu0
        %1115 = vdwg.mxu0
        %v1116 = vadd.f32 %v1013, %v1086
        %v1117 = vadd.f32 %v1014, %v1089
        %v1118 = vadd.f32 %v1015, %v1094
        %v1119 = vadd.f32 %v1016, %v1097
        %v1120 = vadd.f32 %v1017, %v1102
        %v1121 = vadd.f32 %v1018, %v1105
        %v1122 = vadd.f32 %v1019, %v1110
        %v1123 = vadd.f32 %v1020, %v1113
        %s1124 = scalar_lea.vmem [#allocation5], 48
        %v1125 = vld [vmem:[%s1124] sm:$0xf]
        %v1126 = vld [vmem:[%s1124 + $0x4] sm:$0xf]
        %v1127 = vpack.c.b16 %v331, %v809
        %v1130 = vunpack.c.l.b16 %v1125
        %v1131 = vunpack.c.l.b16 %v1126
        %v1132 = vpack.c.b16 %v1131, %v1130
        %v1135 = vsel %vm499, %v1127, 0
        %1137 = vmatprep.subr.bf16.mxu0 0
        %1138 = vmatpush1.bf16.msra.mxu0 %v1132
        %1139 = vmatprep.subr.bf16.mxu0 0
        %1140 = vmatpush1.bf16.msra.mxu0 0
        %1141 = vmatprep.subr.bf16.mxu0 0
        %1142 = vmatpush1.bf16.msra.mxu0 0
        %1143 = vmatprep.subr.bf16.mxu0 0
        %1144 = vmatpush1.bf16.msra.mxu0 0
        %1145 = vmatprep.subr.bf16.mxu0 0
        %1146 = vmatpush1.bf16.msra.mxu0 0
        %1147 = vmatprep.subr.bf16.mxu0 0
        %1148 = vmatpush1.bf16.msra.mxu0 0
        %1149 = vmatprep.subr.bf16.mxu0 0
        %1150 = vmatpush1.bf16.msra.mxu0 0
        %1151 = vmatprep.subr.bf16.mxu0 0
        %1152 = vmatpush1.bf16.msra.mxu0 0
        %1153 = vmatprep.subr.bf16.mxu0 0
        %1154 = vmatpush1.bf16.msra.mxu0 0
        %1155 = vmatprep.subr.bf16.mxu0 0
        %1156 = vmatpush1.bf16.msra.mxu0 0
        %1157 = vmatprep.subr.bf16.mxu0 0
        %1158 = vmatpush1.bf16.msra.mxu0 0
        %1159 = vmatprep.subr.bf16.mxu0 0
        %1160 = vmatpush1.bf16.msra.mxu0 0
        %1161 = vmatprep.subr.bf16.mxu0 0
        %1162 = vmatpush1.bf16.msra.mxu0 0
        %1163 = vmatprep.subr.bf16.mxu0 0
        %1164 = vmatpush1.bf16.msra.mxu0 0
        %1165 = vmatprep.subr.bf16.mxu0 0
        %1166 = vmatpush1.bf16.msra.mxu0 0
        %1167 = vmatprep.subr.bf16.mxu0 0
        %1168 = vmatpush1.bf16.msra.mxu0 0
        %1169 = vmatprep.mubr.bf16.mxu0 0
        %1170 = vmatmul.mubr.bf16.gmra.mrb[0].mxu0 %v591
        %v1171 = vpop.f32.mrb[0].mxu0
        %v1172 = vadd.f32 0.0, %v1171
        %v1173 = vpop.f32.mrb[0].mxu0
        %v1174 = vpop.f32.mrb[0].mxu0
        %v1175 = vadd.f32 0.0, %v1174
        %v1176 = vpop.f32.mrb[0].mxu0
        %1177 = vmatprep.mubr.bf16.mxu0 0
        %1178 = vmatmul.mubr.bf16.gmra.mrb[0].mxu0 %v594
        %v1179 = vpop.f32.mrb[0].mxu0
        %v1180 = vadd.f32 0.0, %v1179
        %v1181 = vpop.f32.mrb[0].mxu0
        %v1182 = vpop.f32.mrb[0].mxu0
        %v1183 = vadd.f32 0.0, %v1182
        %v1184 = vpop.f32.mrb[0].mxu0
        %1185 = vmatprep.mubr.bf16.mxu0 0
        %1186 = vmatmul.mubr.bf16.gmra.mrb[0].mxu0 %v597
        %v1187 = vpop.f32.mrb[0].mxu0
        %v1188 = vadd.f32 0.0, %v1187
        %v1189 = vpop.f32.mrb[0].mxu0
        %v1190 = vpop.f32.mrb[0].mxu0
        %v1191 = vadd.f32 0.0, %v1190
        %v1192 = vpop.f32.mrb[0].mxu0
        %1193 = vmatprep.mubr.bf16.mxu0 0
        %1194 = vmatmul.mubr.bf16.gmra.mrb[0].mxu0 %v1135
        %v1195 = vpop.f32.mrb[0].mxu0
        %v1196 = vadd.f32 0.0, %v1195
        %v1197 = vpop.f32.mrb[0].mxu0
        %v1198 = vpop.f32.mrb[0].mxu0
        %v1199 = vadd.f32 0.0, %v1198
        %v1200 = vpop.f32.mrb[0].mxu0
        %1201 = vdwg.mxu0
        %v1202 = vadd.f32 %v1116, %v1172
        %v1203 = vadd.f32 %v1117, %v1175
        %v1204 = vadd.f32 %v1118, %v1180
        %v1205 = vadd.f32 %v1119, %v1183
        %v1206 = vadd.f32 %v1120, %v1188
        %v1207 = vadd.f32 %v1121, %v1191
        %v1208 = vadd.f32 %v1122, %v1196
        %v1209 = vadd.f32 %v1123, %v1199
        %s1210 = scalar_lea.vmem [#allocation5], 56
        %v1211 = vld [vmem:[%s1210] sm:$0xf]
        %v1212 = vld [vmem:[%s1210 + $0x4] sm:$0xf]
        %v1213 = vpack.c.b16 %v481, %v925
        %v1216 = vunpack.c.l.b16 %v1211
        %v1217 = vunpack.c.l.b16 %v1212
        %v1218 = vpack.c.b16 %v1217, %v1216
        %v1221 = vsel %vm499, %v1213, 0
        %1223 = vmatprep.subr.bf16.mxu0 0
        %1224 = vmatpush1.bf16.msra.mxu0 %v1218
        %1225 = vmatprep.subr.bf16.mxu0 0
        %1226 = vmatpush1.bf16.msra.mxu0 0
        %1227 = vmatprep.subr.bf16.mxu0 0
        %1228 = vmatpush1.bf16.msra.mxu0 0
        %1229 = vmatprep.subr.bf16.mxu0 0
        %1230 = vmatpush1.bf16.msra.mxu0 0
        %1231 = vmatprep.subr.bf16.mxu0 0
        %1232 = vmatpush1.bf16.msra.mxu0 0
        %1233 = vmatprep.subr.bf16.mxu0 0
        %1234 = vmatpush1.bf16.msra.mxu0 0
        %1235 = vmatprep.subr.bf16.mxu0 0
        %1236 = vmatpush1.bf16.msra.mxu0 0
        %1237 = vmatprep.subr.bf16.mxu0 0
        %1238 = vmatpush1.bf16.msra.mxu0 0
        %1239 = vmatprep.subr.bf16.mxu0 0
        %1240 = vmatpush1.bf16.msra.mxu0 0
        %1241 = vmatprep.subr.bf16.mxu0 0
        %1242 = vmatpush1.bf16.msra.mxu0 0
        %1243 = vmatprep.subr.bf16.mxu0 0
        %1244 = vmatpush1.bf16.msra.mxu0 0
        %1245 = vmatprep.subr.bf16.mxu0 0
        %1246 = vmatpush1.bf16.msra.mxu0 0
        %1247 = vmatprep.subr.bf16.mxu0 0
        %1248 = vmatpush1.bf16.msra.mxu0 0
        %1249 = vmatprep.subr.bf16.mxu0 0
        %1250 = vmatpush1.bf16.msra.mxu0 0
        %1251 = vmatprep.subr.bf16.mxu0 0
        %1252 = vmatpush1.bf16.msra.mxu0 0
        %1253 = vmatprep.subr.bf16.mxu0 0
        %1254 = vmatpush1.bf16.msra.mxu0 0
        %1255 = vmatprep.mubr.bf16.mxu0 0
        %1256 = vmatmul.mubr.bf16.gmra.mrb[0].mxu0 %v504
        %v1257 = vpop.f32.mrb[0].mxu0
        %v1258 = vadd.f32 0.0, %v1257
        %v1259 = vpop.f32.mrb[0].mxu0
        %v1260 = vpop.f32.mrb[0].mxu0
        %v1261 = vadd.f32 0.0, %v1260
        %v1262 = vpop.f32.mrb[0].mxu0
        %1263 = vmatprep.mubr.bf16.mxu0 0
        %1264 = vmatmul.mubr.bf16.gmra.mrb[0].mxu0 %v507
        %v1265 = vpop.f32.mrb[0].mxu0
        %v1266 = vadd.f32 0.0, %v1265
        %v1267 = vpop.f32.mrb[0].mxu0
        %v1268 = vpop.f32.mrb[0].mxu0
        %v1269 = vadd.f32 0.0, %v1268
        %v1270 = vpop.f32.mrb[0].mxu0
        %1271 = vmatprep.mubr.bf16.mxu0 0
        %1272 = vmatmul.mubr.bf16.gmra.mrb[0].mxu0 %v510
        %v1273 = vpop.f32.mrb[0].mxu0
        %v1274 = vadd.f32 0.0, %v1273
        %v1275 = vpop.f32.mrb[0].mxu0
        %v1276 = vpop.f32.mrb[0].mxu0
        %v1277 = vadd.f32 0.0, %v1276
        %v1278 = vpop.f32.mrb[0].mxu0
        %1279 = vmatprep.mubr.bf16.mxu0 0
        %1280 = vmatmul.mubr.bf16.gmra.mrb[0].mxu0 %v1221
        %v1281 = vpop.f32.mrb[0].mxu0
        %v1282 = vadd.f32 0.0, %v1281
        %v1283 = vpop.f32.mrb[0].mxu0
        %v1284 = vpop.f32.mrb[0].mxu0
        %v1285 = vadd.f32 0.0, %v1284
        %v1286 = vpop.f32.mrb[0].mxu0
        %1287 = vdwg.mxu0
        %v1288 = vadd.f32 %v1202, %v1258
        %v1289 = vadd.f32 %v1203, %v1261
        %v1290 = vadd.f32 %v1204, %v1266
        %v1291 = vadd.f32 %v1205, %v1269
        %v1292 = vadd.f32 %v1206, %v1274
        %v1293 = vadd.f32 %v1207, %v1277
        %v1294 = vadd.f32 %v1208, %v1282
        %v1295 = vadd.f32 %v1209, %v1285
        %s1296 = scalar_lea.vmem [#allocation5], 64
        %v1297 = vld [vmem:[%s1296] sm:$0xf]
        %v1298 = vld [vmem:[%s1296 + $0x4] sm:$0xf]
        %v1299 = vpack.c.b16 %v702, %v1028
        %v1302 = vunpack.c.l.b16 %v1297
        %v1303 = vunpack.c.l.b16 %v1298
        %v1304 = vpack.c.b16 %v1303, %v1302
        %v1307 = vsel %vm499, %v1299, 0
        %1309 = vmatprep.subr.bf16.mxu0 0
        %1310 = vmatpush1.bf16.msra.mxu0 %v1304
        %1311 = vmatprep.subr.bf16.mxu0 0
        %1312 = vmatpush1.bf16.msra.mxu0 0
        %1313 = vmatprep.subr.bf16.mxu0 0
        %1314 = vmatpush1.bf16.msra.mxu0 0
        %1315 = vmatprep.subr.bf16.mxu0 0
        %1316 = vmatpush1.bf16.msra.mxu0 0
        %1317 = vmatprep.subr.bf16.mxu0 0
        %1318 = vmatpush1.bf16.msra.mxu0 0
        %1319 = vmatprep.subr.bf16.mxu0 0
        %1320 = vmatpush1.bf16.msra.mxu0 0
        %1321 = vmatprep.subr.bf16.mxu0 0
        %1322 = vmatpush1.bf16.msra.mxu0 0
        %1323 = vmatprep.subr.bf16.mxu0 0
        %1324 = vmatpush1.bf16.msra.mxu0 0
        %1325 = vmatprep.subr.bf16.mxu0 0
        %1326 = vmatpush1.bf16.msra.mxu0 0
        %1327 = vmatprep.subr.bf16.mxu0 0
        %1328 = vmatpush1.bf16.msra.mxu0 0
        %1329 = vmatprep.subr.bf16.mxu0 0
        %1330 = vmatpush1.bf16.msra.mxu0 0
        %1331 = vmatprep.subr.bf16.mxu0 0
        %1332 = vmatpush1.bf16.msra.mxu0 0
        %1333 = vmatprep.subr.bf16.mxu0 0
        %1334 = vmatpush1.bf16.msra.mxu0 0
        %1335 = vmatprep.subr.bf16.mxu0 0
        %1336 = vmatpush1.bf16.msra.mxu0 0
        %1337 = vmatprep.subr.bf16.mxu0 0
        %1338 = vmatpush1.bf16.msra.mxu0 0
        %1339 = vmatprep.subr.bf16.mxu0 0
        %1340 = vmatpush1.bf16.msra.mxu0 0
        %1341 = vmatprep.mubr.bf16.mxu0 0
        %1342 = vmatmul.mubr.bf16.gmra.mrb[0].mxu0 %v724
        %v1343 = vpop.f32.mrb[0].mxu0
        %v1344 = vadd.f32 0.0, %v1343
        %v1345 = vpop.f32.mrb[0].mxu0
        %v1346 = vpop.f32.mrb[0].mxu0
        %v1347 = vadd.f32 0.0, %v1346
        %v1348 = vpop.f32.mrb[0].mxu0
        %1349 = vmatprep.mubr.bf16.mxu0 0
        %1350 = vmatmul.mubr.bf16.gmra.mrb[0].mxu0 %v727
        %v1351 = vpop.f32.mrb[0].mxu0
        %v1352 = vadd.f32 0.0, %v1351
        %v1353 = vpop.f32.mrb[0].mxu0
        %v1354 = vpop.f32.mrb[0].mxu0
        %v1355 = vadd.f32 0.0, %v1354
        %v1356 = vpop.f32.mrb[0].mxu0
        %1357 = vmatprep.mubr.bf16.mxu0 0
        %1358 = vmatmul.mubr.bf16.gmra.mrb[0].mxu0 %v730
        %v1359 = vpop.f32.mrb[0].mxu0
        %v1360 = vadd.f32 0.0, %v1359
        %v1361 = vpop.f32.mrb[0].mxu0
        %v1362 = vpop.f32.mrb[0].mxu0
        %v1363 = vadd.f32 0.0, %v1362
        %v1364 = vpop.f32.mrb[0].mxu0
        %1365 = vmatprep.mubr.bf16.mxu0 0
        %1366 = vmatmul.mubr.bf16.gmra.mrb[0].mxu0 %v1307
        %v1367 = vpop.f32.mrb[0].mxu0
        %v1368 = vadd.f32 0.0, %v1367
        %v1369 = vpop.f32.mrb[0].mxu0
        %v1370 = vpop.f32.mrb[0].mxu0
        %v1371 = vadd.f32 0.0, %v1370
        %v1372 = vpop.f32.mrb[0].mxu0
        %1373 = vdwg.mxu0
        %v1374 = vadd.f32 %v1288, %v1344
        %v1375 = vadd.f32 %v1289, %v1347
        %v1376 = vadd.f32 %v1290, %v1352
        %v1377 = vadd.f32 %v1291, %v1355
        %v1378 = vadd.f32 %v1292, %v1360
        %v1379 = vadd.f32 %v1293, %v1363
        %v1380 = vadd.f32 %v1294, %v1368
        %v1381 = vadd.f32 %v1295, %v1371
        %v1382 = vld [vmem:[#allocation7] sm:$0x1]
        %v1384 = vlaneseq
        %v1385 = vshrl.u32 %v1384, 7
        %v1386 = vsub.s32 0, %v1385
        %v1387 = vrot.slane %v1382, %v1386
        %v1389 = vadd.f32 %v1374, %v1387
        %v1390 = vadd.f32 %v1375, %v1387
        %v1391 = vadd.f32 %v1376, %v1387
        %v1392 = vadd.f32 %v1377, %v1387
        %v1393 = vadd.f32 %v1378, %v1387
        %v1394 = vadd.f32 %v1379, %v1387
        %v1395 = vadd.f32 %v1380, %v1387
        %v1396 = vadd.f32 %v1381, %v1387
        %v1397 = vmul.f32 %v1389, 0.5
        %v1398 = vmul.f32 %v1390, 0.5
        %v1399 = vmul.f32 %v1391, 0.5
        %v1400 = vmul.f32 %v1392, 0.5
        %v1401 = vmul.f32 %v1393, 0.5
        %v1402 = vmul.f32 %v1394, 0.5
        %v1403 = vmul.f32 %v1395, 0.5
        %v1404 = vmul.f32 %v1396, 0.5
        %v1405 = vmul.f32 %v1389, 0.70710677
        %v1406 = vmul.f32 %v1390, 0.70710677
        %v1407 = vmul.f32 %v1391, 0.70710677
        %v1408 = vmul.f32 %v1392, 0.70710677
        %v1409 = vmul.f32 %v1393, 0.70710677
        %v1410 = vmul.f32 %v1394, 0.70710677
        %v1411 = vmul.f32 %v1395, 0.70710677
        %v1412 = vmul.f32 %v1396, 0.70710677
        %v1413 = verf.f32.pop %v1405
        %v1414 = verf.f32.pop %v1406
        %v1415 = verf.f32.pop %v1407
        %v1416 = verf.f32.pop %v1408
        %v1417 = verf.f32.pop %v1409
        %v1418 = verf.f32.pop %v1410
        %v1419 = verf.f32.pop %v1411
        %v1420 = verf.f32.pop %v1412
        %v1421 = vadd.f32 %v1413, 1.0
        %v1422 = vadd.f32 %v1414, 1.0
        %v1423 = vadd.f32 %v1415, 1.0
        %v1424 = vadd.f32 %v1416, 1.0
        %v1425 = vadd.f32 %v1417, 1.0
        %v1426 = vadd.f32 %v1418, 1.0
        %v1427 = vadd.f32 %v1419, 1.0
        %v1428 = vadd.f32 %v1420, 1.0
        %v1429 = vmul.f32 %v1397, %v1421
        %v1430 = vmul.f32 %v1398, %v1422
        %v1431 = vmul.f32 %v1399, %v1423
        %v1432 = vmul.f32 %v1400, %v1424
        %v1433 = vmul.f32 %v1401, %v1425
        %v1434 = vmul.f32 %v1402, %v1426
        %v1435 = vmul.f32 %v1403, %v1427
        %v1436 = vmul.f32 %v1404, %v1428
        %v1437 = vpack.c.bf16 %v1429, %v1429
        %v1438 = vpack.c.bf16 %v1430, %v1430
        %v1439 = vpack.c.bf16 %v1431, %v1431
        %v1440 = vpack.c.bf16 %v1432, %v1432
        %v1441 = vpack.c.bf16 %v1433, %v1433
        %v1442 = vpack.c.bf16 %v1434, %v1434
        %v1443 = vpack.c.bf16 %v1435, %v1435
        %v1444 = vpack.c.bf16 %v1436, %v1436
        %v1454 = vunpack.c.l.s4 1966171168
        %v1455 = vunpack.c.0.s8 %v1454
        %v1456 = vlaneseq
        %v1457 = vshrl.u32 %v1456, 7
        %v1458 = vsub.s32 %v1455, %v1457
        %v1459 = vrot.slane %v1437, %v1458
        %v1460 = vcombine.high %v1459, %v1459
        %v1462 = vunpack.c.l.s4 1966171168
        %v1463 = vunpack.c.0.s8 %v1462
        %v1464 = vlaneseq
        %v1465 = vshrl.u32 %v1464, 7
        %v1466 = vsub.s32 %v1463, %v1465
        %v1467 = vrot.slane %v1459, %v1466
        %v1469 = vunpack.c.l.s4 1966171168
        %v1470 = vunpack.c.0.s8 %v1469
        %v1471 = vlaneseq
        %v1472 = vshrl.u32 %v1471, 7
        %v1473 = vsub.s32 %v1470, %v1472
        %v1474 = vrot.slane %v1460, %v1473
        %v1475 = vcombine.high %v1467, %v1467
        %v1476 = vcombine.high %v1474, %v1474
        %v1478 = vunpack.c.l.s4 1966171168
        %v1479 = vunpack.c.0.s8 %v1478
        %v1480 = vlaneseq
        %v1481 = vshrl.u32 %v1480, 7
        %v1482 = vsub.s32 %v1479, %v1481
        %v1483 = vrot.slane %v1438, %v1482
        %v1484 = vcombine.high %v1483, %v1483
        %v1486 = vunpack.c.l.s4 1966171168
        %v1487 = vunpack.c.0.s8 %v1486
        %v1488 = vlaneseq
        %v1489 = vshrl.u32 %v1488, 7
        %v1490 = vsub.s32 %v1487, %v1489
        %v1491 = vrot.slane %v1483, %v1490
        %v1493 = vunpack.c.l.s4 1966171168
        %v1494 = vunpack.c.0.s8 %v1493
        %v1495 = vlaneseq
        %v1496 = vshrl.u32 %v1495, 7
        %v1497 = vsub.s32 %v1494, %v1496
        %v1498 = vrot.slane %v1484, %v1497
        %v1499 = vcombine.high %v1491, %v1491
        %v1500 = vcombine.high %v1498, %v1498
        %v1502 = vunpack.c.l.s4 1966171168
        %v1503 = vunpack.c.0.s8 %v1502
        %v1504 = vlaneseq
        %v1505 = vshrl.u32 %v1504, 7
        %v1506 = vsub.s32 %v1503, %v1505
        %v1507 = vrot.slane %v1439, %v1506
        %v1508 = vcombine.high %v1507, %v1507
        %v1510 = vunpack.c.l.s4 1966171168
        %v1511 = vunpack.c.0.s8 %v1510
        %v1512 = vlaneseq
        %v1513 = vshrl.u32 %v1512, 7
        %v1514 = vsub.s32 %v1511, %v1513
        %v1515 = vrot.slane %v1507, %v1514
        %v1517 = vunpack.c.l.s4 1966171168
        %v1518 = vunpack.c.0.s8 %v1517
        %v1519 = vlaneseq
        %v1520 = vshrl.u32 %v1519, 7
        %v1521 = vsub.s32 %v1518, %v1520
        %v1522 = vrot.slane %v1508, %v1521
        %v1523 = vcombine.high %v1515, %v1515
        %v1524 = vcombine.high %v1522, %v1522
        %v1526 = vunpack.c.l.s4 1966171168
        %v1527 = vunpack.c.0.s8 %v1526
        %v1528 = vlaneseq
        %v1529 = vshrl.u32 %v1528, 7
        %v1530 = vsub.s32 %v1527, %v1529
        %v1531 = vrot.slane %v1440, %v1530
        %v1532 = vcombine.high %v1531, %v1531
        %v1534 = vunpack.c.l.s4 1966171168
        %v1535 = vunpack.c.0.s8 %v1534
        %v1536 = vlaneseq
        %v1537 = vshrl.u32 %v1536, 7
        %v1538 = vsub.s32 %v1535, %v1537
        %v1539 = vrot.slane %v1531, %v1538
        %v1541 = vunpack.c.l.s4 1966171168
        %v1542 = vunpack.c.0.s8 %v1541
        %v1543 = vlaneseq
        %v1544 = vshrl.u32 %v1543, 7
        %v1545 = vsub.s32 %v1542, %v1544
        %v1546 = vrot.slane %v1532, %v1545
        %v1547 = vcombine.high %v1539, %v1539
        %v1548 = vcombine.high %v1546, %v1546
        %v1550 = vunpack.c.l.s4 1966171168
        %v1551 = vunpack.c.0.s8 %v1550
        %v1552 = vlaneseq
        %v1553 = vshrl.u32 %v1552, 7
        %v1554 = vsub.s32 %v1551, %v1553
        %v1555 = vrot.slane %v1441, %v1554
        %v1556 = vcombine.high %v1555, %v1555
        %v1558 = vunpack.c.l.s4 1966171168
        %v1559 = vunpack.c.0.s8 %v1558
        %v1560 = vlaneseq
        %v1561 = vshrl.u32 %v1560, 7
        %v1562 = vsub.s32 %v1559, %v1561
        %v1563 = vrot.slane %v1555, %v1562
        %v1565 = vunpack.c.l.s4 1966171168
        %v1566 = vunpack.c.0.s8 %v1565
        %v1567 = vlaneseq
        %v1568 = vshrl.u32 %v1567, 7
        %v1569 = vsub.s32 %v1566, %v1568
        %v1570 = vrot.slane %v1556, %v1569
        %v1571 = vcombine.high %v1563, %v1563
        %v1572 = vcombine.high %v1570, %v1570
        %v1574 = vunpack.c.l.s4 1966171168
        %v1575 = vunpack.c.0.s8 %v1574
        %v1576 = vlaneseq
        %v1577 = vshrl.u32 %v1576, 7
        %v1578 = vsub.s32 %v1575, %v1577
        %v1579 = vrot.slane %v1442, %v1578
        %v1580 = vcombine.high %v1579, %v1579
        %v1582 = vunpack.c.l.s4 1966171168
        %v1583 = vunpack.c.0.s8 %v1582
        %v1584 = vlaneseq
        %v1585 = vshrl.u32 %v1584, 7
        %v1586 = vsub.s32 %v1583, %v1585
        %v1587 = vrot.slane %v1579, %v1586
        %v1589 = vunpack.c.l.s4 1966171168
        %v1590 = vunpack.c.0.s8 %v1589
        %v1591 = vlaneseq
        %v1592 = vshrl.u32 %v1591, 7
        %v1593 = vsub.s32 %v1590, %v1592
        %v1594 = vrot.slane %v1580, %v1593
        %v1595 = vcombine.high %v1587, %v1587
        %v1596 = vcombine.high %v1594, %v1594
        %v1598 = vunpack.c.l.s4 1966171168
        %v1599 = vunpack.c.0.s8 %v1598
        %v1600 = vlaneseq
        %v1601 = vshrl.u32 %v1600, 7
        %v1602 = vsub.s32 %v1599, %v1601
        %v1603 = vrot.slane %v1443, %v1602
        %v1604 = vcombine.high %v1603, %v1603
        %v1606 = vunpack.c.l.s4 1966171168
        %v1607 = vunpack.c.0.s8 %v1606
        %v1608 = vlaneseq
        %v1609 = vshrl.u32 %v1608, 7
        %v1610 = vsub.s32 %v1607, %v1609
        %v1611 = vrot.slane %v1603, %v1610
        %v1613 = vunpack.c.l.s4 1966171168
        %v1614 = vunpack.c.0.s8 %v1613
        %v1615 = vlaneseq
        %v1616 = vshrl.u32 %v1615, 7
        %v1617 = vsub.s32 %v1614, %v1616
        %v1618 = vrot.slane %v1604, %v1617
        %v1619 = vcombine.high %v1611, %v1611
        %v1620 = vcombine.high %v1618, %v1618
        %v1622 = vunpack.c.l.s4 1966171168
        %v1623 = vunpack.c.0.s8 %v1622
        %v1624 = vlaneseq
        %v1625 = vshrl.u32 %v1624, 7
        %v1626 = vsub.s32 %v1623, %v1625
        %v1627 = vrot.slane %v1444, %v1626
        %v1628 = vcombine.high %v1627, %v1627
        %v1630 = vunpack.c.l.s4 1966171168
        %v1631 = vunpack.c.0.s8 %v1630
        %v1632 = vlaneseq
        %v1633 = vshrl.u32 %v1632, 7
        %v1634 = vsub.s32 %v1631, %v1633
        %v1635 = vrot.slane %v1627, %v1634
        %v1637 = vunpack.c.l.s4 1966171168
        %v1638 = vunpack.c.0.s8 %v1637
        %v1639 = vlaneseq
        %v1640 = vshrl.u32 %v1639, 7
        %v1641 = vsub.s32 %v1638, %v1640
        %v1642 = vrot.slane %v1628, %v1641
        %v1643 = vcombine.high %v1635, %v1635
        %v1644 = vcombine.high %v1642, %v1642
        %v1645 = vunpack.i.l.s16 %v1467
        %v1646 = vunpack.i.h.s16 %v1467
        %v1647 = vunpack.i.l.s16 %v1474
        %v1648 = vunpack.i.h.s16 %v1474
        %v1649 = vunpack.i.l.s16 %v1475
        %v1650 = vunpack.i.h.s16 %v1475
        %v1651 = vunpack.i.l.s16 %v1476
        %v1652 = vunpack.i.h.s16 %v1476
        %v1653 = vunpack.i.l.s16 %v1491
        %v1654 = vunpack.i.h.s16 %v1491
        %v1655 = vunpack.i.l.s16 %v1498
        %v1656 = vunpack.i.h.s16 %v1498
        %v1657 = vunpack.i.l.s16 %v1499
        %v1658 = vunpack.i.h.s16 %v1499
        %v1659 = vunpack.i.l.s16 %v1500
        %v1660 = vunpack.i.h.s16 %v1500
        %v1661 = vunpack.i.l.s16 %v1515
        %v1662 = vunpack.i.h.s16 %v1515
        %v1663 = vunpack.i.l.s16 %v1522
        %v1664 = vunpack.i.h.s16 %v1522
        %v1665 = vunpack.i.l.s16 %v1523
        %v1666 = vunpack.i.h.s16 %v1523
        %v1667 = vunpack.i.l.s16 %v1524
        %v1668 = vunpack.i.h.s16 %v1524
        %v1669 = vunpack.i.l.s16 %v1539
        %v1670 = vunpack.i.h.s16 %v1539
        %v1671 = vunpack.i.l.s16 %v1546
        %v1672 = vunpack.i.h.s16 %v1546
        %v1673 = vunpack.i.l.s16 %v1547
        %v1674 = vunpack.i.h.s16 %v1547
        %v1675 = vunpack.i.l.s16 %v1548
        %v1676 = vunpack.i.h.s16 %v1548
        %v1677 = vunpack.i.l.s16 %v1563
        %v1678 = vunpack.i.h.s16 %v1563
        %v1679 = vunpack.i.l.s16 %v1570
        %v1680 = vunpack.i.h.s16 %v1570
        %v1681 = vunpack.i.l.s16 %v1571
        %v1682 = vunpack.i.h.s16 %v1571
        %v1683 = vunpack.i.l.s16 %v1572
        %v1684 = vunpack.i.h.s16 %v1572
        %v1685 = vunpack.i.l.s16 %v1587
        %v1686 = vunpack.i.h.s16 %v1587
        %v1687 = vunpack.i.l.s16 %v1594
        %v1688 = vunpack.i.h.s16 %v1594
        %v1689 = vunpack.i.l.s16 %v1595
        %v1690 = vunpack.i.h.s16 %v1595
        %v1691 = vunpack.i.l.s16 %v1596
        %v1692 = vunpack.i.h.s16 %v1596
        %v1693 = vunpack.i.l.s16 %v1611
        %v1694 = vunpack.i.h.s16 %v1611
        %v1695 = vunpack.i.l.s16 %v1618
        %v1696 = vunpack.i.h.s16 %v1618
        %v1697 = vunpack.i.l.s16 %v1619
        %v1698 = vunpack.i.h.s16 %v1619
        %v1699 = vunpack.i.l.s16 %v1620
        %v1700 = vunpack.i.h.s16 %v1620
        %v1701 = vunpack.i.l.s16 %v1635
        %v1702 = vunpack.i.h.s16 %v1635
        %v1703 = vunpack.i.l.s16 %v1642
        %v1704 = vunpack.i.h.s16 %v1642
        %v1705 = vunpack.i.l.s16 %v1643
        %v1706 = vunpack.i.h.s16 %v1643
        %v1707 = vunpack.i.l.s16 %v1644
        %v1708 = vunpack.i.h.s16 %v1644
        %v1709 = vpack.i.b16 %v1645, %v1645
        %v1710 = vpack.i.b16 %v1646, %v1646
        %v1711 = vpack.i.b16 %v1647, %v1647
        %v1712 = vpack.i.b16 %v1648, %v1648
        %v1713 = vpack.i.b16 %v1649, %v1649
        %v1714 = vpack.i.b16 %v1650, %v1650
        %v1715 = vpack.i.b16 %v1651, %v1651
        %v1716 = vpack.i.b16 %v1652, %v1652
        %v1717 = vpack.i.b16 %v1653, %v1653
        %v1718 = vpack.i.b16 %v1654, %v1654
        %v1719 = vpack.i.b16 %v1655, %v1655
        %v1720 = vpack.i.b16 %v1656, %v1656
        %v1721 = vpack.i.b16 %v1657, %v1657
        %v1722 = vpack.i.b16 %v1658, %v1658
        %v1723 = vpack.i.b16 %v1659, %v1659
        %v1724 = vpack.i.b16 %v1660, %v1660
        %v1725 = vpack.i.b16 %v1661, %v1661
        %v1726 = vpack.i.b16 %v1662, %v1662
        %v1727 = vpack.i.b16 %v1663, %v1663
        %v1728 = vpack.i.b16 %v1664, %v1664
        %v1729 = vpack.i.b16 %v1665, %v1665
        %v1730 = vpack.i.b16 %v1666, %v1666
        %v1731 = vpack.i.b16 %v1667, %v1667
        %v1732 = vpack.i.b16 %v1668, %v1668
        %v1733 = vpack.i.b16 %v1669, %v1669
        %v1734 = vpack.i.b16 %v1670, %v1670
        %v1735 = vpack.i.b16 %v1671, %v1671
        %v1736 = vpack.i.b16 %v1672, %v1672
        %v1737 = vpack.i.b16 %v1673, %v1673
        %v1738 = vpack.i.b16 %v1674, %v1674
        %v1739 = vpack.i.b16 %v1675, %v1675
        %v1740 = vpack.i.b16 %v1676, %v1676
        %v1741 = vpack.i.b16 %v1677, %v1677
        %v1742 = vpack.i.b16 %v1678, %v1678
        %v1743 = vpack.i.b16 %v1679, %v1679
        %v1744 = vpack.i.b16 %v1680, %v1680
        %v1745 = vpack.i.b16 %v1681, %v1681
        %v1746 = vpack.i.b16 %v1682, %v1682
        %v1747 = vpack.i.b16 %v1683, %v1683
        %v1748 = vpack.i.b16 %v1684, %v1684
        %v1749 = vpack.i.b16 %v1685, %v1685
        %v1750 = vpack.i.b16 %v1686, %v1686
        %v1751 = vpack.i.b16 %v1687, %v1687
        %v1752 = vpack.i.b16 %v1688, %v1688
        %v1753 = vpack.i.b16 %v1689, %v1689
        %v1754 = vpack.i.b16 %v1690, %v1690
        %v1755 = vpack.i.b16 %v1691, %v1691
        %v1756 = vpack.i.b16 %v1692, %v1692
        %v1757 = vpack.i.b16 %v1693, %v1693
        %v1758 = vpack.i.b16 %v1694, %v1694
        %v1759 = vpack.i.b16 %v1695, %v1695
        %v1760 = vpack.i.b16 %v1696, %v1696
        %v1761 = vpack.i.b16 %v1697, %v1697
        %v1762 = vpack.i.b16 %v1698, %v1698
        %v1763 = vpack.i.b16 %v1699, %v1699
        %v1764 = vpack.i.b16 %v1700, %v1700
        %v1765 = vpack.i.b16 %v1701, %v1701
        %v1766 = vpack.i.b16 %v1702, %v1702
        %v1767 = vpack.i.b16 %v1703, %v1703
        %v1768 = vpack.i.b16 %v1704, %v1704
        %v1769 = vpack.i.b16 %v1705, %v1705
        %v1770 = vpack.i.b16 %v1706, %v1706
        %v1771 = vpack.i.b16 %v1707, %v1707
        %v1772 = vpack.i.b16 %v1708, %v1708
        %v1773 = vlaneseq
        %v1774 = vshrl.u32 %v1773, 7
        %v1775 = vsub.s32 0, %v1774
        %v1776 = vrot.slane %v1709, %v1775
        %v1777 = vlaneseq
        %v1778 = vshrl.u32 %v1777, 7
        %v1779 = vsub.s32 0, %v1778
        %v1780 = vrot.slane %v1710, %v1779
        %v1781 = vlaneseq
        %v1782 = vshrl.u32 %v1781, 7
        %v1783 = vsub.s32 0, %v1782
        %v1784 = vrot.slane %v1711, %v1783
        %v1785 = vlaneseq
        %v1786 = vshrl.u32 %v1785, 7
        %v1787 = vsub.s32 0, %v1786
        %v1788 = vrot.slane %v1712, %v1787
        %v1789 = vlaneseq
        %v1790 = vshrl.u32 %v1789, 7
        %v1791 = vsub.s32 0, %v1790
        %v1792 = vrot.slane %v1713, %v1791
        %v1793 = vlaneseq
        %v1794 = vshrl.u32 %v1793, 7
        %v1795 = vsub.s32 0, %v1794
        %v1796 = vrot.slane %v1714, %v1795
        %v1797 = vlaneseq
        %v1798 = vshrl.u32 %v1797, 7
        %v1799 = vsub.s32 0, %v1798
        %v1800 = vrot.slane %v1715, %v1799
        %v1801 = vlaneseq
        %v1802 = vshrl.u32 %v1801, 7
        %v1803 = vsub.s32 0, %v1802
        %v1804 = vrot.slane %v1716, %v1803
        %v1805 = vlaneseq
        %v1806 = vshrl.u32 %v1805, 7
        %v1807 = vsub.s32 0, %v1806
        %v1808 = vrot.slane %v1717, %v1807
        %v1809 = vlaneseq
        %v1810 = vshrl.u32 %v1809, 7
        %v1811 = vsub.s32 0, %v1810
        %v1812 = vrot.slane %v1718, %v1811
        %v1813 = vlaneseq
        %v1814 = vshrl.u32 %v1813, 7
        %v1815 = vsub.s32 0, %v1814
        %v1816 = vrot.slane %v1719, %v1815
        %v1817 = vlaneseq
        %v1818 = vshrl.u32 %v1817, 7
        %v1819 = vsub.s32 0, %v1818
        %v1820 = vrot.slane %v1720, %v1819
        %v1821 = vlaneseq
        %v1822 = vshrl.u32 %v1821, 7
        %v1823 = vsub.s32 0, %v1822
        %v1824 = vrot.slane %v1721, %v1823
        %v1825 = vlaneseq
        %v1826 = vshrl.u32 %v1825, 7
        %v1827 = vsub.s32 0, %v1826
        %v1828 = vrot.slane %v1722, %v1827
        %v1829 = vlaneseq
        %v1830 = vshrl.u32 %v1829, 7
        %v1831 = vsub.s32 0, %v1830
        %v1832 = vrot.slane %v1723, %v1831
        %v1833 = vlaneseq
        %v1834 = vshrl.u32 %v1833, 7
        %v1835 = vsub.s32 0, %v1834
        %v1836 = vrot.slane %v1724, %v1835
        %v1837 = vlaneseq
        %v1838 = vshrl.u32 %v1837, 7
        %v1839 = vsub.s32 0, %v1838
        %v1840 = vrot.slane %v1725, %v1839
        %v1841 = vlaneseq
        %v1842 = vshrl.u32 %v1841, 7
        %v1843 = vsub.s32 0, %v1842
        %v1844 = vrot.slane %v1726, %v1843
        %v1845 = vlaneseq
        %v1846 = vshrl.u32 %v1845, 7
        %v1847 = vsub.s32 0, %v1846
        %v1848 = vrot.slane %v1727, %v1847
        %v1849 = vlaneseq
        %v1850 = vshrl.u32 %v1849, 7
        %v1851 = vsub.s32 0, %v1850
        %v1852 = vrot.slane %v1728, %v1851
        %v1853 = vlaneseq
        %v1854 = vshrl.u32 %v1853, 7
        %v1855 = vsub.s32 0, %v1854
        %v1856 = vrot.slane %v1729, %v1855
        %v1857 = vlaneseq
        %v1858 = vshrl.u32 %v1857, 7
        %v1859 = vsub.s32 0, %v1858
        %v1860 = vrot.slane %v1730, %v1859
        %v1861 = vlaneseq
        %v1862 = vshrl.u32 %v1861, 7
        %v1863 = vsub.s32 0, %v1862
        %v1864 = vrot.slane %v1731, %v1863
        %v1865 = vlaneseq
        %v1866 = vshrl.u32 %v1865, 7
        %v1867 = vsub.s32 0, %v1866
        %v1868 = vrot.slane %v1732, %v1867
        %v1869 = vlaneseq
        %v1870 = vshrl.u32 %v1869, 7
        %v1871 = vsub.s32 0, %v1870
        %v1872 = vrot.slane %v1733, %v1871
        %v1873 = vlaneseq
        %v1874 = vshrl.u32 %v1873, 7
        %v1875 = vsub.s32 0, %v1874
        %v1876 = vrot.slane %v1734, %v1875
        %v1877 = vlaneseq
        %v1878 = vshrl.u32 %v1877, 7
        %v1879 = vsub.s32 0, %v1878
        %v1880 = vrot.slane %v1735, %v1879
        %v1881 = vlaneseq
        %v1882 = vshrl.u32 %v1881, 7
        %v1883 = vsub.s32 0, %v1882
        %v1884 = vrot.slane %v1736, %v1883
        %v1885 = vlaneseq
        %v1886 = vshrl.u32 %v1885, 7
        %v1887 = vsub.s32 0, %v1886
        %v1888 = vrot.slane %v1737, %v1887
        %v1889 = vlaneseq
        %v1890 = vshrl.u32 %v1889, 7
        %v1891 = vsub.s32 0, %v1890
        %v1892 = vrot.slane %v1738, %v1891
        %v1893 = vlaneseq
        %v1894 = vshrl.u32 %v1893, 7
        %v1895 = vsub.s32 0, %v1894
        %v1896 = vrot.slane %v1739, %v1895
        %v1897 = vlaneseq
        %v1898 = vshrl.u32 %v1897, 7
        %v1899 = vsub.s32 0, %v1898
        %v1900 = vrot.slane %v1740, %v1899
        %v1901 = vlaneseq
        %v1902 = vshrl.u32 %v1901, 7
        %v1903 = vsub.s32 0, %v1902
        %v1904 = vrot.slane %v1741, %v1903
        %v1905 = vlaneseq
        %v1906 = vshrl.u32 %v1905, 7
        %v1907 = vsub.s32 0, %v1906
        %v1908 = vrot.slane %v1742, %v1907
        %v1909 = vlaneseq
        %v1910 = vshrl.u32 %v1909, 7
        %v1911 = vsub.s32 0, %v1910
        %v1912 = vrot.slane %v1743, %v1911
        %v1913 = vlaneseq
        %v1914 = vshrl.u32 %v1913, 7
        %v1915 = vsub.s32 0, %v1914
        %v1916 = vrot.slane %v1744, %v1915
        %v1917 = vlaneseq
        %v1918 = vshrl.u32 %v1917, 7
        %v1919 = vsub.s32 0, %v1918
        %v1920 = vrot.slane %v1745, %v1919
        %v1921 = vlaneseq
        %v1922 = vshrl.u32 %v1921, 7
        %v1923 = vsub.s32 0, %v1922
        %v1924 = vrot.slane %v1746, %v1923
        %v1925 = vlaneseq
        %v1926 = vshrl.u32 %v1925, 7
        %v1927 = vsub.s32 0, %v1926
        %v1928 = vrot.slane %v1747, %v1927
        %v1929 = vlaneseq
        %v1930 = vshrl.u32 %v1929, 7
        %v1931 = vsub.s32 0, %v1930
        %v1932 = vrot.slane %v1748, %v1931
        %v1933 = vlaneseq
        %v1934 = vshrl.u32 %v1933, 7
        %v1935 = vsub.s32 0, %v1934
        %v1936 = vrot.slane %v1749, %v1935
        %v1937 = vlaneseq
        %v1938 = vshrl.u32 %v1937, 7
        %v1939 = vsub.s32 0, %v1938
        %v1940 = vrot.slane %v1750, %v1939
        %v1941 = vlaneseq
        %v1942 = vshrl.u32 %v1941, 7
        %v1943 = vsub.s32 0, %v1942
        %v1944 = vrot.slane %v1751, %v1943
        %v1945 = vlaneseq
        %v1946 = vshrl.u32 %v1945, 7
        %v1947 = vsub.s32 0, %v1946
        %v1948 = vrot.slane %v1752, %v1947
        %v1949 = vlaneseq
        %v1950 = vshrl.u32 %v1949, 7
        %v1951 = vsub.s32 0, %v1950
        %v1952 = vrot.slane %v1753, %v1951
        %v1953 = vlaneseq
        %v1954 = vshrl.u32 %v1953, 7
        %v1955 = vsub.s32 0, %v1954
        %v1956 = vrot.slane %v1754, %v1955
        %v1957 = vlaneseq
        %v1958 = vshrl.u32 %v1957, 7
        %v1959 = vsub.s32 0, %v1958
        %v1960 = vrot.slane %v1755, %v1959
        %v1961 = vlaneseq
        %v1962 = vshrl.u32 %v1961, 7
        %v1963 = vsub.s32 0, %v1962
        %v1964 = vrot.slane %v1756, %v1963
        %v1965 = vlaneseq
        %v1966 = vshrl.u32 %v1965, 7
        %v1967 = vsub.s32 0, %v1966
        %v1968 = vrot.slane %v1757, %v1967
        %v1969 = vlaneseq
        %v1970 = vshrl.u32 %v1969, 7
        %v1971 = vsub.s32 0, %v1970
        %v1972 = vrot.slane %v1758, %v1971
        %v1973 = vlaneseq
        %v1974 = vshrl.u32 %v1973, 7
        %v1975 = vsub.s32 0, %v1974
        %v1976 = vrot.slane %v1759, %v1975
        %v1977 = vlaneseq
        %v1978 = vshrl.u32 %v1977, 7
        %v1979 = vsub.s32 0, %v1978
        %v1980 = vrot.slane %v1760, %v1979
        %v1981 = vlaneseq
        %v1982 = vshrl.u32 %v1981, 7
        %v1983 = vsub.s32 0, %v1982
        %v1984 = vrot.slane %v1761, %v1983
        %v1985 = vlaneseq
        %v1986 = vshrl.u32 %v1985, 7
        %v1987 = vsub.s32 0, %v1986
        %v1988 = vrot.slane %v1762, %v1987
        %v1989 = vlaneseq
        %v1990 = vshrl.u32 %v1989, 7
        %v1991 = vsub.s32 0, %v1990
        %v1992 = vrot.slane %v1763, %v1991
        %v1993 = vlaneseq
        %v1994 = vshrl.u32 %v1993, 7
        %v1995 = vsub.s32 0, %v1994
        %v1996 = vrot.slane %v1764, %v1995
        %v1997 = vlaneseq
        %v1998 = vshrl.u32 %v1997, 7
        %v1999 = vsub.s32 0, %v1998
        %v2000 = vrot.slane %v1765, %v1999
        %v2001 = vlaneseq
        %v2002 = vshrl.u32 %v2001, 7
        %v2003 = vsub.s32 0, %v2002
        %v2004 = vrot.slane %v1766, %v2003
        %v2005 = vlaneseq
        %v2006 = vshrl.u32 %v2005, 7
        %v2007 = vsub.s32 0, %v2006
        %v2008 = vrot.slane %v1767, %v2007
        %v2009 = vlaneseq
        %v2010 = vshrl.u32 %v2009, 7
        %v2011 = vsub.s32 0, %v2010
        %v2012 = vrot.slane %v1768, %v2011
        %v2013 = vlaneseq
        %v2014 = vshrl.u32 %v2013, 7
        %v2015 = vsub.s32 0, %v2014
        %v2016 = vrot.slane %v1769, %v2015
        %v2017 = vlaneseq
        %v2018 = vshrl.u32 %v2017, 7
        %v2019 = vsub.s32 0, %v2018
        %v2020 = vrot.slane %v1770, %v2019
        %v2021 = vlaneseq
        %v2022 = vshrl.u32 %v2021, 7
        %v2023 = vsub.s32 0, %v2022
        %v2024 = vrot.slane %v1771, %v2023
        %v2025 = vlaneseq
        %v2026 = vshrl.u32 %v2025, 7
        %v2027 = vsub.s32 0, %v2026
        %v2028 = vrot.slane %v1772, %v2027
        %v2030 = vpack.i.b16 %v1776, %v1776
        %v2032 = vlaneseq
        %v2033 = vshrl.u32 %v2032, 7
        %v2034 = vsub.s32 0, %v2033
        %v2035 = vrot.slane %v2030, %v2034
        %v2037 = vpack.i.b16 %v1780, %v1780
        %v2039 = vlaneseq
        %v2040 = vshrl.u32 %v2039, 7
        %v2041 = vsub.s32 0, %v2040
        %v2042 = vrot.slane %v2037, %v2041
        %v2044 = vpack.i.b16 %v1784, %v1784
        %v2046 = vlaneseq
        %v2047 = vshrl.u32 %v2046, 7
        %v2048 = vsub.s32 0, %v2047
        %v2049 = vrot.slane %v2044, %v2048
        %v2051 = vpack.i.b16 %v1788, %v1788
        %v2053 = vlaneseq
        %v2054 = vshrl.u32 %v2053, 7
        %v2055 = vsub.s32 0, %v2054
        %v2056 = vrot.slane %v2051, %v2055
        %v2058 = vpack.i.b16 %v1792, %v1792
        %v2060 = vlaneseq
        %v2061 = vshrl.u32 %v2060, 7
        %v2062 = vsub.s32 0, %v2061
        %v2063 = vrot.slane %v2058, %v2062
        %v2065 = vpack.i.b16 %v1796, %v1796
        %v2067 = vlaneseq
        %v2068 = vshrl.u32 %v2067, 7
        %v2069 = vsub.s32 0, %v2068
        %v2070 = vrot.slane %v2065, %v2069
        %v2072 = vpack.i.b16 %v1800, %v1800
        %v2074 = vlaneseq
        %v2075 = vshrl.u32 %v2074, 7
        %v2076 = vsub.s32 0, %v2075
        %v2077 = vrot.slane %v2072, %v2076
        %v2079 = vpack.i.b16 %v1804, %v1804
        %v2081 = vlaneseq
        %v2082 = vshrl.u32 %v2081, 7
        %v2083 = vsub.s32 0, %v2082
        %v2084 = vrot.slane %v2079, %v2083
        %v2086 = vpack.i.b16 %v1808, %v1808
        %v2088 = vlaneseq
        %v2089 = vshrl.u32 %v2088, 7
        %v2090 = vsub.s32 0, %v2089
        %v2091 = vrot.slane %v2086, %v2090
        %v2093 = vpack.i.b16 %v1812, %v1812
        %v2095 = vlaneseq
        %v2096 = vshrl.u32 %v2095, 7
        %v2097 = vsub.s32 0, %v2096
        %v2098 = vrot.slane %v2093, %v2097
        %v2100 = vpack.i.b16 %v1816, %v1816
        %v2102 = vlaneseq
        %v2103 = vshrl.u32 %v2102, 7
        %v2104 = vsub.s32 0, %v2103
        %v2105 = vrot.slane %v2100, %v2104
        %v2107 = vpack.i.b16 %v1820, %v1820
        %v2109 = vlaneseq
        %v2110 = vshrl.u32 %v2109, 7
        %v2111 = vsub.s32 0, %v2110
        %v2112 = vrot.slane %v2107, %v2111
        %v2114 = vpack.i.b16 %v1824, %v1824
        %v2116 = vlaneseq
        %v2117 = vshrl.u32 %v2116, 7
        %v2118 = vsub.s32 0, %v2117
        %v2119 = vrot.slane %v2114, %v2118
        %v2121 = vpack.i.b16 %v1828, %v1828
        %v2123 = vlaneseq
        %v2124 = vshrl.u32 %v2123, 7
        %v2125 = vsub.s32 0, %v2124
        %v2126 = vrot.slane %v2121, %v2125
        %v2128 = vpack.i.b16 %v1832, %v1832
        %v2130 = vlaneseq
        %v2131 = vshrl.u32 %v2130, 7
        %v2132 = vsub.s32 0, %v2131
        %v2133 = vrot.slane %v2128, %v2132
        %v2135 = vpack.i.b16 %v1836, %v1836
        %v2137 = vlaneseq
        %v2138 = vshrl.u32 %v2137, 7
        %v2139 = vsub.s32 0, %v2138
        %v2140 = vrot.slane %v2135, %v2139
        %v2142 = vpack.i.b16 %v1840, %v1840
        %v2144 = vlaneseq
        %v2145 = vshrl.u32 %v2144, 7
        %v2146 = vsub.s32 0, %v2145
        %v2147 = vrot.slane %v2142, %v2146
        %v2149 = vpack.i.b16 %v1844, %v1844
        %v2151 = vlaneseq
        %v2152 = vshrl.u32 %v2151, 7
        %v2153 = vsub.s32 0, %v2152
        %v2154 = vrot.slane %v2149, %v2153
        %v2156 = vpack.i.b16 %v1848, %v1848
        %v2158 = vlaneseq
        %v2159 = vshrl.u32 %v2158, 7
        %v2160 = vsub.s32 0, %v2159
        %v2161 = vrot.slane %v2156, %v2160
        %v2163 = vpack.i.b16 %v1852, %v1852
        %v2165 = vlaneseq
        %v2166 = vshrl.u32 %v2165, 7
        %v2167 = vsub.s32 0, %v2166
        %v2168 = vrot.slane %v2163, %v2167
        %v2170 = vpack.i.b16 %v1856, %v1856
        %v2172 = vlaneseq
        %v2173 = vshrl.u32 %v2172, 7
        %v2174 = vsub.s32 0, %v2173
        %v2175 = vrot.slane %v2170, %v2174
        %v2177 = vpack.i.b16 %v1860, %v1860
        %v2179 = vlaneseq
        %v2180 = vshrl.u32 %v2179, 7
        %v2181 = vsub.s32 0, %v2180
        %v2182 = vrot.slane %v2177, %v2181
        %v2184 = vpack.i.b16 %v1864, %v1864
        %v2186 = vlaneseq
        %v2187 = vshrl.u32 %v2186, 7
        %v2188 = vsub.s32 0, %v2187
        %v2189 = vrot.slane %v2184, %v2188
        %v2191 = vpack.i.b16 %v1868, %v1868
        %v2193 = vlaneseq
        %v2194 = vshrl.u32 %v2193, 7
        %v2195 = vsub.s32 0, %v2194
        %v2196 = vrot.slane %v2191, %v2195
        %v2198 = vpack.i.b16 %v1872, %v1872
        %v2200 = vlaneseq
        %v2201 = vshrl.u32 %v2200, 7
        %v2202 = vsub.s32 0, %v2201
        %v2203 = vrot.slane %v2198, %v2202
        %v2205 = vpack.i.b16 %v1876, %v1876
        %v2207 = vlaneseq
        %v2208 = vshrl.u32 %v2207, 7
        %v2209 = vsub.s32 0, %v2208
        %v2210 = vrot.slane %v2205, %v2209
        %v2212 = vpack.i.b16 %v1880, %v1880
        %v2214 = vlaneseq
        %v2215 = vshrl.u32 %v2214, 7
        %v2216 = vsub.s32 0, %v2215
        %v2217 = vrot.slane %v2212, %v2216
        %v2219 = vpack.i.b16 %v1884, %v1884
        %v2221 = vlaneseq
        %v2222 = vshrl.u32 %v2221, 7
        %v2223 = vsub.s32 0, %v2222
        %v2224 = vrot.slane %v2219, %v2223
        %v2226 = vpack.i.b16 %v1888, %v1888
        %v2228 = vlaneseq
        %v2229 = vshrl.u32 %v2228, 7
        %v2230 = vsub.s32 0, %v2229
        %v2231 = vrot.slane %v2226, %v2230
        %v2233 = vpack.i.b16 %v1892, %v1892
        %v2235 = vlaneseq
        %v2236 = vshrl.u32 %v2235, 7
        %v2237 = vsub.s32 0, %v2236
        %v2238 = vrot.slane %v2233, %v2237
        %v2240 = vpack.i.b16 %v1896, %v1896
        %v2242 = vlaneseq
        %v2243 = vshrl.u32 %v2242, 7
        %v2244 = vsub.s32 0, %v2243
        %v2245 = vrot.slane %v2240, %v2244
        %v2247 = vpack.i.b16 %v1900, %v1900
        %v2249 = vlaneseq
        %v2250 = vshrl.u32 %v2249, 7
        %v2251 = vsub.s32 0, %v2250
        %v2252 = vrot.slane %v2247, %v2251
        %v2254 = vpack.i.b16 %v1904, %v1904
        %v2256 = vlaneseq
        %v2257 = vshrl.u32 %v2256, 7
        %v2258 = vsub.s32 0, %v2257
        %v2259 = vrot.slane %v2254, %v2258
        %v2261 = vpack.i.b16 %v1908, %v1908
        %v2263 = vlaneseq
        %v2264 = vshrl.u32 %v2263, 7
        %v2265 = vsub.s32 0, %v2264
        %v2266 = vrot.slane %v2261, %v2265
        %v2268 = vpack.i.b16 %v1912, %v1912
        %v2270 = vlaneseq
        %v2271 = vshrl.u32 %v2270, 7
        %v2272 = vsub.s32 0, %v2271
        %v2273 = vrot.slane %v2268, %v2272
        %v2275 = vpack.i.b16 %v1916, %v1916
        %v2277 = vlaneseq
        %v2278 = vshrl.u32 %v2277, 7
        %v2279 = vsub.s32 0, %v2278
        %v2280 = vrot.slane %v2275, %v2279
        %v2282 = vpack.i.b16 %v1920, %v1920
        %v2284 = vlaneseq
        %v2285 = vshrl.u32 %v2284, 7
        %v2286 = vsub.s32 0, %v2285
        %v2287 = vrot.slane %v2282, %v2286
        %v2289 = vpack.i.b16 %v1924, %v1924
        %v2291 = vlaneseq
        %v2292 = vshrl.u32 %v2291, 7
        %v2293 = vsub.s32 0, %v2292
        %v2294 = vrot.slane %v2289, %v2293
        %v2296 = vpack.i.b16 %v1928, %v1928
        %v2298 = vlaneseq
        %v2299 = vshrl.u32 %v2298, 7
        %v2300 = vsub.s32 0, %v2299
        %v2301 = vrot.slane %v2296, %v2300
        %v2303 = vpack.i.b16 %v1932, %v1932
        %v2305 = vlaneseq
        %v2306 = vshrl.u32 %v2305, 7
        %v2307 = vsub.s32 0, %v2306
        %v2308 = vrot.slane %v2303, %v2307
        %v2310 = vpack.i.b16 %v1936, %v1936
        %v2312 = vlaneseq
        %v2313 = vshrl.u32 %v2312, 7
        %v2314 = vsub.s32 0, %v2313
        %v2315 = vrot.slane %v2310, %v2314
        %v2317 = vpack.i.b16 %v1940, %v1940
        %v2319 = vlaneseq
        %v2320 = vshrl.u32 %v2319, 7
        %v2321 = vsub.s32 0, %v2320
        %v2322 = vrot.slane %v2317, %v2321
        %v2324 = vpack.i.b16 %v1944, %v1944
        %v2326 = vlaneseq
        %v2327 = vshrl.u32 %v2326, 7
        %v2328 = vsub.s32 0, %v2327
        %v2329 = vrot.slane %v2324, %v2328
        %v2331 = vpack.i.b16 %v1948, %v1948
        %v2333 = vlaneseq
        %v2334 = vshrl.u32 %v2333, 7
        %v2335 = vsub.s32 0, %v2334
        %v2336 = vrot.slane %v2331, %v2335
        %v2338 = vpack.i.b16 %v1952, %v1952
        %v2340 = vlaneseq
        %v2341 = vshrl.u32 %v2340, 7
        %v2342 = vsub.s32 0, %v2341
        %v2343 = vrot.slane %v2338, %v2342
        %v2345 = vpack.i.b16 %v1956, %v1956
        %v2347 = vlaneseq
        %v2348 = vshrl.u32 %v2347, 7
        %v2349 = vsub.s32 0, %v2348
        %v2350 = vrot.slane %v2345, %v2349
        %v2352 = vpack.i.b16 %v1960, %v1960
        %v2354 = vlaneseq
        %v2355 = vshrl.u32 %v2354, 7
        %v2356 = vsub.s32 0, %v2355
        %v2357 = vrot.slane %v2352, %v2356
        %v2359 = vpack.i.b16 %v1964, %v1964
        %v2361 = vlaneseq
        %v2362 = vshrl.u32 %v2361, 7
        %v2363 = vsub.s32 0, %v2362
        %v2364 = vrot.slane %v2359, %v2363
        %v2366 = vpack.i.b16 %v1968, %v1968
        %v2368 = vlaneseq
        %v2369 = vshrl.u32 %v2368, 7
        %v2370 = vsub.s32 0, %v2369
        %v2371 = vrot.slane %v2366, %v2370
        %v2373 = vpack.i.b16 %v1972, %v1972
        %v2375 = vlaneseq
        %v2376 = vshrl.u32 %v2375, 7
        %v2377 = vsub.s32 0, %v2376
        %v2378 = vrot.slane %v2373, %v2377
        %v2380 = vpack.i.b16 %v1976, %v1976
        %v2382 = vlaneseq
        %v2383 = vshrl.u32 %v2382, 7
        %v2384 = vsub.s32 0, %v2383
        %v2385 = vrot.slane %v2380, %v2384
        %v2387 = vpack.i.b16 %v1980, %v1980
        %v2389 = vlaneseq
        %v2390 = vshrl.u32 %v2389, 7
        %v2391 = vsub.s32 0, %v2390
        %v2392 = vrot.slane %v2387, %v2391
        %v2394 = vpack.i.b16 %v1984, %v1984
        %v2396 = vlaneseq
        %v2397 = vshrl.u32 %v2396, 7
        %v2398 = vsub.s32 0, %v2397
        %v2399 = vrot.slane %v2394, %v2398
        %v2401 = vpack.i.b16 %v1988, %v1988
        %v2403 = vlaneseq
        %v2404 = vshrl.u32 %v2403, 7
        %v2405 = vsub.s32 0, %v2404
        %v2406 = vrot.slane %v2401, %v2405
        %v2408 = vpack.i.b16 %v1992, %v1992
        %v2410 = vlaneseq
        %v2411 = vshrl.u32 %v2410, 7
        %v2412 = vsub.s32 0, %v2411
        %v2413 = vrot.slane %v2408, %v2412
        %v2415 = vpack.i.b16 %v1996, %v1996
        %v2417 = vlaneseq
        %v2418 = vshrl.u32 %v2417, 7
        %v2419 = vsub.s32 0, %v2418
        %v2420 = vrot.slane %v2415, %v2419
        %v2422 = vpack.i.b16 %v2000, %v2000
        %v2424 = vlaneseq
        %v2425 = vshrl.u32 %v2424, 7
        %v2426 = vsub.s32 0, %v2425
        %v2427 = vrot.slane %v2422, %v2426
        %v2429 = vpack.i.b16 %v2004, %v2004
        %v2431 = vlaneseq
        %v2432 = vshrl.u32 %v2431, 7
        %v2433 = vsub.s32 0, %v2432
        %v2434 = vrot.slane %v2429, %v2433
        %v2436 = vpack.i.b16 %v2008, %v2008
        %v2438 = vlaneseq
        %v2439 = vshrl.u32 %v2438, 7
        %v2440 = vsub.s32 0, %v2439
        %v2441 = vrot.slane %v2436, %v2440
        %v2443 = vpack.i.b16 %v2012, %v2012
        %v2445 = vlaneseq
        %v2446 = vshrl.u32 %v2445, 7
        %v2447 = vsub.s32 0, %v2446
        %v2448 = vrot.slane %v2443, %v2447
        %v2450 = vpack.i.b16 %v2016, %v2016
        %v2452 = vlaneseq
        %v2453 = vshrl.u32 %v2452, 7
        %v2454 = vsub.s32 0, %v2453
        %v2455 = vrot.slane %v2450, %v2454
        %v2457 = vpack.i.b16 %v2020, %v2020
        %v2459 = vlaneseq
        %v2460 = vshrl.u32 %v2459, 7
        %v2461 = vsub.s32 0, %v2460
        %v2462 = vrot.slane %v2457, %v2461
        %v2464 = vpack.i.b16 %v2024, %v2024
        %v2466 = vlaneseq
        %v2467 = vshrl.u32 %v2466, 7
        %v2468 = vsub.s32 0, %v2467
        %v2469 = vrot.slane %v2464, %v2468
        %v2471 = vpack.i.b16 %v2028, %v2028
        %v2473 = vlaneseq
        %v2474 = vshrl.u32 %v2473, 7
        %v2475 = vsub.s32 0, %v2474
        %v2476 = vrot.slane %v2471, %v2475
        %v2541 = vcombine.low %v2035, %v2049
        %v2542 = vcombine.low %v2042, %v2056
        %v2544 = vunpack.c.l.s4 1935823168
        %v2545 = vunpack.c.0.s8 %v2544
        %v2546 = vlaneseq
        %v2547 = vshrl.u32 %v2546, 7
        %v2548 = vsub.s32 %v2545, %v2547
        %v2549 = vrot.slane %v2541, %v2548
        %v2551 = vunpack.c.l.s4 1935823168
        %v2552 = vunpack.c.0.s8 %v2551
        %v2553 = vlaneseq
        %v2554 = vshrl.u32 %v2553, 7
        %v2555 = vsub.s32 %v2552, %v2554
        %v2556 = vrot.slane %v2542, %v2555
        %v2557 = vcombine.low %v2549, %v2556
        %v2559 = vunpack.c.l.s4 1935823168
        %v2560 = vunpack.c.0.s8 %v2559
        %v2561 = vlaneseq
        %v2562 = vshrl.u32 %v2561, 7
        %v2563 = vsub.s32 %v2560, %v2562
        %v2564 = vrot.slane %v2557, %v2563
        %v2565 = vcombine.low %v2063, %v2077
        %v2566 = vcombine.low %v2070, %v2084
        %v2568 = vunpack.c.l.s4 1935823168
        %v2569 = vunpack.c.0.s8 %v2568
        %v2570 = vlaneseq
        %v2571 = vshrl.u32 %v2570, 7
        %v2572 = vsub.s32 %v2569, %v2571
        %v2573 = vrot.slane %v2565, %v2572
        %v2575 = vunpack.c.l.s4 1935823168
        %v2576 = vunpack.c.0.s8 %v2575
        %v2577 = vlaneseq
        %v2578 = vshrl.u32 %v2577, 7
        %v2579 = vsub.s32 %v2576, %v2578
        %v2580 = vrot.slane %v2566, %v2579
        %v2581 = vcombine.low %v2573, %v2580
        %v2583 = vunpack.c.l.s4 1935823168
        %v2584 = vunpack.c.0.s8 %v2583
        %v2585 = vlaneseq
        %v2586 = vshrl.u32 %v2585, 7
        %v2587 = vsub.s32 %v2584, %v2586
        %v2588 = vrot.slane %v2581, %v2587
        %v2589 = vcombine.low %v2091, %v2105
        %v2590 = vcombine.low %v2098, %v2112
        %v2592 = vunpack.c.l.s4 1935823168
        %v2593 = vunpack.c.0.s8 %v2592
        %v2594 = vlaneseq
        %v2595 = vshrl.u32 %v2594, 7
        %v2596 = vsub.s32 %v2593, %v2595
        %v2597 = vrot.slane %v2589, %v2596
        %v2599 = vunpack.c.l.s4 1935823168
        %v2600 = vunpack.c.0.s8 %v2599
        %v2601 = vlaneseq
        %v2602 = vshrl.u32 %v2601, 7
        %v2603 = vsub.s32 %v2600, %v2602
        %v2604 = vrot.slane %v2590, %v2603
        %v2605 = vcombine.low %v2597, %v2604
        %v2607 = vunpack.c.l.s4 1935823168
        %v2608 = vunpack.c.0.s8 %v2607
        %v2609 = vlaneseq
        %v2610 = vshrl.u32 %v2609, 7
        %v2611 = vsub.s32 %v2608, %v2610
        %v2612 = vrot.slane %v2605, %v2611
        %v2613 = vcombine.low %v2119, %v2133
        %v2614 = vcombine.low %v2126, %v2140
        %v2616 = vunpack.c.l.s4 1935823168
        %v2617 = vunpack.c.0.s8 %v2616
        %v2618 = vlaneseq
        %v2619 = vshrl.u32 %v2618, 7
        %v2620 = vsub.s32 %v2617, %v2619
        %v2621 = vrot.slane %v2613, %v2620
        %v2623 = vunpack.c.l.s4 1935823168
        %v2624 = vunpack.c.0.s8 %v2623
        %v2625 = vlaneseq
        %v2626 = vshrl.u32 %v2625, 7
        %v2627 = vsub.s32 %v2624, %v2626
        %v2628 = vrot.slane %v2614, %v2627
        %v2629 = vcombine.low %v2621, %v2628
        %v2631 = vunpack.c.l.s4 1935823168
        %v2632 = vunpack.c.0.s8 %v2631
        %v2633 = vlaneseq
        %v2634 = vshrl.u32 %v2633, 7
        %v2635 = vsub.s32 %v2632, %v2634
        %v2636 = vrot.slane %v2629, %v2635
        %v2637 = vcombine.low %v2147, %v2161
        %v2638 = vcombine.low %v2154, %v2168
        %v2640 = vunpack.c.l.s4 1935823168
        %v2641 = vunpack.c.0.s8 %v2640
        %v2642 = vlaneseq
        %v2643 = vshrl.u32 %v2642, 7
        %v2644 = vsub.s32 %v2641, %v2643
        %v2645 = vrot.slane %v2637, %v2644
        %v2647 = vunpack.c.l.s4 1935823168
        %v2648 = vunpack.c.0.s8 %v2647
        %v2649 = vlaneseq
        %v2650 = vshrl.u32 %v2649, 7
        %v2651 = vsub.s32 %v2648, %v2650
        %v2652 = vrot.slane %v2638, %v2651
        %v2653 = vcombine.low %v2645, %v2652
        %v2655 = vunpack.c.l.s4 1935823168
        %v2656 = vunpack.c.0.s8 %v2655
        %v2657 = vlaneseq
        %v2658 = vshrl.u32 %v2657, 7
        %v2659 = vsub.s32 %v2656, %v2658
        %v2660 = vrot.slane %v2653, %v2659
        %v2661 = vcombine.low %v2175, %v2189
        %v2662 = vcombine.low %v2182, %v2196
        %v2664 = vunpack.c.l.s4 1935823168
        %v2665 = vunpack.c.0.s8 %v2664
        %v2666 = vlaneseq
        %v2667 = vshrl.u32 %v2666, 7
        %v2668 = vsub.s32 %v2665, %v2667
        %v2669 = vrot.slane %v2661, %v2668
        %v2671 = vunpack.c.l.s4 1935823168
        %v2672 = vunpack.c.0.s8 %v2671
        %v2673 = vlaneseq
        %v2674 = vshrl.u32 %v2673, 7
        %v2675 = vsub.s32 %v2672, %v2674
        %v2676 = vrot.slane %v2662, %v2675
        %v2677 = vcombine.low %v2669, %v2676
        %v2679 = vunpack.c.l.s4 1935823168
        %v2680 = vunpack.c.0.s8 %v2679
        %v2681 = vlaneseq
        %v2682 = vshrl.u32 %v2681, 7
        %v2683 = vsub.s32 %v2680, %v2682
        %v2684 = vrot.slane %v2677, %v2683
        %v2685 = vcombine.low %v2203, %v2217
        %v2686 = vcombine.low %v2210, %v2224
        %v2688 = vunpack.c.l.s4 1935823168
        %v2689 = vunpack.c.0.s8 %v2688
        %v2690 = vlaneseq
        %v2691 = vshrl.u32 %v2690, 7
        %v2692 = vsub.s32 %v2689, %v2691
        %v2693 = vrot.slane %v2685, %v2692
        %v2695 = vunpack.c.l.s4 1935823168
        %v2696 = vunpack.c.0.s8 %v2695
        %v2697 = vlaneseq
        %v2698 = vshrl.u32 %v2697, 7
        %v2699 = vsub.s32 %v2696, %v2698
        %v2700 = vrot.slane %v2686, %v2699
        %v2701 = vcombine.low %v2693, %v2700
        %v2703 = vunpack.c.l.s4 1935823168
        %v2704 = vunpack.c.0.s8 %v2703
        %v2705 = vlaneseq
        %v2706 = vshrl.u32 %v2705, 7
        %v2707 = vsub.s32 %v2704, %v2706
        %v2708 = vrot.slane %v2701, %v2707
        %v2709 = vcombine.low %v2231, %v2245
        %v2710 = vcombine.low %v2238, %v2252
        %v2712 = vunpack.c.l.s4 1935823168
        %v2713 = vunpack.c.0.s8 %v2712
        %v2714 = vlaneseq
        %v2715 = vshrl.u32 %v2714, 7
        %v2716 = vsub.s32 %v2713, %v2715
        %v2717 = vrot.slane %v2709, %v2716
        %v2719 = vunpack.c.l.s4 1935823168
        %v2720 = vunpack.c.0.s8 %v2719
        %v2721 = vlaneseq
        %v2722 = vshrl.u32 %v2721, 7
        %v2723 = vsub.s32 %v2720, %v2722
        %v2724 = vrot.slane %v2710, %v2723
        %v2725 = vcombine.low %v2717, %v2724
        %v2727 = vunpack.c.l.s4 1935823168
        %v2728 = vunpack.c.0.s8 %v2727
        %v2729 = vlaneseq
        %v2730 = vshrl.u32 %v2729, 7
        %v2731 = vsub.s32 %v2728, %v2730
        %v2732 = vrot.slane %v2725, %v2731
        %v2733 = vcombine.low %v2259, %v2273
        %v2734 = vcombine.low %v2266, %v2280
        %v2736 = vunpack.c.l.s4 1935823168
        %v2737 = vunpack.c.0.s8 %v2736
        %v2738 = vlaneseq
        %v2739 = vshrl.u32 %v2738, 7
        %v2740 = vsub.s32 %v2737, %v2739
        %v2741 = vrot.slane %v2733, %v2740
        %v2743 = vunpack.c.l.s4 1935823168
        %v2744 = vunpack.c.0.s8 %v2743
        %v2745 = vlaneseq
        %v2746 = vshrl.u32 %v2745, 7
        %v2747 = vsub.s32 %v2744, %v2746
        %v2748 = vrot.slane %v2734, %v2747
        %v2749 = vcombine.low %v2741, %v2748
        %v2751 = vunpack.c.l.s4 1935823168
        %v2752 = vunpack.c.0.s8 %v2751
        %v2753 = vlaneseq
        %v2754 = vshrl.u32 %v2753, 7
        %v2755 = vsub.s32 %v2752, %v2754
        %v2756 = vrot.slane %v2749, %v2755
        %v2757 = vcombine.low %v2287, %v2301
        %v2758 = vcombine.low %v2294, %v2308
        %v2760 = vunpack.c.l.s4 1935823168
        %v2761 = vunpack.c.0.s8 %v2760
        %v2762 = vlaneseq
        %v2763 = vshrl.u32 %v2762, 7
        %v2764 = vsub.s32 %v2761, %v2763
        %v2765 = vrot.slane %v2757, %v2764
        %v2767 = vunpack.c.l.s4 1935823168
        %v2768 = vunpack.c.0.s8 %v2767
        %v2769 = vlaneseq
        %v2770 = vshrl.u32 %v2769, 7
        %v2771 = vsub.s32 %v2768, %v2770
        %v2772 = vrot.slane %v2758, %v2771
        %v2773 = vcombine.low %v2765, %v2772
        %v2775 = vunpack.c.l.s4 1935823168
        %v2776 = vunpack.c.0.s8 %v2775
        %v2777 = vlaneseq
        %v2778 = vshrl.u32 %v2777, 7
        %v2779 = vsub.s32 %v2776, %v2778
        %v2780 = vrot.slane %v2773, %v2779
        %v2781 = vcombine.low %v2315, %v2329
        %v2782 = vcombine.low %v2322, %v2336
        %v2784 = vunpack.c.l.s4 1935823168
        %v2785 = vunpack.c.0.s8 %v2784
        %v2786 = vlaneseq
        %v2787 = vshrl.u32 %v2786, 7
        %v2788 = vsub.s32 %v2785, %v2787
        %v2789 = vrot.slane %v2781, %v2788
        %v2791 = vunpack.c.l.s4 1935823168
        %v2792 = vunpack.c.0.s8 %v2791
        %v2793 = vlaneseq
        %v2794 = vshrl.u32 %v2793, 7
        %v2795 = vsub.s32 %v2792, %v2794
        %v2796 = vrot.slane %v2782, %v2795
        %v2797 = vcombine.low %v2789, %v2796
        %v2799 = vunpack.c.l.s4 1935823168
        %v2800 = vunpack.c.0.s8 %v2799
        %v2801 = vlaneseq
        %v2802 = vshrl.u32 %v2801, 7
        %v2803 = vsub.s32 %v2800, %v2802
        %v2804 = vrot.slane %v2797, %v2803
        %v2805 = vcombine.low %v2343, %v2357
        %v2806 = vcombine.low %v2350, %v2364
        %v2808 = vunpack.c.l.s4 1935823168
        %v2809 = vunpack.c.0.s8 %v2808
        %v2810 = vlaneseq
        %v2811 = vshrl.u32 %v2810, 7
        %v2812 = vsub.s32 %v2809, %v2811
        %v2813 = vrot.slane %v2805, %v2812
        %v2815 = vunpack.c.l.s4 1935823168
        %v2816 = vunpack.c.0.s8 %v2815
        %v2817 = vlaneseq
        %v2818 = vshrl.u32 %v2817, 7
        %v2819 = vsub.s32 %v2816, %v2818
        %v2820 = vrot.slane %v2806, %v2819
        %v2821 = vcombine.low %v2813, %v2820
        %v2823 = vunpack.c.l.s4 1935823168
        %v2824 = vunpack.c.0.s8 %v2823
        %v2825 = vlaneseq
        %v2826 = vshrl.u32 %v2825, 7
        %v2827 = vsub.s32 %v2824, %v2826
        %v2828 = vrot.slane %v2821, %v2827
        %v2829 = vcombine.low %v2371, %v2385
        %v2830 = vcombine.low %v2378, %v2392
        %v2832 = vunpack.c.l.s4 1935823168
        %v2833 = vunpack.c.0.s8 %v2832
        %v2834 = vlaneseq
        %v2835 = vshrl.u32 %v2834, 7
        %v2836 = vsub.s32 %v2833, %v2835
        %v2837 = vrot.slane %v2829, %v2836
        %v2839 = vunpack.c.l.s4 1935823168
        %v2840 = vunpack.c.0.s8 %v2839
        %v2841 = vlaneseq
        %v2842 = vshrl.u32 %v2841, 7
        %v2843 = vsub.s32 %v2840, %v2842
        %v2844 = vrot.slane %v2830, %v2843
        %v2845 = vcombine.low %v2837, %v2844
        %v2847 = vunpack.c.l.s4 1935823168
        %v2848 = vunpack.c.0.s8 %v2847
        %v2849 = vlaneseq
        %v2850 = vshrl.u32 %v2849, 7
        %v2851 = vsub.s32 %v2848, %v2850
        %v2852 = vrot.slane %v2845, %v2851
        %v2853 = vcombine.low %v2399, %v2413
        %v2854 = vcombine.low %v2406, %v2420
        %v2856 = vunpack.c.l.s4 1935823168
        %v2857 = vunpack.c.0.s8 %v2856
        %v2858 = vlaneseq
        %v2859 = vshrl.u32 %v2858, 7
        %v2860 = vsub.s32 %v2857, %v2859
        %v2861 = vrot.slane %v2853, %v2860
        %v2863 = vunpack.c.l.s4 1935823168
        %v2864 = vunpack.c.0.s8 %v2863
        %v2865 = vlaneseq
        %v2866 = vshrl.u32 %v2865, 7
        %v2867 = vsub.s32 %v2864, %v2866
        %v2868 = vrot.slane %v2854, %v2867
        %v2869 = vcombine.low %v2861, %v2868
        %v2871 = vunpack.c.l.s4 1935823168
        %v2872 = vunpack.c.0.s8 %v2871
        %v2873 = vlaneseq
        %v2874 = vshrl.u32 %v2873, 7
        %v2875 = vsub.s32 %v2872, %v2874
        %v2876 = vrot.slane %v2869, %v2875
        %v2877 = vcombine.low %v2427, %v2441
        %v2878 = vcombine.low %v2434, %v2448
        %v2880 = vunpack.c.l.s4 1935823168
        %v2881 = vunpack.c.0.s8 %v2880
        %v2882 = vlaneseq
        %v2883 = vshrl.u32 %v2882, 7
        %v2884 = vsub.s32 %v2881, %v2883
        %v2885 = vrot.slane %v2877, %v2884
        %v2887 = vunpack.c.l.s4 1935823168
        %v2888 = vunpack.c.0.s8 %v2887
        %v2889 = vlaneseq
        %v2890 = vshrl.u32 %v2889, 7
        %v2891 = vsub.s32 %v2888, %v2890
        %v2892 = vrot.slane %v2878, %v2891
        %v2893 = vcombine.low %v2885, %v2892
        %v2895 = vunpack.c.l.s4 1935823168
        %v2896 = vunpack.c.0.s8 %v2895
        %v2897 = vlaneseq
        %v2898 = vshrl.u32 %v2897, 7
        %v2899 = vsub.s32 %v2896, %v2898
        %v2900 = vrot.slane %v2893, %v2899
        %v2901 = vcombine.low %v2455, %v2469
        %v2902 = vcombine.low %v2462, %v2476
        %v2904 = vunpack.c.l.s4 1935823168
        %v2905 = vunpack.c.0.s8 %v2904
        %v2906 = vlaneseq
        %v2907 = vshrl.u32 %v2906, 7
        %v2908 = vsub.s32 %v2905, %v2907
        %v2909 = vrot.slane %v2901, %v2908
        %v2911 = vunpack.c.l.s4 1935823168
        %v2912 = vunpack.c.0.s8 %v2911
        %v2913 = vlaneseq
        %v2914 = vshrl.u32 %v2913, 7
        %v2915 = vsub.s32 %v2912, %v2914
        %v2916 = vrot.slane %v2902, %v2915
        %v2917 = vcombine.low %v2909, %v2916
        %v2919 = vunpack.c.l.s4 1935823168
        %v2920 = vunpack.c.0.s8 %v2919
        %v2921 = vlaneseq
        %v2922 = vshrl.u32 %v2921, 7
        %v2923 = vsub.s32 %v2920, %v2922
        %v2924 = vrot.slane %v2917, %v2923
        %vm2941 = vcmask 60416
        %2942 = vst.msk [vmem:[%s215] sm:$0xf] %vm2941, %v2564
        %2943 = vst.msk [vmem:[%s215 + $0x4] sm:$0xf] %vm2941, %v2588
        %2944 = vst.msk [vmem:[%s215 + $0x8] sm:$0xf] %vm2941, %v2564
        %2945 = vst.msk [vmem:[%s215 + $0xc] sm:$0xf] %vm2941, %v2588
        %2946 = vst.msk [vmem:[%s215 + $0x10] sm:$0xf] %vm2941, %v2612
        %2947 = vst.msk [vmem:[%s215 + $0x14] sm:$0xf] %vm2941, %v2636
        %2948 = vst.msk [vmem:[%s215 + $0x18] sm:$0xf] %vm2941, %v2612
        %2949 = vst.msk [vmem:[%s215 + $0x1c] sm:$0xf] %vm2941, %v2636
        %2950 = vst.msk [vmem:[%s215 + $0x20] sm:$0xf] %vm2941, %v2660
        %2951 = vst.msk [vmem:[%s215 + $0x24] sm:$0xf] %vm2941, %v2684
        %2952 = vst.msk [vmem:[%s215 + $0x28] sm:$0xf] %vm2941, %v2660
        %2953 = vst.msk [vmem:[%s215 + $0x2c] sm:$0xf] %vm2941, %v2684
        %2954 = vst.msk [vmem:[%s215 + $0x30] sm:$0xf] %vm2941, %v2708
        %2955 = vst.msk [vmem:[%s215 + $0x34] sm:$0xf] %vm2941, %v2732
        %2956 = vst.msk [vmem:[%s215 + $0x38] sm:$0xf] %vm2941, %v2708
        %2957 = vst.msk [vmem:[%s215 + $0x3c] sm:$0xf] %vm2941, %v2732
        %2958 = vst.msk [vmem:[%s215 + $0x40] sm:$0xf] %vm2941, %v2756
        %2959 = vst.msk [vmem:[%s215 + $0x44] sm:$0xf] %vm2941, %v2780
        %2960 = vst.msk [vmem:[%s215 + $0x48] sm:$0xf] %vm2941, %v2756
        %2961 = vst.msk [vmem:[%s215 + $0x4c] sm:$0xf] %vm2941, %v2780
        %2962 = vst.msk [vmem:[%s215 + $0x50] sm:$0xf] %vm2941, %v2804
        %2963 = vst.msk [vmem:[%s215 + $0x54] sm:$0xf] %vm2941, %v2828
        %2964 = vst.msk [vmem:[%s215 + $0x58] sm:$0xf] %vm2941, %v2804
        %2965 = vst.msk [vmem:[%s215 + $0x5c] sm:$0xf] %vm2941, %v2828
        %2966 = vst.msk [vmem:[%s215 + $0x60] sm:$0xf] %vm2941, %v2852
        %2967 = vst.msk [vmem:[%s215 + $0x64] sm:$0xf] %vm2941, %v2876
        %2968 = vst.msk [vmem:[%s215 + $0x68] sm:$0xf] %vm2941, %v2852
        %2969 = vst.msk [vmem:[%s215 + $0x6c] sm:$0xf] %vm2941, %v2876
        %2970 = vst.msk [vmem:[%s215 + $0x70] sm:$0xf] %vm2941, %v2900
        %2971 = vst.msk [vmem:[%s215 + $0x74] sm:$0xf] %vm2941, %v2924
        %2972 = vst.msk [vmem:[%s215 + $0x78] sm:$0xf] %vm2941, %v2900
        %2973 = vst.msk [vmem:[%s215 + $0x7c] sm:$0xf] %vm2941, %v2924
        %s2974 = sand.u32 %s97, 1
        %s2975 = scalar_lea.sflag [#allocation4], %s2974
        %s2976 = sand.u32 %s97, 1
        %s2977 = smul.addr %s2976, 128
        %s2978 = scalar_lea.vmem [#allocation8], %s2977
        // Predicated region
        $region45: #{decoder_forward.4} parent=31 // pred_check
          %p2979 = pneg %p107
        $region46: #{decoder_forward.4} parent=31 // pred_check_branch
          %2981 = sbr.rel (%p2979) target = $region48
        $region47: #{decoder_forward.4} parent=31 // pred_region
          %s2983 = ssub.s32 2048, 2048
          %2984 = vsyncadd %s2975, %s2983
          %s2985 = smul.addr %s21, 32
          %s2986 = smul.addr %s2985, 64
          %s2987 = scalar_lea.hbm %s3, %s2986
          %s2988 = sshll.u32 %s2978, 4
          %s2989 = int_to_ptr.vmem [resolvable:$true] %s2988
          %2994 = dma.vmem_to_hbm [thread:$0]  %s2989, 2048, %s2987, %s2975, 64, 64, 4
        $region48: #{decoder_forward.4} parent=31 // pred_fallthru
          _
      $region32: #{decoder_forward.4} parent=5 // pred_fallthru
        _
      %p2995 = scmp.le.s32.totalorder 2, %s16
      // Predicated region
      $region49: #{decoder_forward.4} parent=5 // pred_check
        %p2996 = pneg %p2995
      $region50: #{decoder_forward.4} parent=5 // pred_check_branch
        %2998 = sbr.rel (%p2996) target = $region52
      $region51: #{decoder_forward.4} parent=5 // pred_region
        %s2999 = ssub.s32 %s16, 2
        // Predicated region
        $region53: #{decoder_forward.4} parent=51 // pred_check
          %p3000 = pneg %p113
        $region54: #{decoder_forward.4} parent=51 // pred_check_branch
          %3002 = sbr.rel (%p3000) target = $region56
        $region55: #{decoder_forward.4} parent=51 // pred_region
          %s3003 = sand.u32 %s98, 1
          %s3004 = scalar_lea.sflag [#allocation4], %s3003
          %s3005 = sand.u32 %s98, 1
          %s3006 = smul.addr %s3005, 128
          %s3007 = scalar_lea.vmem [#allocation8], %s3006
          %3008 = dma.done %s3004, 2048
        $region56: #{decoder_forward.4} parent=51 // pred_fallthru
          _
      $region52: #{decoder_forward.4} parent=5 // pred_fallthru
        _
    $region6: #{decoder_forward.4} parent=1 // loop_footer
      %s20 = sadd.s32 1, %s16
    $region7: #{decoder_forward.4} parent=1 // loop_footer_branch
      %15 = sbr.rel target = $region3
    $region8: #{decoder_forward.4} parent=1 // loop_exit
      _
    %3009 = vsyncpa [#allocation3], 1
    %s3010 = scalar_lea.sflag [#allocation3], 1
    %3011 = vsyncpa %s3010, 1
    %3012 = vsyncpa [#allocation6], 1
    %3013 = vsyncpa [#allocation4], 1
    %s3014 = scalar_lea.sflag [#allocation4], 1
    %3015 = vsyncpa %s3014, 1

// kernel: decoder_forward.5
$region0: #{decoder_forward.5}
  #allocation0 [shape = 'u32[]', space=smem, size = 0x4, offset = 0x4, fixed_abs, tag = 'smem constant byte address 0x4 - core index']
  #allocation1 [shape = 'u32[144,128]{1,0:T(1,128)}', space=vmem, size = 0x12000, scoped, tag = 'internal scratch']
  #allocation2 [shape = 'f32[1]{0:T(128)S(6)}', space=smem, size = 0x200, scoped, tag = 'scoped memory for decoder_forward.5']
  %s0 = inlined_call_operand.hbm [shape: bf16[2,16,16,8], index: 0, kind: input, shape index: {}]
  %s1 = inlined_call_operand.hbm [shape: bf16[3,3,1,8], index: 1, kind: input, shape index: {}]
  %s2 = inlined_call_operand.<no memory space> [shape: f32[1], index: 2, kind: input, shape index: {}]
  %s3 = inlined_call_operand.hbm [shape: f32[2,1,16,16], index: 3, kind: output, shape index: {}]
  %s4 = sld [smem:[#allocation0]]
  $region53: #{decoder_forward.5} parent=0
    _
  %s6 = ssub.s32 1, %s4
  %s7 = scalar_select 0, %s6, %s4
  %8 = sst [smem:[#allocation2]] %s2
  $region1: #{decoder_forward.5} parent=0
    #allocation3 [shape = 'u8[131072]{0}', space=vmem, size = 0x20000, scoped, tag = 'input window, operand 0']
    #allocation4 [shape = 's32[2]{0}', space=sflag, size = 0x8, scoped, tag = 'scoped memory for decoder_forward.5']
    #allocation5 [shape = 's32[2]{0}', space=sflag, size = 0x8, scoped, tag = 'scoped memory for decoder_forward.5']
    #allocation6 [shape = 'u8[4608]{0}', space=vmem, size = 0x1400, scoped, tag = 'input window, operand 1, single buffered']
    #allocation7 [shape = 's32[1]{0}', space=sflag, size = 0x4, scoped, tag = 'scoped memory for decoder_forward.5']
    #allocation8 [shape = 'u8[16384]{0}', space=vmem, size = 0x4000, scoped, tag = 'output window, operand 0']
    %9 = vsyncpa [#allocation4], 0
    %s10 = scalar_lea.sflag [#allocation4], 1
    %11 = vsyncpa %s10, 0
    %12 = vsyncpa [#allocation7], 0
    %13 = vsyncpa [#allocation5], 0
    %s14 = scalar_lea.sflag [#allocation5], 1
    %15 = vsyncpa %s14, 0
    loop: start=0, step=1, limit=4
    $region2: #{decoder_forward.5} parent=1 // loop_pre_header
      _
    $region3: #{decoder_forward.5} parent=1 // loop_header
      %s17 = sphi 0, %s21
      %p18 = scmp.ge.s32.totalorder %s17, 4
      %s27 = sphi 0, %s29
      %s30 = sphi 0, %s27
      %s31 = sphi 0, %s30
      %s47 = sphi 0, %s31
      %s51 = sphi 0, %s51
      %s53 = sphi 0, %s51
      %s54 = sphi 0, %s53
      %s68 = sphi 0, %s54
      %s72 = sphi 0, %s72
      %s74 = sphi 0, %s72
      %s75 = sphi 0, %s74
      %s89 = sphi 0, %s75
      %s95 = sphi 0, %s97
      %s98 = sphi 0, %s95
      %s99 = sphi 0, %s98
      %s115 = sphi 0, %s99
    $region4: #{decoder_forward.5} parent=1 // loop_header_branch
      %20 = sbr.rel (%p18) target = $region8
    $region5: #{decoder_forward.5} parent=1 // loop_body
      %s22 = ssub.s32 %s17, 1
      %s23 = ssub.s32 %s17, 2
      %s24 = sadd.s32 %s17, 1
      %s25 = ssub.s32 %s17, %s24
      %p26 = scmp.eq.s32.totalorder %s25, 0
      %s28 = sadd.s32 %s27, 1
      %s29 = scalar_select %p26, %s27, %s28
      %p32 = pneg %p26
      %p33 = scmp.eq.s32.totalorder %s17, 1
      %p34 = por %p32, %p33
      %p35 = scmp.ne.s32.totalorder %s27, %s30
      %p36 = scmp.eq.s32.totalorder %s17, 0
      %p37 = por %p35, %p36
      %p38 = scmp.ne.s32.totalorder %s27, %s30
      %p39 = scmp.eq.s32.totalorder %s22, 1
      %p40 = por %p38, %p39
      %p41 = scmp.ne.s32.totalorder %s30, %s31
      %p42 = scmp.eq.s32.totalorder %s22, 0
      %p43 = por %p41, %p42
      %p44 = scmp.ne.s32.totalorder %s30, %s31
      %p45 = scmp.eq.s32.totalorder %s23, 1
      %p46 = por %p44, %p45
      %p48 = scmp.ne.s32.totalorder %s31, %s47
      %p49 = scmp.eq.s32.totalorder %s23, 0
      %p50 = por %p48, %p49
      %s52 = sadd.s32 %s51, 1
      %p55 = scmp.eq.s32.totalorder %s17, 1
      %p56 = scmp.ne.s32.totalorder %s51, %s53
      %p57 = scmp.eq.s32.totalorder %s17, 0
      %p58 = por %p56, %p57
      %p59 = scmp.ne.s32.totalorder %s51, %s53
      %p60 = scmp.eq.s32.totalorder %s22, 1
      %p61 = por %p59, %p60
      %p62 = scmp.ne.s32.totalorder %s53, %s54
      %p63 = scmp.eq.s32.totalorder %s22, 0
      %p64 = por %p62, %p63
      %p65 = scmp.ne.s32.totalorder %s53, %s54
      %p66 = scmp.eq.s32.totalorder %s23, 1
      %p67 = por %p65, %p66
      %p69 = scmp.ne.s32.totalorder %s54, %s68
      %p70 = scmp.eq.s32.totalorder %s23, 0
      %p71 = por %p69, %p70
      %s73 = sadd.s32 %s72, 1
      %p76 = scmp.eq.s32.totalorder %s17, 1
      %p77 = scmp.ne.s32.totalorder %s72, %s74
      %p78 = scmp.eq.s32.totalorder %s17, 0
      %p79 = por %p77, %p78
      %p80 = scmp.ne.s32.totalorder %s72, %s74
      %p81 = scmp.eq.s32.totalorder %s22, 1
      %p82 = por %p80, %p81
      %p83 = scmp.ne.s32.totalorder %s74, %s75
      %p84 = scmp.eq.s32.totalorder %s22, 0
      %p85 = por %p83, %p84
      %p86 = scmp.ne.s32.totalorder %s74, %s75
      %p87 = scmp.eq.s32.totalorder %s23, 1
      %p88 = por %p86, %p87
      %p90 = scmp.ne.s32.totalorder %s75, %s89
      %p91 = scmp.eq.s32.totalorder %s23, 0
      %p92 = por %p90, %p91
      %s93 = ssub.s32 %s17, %s24
      %p94 = scmp.eq.s32.totalorder %s93, 0
      %s96 = sadd.s32 %s95, 1
      %s97 = scalar_select %p94, %s95, %s96
      %p100 = pneg %p94
      %p101 = scmp.eq.s32.totalorder %s17, 1
      %p102 = por %p100, %p101
      %p103 = scmp.ne.s32.totalorder %s95, %s98
      %p104 = scmp.eq.s32.totalorder %s17, 0
      %p105 = por %p103, %p104
      %p106 = scmp.ne.s32.totalorder %s95, %s98
      %p107 = scmp.eq.s32.totalorder %s22, 1
      %p108 = por %p106, %p107
      %p109 = scmp.ne.s32.totalorder %s98, %s99
      %p110 = scmp.eq.s32.totalorder %s22, 0
      %p111 = por %p109, %p110
      %p112 = scmp.ne.s32.totalorder %s98, %s99
      %p113 = scmp.eq.s32.totalorder %s23, 1
      %p114 = por %p112, %p113
      %p116 = scmp.ne.s32.totalorder %s99, %s115
      %p117 = scmp.eq.s32.totalorder %s23, 0
      %p118 = por %p116, %p117
      %p119 = scmp.le.s32.totalorder 1, %s17
      %p120 = scmp.lt.s32.totalorder %s17, 3
      %p121 = pnand %p119, %p120
      %p122 = pneg %p121
      // Predicated region
      $region9: #{decoder_forward.5} parent=5 // pred_check
        _
      $region10: #{decoder_forward.5} parent=5 // pred_check_branch
        %124 = sbr.rel (%p121) target = $region12
      $region11: #{decoder_forward.5} parent=5 // pred_region
        %s125 = ssub.s32 %s17, 1
        // Predicated region
        $region13: #{decoder_forward.5} parent=11 // pred_check
          %p126 = pneg %p64
        $region14: #{decoder_forward.5} parent=11 // pred_check_branch
          %128 = sbr.rel (%p126) target = $region16
        $region15: #{decoder_forward.5} parent=11 // pred_region
          %s130 = ssub.s32 144, 144
          %131 = vsyncadd [#allocation7], %s130
          %s132 = sshll.u32 [#allocation6], 4
          %s133 = int_to_ptr.vmem [resolvable:$true] %s132
          %138 = dma.hbm_to_vmem [thread:$0]  %s1, 144, %s133, [#allocation7], 16, 16, 1
        $region16: #{decoder_forward.5} parent=11 // pred_fallthru
          _
        // Predicated region
        $region17: #{decoder_forward.5} parent=11 // pred_check
          %p139 = pneg %p85
        $region18: #{decoder_forward.5} parent=11 // pred_check_branch
          %141 = sbr.rel (%p139) target = $region20
        $region19: #{decoder_forward.5} parent=11 // pred_region
          _
        $region20: #{decoder_forward.5} parent=11 // pred_fallthru
          _
      $region12: #{decoder_forward.5} parent=5 // pred_fallthru
        _
      %p142 = scmp.lt.s32.totalorder %s17, 2
      // Predicated region
      $region21: #{decoder_forward.5} parent=5 // pred_check
        %p143 = pneg %p142
      $region22: #{decoder_forward.5} parent=5 // pred_check_branch
        %145 = sbr.rel (%p143) target = $region24
      $region23: #{decoder_forward.5} parent=5 // pred_region
        // Predicated region
        $region25: #{decoder_forward.5} parent=23 // pred_check
          %p146 = pneg %p37
        $region26: #{decoder_forward.5} parent=23 // pred_check_branch
          %148 = sbr.rel (%p146) target = $region28
        $region27: #{decoder_forward.5} parent=23 // pred_region
          %s149 = sand.u32 %s27, 1
          %s150 = scalar_lea.sflag [#allocation4], %s149
          %s151 = sand.u32 %s27, 1
          %s152 = smul.addr %s151, 128
          %s153 = scalar_lea.vmem [#allocation3], %s152
          %s155 = ssub.s32 2048, 2048
          %156 = vsyncadd %s150, %s155
          %s157 = smul.addr %s17, 32
          %s158 = smul.addr %s157, 64
          %s159 = scalar_lea.hbm %s0, %s158
          %s160 = sshll.u32 %s153, 4
          %s161 = int_to_ptr.vmem [resolvable:$true] %s160
          %166 = dma.hbm_to_vmem [thread:$0]  %s159, 2048, %s161, %s150, 64, 64, 4
        $region28: #{decoder_forward.5} parent=23 // pred_fallthru
          _
      $region24: #{decoder_forward.5} parent=5 // pred_fallthru
        _
      %p167 = scmp.le.s32.totalorder 1, %s17
      %p168 = scmp.lt.s32.totalorder %s17, 3
      %p169 = pnand %p167, %p168
      %p170 = pneg %p169
      // Predicated region
      $region29: #{decoder_forward.5} parent=5 // pred_check
        _
      $region30: #{decoder_forward.5} parent=5 // pred_check_branch
        %172 = sbr.rel (%p169) target = $region32
      $region31: #{decoder_forward.5} parent=5 // pred_region
        %s173 = ssub.s32 %s17, 1
        %s174 = sand.u32 %s30, 1
        %s175 = scalar_lea.sflag [#allocation4], %s174
        %s176 = sand.u32 %s30, 1
        %s177 = smul.addr %s176, 128
        %s178 = scalar_lea.vmem [#allocation3], %s177
        // Predicated region
        $region33: #{decoder_forward.5} parent=31 // pred_check
          %p179 = pneg %p43
        $region34: #{decoder_forward.5} parent=31 // pred_check_branch
          %181 = sbr.rel (%p179) target = $region36
        $region35: #{decoder_forward.5} parent=31 // pred_region
          %182 = dma.done %s175, 2048
        $region36: #{decoder_forward.5} parent=31 // pred_fallthru
          _
        // Predicated region
        $region37: #{decoder_forward.5} parent=31 // pred_check
          %p183 = pneg %p64
        $region38: #{decoder_forward.5} parent=31 // pred_check_branch
          %185 = sbr.rel (%p183) target = $region40
        $region39: #{decoder_forward.5} parent=31 // pred_region
          %186 = dma.done [#allocation7], 144
        $region40: #{decoder_forward.5} parent=31 // pred_fallthru
          _
        %s187 = sand.u32 %s30, 1
        %s188 = scalar_lea.sflag [#allocation4], %s187
        %s189 = sand.u32 %s30, 1
        %s190 = smul.addr %s189, 128
        %s191 = scalar_lea.vmem [#allocation3], %s190
        %p192 = pneg %p43
        %p193 = pneg %p40
        %p194 = pneg %p64
        %p195 = pneg %p61
        %p196 = pneg %p85
        %p197 = pneg %p82
        %p198 = pneg %p111
        %p199 = pneg %p108
        %s200 = sand.u32 %s98, 1
        %s201 = scalar_lea.sflag [#allocation5], %s200
        %s202 = sand.u32 %s98, 1
        %s203 = smul.addr %s202, 16
        %s204 = scalar_lea.vmem [#allocation8], %s203
        %v206 = vld [vmem:[%s178] sm:$0xf]
        %v207 = vld [vmem:[%s178 + $0x4] sm:$0xf]
        %v208 = vld [vmem:[%s178 + $0x8] sm:$0xf]
        %v209 = vld [vmem:[%s178 + $0xc] sm:$0xf]
        %v210 = vld [vmem:[%s178 + $0x10] sm:$0xf]
        %v211 = vld [vmem:[%s178 + $0x14] sm:$0xf]
        %v212 = vld [vmem:[%s178 + $0x18] sm:$0xf]
        %v213 = vld [vmem:[%s178 + $0x1c] sm:$0xf]
        %v214 = vld [vmem:[%s178 + $0x20] sm:$0xf]
        %v215 = vld [vmem:[%s178 + $0x24] sm:$0xf]
        %v216 = vld [vmem:[%s178 + $0x28] sm:$0xf]
        %v217 = vld [vmem:[%s178 + $0x2c] sm:$0xf]
        %v218 = vld [vmem:[%s178 + $0x30] sm:$0xf]
        %v219 = vld [vmem:[%s178 + $0x34] sm:$0xf]
        %v220 = vld [vmem:[%s178 + $0x38] sm:$0xf]
        %v221 = vld [vmem:[%s178 + $0x3c] sm:$0xf]
        %v222 = vld [vmem:[%s178 + $0x40] sm:$0xf]
        %v223 = vld [vmem:[%s178 + $0x44] sm:$0xf]
        %v224 = vld [vmem:[%s178 + $0x48] sm:$0xf]
        %v225 = vld [vmem:[%s178 + $0x4c] sm:$0xf]
        %v226 = vld [vmem:[%s178 + $0x50] sm:$0xf]
        %v227 = vld [vmem:[%s178 + $0x54] sm:$0xf]
        %v228 = vld [vmem:[%s178 + $0x58] sm:$0xf]
        %v229 = vld [vmem:[%s178 + $0x5c] sm:$0xf]
        %v230 = vld [vmem:[%s178 + $0x60] sm:$0xf]
        %v231 = vld [vmem:[%s178 + $0x64] sm:$0xf]
        %v232 = vld [vmem:[%s178 + $0x68] sm:$0xf]
        %v233 = vld [vmem:[%s178 + $0x6c] sm:$0xf]
        %v234 = vld [vmem:[%s178 + $0x70] sm:$0xf]
        %v235 = vld [vmem:[%s178 + $0x74] sm:$0xf]
        %v236 = vld [vmem:[%s178 + $0x78] sm:$0xf]
        %v237 = vld [vmem:[%s178 + $0x7c] sm:$0xf]
        %v270 = vunpack.c.l.b16 %v206
        %v271 = vunpack.c.l.b16 %v207
        %v272 = vunpack.c.l.b16 %v208
        %v273 = vunpack.c.l.b16 %v209
        %v274 = vunpack.c.l.b16 %v210
        %v275 = vunpack.c.l.b16 %v211
        %v276 = vunpack.c.l.b16 %v212
        %v277 = vunpack.c.l.b16 %v213
        %v278 = vunpack.c.l.b16 %v214
        %v279 = vunpack.c.l.b16 %v215
        %v280 = vunpack.c.l.b16 %v216
        %v281 = vunpack.c.l.b16 %v217
        %v282 = vunpack.c.l.b16 %v218
        %v283 = vunpack.c.l.b16 %v219
        %v284 = vunpack.c.l.b16 %v220
        %v285 = vunpack.c.l.b16 %v221
        %v286 = vunpack.c.l.b16 %v222
        %v287 = vunpack.c.l.b16 %v223
        %v288 = vunpack.c.l.b16 %v224
        %v289 = vunpack.c.l.b16 %v225
        %v290 = vunpack.c.l.b16 %v226
        %v291 = vunpack.c.l.b16 %v227
        %v292 = vunpack.c.l.b16 %v228
        %v293 = vunpack.c.l.b16 %v229
        %v294 = vunpack.c.l.b16 %v230
        %v295 = vunpack.c.l.b16 %v231
        %v296 = vunpack.c.l.b16 %v232
        %v297 = vunpack.c.l.b16 %v233
        %v298 = vunpack.c.l.b16 %v234
        %v299 = vunpack.c.l.b16 %v235
        %v300 = vunpack.c.l.b16 %v236
        %v301 = vunpack.c.l.b16 %v237
        %v302 = vpack.c.b16 %v271, %v270
        %v303 = vpack.c.b16 %v273, %v272
        %v304 = vpack.c.b16 %v275, %v274
        %v305 = vpack.c.b16 %v277, %v276
        %v306 = vpack.c.b16 %v279, %v278
        %v307 = vpack.c.b16 %v281, %v280
        %v308 = vpack.c.b16 %v283, %v282
        %v309 = vpack.c.b16 %v285, %v284
        %v310 = vpack.c.b16 %v287, %v286
        %v311 = vpack.c.b16 %v289, %v288
        %v312 = vpack.c.b16 %v291, %v290
        %v313 = vpack.c.b16 %v293, %v292
        %v314 = vpack.c.b16 %v295, %v294
        %v315 = vpack.c.b16 %v297, %v296
        %v316 = vpack.c.b16 %v299, %v298
        %v317 = vpack.c.b16 %v301, %v300
        %v319 = vshrl.u32 0, 16
        %v321 = vrot.slane %v319, 7
        %v322 = vshll.u32 0, 16
        %v324 = vor.u32 %v321, %v322
        %v326 = vshrl.u32 %v302, 16
        %v328 = vrot.slane %v326, 7
        %v329 = vshll.u32 %v302, 16
        %v331 = vor.u32 %v328, %v329
        %v333 = vshrl.u32 %v303, 16
        %v335 = vrot.slane %v333, 7
        %v336 = vshll.u32 %v303, 16
        %v338 = vor.u32 %v335, %v336
        %v340 = vshrl.u32 %v304, 16
        %v342 = vrot.slane %v340, 7
        %v343 = vshll.u32 %v304, 16
        %v345 = vor.u32 %v342, %v343
        %v347 = vshrl.u32 %v305, 16
        %v349 = vrot.slane %v347, 7
        %v350 = vshll.u32 %v305, 16
        %v352 = vor.u32 %v349, %v350
        %v354 = vshrl.u32 %v306, 16
        %v356 = vrot.slane %v354, 7
        %v357 = vshll.u32 %v306, 16
        %v359 = vor.u32 %v356, %v357
        %v361 = vshrl.u32 %v307, 16
        %v363 = vrot.slane %v361, 7
        %v364 = vshll.u32 %v307, 16
        %v366 = vor.u32 %v363, %v364
        %v368 = vshrl.u32 %v308, 16
        %v370 = vrot.slane %v368, 7
        %v371 = vshll.u32 %v308, 16
        %v373 = vor.u32 %v370, %v371
        %v375 = vshrl.u32 %v309, 16
        %v377 = vrot.slane %v375, 7
        %v378 = vshll.u32 %v309, 16
        %v380 = vor.u32 %v377, %v378
        %v382 = vshrl.u32 %v310, 16
        %v384 = vrot.slane %v382, 7
        %v385 = vshll.u32 %v310, 16
        %v387 = vor.u32 %v384, %v385
        %v389 = vshrl.u32 %v311, 16
        %v391 = vrot.slane %v389, 7
        %v392 = vshll.u32 %v311, 16
        %v394 = vor.u32 %v391, %v392
        %v396 = vshrl.u32 %v312, 16
        %v398 = vrot.slane %v396, 7
        %v399 = vshll.u32 %v312, 16
        %v401 = vor.u32 %v398, %v399
        %v403 = vshrl.u32 %v313, 16
        %v405 = vrot.slane %v403, 7
        %v406 = vshll.u32 %v313, 16
        %v408 = vor.u32 %v405, %v406
        %v410 = vshrl.u32 %v314, 16
        %v412 = vrot.slane %v410, 7
        %v413 = vshll.u32 %v314, 16
        %v415 = vor.u32 %v412, %v413
        %v417 = vshrl.u32 %v315, 16
        %v419 = vrot.slane %v417, 7
        %v420 = vshll.u32 %v315, 16
        %v422 = vor.u32 %v419, %v420
        %v424 = vshrl.u32 %v316, 16
        %v426 = vrot.slane %v424, 7
        %v427 = vshll.u32 %v316, 16
        %v429 = vor.u32 %v426, %v427
        %v431 = vshrl.u32 %v317, 16
        %v433 = vrot.slane %v431, 7
        %v434 = vshll.u32 %v317, 16
        %v436 = vor.u32 %v433, %v434
        %vm471 = vcmask 1040384
        %vm472 = vsmask.f32 256
        %vm473 = vmand %vm471, %vm472
        %v474 = vsel %vm473, 0, %v324
        %v475 = vsel %vm473, 0, %v331
        %v476 = vsel %vm473, 0, %v338
        %v477 = vsel %vm473, 0, %v345
        %v478 = vsel %vm473, 0, %v352
        %v479 = vsel %vm473, 0, %v359
        %v480 = vsel %vm473, 0, %v366
        %v481 = vsel %vm473, 0, %v373
        %v482 = vsel %vm473, 0, %v380
        %v483 = vsel %vm473, 0, %v387
        %v484 = vsel %vm473, 0, %v394
        %v485 = vsel %vm473, 0, %v401
        %v486 = vsel %vm473, 0, %v408
        %v487 = vsel %vm473, 0, %v415
        %v488 = vsel %vm473, 0, %v422
        %v489 = vsel %vm473, 0, %v429
        %v490 = vsel %vm473, 0, %v436
        %v491 = vsel %vm473, %v321, 0
        %v492 = vsel %vm473, %v328, 0
        %v493 = vsel %vm473, %v335, 0
        %v494 = vsel %vm473, %v342, 0
        %v495 = vsel %vm473, %v349, 0
        %v496 = vsel %vm473, %v356, 0
        %v497 = vsel %vm473, %v363, 0
        %v498 = vsel %vm473, %v370, 0
        %v499 = vsel %vm473, %v377, 0
        %v500 = vsel %vm473, %v384, 0
        %v501 = vsel %vm473, %v391, 0
        %v502 = vsel %vm473, %v398, 0
        %v503 = vsel %vm473, %v405, 0
        %v504 = vsel %vm473, %v412, 0
        %v505 = vsel %vm473, %v419, 0
        %v506 = vsel %vm473, %v426, 0
        %v507 = vsel %vm473, %v433, 0
        %v508 = vunpack.c.l.bf16 %v474
        %v509 = vunpack.c.h.bf16 %v474
        %v510 = vunpack.c.l.bf16 %v491
        %v511 = vunpack.c.l.bf16 %v475
        %v512 = vunpack.c.h.bf16 %v475
        %v513 = vunpack.c.l.bf16 %v492
        %v514 = vunpack.c.l.bf16 %v476
        %v515 = vunpack.c.h.bf16 %v476
        %v516 = vunpack.c.l.bf16 %v493
        %v517 = vunpack.c.l.bf16 %v477
        %v518 = vunpack.c.h.bf16 %v477
        %v519 = vunpack.c.l.bf16 %v494
        %v520 = vunpack.c.l.bf16 %v478
        %v521 = vunpack.c.h.bf16 %v478
        %v522 = vunpack.c.l.bf16 %v495
        %v523 = vunpack.c.l.bf16 %v479
        %v524 = vunpack.c.h.bf16 %v479
        %v525 = vunpack.c.l.bf16 %v496
        %v526 = vunpack.c.l.bf16 %v480
        %v527 = vunpack.c.h.bf16 %v480
        %v528 = vunpack.c.l.bf16 %v497
        %v529 = vunpack.c.l.bf16 %v481
        %v530 = vunpack.c.h.bf16 %v481
        %v531 = vunpack.c.l.bf16 %v498
        %v532 = vunpack.c.l.bf16 %v482
        %v533 = vunpack.c.h.bf16 %v482
        %v534 = vunpack.c.l.bf16 %v499
        %v535 = vunpack.c.l.bf16 %v483
        %v536 = vunpack.c.h.bf16 %v483
        %v537 = vunpack.c.l.bf16 %v500
        %v538 = vunpack.c.l.bf16 %v484
        %v539 = vunpack.c.h.bf16 %v484
        %v540 = vunpack.c.l.bf16 %v501
        %v541 = vunpack.c.l.bf16 %v485
        %v542 = vunpack.c.h.bf16 %v485
        %v543 = vunpack.c.l.bf16 %v502
        %v544 = vunpack.c.l.bf16 %v486
        %v545 = vunpack.c.h.bf16 %v486
        %v546 = vunpack.c.l.bf16 %v503
        %v547 = vunpack.c.l.bf16 %v487
        %v548 = vunpack.c.h.bf16 %v487
        %v549 = vunpack.c.l.bf16 %v504
        %v550 = vunpack.c.l.bf16 %v488
        %v551 = vunpack.c.h.bf16 %v488
        %v552 = vunpack.c.l.bf16 %v505
        %v553 = vunpack.c.l.bf16 %v489
        %v554 = vunpack.c.h.bf16 %v489
        %v555 = vunpack.c.l.bf16 %v506
        %v556 = vunpack.c.l.bf16 %v490
        %v557 = vunpack.c.h.bf16 %v490
        %v558 = vunpack.c.l.bf16 %v507
        %v559 = vld [vmem:[#allocation6] sm:$0x1]
        %v560 = vunpack.c.l.bf16 %v559
        %v561 = vlaneseq
        %v562 = vshrl.u32 %v561, 7
        %v563 = vsub.s32 0, %v562
        %v564 = vrot.slane %v560, %v563
        %v565 = vmul.f32 %v508, %v564
        %v566 = vmul.f32 %v509, %v564
        %v567 = vmul.f32 %v511, %v564
        %v568 = vmul.f32 %v512, %v564
        %v569 = vmul.f32 %v514, %v564
        %v570 = vmul.f32 %v515, %v564
        %v571 = vmul.f32 %v517, %v564
        %v572 = vmul.f32 %v518, %v564
        %v573 = vmul.f32 %v520, %v564
        %v574 = vmul.f32 %v521, %v564
        %v575 = vmul.f32 %v523, %v564
        %v576 = vmul.f32 %v524, %v564
        %v577 = vmul.f32 %v526, %v564
        %v578 = vmul.f32 %v527, %v564
        %v579 = vmul.f32 %v529, %v564
        %v580 = vmul.f32 %v530, %v564
        %v581 = vmul.f32 %v532, %v564
        %v582 = vmul.f32 %v533, %v564
        %v583 = vmul.f32 %v535, %v564
        %v584 = vmul.f32 %v536, %v564
        %v585 = vmul.f32 %v538, %v564
        %v586 = vmul.f32 %v539, %v564
        %v587 = vmul.f32 %v541, %v564
        %v588 = vmul.f32 %v542, %v564
        %v589 = vmul.f32 %v544, %v564
        %v590 = vmul.f32 %v545, %v564
        %v591 = vmul.f32 %v547, %v564
        %v592 = vmul.f32 %v548, %v564
        %v593 = vmul.f32 %v550, %v564
        %v594 = vmul.f32 %v551, %v564
        %v595 = vmul.f32 %v553, %v564
        %v596 = vmul.f32 %v554, %v564
        %vm597 = vcmask 64512
        %v598 = vsel %vm597, %v565, 0.0
        %599 = vadd.xlane.f32.xlu0 %v598
        %v600 = vpop.xlane.xlu0 %599
        %v601 = vsel %vm597, %v566, 0.0
        %602 = vadd.xlane.f32.xlu0 %v601
        %v603 = vpop.xlane.xlu0 %602
        %v604 = vsel %vm597, %v567, 0.0
        %605 = vadd.xlane.f32.xlu0 %v604
        %v606 = vpop.xlane.xlu0 %605
        %v607 = vsel %vm597, %v568, 0.0
        %608 = vadd.xlane.f32.xlu0 %v607
        %v609 = vpop.xlane.xlu0 %608
        %v610 = vsel %vm597, %v569, 0.0
        %611 = vadd.xlane.f32.xlu0 %v610
        %v612 = vpop.xlane.xlu0 %611
        %v613 = vsel %vm597, %v570, 0.0
        %614 = vadd.xlane.f32.xlu0 %v613
        %v615 = vpop.xlane.xlu0 %614
        %v616 = vsel %vm597, %v571, 0.0
        %617 = vadd.xlane.f32.xlu0 %v616
        %v618 = vpop.xlane.xlu0 %617
        %v619 = vsel %vm597, %v572, 0.0
        %620 = vadd.xlane.f32.xlu0 %v619
        %v621 = vpop.xlane.xlu0 %620
        %v622 = vsel %vm597, %v573, 0.0
        %623 = vadd.xlane.f32.xlu0 %v622
        %v624 = vpop.xlane.xlu0 %623
        %v625 = vsel %vm597, %v574, 0.0
        %626 = vadd.xlane.f32.xlu0 %v625
        %v627 = vpop.xlane.xlu0 %626
        %v628 = vsel %vm597, %v575, 0.0
        %629 = vadd.xlane.f32.xlu0 %v628
        %v630 = vpop.xlane.xlu0 %629
        %v631 = vsel %vm597, %v576, 0.0
        %632 = vadd.xlane.f32.xlu0 %v631
        %v633 = vpop.xlane.xlu0 %632
        %v634 = vsel %vm597, %v577, 0.0
        %635 = vadd.xlane.f32.xlu0 %v634
        %v636 = vpop.xlane.xlu0 %635
        %v637 = vsel %vm597, %v578, 0.0
        %638 = vadd.xlane.f32.xlu0 %v637
        %v639 = vpop.xlane.xlu0 %638
        %v640 = vsel %vm597, %v579, 0.0
        %641 = vadd.xlane.f32.xlu0 %v640
        %v642 = vpop.xlane.xlu0 %641
        %v643 = vsel %vm597, %v580, 0.0
        %644 = vadd.xlane.f32.xlu0 %v643
        %v645 = vpop.xlane.xlu0 %644
        %v646 = vsel %vm597, %v581, 0.0
        %647 = vadd.xlane.f32.xlu0 %v646
        %v648 = vpop.xlane.xlu0 %647
        %v649 = vsel %vm597, %v582, 0.0
        %650 = vadd.xlane.f32.xlu0 %v649
        %v651 = vpop.xlane.xlu0 %650
        %v652 = vsel %vm597, %v583, 0.0
        %653 = vadd.xlane.f32.xlu0 %v652
        %v654 = vpop.xlane.xlu0 %653
        %v655 = vsel %vm597, %v584, 0.0
        %656 = vadd.xlane.f32.xlu0 %v655
        %v657 = vpop.xlane.xlu0 %656
        %v658 = vsel %vm597, %v585, 0.0
        %659 = vadd.xlane.f32.xlu0 %v658
        %v660 = vpop.xlane.xlu0 %659
        %v661 = vsel %vm597, %v586, 0.0
        %662 = vadd.xlane.f32.xlu0 %v661
        %v663 = vpop.xlane.xlu0 %662
        %v664 = vsel %vm597, %v587, 0.0
        %665 = vadd.xlane.f32.xlu0 %v664
        %v666 = vpop.xlane.xlu0 %665
        %v667 = vsel %vm597, %v588, 0.0
        %668 = vadd.xlane.f32.xlu0 %v667
        %v669 = vpop.xlane.xlu0 %668
        %v670 = vsel %vm597, %v589, 0.0
        %671 = vadd.xlane.f32.xlu0 %v670
        %v672 = vpop.xlane.xlu0 %671
        %v673 = vsel %vm597, %v590, 0.0
        %674 = vadd.xlane.f32.xlu0 %v673
        %v675 = vpop.xlane.xlu0 %674
        %v676 = vsel %vm597, %v591, 0.0
        %677 = vadd.xlane.f32.xlu0 %v676
        %v678 = vpop.xlane.xlu0 %677
        %v679 = vsel %vm597, %v592, 0.0
        %680 = vadd.xlane.f32.xlu0 %v679
        %v681 = vpop.xlane.xlu0 %680
        %v682 = vsel %vm597, %v593, 0.0
        %683 = vadd.xlane.f32.xlu0 %v682
        %v684 = vpop.xlane.xlu0 %683
        %v685 = vsel %vm597, %v594, 0.0
        %686 = vadd.xlane.f32.xlu0 %v685
        %v687 = vpop.xlane.xlu0 %686
        %v688 = vsel %vm597, %v595, 0.0
        %689 = vadd.xlane.f32.xlu0 %v688
        %v690 = vpop.xlane.xlu0 %689
        %v691 = vsel %vm597, %v596, 0.0
        %692 = vadd.xlane.f32.xlu0 %v691
        %v693 = vpop.xlane.xlu0 %692
        %v694 = vadd.f32 %v600, 0.0
        %v695 = vadd.f32 %v603, 0.0
        %v696 = vadd.f32 %v606, 0.0
        %v697 = vadd.f32 %v609, 0.0
        %v698 = vadd.f32 %v612, 0.0
        %v699 = vadd.f32 %v615, 0.0
        %v700 = vadd.f32 %v618, 0.0
        %v701 = vadd.f32 %v621, 0.0
        %v702 = vadd.f32 %v624, 0.0
        %v703 = vadd.f32 %v627, 0.0
        %v704 = vadd.f32 %v630, 0.0
        %v705 = vadd.f32 %v633, 0.0
        %v706 = vadd.f32 %v636, 0.0
        %v707 = vadd.f32 %v639, 0.0
        %v708 = vadd.f32 %v642, 0.0
        %v709 = vadd.f32 %v645, 0.0
        %v710 = vadd.f32 %v648, 0.0
        %v711 = vadd.f32 %v651, 0.0
        %v712 = vadd.f32 %v654, 0.0
        %v713 = vadd.f32 %v657, 0.0
        %v714 = vadd.f32 %v660, 0.0
        %v715 = vadd.f32 %v663, 0.0
        %v716 = vadd.f32 %v666, 0.0
        %v717 = vadd.f32 %v669, 0.0
        %v718 = vadd.f32 %v672, 0.0
        %v719 = vadd.f32 %v675, 0.0
        %v720 = vadd.f32 %v678, 0.0
        %v721 = vadd.f32 %v681, 0.0
        %v722 = vadd.f32 %v684, 0.0
        %v723 = vadd.f32 %v687, 0.0
        %v724 = vadd.f32 %v690, 0.0
        %v725 = vadd.f32 %v693, 0.0
        %s726 = scalar_lea.vmem [#allocation6], 1
        %v727 = vld [vmem:[%s726] sm:$0x1]
        %v728 = vunpack.c.l.bf16 %v727
        %v729 = vlaneseq
        %v730 = vshrl.u32 %v729, 7
        %v731 = vsub.s32 0, %v730
        %v732 = vrot.slane %v728, %v731
        %v733 = vmul.f32 %v508, %v732
        %v734 = vmul.f32 %v509, %v732
        %v735 = vmul.f32 %v510, %v732
        %v736 = vmul.f32 %v511, %v732
        %v737 = vmul.f32 %v512, %v732
        %v738 = vmul.f32 %v513, %v732
        %v739 = vmul.f32 %v514, %v732
        %v740 = vmul.f32 %v515, %v732
        %v741 = vmul.f32 %v516, %v732
        %v742 = vmul.f32 %v517, %v732
        %v743 = vmul.f32 %v518, %v732
        %v744 = vmul.f32 %v519, %v732
        %v745 = vmul.f32 %v520, %v732
        %v746 = vmul.f32 %v521, %v732
        %v747 = vmul.f32 %v522, %v732
        %v748 = vmul.f32 %v523, %v732
        %v749 = vmul.f32 %v524, %v732
        %v750 = vmul.f32 %v525, %v732
        %v751 = vmul.f32 %v526, %v732
        %v752 = vmul.f32 %v527, %v732
        %v753 = vmul.f32 %v528, %v732
        %v754 = vmul.f32 %v529, %v732
        %v755 = vmul.f32 %v530, %v732
        %v756 = vmul.f32 %v531, %v732
        %v757 = vmul.f32 %v532, %v732
        %v758 = vmul.f32 %v533, %v732
        %v759 = vmul.f32 %v534, %v732
        %v760 = vmul.f32 %v535, %v732
        %v761 = vmul.f32 %v536, %v732
        %v762 = vmul.f32 %v537, %v732
        %v763 = vmul.f32 %v538, %v732
        %v764 = vmul.f32 %v539, %v732
        %v765 = vmul.f32 %v540, %v732
        %v766 = vmul.f32 %v541, %v732
        %v767 = vmul.f32 %v542, %v732
        %v768 = vmul.f32 %v543, %v732
        %v769 = vmul.f32 %v544, %v732
        %v770 = vmul.f32 %v545, %v732
        %v771 = vmul.f32 %v546, %v732
        %v772 = vmul.f32 %v547, %v732
        %v773 = vmul.f32 %v548, %v732
        %v774 = vmul.f32 %v549, %v732
        %v775 = vmul.f32 %v550, %v732
        %v776 = vmul.f32 %v551, %v732
        %v777 = vmul.f32 %v552, %v732
        %v778 = vmul.f32 %v553, %v732
        %v779 = vmul.f32 %v554, %v732
        %v780 = vmul.f32 %v555, %v732
        %vm781 = vcmask 64513
        %v782 = vsel %vm781, %v733, 0.0
        %783 = vadd.xlane.f32.xlu0 %v782
        %v784 = vpop.xlane.xlu0 %783
        %v785 = vsel %vm597, %v734, 0.0
        %786 = vadd.xlane.f32.xlu0 %v785
        %v787 = vpop.xlane.xlu0 %786
        %vm788 = vcmask 57344
        %v789 = vsel %vm788, %v735, 0.0
        %790 = vadd.xlane.f32.xlu0 %v789
        %v791 = vpop.xlane.xlu0 %790
        %v792 = vsel %vm781, %v736, 0.0
        %793 = vadd.xlane.f32.xlu0 %v792
        %v794 = vpop.xlane.xlu0 %793
        %v795 = vsel %vm597, %v737, 0.0
        %796 = vadd.xlane.f32.xlu0 %v795
        %v797 = vpop.xlane.xlu0 %796
        %v798 = vsel %vm788, %v738, 0.0
        %799 = vadd.xlane.f32.xlu0 %v798
        %v800 = vpop.xlane.xlu0 %799
        %v801 = vsel %vm781, %v739, 0.0
        %802 = vadd.xlane.f32.xlu0 %v801
        %v803 = vpop.xlane.xlu0 %802
        %v804 = vsel %vm597, %v740, 0.0
        %805 = vadd.xlane.f32.xlu0 %v804
        %v806 = vpop.xlane.xlu0 %805
        %v807 = vsel %vm788, %v741, 0.0
        %808 = vadd.xlane.f32.xlu0 %v807
        %v809 = vpop.xlane.xlu0 %808
        %v810 = vsel %vm781, %v742, 0.0
        %811 = vadd.xlane.f32.xlu0 %v810
        %v812 = vpop.xlane.xlu0 %811
        %v813 = vsel %vm597, %v743, 0.0
        %814 = vadd.xlane.f32.xlu0 %v813
        %v815 = vpop.xlane.xlu0 %814
        %v816 = vsel %vm788, %v744, 0.0
        %817 = vadd.xlane.f32.xlu0 %v816
        %v818 = vpop.xlane.xlu0 %817
        %v819 = vsel %vm781, %v745, 0.0
        %820 = vadd.xlane.f32.xlu0 %v819
        %v821 = vpop.xlane.xlu0 %820
        %v822 = vsel %vm597, %v746, 0.0
        %823 = vadd.xlane.f32.xlu0 %v822
        %v824 = vpop.xlane.xlu0 %823
        %v825 = vsel %vm788, %v747, 0.0
        %826 = vadd.xlane.f32.xlu0 %v825
        %v827 = vpop.xlane.xlu0 %826
        %v828 = vsel %vm781, %v748, 0.0
        %829 = vadd.xlane.f32.xlu0 %v828
        %v830 = vpop.xlane.xlu0 %829
        %v831 = vsel %vm597, %v749, 0.0
        %832 = vadd.xlane.f32.xlu0 %v831
        %v833 = vpop.xlane.xlu0 %832
        %v834 = vsel %vm788, %v750, 0.0
        %835 = vadd.xlane.f32.xlu0 %v834
        %v836 = vpop.xlane.xlu0 %835
        %v837 = vsel %vm781, %v751, 0.0
        %838 = vadd.xlane.f32.xlu0 %v837
        %v839 = vpop.xlane.xlu0 %838
        %v840 = vsel %vm597, %v752, 0.0
        %841 = vadd.xlane.f32.xlu0 %v840
        %v842 = vpop.xlane.xlu0 %841
        %v843 = vsel %vm788, %v753, 0.0
        %844 = vadd.xlane.f32.xlu0 %v843
        %v845 = vpop.xlane.xlu0 %844
        %v846 = vsel %vm781, %v754, 0.0
        %847 = vadd.xlane.f32.xlu0 %v846
        %v848 = vpop.xlane.xlu0 %847
        %v849 = vsel %vm597, %v755, 0.0
        %850 = vadd.xlane.f32.xlu0 %v849
        %v851 = vpop.xlane.xlu0 %850
        %v852 = vsel %vm788, %v756, 0.0
        %853 = vadd.xlane.f32.xlu0 %v852
        %v854 = vpop.xlane.xlu0 %853
        %v855 = vsel %vm781, %v757, 0.0
        %856 = vadd.xlane.f32.xlu0 %v855
        %v857 = vpop.xlane.xlu0 %856
        %v858 = vsel %vm597, %v758, 0.0
        %859 = vadd.xlane.f32.xlu0 %v858
        %v860 = vpop.xlane.xlu0 %859
        %v861 = vsel %vm788, %v759, 0.0
        %862 = vadd.xlane.f32.xlu0 %v861
        %v863 = vpop.xlane.xlu0 %862
        %v864 = vsel %vm781, %v760, 0.0
        %865 = vadd.xlane.f32.xlu0 %v864
        %v866 = vpop.xlane.xlu0 %865
        %v867 = vsel %vm597, %v761, 0.0
        %868 = vadd.xlane.f32.xlu0 %v867
        %v869 = vpop.xlane.xlu0 %868
        %v870 = vsel %vm788, %v762, 0.0
        %871 = vadd.xlane.f32.xlu0 %v870
        %v872 = vpop.xlane.xlu0 %871
        %v873 = vsel %vm781, %v763, 0.0
        %874 = vadd.xlane.f32.xlu0 %v873
        %v875 = vpop.xlane.xlu0 %874
        %v876 = vsel %vm597, %v764, 0.0
        %877 = vadd.xlane.f32.xlu0 %v876
        %v878 = vpop.xlane.xlu0 %877
        %v879 = vsel %vm788, %v765, 0.0
        %880 = vadd.xlane.f32.xlu0 %v879
        %v881 = vpop.xlane.xlu0 %880
        %v882 = vsel %vm781, %v766, 0.0
        %883 = vadd.xlane.f32.xlu0 %v882
        %v884 = vpop.xlane.xlu0 %883
        %v885 = vsel %vm597, %v767, 0.0
        %886 = vadd.xlane.f32.xlu0 %v885
        %v887 = vpop.xlane.xlu0 %886
        %v888 = vsel %vm788, %v768, 0.0
        %889 = vadd.xlane.f32.xlu0 %v888
        %v890 = vpop.xlane.xlu0 %889
        %v891 = vsel %vm781, %v769, 0.0
        %892 = vadd.xlane.f32.xlu0 %v891
        %v893 = vpop.xlane.xlu0 %892
        %v894 = vsel %vm597, %v770, 0.0
        %895 = vadd.xlane.f32.xlu0 %v894
        %v896 = vpop.xlane.xlu0 %895
        %v897 = vsel %vm788, %v771, 0.0
        %898 = vadd.xlane.f32.xlu0 %v897
        %v899 = vpop.xlane.xlu0 %898
        %v900 = vsel %vm781, %v772, 0.0
        %901 = vadd.xlane.f32.xlu0 %v900
        %v902 = vpop.xlane.xlu0 %901
        %v903 = vsel %vm597, %v773, 0.0
        %904 = vadd.xlane.f32.xlu0 %v903
        %v905 = vpop.xlane.xlu0 %904
        %v906 = vsel %vm788, %v774, 0.0
        %907 = vadd.xlane.f32.xlu0 %v906
        %v908 = vpop.xlane.xlu0 %907
        %v909 = vsel %vm781, %v775, 0.0
        %910 = vadd.xlane.f32.xlu0 %v909
        %v911 = vpop.xlane.xlu0 %910
        %v912 = vsel %vm597, %v776, 0.0
        %913 = vadd.xlane.f32.xlu0 %v912
        %v914 = vpop.xlane.xlu0 %913
        %v915 = vsel %vm788, %v777, 0.0
        %916 = vadd.xlane.f32.xlu0 %v915
        %v917 = vpop.xlane.xlu0 %916
        %v918 = vsel %vm781, %v778, 0.0
        %919 = vadd.xlane.f32.xlu0 %v918
        %v920 = vpop.xlane.xlu0 %919
        %v921 = vsel %vm597, %v779, 0.0
        %922 = vadd.xlane.f32.xlu0 %v921
        %v923 = vpop.xlane.xlu0 %922
        %v924 = vsel %vm788, %v780, 0.0
        %925 = vadd.xlane.f32.xlu0 %v924
        %v926 = vpop.xlane.xlu0 %925
        %vm975 = vcmask 1046528
        %v976 = vrot.slane %v784, 1
        %v977 = vrot.slane %v787, 1
        %v978 = vsel %vm975, %v976, %v977
        %v979 = vrot.slane %v791, 1
        %v980 = vsel %vm975, %v977, %v979
        %v981 = vrot.slane %v794, 1
        %v982 = vrot.slane %v797, 1
        %v983 = vsel %vm975, %v981, %v982
        %v984 = vrot.slane %v800, 1
        %v985 = vsel %vm975, %v982, %v984
        %v986 = vrot.slane %v803, 1
        %v987 = vrot.slane %v806, 1
        %v988 = vsel %vm975, %v986, %v987
        %v989 = vrot.slane %v809, 1
        %v990 = vsel %vm975, %v987, %v989
        %v991 = vrot.slane %v812, 1
        %v992 = vrot.slane %v815, 1
        %v993 = vsel %vm975, %v991, %v992
        %v994 = vrot.slane %v818, 1
        %v995 = vsel %vm975, %v992, %v994
        %v996 = vrot.slane %v821, 1
        %v997 = vrot.slane %v824, 1
        %v998 = vsel %vm975, %v996, %v997
        %v999 = vrot.slane %v827, 1
        %v1000 = vsel %vm975, %v997, %v999
        %v1001 = vrot.slane %v830, 1
        %v1002 = vrot.slane %v833, 1
        %v1003 = vsel %vm975, %v1001, %v1002
        %v1004 = vrot.slane %v836, 1
        %v1005 = vsel %vm975, %v1002, %v1004
        %v1006 = vrot.slane %v839, 1
        %v1007 = vrot.slane %v842, 1
        %v1008 = vsel %vm975, %v1006, %v1007
        %v1009 = vrot.slane %v845, 1
        %v1010 = vsel %vm975, %v1007, %v1009
        %v1011 = vrot.slane %v848, 1
        %v1012 = vrot.slane %v851, 1
        %v1013 = vsel %vm975, %v1011, %v1012
        %v1014 = vrot.slane %v854, 1
        %v1015 = vsel %vm975, %v1012, %v1014
        %v1016 = vrot.slane %v857, 1
        %v1017 = vrot.slane %v860, 1
        %v1018 = vsel %vm975, %v1016, %v1017
        %v1019 = vrot.slane %v863, 1
        %v1020 = vsel %vm975, %v1017, %v1019
        %v1021 = vrot.slane %v866, 1
        %v1022 = vrot.slane %v869, 1
        %v1023 = vsel %vm975, %v1021, %v1022
        %v1024 = vrot.slane %v872, 1
        %v1025 = vsel %vm975, %v1022, %v1024
        %v1026 = vrot.slane %v875, 1
        %v1027 = vrot.slane %v878, 1
        %v1028 = vsel %vm975, %v1026, %v1027
        %v1029 = vrot.slane %v881, 1
        %v1030 = vsel %vm975, %v1027, %v1029
        %v1031 = vrot.slane %v884, 1
        %v1032 = vrot.slane %v887, 1
        %v1033 = vsel %vm975, %v1031, %v1032
        %v1034 = vrot.slane %v890, 1
        %v1035 = vsel %vm975, %v1032, %v1034
        %v1036 = vrot.slane %v893, 1
        %v1037 = vrot.slane %v896, 1
        %v1038 = vsel %vm975, %v1036, %v1037
        %v1039 = vrot.slane %v899, 1
        %v1040 = vsel %vm975, %v1037, %v1039
        %v1041 = vrot.slane %v902, 1
        %v1042 = vrot.slane %v905, 1
        %v1043 = vsel %vm975, %v1041, %v1042
        %v1044 = vrot.slane %v908, 1
        %v1045 = vsel %vm975, %v1042, %v1044
        %v1046 = vrot.slane %v911, 1
        %v1047 = vrot.slane %v914, 1
        %v1048 = vsel %vm975, %v1046, %v1047
        %v1049 = vrot.slane %v917, 1
        %v1050 = vsel %vm975, %v1047, %v1049
        %v1051 = vrot.slane %v920, 1
        %v1052 = vrot.slane %v923, 1
        %v1053 = vsel %vm975, %v1051, %v1052
        %v1054 = vrot.slane %v926, 1
        %v1055 = vsel %vm975, %v1052, %v1054
        %v1088 = vadd.f32 %v694, %v978
        %v1089 = vadd.f32 %v695, %v980
        %v1090 = vadd.f32 %v696, %v983
        %v1091 = vadd.f32 %v697, %v985
        %v1092 = vadd.f32 %v698, %v988
        %v1093 = vadd.f32 %v699, %v990
        %v1094 = vadd.f32 %v700, %v993
        %v1095 = vadd.f32 %v701, %v995
        %v1096 = vadd.f32 %v702, %v998
        %v1097 = vadd.f32 %v703, %v1000
        %v1098 = vadd.f32 %v704, %v1003
        %v1099 = vadd.f32 %v705, %v1005
        %v1100 = vadd.f32 %v706, %v1008
        %v1101 = vadd.f32 %v707, %v1010
        %v1102 = vadd.f32 %v708, %v1013
        %v1103 = vadd.f32 %v709, %v1015
        %v1104 = vadd.f32 %v710, %v1018
        %v1105 = vadd.f32 %v711, %v1020
        %v1106 = vadd.f32 %v712, %v1023
        %v1107 = vadd.f32 %v713, %v1025
        %v1108 = vadd.f32 %v714, %v1028
        %v1109 = vadd.f32 %v715, %v1030
        %v1110 = vadd.f32 %v716, %v1033
        %v1111 = vadd.f32 %v717, %v1035
        %v1112 = vadd.f32 %v718, %v1038
        %v1113 = vadd.f32 %v719, %v1040
        %v1114 = vadd.f32 %v720, %v1043
        %v1115 = vadd.f32 %v721, %v1045
        %v1116 = vadd.f32 %v722, %v1048
        %v1117 = vadd.f32 %v723, %v1050
        %v1118 = vadd.f32 %v724, %v1053
        %v1119 = vadd.f32 %v725, %v1055
        %s1120 = scalar_lea.vmem [#allocation6], 2
        %v1121 = vld [vmem:[%s1120] sm:$0x1]
        %v1122 = vunpack.c.l.bf16 %v1121
        %v1123 = vlaneseq
        %v1124 = vshrl.u32 %v1123, 7
        %v1125 = vsub.s32 0, %v1124
        %v1126 = vrot.slane %v1122, %v1125
        %v1127 = vmul.f32 %v508, %v1126
        %v1128 = vmul.f32 %v509, %v1126
        %v1129 = vmul.f32 %v510, %v1126
        %v1130 = vmul.f32 %v511, %v1126
        %v1131 = vmul.f32 %v512, %v1126
        %v1132 = vmul.f32 %v513, %v1126
        %v1133 = vmul.f32 %v514, %v1126
        %v1134 = vmul.f32 %v515, %v1126
        %v1135 = vmul.f32 %v516, %v1126
        %v1136 = vmul.f32 %v517, %v1126
        %v1137 = vmul.f32 %v518, %v1126
        %v1138 = vmul.f32 %v519, %v1126
        %v1139 = vmul.f32 %v520, %v1126
        %v1140 = vmul.f32 %v521, %v1126
        %v1141 = vmul.f32 %v522, %v1126
        %v1142 = vmul.f32 %v523, %v1126
        %v1143 = vmul.f32 %v524, %v1126
        %v1144 = vmul.f32 %v525, %v1126
        %v1145 = vmul.f32 %v526, %v1126
        %v1146 = vmul.f32 %v527, %v1126
        %v1147 = vmul.f32 %v528, %v1126
        %v1148 = vmul.f32 %v529, %v1126
        %v1149 = vmul.f32 %v530, %v1126
        %v1150 = vmul.f32 %v531, %v1126
        %v1151 = vmul.f32 %v532, %v1126
        %v1152 = vmul.f32 %v533, %v1126
        %v1153 = vmul.f32 %v534, %v1126
        %v1154 = vmul.f32 %v535, %v1126
        %v1155 = vmul.f32 %v536, %v1126
        %v1156 = vmul.f32 %v537, %v1126
        %v1157 = vmul.f32 %v538, %v1126
        %v1158 = vmul.f32 %v539, %v1126
        %v1159 = vmul.f32 %v540, %v1126
        %v1160 = vmul.f32 %v541, %v1126
        %v1161 = vmul.f32 %v542, %v1126
        %v1162 = vmul.f32 %v543, %v1126
        %v1163 = vmul.f32 %v544, %v1126
        %v1164 = vmul.f32 %v545, %v1126
        %v1165 = vmul.f32 %v546, %v1126
        %v1166 = vmul.f32 %v547, %v1126
        %v1167 = vmul.f32 %v548, %v1126
        %v1168 = vmul.f32 %v549, %v1126
        %v1169 = vmul.f32 %v550, %v1126
        %v1170 = vmul.f32 %v551, %v1126
        %v1171 = vmul.f32 %v552, %v1126
        %v1172 = vmul.f32 %v553, %v1126
        %v1173 = vmul.f32 %v554, %v1126
        %v1174 = vmul.f32 %v555, %v1126
        %vm1175 = vcmask 64514
        %v1176 = vsel %vm1175, %v1127, 0.0
        %1177 = vadd.xlane.f32.xlu0 %v1176
        %v1178 = vpop.xlane.xlu0 %1177
        %v1179 = vsel %vm597, %v1128, 0.0
        %1180 = vadd.xlane.f32.xlu0 %v1179
        %v1181 = vpop.xlane.xlu0 %1180
        %vm1182 = vcmask 58368
        %v1183 = vsel %vm1182, %v1129, 0.0
        %1184 = vadd.xlane.f32.xlu0 %v1183
        %v1185 = vpop.xlane.xlu0 %1184
        %v1186 = vsel %vm1175, %v1130, 0.0
        %1187 = vadd.xlane.f32.xlu0 %v1186
        %v1188 = vpop.xlane.xlu0 %1187
        %v1189 = vsel %vm597, %v1131, 0.0
        %1190 = vadd.xlane.f32.xlu0 %v1189
        %v1191 = vpop.xlane.xlu0 %1190
        %v1192 = vsel %vm1182, %v1132, 0.0
        %1193 = vadd.xlane.f32.xlu0 %v1192
        %v1194 = vpop.xlane.xlu0 %1193
        %v1195 = vsel %vm1175, %v1133, 0.0
        %1196 = vadd.xlane.f32.xlu0 %v1195
        %v1197 = vpop.xlane.xlu0 %1196
        %v1198 = vsel %vm597, %v1134, 0.0
        %1199 = vadd.xlane.f32.xlu0 %v1198
        %v1200 = vpop.xlane.xlu0 %1199
        %v1201 = vsel %vm1182, %v1135, 0.0
        %1202 = vadd.xlane.f32.xlu0 %v1201
        %v1203 = vpop.xlane.xlu0 %1202
        %v1204 = vsel %vm1175, %v1136, 0.0
        %1205 = vadd.xlane.f32.xlu0 %v1204
        %v1206 = vpop.xlane.xlu0 %1205
        %v1207 = vsel %vm597, %v1137, 0.0
        %1208 = vadd.xlane.f32.xlu0 %v1207
        %v1209 = vpop.xlane.xlu0 %1208
        %v1210 = vsel %vm1182, %v1138, 0.0
        %1211 = vadd.xlane.f32.xlu0 %v1210
        %v1212 = vpop.xlane.xlu0 %1211
        %v1213 = vsel %vm1175, %v1139, 0.0
        %1214 = vadd.xlane.f32.xlu0 %v1213
        %v1215 = vpop.xlane.xlu0 %1214
        %v1216 = vsel %vm597, %v1140, 0.0
        %1217 = vadd.xlane.f32.xlu0 %v1216
        %v1218 = vpop.xlane.xlu0 %1217
        %v1219 = vsel %vm1182, %v1141, 0.0
        %1220 = vadd.xlane.f32.xlu0 %v1219
        %v1221 = vpop.xlane.xlu0 %1220
        %v1222 = vsel %vm1175, %v1142, 0.0
        %1223 = vadd.xlane.f32.xlu0 %v1222
        %v1224 = vpop.xlane.xlu0 %1223
        %v1225 = vsel %vm597, %v1143, 0.0
        %1226 = vadd.xlane.f32.xlu0 %v1225
        %v1227 = vpop.xlane.xlu0 %1226
        %v1228 = vsel %vm1182, %v1144, 0.0
        %1229 = vadd.xlane.f32.xlu0 %v1228
        %v1230 = vpop.xlane.xlu0 %1229
        %v1231 = vsel %vm1175, %v1145, 0.0
        %1232 = vadd.xlane.f32.xlu0 %v1231
        %v1233 = vpop.xlane.xlu0 %1232
        %v1234 = vsel %vm597, %v1146, 0.0
        %1235 = vadd.xlane.f32.xlu0 %v1234
        %v1236 = vpop.xlane.xlu0 %1235
        %v1237 = vsel %vm1182, %v1147, 0.0
        %1238 = vadd.xlane.f32.xlu0 %v1237
        %v1239 = vpop.xlane.xlu0 %1238
        %v1240 = vsel %vm1175, %v1148, 0.0
        %1241 = vadd.xlane.f32.xlu0 %v1240
        %v1242 = vpop.xlane.xlu0 %1241
        %v1243 = vsel %vm597, %v1149, 0.0
        %1244 = vadd.xlane.f32.xlu0 %v1243
        %v1245 = vpop.xlane.xlu0 %1244
        %v1246 = vsel %vm1182, %v1150, 0.0
        %1247 = vadd.xlane.f32.xlu0 %v1246
        %v1248 = vpop.xlane.xlu0 %1247
        %v1249 = vsel %vm1175, %v1151, 0.0
        %1250 = vadd.xlane.f32.xlu0 %v1249
        %v1251 = vpop.xlane.xlu0 %1250
        %v1252 = vsel %vm597, %v1152, 0.0
        %1253 = vadd.xlane.f32.xlu0 %v1252
        %v1254 = vpop.xlane.xlu0 %1253
        %v1255 = vsel %vm1182, %v1153, 0.0
        %1256 = vadd.xlane.f32.xlu0 %v1255
        %v1257 = vpop.xlane.xlu0 %1256
        %v1258 = vsel %vm1175, %v1154, 0.0
        %1259 = vadd.xlane.f32.xlu0 %v1258
        %v1260 = vpop.xlane.xlu0 %1259
        %v1261 = vsel %vm597, %v1155, 0.0
        %1262 = vadd.xlane.f32.xlu0 %v1261
        %v1263 = vpop.xlane.xlu0 %1262
        %v1264 = vsel %vm1182, %v1156, 0.0
        %1265 = vadd.xlane.f32.xlu0 %v1264
        %v1266 = vpop.xlane.xlu0 %1265
        %v1267 = vsel %vm1175, %v1157, 0.0
        %1268 = vadd.xlane.f32.xlu0 %v1267
        %v1269 = vpop.xlane.xlu0 %1268
        %v1270 = vsel %vm597, %v1158, 0.0
        %1271 = vadd.xlane.f32.xlu0 %v1270
        %v1272 = vpop.xlane.xlu0 %1271
        %v1273 = vsel %vm1182, %v1159, 0.0
        %1274 = vadd.xlane.f32.xlu0 %v1273
        %v1275 = vpop.xlane.xlu0 %1274
        %v1276 = vsel %vm1175, %v1160, 0.0
        %1277 = vadd.xlane.f32.xlu0 %v1276
        %v1278 = vpop.xlane.xlu0 %1277
        %v1279 = vsel %vm597, %v1161, 0.0
        %1280 = vadd.xlane.f32.xlu0 %v1279
        %v1281 = vpop.xlane.xlu0 %1280
        %v1282 = vsel %vm1182, %v1162, 0.0
        %1283 = vadd.xlane.f32.xlu0 %v1282
        %v1284 = vpop.xlane.xlu0 %1283
        %v1285 = vsel %vm1175, %v1163, 0.0
        %1286 = vadd.xlane.f32.xlu0 %v1285
        %v1287 = vpop.xlane.xlu0 %1286
        %v1288 = vsel %vm597, %v1164, 0.0
        %1289 = vadd.xlane.f32.xlu0 %v1288
        %v1290 = vpop.xlane.xlu0 %1289
        %v1291 = vsel %vm1182, %v1165, 0.0
        %1292 = vadd.xlane.f32.xlu0 %v1291
        %v1293 = vpop.xlane.xlu0 %1292
        %v1294 = vsel %vm1175, %v1166, 0.0
        %1295 = vadd.xlane.f32.xlu0 %v1294
        %v1296 = vpop.xlane.xlu0 %1295
        %v1297 = vsel %vm597, %v1167, 0.0
        %1298 = vadd.xlane.f32.xlu0 %v1297
        %v1299 = vpop.xlane.xlu0 %1298
        %v1300 = vsel %vm1182, %v1168, 0.0
        %1301 = vadd.xlane.f32.xlu0 %v1300
        %v1302 = vpop.xlane.xlu0 %1301
        %v1303 = vsel %vm1175, %v1169, 0.0
        %1304 = vadd.xlane.f32.xlu0 %v1303
        %v1305 = vpop.xlane.xlu0 %1304
        %v1306 = vsel %vm597, %v1170, 0.0
        %1307 = vadd.xlane.f32.xlu0 %v1306
        %v1308 = vpop.xlane.xlu0 %1307
        %v1309 = vsel %vm1182, %v1171, 0.0
        %1310 = vadd.xlane.f32.xlu0 %v1309
        %v1311 = vpop.xlane.xlu0 %1310
        %v1312 = vsel %vm1175, %v1172, 0.0
        %1313 = vadd.xlane.f32.xlu0 %v1312
        %v1314 = vpop.xlane.xlu0 %1313
        %v1315 = vsel %vm597, %v1173, 0.0
        %1316 = vadd.xlane.f32.xlu0 %v1315
        %v1317 = vpop.xlane.xlu0 %1316
        %v1318 = vsel %vm1182, %v1174, 0.0
        %1319 = vadd.xlane.f32.xlu0 %v1318
        %v1320 = vpop.xlane.xlu0 %1319
        %vm1369 = vcmask 1045504
        %v1370 = vrot.slane %v1178, 2
        %v1371 = vrot.slane %v1181, 2
        %v1372 = vsel %vm1369, %v1370, %v1371
        %v1373 = vrot.slane %v1185, 2
        %v1374 = vsel %vm1369, %v1371, %v1373
        %v1375 = vrot.slane %v1188, 2
        %v1376 = vrot.slane %v1191, 2
        %v1377 = vsel %vm1369, %v1375, %v1376
        %v1378 = vrot.slane %v1194, 2
        %v1379 = vsel %vm1369, %v1376, %v1378
        %v1380 = vrot.slane %v1197, 2
        %v1381 = vrot.slane %v1200, 2
        %v1382 = vsel %vm1369, %v1380, %v1381
        %v1383 = vrot.slane %v1203, 2
        %v1384 = vsel %vm1369, %v1381, %v1383
        %v1385 = vrot.slane %v1206, 2
        %v1386 = vrot.slane %v1209, 2
        %v1387 = vsel %vm1369, %v1385, %v1386
        %v1388 = vrot.slane %v1212, 2
        %v1389 = vsel %vm1369, %v1386, %v1388
        %v1390 = vrot.slane %v1215, 2
        %v1391 = vrot.slane %v1218, 2
        %v1392 = vsel %vm1369, %v1390, %v1391
        %v1393 = vrot.slane %v1221, 2
        %v1394 = vsel %vm1369, %v1391, %v1393
        %v1395 = vrot.slane %v1224, 2
        %v1396 = vrot.slane %v1227, 2
        %v1397 = vsel %vm1369, %v1395, %v1396
        %v1398 = vrot.slane %v1230, 2
        %v1399 = vsel %vm1369, %v1396, %v1398
        %v1400 = vrot.slane %v1233, 2
        %v1401 = vrot.slane %v1236, 2
        %v1402 = vsel %vm1369, %v1400, %v1401
        %v1403 = vrot.slane %v1239, 2
        %v1404 = vsel %vm1369, %v1401, %v1403
        %v1405 = vrot.slane %v1242, 2
        %v1406 = vrot.slane %v1245, 2
        %v1407 = vsel %vm1369, %v1405, %v1406
        %v1408 = vrot.slane %v1248, 2
        %v1409 = vsel %vm1369, %v1406, %v1408
        %v1410 = vrot.slane %v1251, 2
        %v1411 = vrot.slane %v1254, 2
        %v1412 = vsel %vm1369, %v1410, %v1411
        %v1413 = vrot.slane %v1257, 2
        %v1414 = vsel %vm1369, %v1411, %v1413
        %v1415 = vrot.slane %v1260, 2
        %v1416 = vrot.slane %v1263, 2
        %v1417 = vsel %vm1369, %v1415, %v1416
        %v1418 = vrot.slane %v1266, 2
        %v1419 = vsel %vm1369, %v1416, %v1418
        %v1420 = vrot.slane %v1269, 2
        %v1421 = vrot.slane %v1272, 2
        %v1422 = vsel %vm1369, %v1420, %v1421
        %v1423 = vrot.slane %v1275, 2
        %v1424 = vsel %vm1369, %v1421, %v1423
        %v1425 = vrot.slane %v1278, 2
        %v1426 = vrot.slane %v1281, 2
        %v1427 = vsel %vm1369, %v1425, %v1426
        %v1428 = vrot.slane %v1284, 2
        %v1429 = vsel %vm1369, %v1426, %v1428
        %v1430 = vrot.slane %v1287, 2
        %v1431 = vrot.slane %v1290, 2
        %v1432 = vsel %vm1369, %v1430, %v1431
        %v1433 = vrot.slane %v1293, 2
        %v1434 = vsel %vm1369, %v1431, %v1433
        %v1435 = vrot.slane %v1296, 2
        %v1436 = vrot.slane %v1299, 2
        %v1437 = vsel %vm1369, %v1435, %v1436
        %v1438 = vrot.slane %v1302, 2
        %v1439 = vsel %vm1369, %v1436, %v1438
        %v1440 = vrot.slane %v1305, 2
        %v1441 = vrot.slane %v1308, 2
        %v1442 = vsel %vm1369, %v1440, %v1441
        %v1443 = vrot.slane %v1311, 2
        %v1444 = vsel %vm1369, %v1441, %v1443
        %v1445 = vrot.slane %v1314, 2
        %v1446 = vrot.slane %v1317, 2
        %v1447 = vsel %vm1369, %v1445, %v1446
        %v1448 = vrot.slane %v1320, 2
        %v1449 = vsel %vm1369, %v1446, %v1448
        %v1482 = vadd.f32 %v1088, %v1372
        %v1483 = vadd.f32 %v1089, %v1374
        %v1484 = vadd.f32 %v1090, %v1377
        %v1485 = vadd.f32 %v1091, %v1379
        %v1486 = vadd.f32 %v1092, %v1382
        %v1487 = vadd.f32 %v1093, %v1384
        %v1488 = vadd.f32 %v1094, %v1387
        %v1489 = vadd.f32 %v1095, %v1389
        %v1490 = vadd.f32 %v1096, %v1392
        %v1491 = vadd.f32 %v1097, %v1394
        %v1492 = vadd.f32 %v1098, %v1397
        %v1493 = vadd.f32 %v1099, %v1399
        %v1494 = vadd.f32 %v1100, %v1402
        %v1495 = vadd.f32 %v1101, %v1404
        %v1496 = vadd.f32 %v1102, %v1407
        %v1497 = vadd.f32 %v1103, %v1409
        %v1498 = vadd.f32 %v1104, %v1412
        %v1499 = vadd.f32 %v1105, %v1414
        %v1500 = vadd.f32 %v1106, %v1417
        %v1501 = vadd.f32 %v1107, %v1419
        %v1502 = vadd.f32 %v1108, %v1422
        %v1503 = vadd.f32 %v1109, %v1424
        %v1504 = vadd.f32 %v1110, %v1427
        %v1505 = vadd.f32 %v1111, %v1429
        %v1506 = vadd.f32 %v1112, %v1432
        %v1507 = vadd.f32 %v1113, %v1434
        %v1508 = vadd.f32 %v1114, %v1437
        %v1509 = vadd.f32 %v1115, %v1439
        %v1510 = vadd.f32 %v1116, %v1442
        %v1511 = vadd.f32 %v1117, %v1444
        %v1512 = vadd.f32 %v1118, %v1447
        %v1513 = vadd.f32 %v1119, %v1449
        %s1514 = scalar_lea.vmem [#allocation6], 3
        %v1515 = vld [vmem:[%s1514] sm:$0x1]
        %v1516 = vunpack.c.l.bf16 %v1515
        %v1517 = vlaneseq
        %v1518 = vshrl.u32 %v1517, 7
        %v1519 = vsub.s32 0, %v1518
        %v1520 = vrot.slane %v1516, %v1519
        %v1521 = vmul.f32 %v511, %v1520
        %v1522 = vmul.f32 %v512, %v1520
        %v1523 = vmul.f32 %v514, %v1520
        %v1524 = vmul.f32 %v515, %v1520
        %v1525 = vmul.f32 %v517, %v1520
        %v1526 = vmul.f32 %v518, %v1520
        %v1527 = vmul.f32 %v520, %v1520
        %v1528 = vmul.f32 %v521, %v1520
        %v1529 = vmul.f32 %v523, %v1520
        %v1530 = vmul.f32 %v524, %v1520
        %v1531 = vmul.f32 %v526, %v1520
        %v1532 = vmul.f32 %v527, %v1520
        %v1533 = vmul.f32 %v529, %v1520
        %v1534 = vmul.f32 %v530, %v1520
        %v1535 = vmul.f32 %v532, %v1520
        %v1536 = vmul.f32 %v533, %v1520
        %v1537 = vmul.f32 %v535, %v1520
        %v1538 = vmul.f32 %v536, %v1520
        %v1539 = vmul.f32 %v538, %v1520
        %v1540 = vmul.f32 %v539, %v1520
        %v1541 = vmul.f32 %v541, %v1520
        %v1542 = vmul.f32 %v542, %v1520
        %v1543 = vmul.f32 %v544, %v1520
        %v1544 = vmul.f32 %v545, %v1520
        %v1545 = vmul.f32 %v547, %v1520
        %v1546 = vmul.f32 %v548, %v1520
        %v1547 = vmul.f32 %v550, %v1520
        %v1548 = vmul.f32 %v551, %v1520
        %v1549 = vmul.f32 %v553, %v1520
        %v1550 = vmul.f32 %v554, %v1520
        %v1551 = vmul.f32 %v556, %v1520
        %v1552 = vmul.f32 %v557, %v1520
        %v1553 = vsel %vm597, %v1521, 0.0
        %1554 = vadd.xlane.f32.xlu0 %v1553
        %v1555 = vpop.xlane.xlu0 %1554
        %v1556 = vsel %vm597, %v1522, 0.0
        %1557 = vadd.xlane.f32.xlu0 %v1556
        %v1558 = vpop.xlane.xlu0 %1557
        %v1559 = vsel %vm597, %v1523, 0.0
        %1560 = vadd.xlane.f32.xlu0 %v1559
        %v1561 = vpop.xlane.xlu0 %1560
        %v1562 = vsel %vm597, %v1524, 0.0
        %1563 = vadd.xlane.f32.xlu0 %v1562
        %v1564 = vpop.xlane.xlu0 %1563
        %v1565 = vsel %vm597, %v1525, 0.0
        %1566 = vadd.xlane.f32.xlu0 %v1565
        %v1567 = vpop.xlane.xlu0 %1566
        %v1568 = vsel %vm597, %v1526, 0.0
        %1569 = vadd.xlane.f32.xlu0 %v1568
        %v1570 = vpop.xlane.xlu0 %1569
        %v1571 = vsel %vm597, %v1527, 0.0
        %1572 = vadd.xlane.f32.xlu0 %v1571
        %v1573 = vpop.xlane.xlu0 %1572
        %v1574 = vsel %vm597, %v1528, 0.0
        %1575 = vadd.xlane.f32.xlu0 %v1574
        %v1576 = vpop.xlane.xlu0 %1575
        %v1577 = vsel %vm597, %v1529, 0.0
        %1578 = vadd.xlane.f32.xlu0 %v1577
        %v1579 = vpop.xlane.xlu0 %1578
        %v1580 = vsel %vm597, %v1530, 0.0
        %1581 = vadd.xlane.f32.xlu0 %v1580
        %v1582 = vpop.xlane.xlu0 %1581
        %v1583 = vsel %vm597, %v1531, 0.0
        %1584 = vadd.xlane.f32.xlu0 %v1583
        %v1585 = vpop.xlane.xlu0 %1584
        %v1586 = vsel %vm597, %v1532, 0.0
        %1587 = vadd.xlane.f32.xlu0 %v1586
        %v1588 = vpop.xlane.xlu0 %1587
        %v1589 = vsel %vm597, %v1533, 0.0
        %1590 = vadd.xlane.f32.xlu0 %v1589
        %v1591 = vpop.xlane.xlu0 %1590
        %v1592 = vsel %vm597, %v1534, 0.0
        %1593 = vadd.xlane.f32.xlu0 %v1592
        %v1594 = vpop.xlane.xlu0 %1593
        %v1595 = vsel %vm597, %v1535, 0.0
        %1596 = vadd.xlane.f32.xlu0 %v1595
        %v1597 = vpop.xlane.xlu0 %1596
        %v1598 = vsel %vm597, %v1536, 0.0
        %1599 = vadd.xlane.f32.xlu0 %v1598
        %v1600 = vpop.xlane.xlu0 %1599
        %v1601 = vsel %vm597, %v1537, 0.0
        %1602 = vadd.xlane.f32.xlu0 %v1601
        %v1603 = vpop.xlane.xlu0 %1602
        %v1604 = vsel %vm597, %v1538, 0.0
        %1605 = vadd.xlane.f32.xlu0 %v1604
        %v1606 = vpop.xlane.xlu0 %1605
        %v1607 = vsel %vm597, %v1539, 0.0
        %1608 = vadd.xlane.f32.xlu0 %v1607
        %v1609 = vpop.xlane.xlu0 %1608
        %v1610 = vsel %vm597, %v1540, 0.0
        %1611 = vadd.xlane.f32.xlu0 %v1610
        %v1612 = vpop.xlane.xlu0 %1611
        %v1613 = vsel %vm597, %v1541, 0.0
        %1614 = vadd.xlane.f32.xlu0 %v1613
        %v1615 = vpop.xlane.xlu0 %1614
        %v1616 = vsel %vm597, %v1542, 0.0
        %1617 = vadd.xlane.f32.xlu0 %v1616
        %v1618 = vpop.xlane.xlu0 %1617
        %v1619 = vsel %vm597, %v1543, 0.0
        %1620 = vadd.xlane.f32.xlu0 %v1619
        %v1621 = vpop.xlane.xlu0 %1620
        %v1622 = vsel %vm597, %v1544, 0.0
        %1623 = vadd.xlane.f32.xlu0 %v1622
        %v1624 = vpop.xlane.xlu0 %1623
        %v1625 = vsel %vm597, %v1545, 0.0
        %1626 = vadd.xlane.f32.xlu0 %v1625
        %v1627 = vpop.xlane.xlu0 %1626
        %v1628 = vsel %vm597, %v1546, 0.0
        %1629 = vadd.xlane.f32.xlu0 %v1628
        %v1630 = vpop.xlane.xlu0 %1629
        %v1631 = vsel %vm597, %v1547, 0.0
        %1632 = vadd.xlane.f32.xlu0 %v1631
        %v1633 = vpop.xlane.xlu0 %1632
        %v1634 = vsel %vm597, %v1548, 0.0
        %1635 = vadd.xlane.f32.xlu0 %v1634
        %v1636 = vpop.xlane.xlu0 %1635
        %v1637 = vsel %vm597, %v1549, 0.0
        %1638 = vadd.xlane.f32.xlu0 %v1637
        %v1639 = vpop.xlane.xlu0 %1638
        %v1640 = vsel %vm597, %v1550, 0.0
        %1641 = vadd.xlane.f32.xlu0 %v1640
        %v1642 = vpop.xlane.xlu0 %1641
        %v1643 = vsel %vm597, %v1551, 0.0
        %1644 = vadd.xlane.f32.xlu0 %v1643
        %v1645 = vpop.xlane.xlu0 %1644
        %v1646 = vsel %vm597, %v1552, 0.0
        %1647 = vadd.xlane.f32.xlu0 %v1646
        %v1648 = vpop.xlane.xlu0 %1647
        %v1649 = vadd.f32 %v1482, %v1555
        %v1650 = vadd.f32 %v1483, %v1558
        %v1651 = vadd.f32 %v1484, %v1561
        %v1652 = vadd.f32 %v1485, %v1564
        %v1653 = vadd.f32 %v1486, %v1567
        %v1654 = vadd.f32 %v1487, %v1570
        %v1655 = vadd.f32 %v1488, %v1573
        %v1656 = vadd.f32 %v1489, %v1576
        %v1657 = vadd.f32 %v1490, %v1579
        %v1658 = vadd.f32 %v1491, %v1582
        %v1659 = vadd.f32 %v1492, %v1585
        %v1660 = vadd.f32 %v1493, %v1588
        %v1661 = vadd.f32 %v1494, %v1591
        %v1662 = vadd.f32 %v1495, %v1594
        %v1663 = vadd.f32 %v1496, %v1597
        %v1664 = vadd.f32 %v1497, %v1600
        %v1665 = vadd.f32 %v1498, %v1603
        %v1666 = vadd.f32 %v1499, %v1606
        %v1667 = vadd.f32 %v1500, %v1609
        %v1668 = vadd.f32 %v1501, %v1612
        %v1669 = vadd.f32 %v1502, %v1615
        %v1670 = vadd.f32 %v1503, %v1618
        %v1671 = vadd.f32 %v1504, %v1621
        %v1672 = vadd.f32 %v1505, %v1624
        %v1673 = vadd.f32 %v1506, %v1627
        %v1674 = vadd.f32 %v1507, %v1630
        %v1675 = vadd.f32 %v1508, %v1633
        %v1676 = vadd.f32 %v1509, %v1636
        %v1677 = vadd.f32 %v1510, %v1639
        %v1678 = vadd.f32 %v1511, %v1642
        %v1679 = vadd.f32 %v1512, %v1645
        %v1680 = vadd.f32 %v1513, %v1648
        %s1681 = scalar_lea.vmem [#allocation6], 4
        %v1682 = vld [vmem:[%s1681] sm:$0x1]
        %v1683 = vunpack.c.l.bf16 %v1682
        %v1684 = vlaneseq
        %v1685 = vshrl.u32 %v1684, 7
        %v1686 = vsub.s32 0, %v1685
        %v1687 = vrot.slane %v1683, %v1686
        %v1688 = vmul.f32 %v511, %v1687
        %v1689 = vmul.f32 %v512, %v1687
        %v1690 = vmul.f32 %v513, %v1687
        %v1691 = vmul.f32 %v514, %v1687
        %v1692 = vmul.f32 %v515, %v1687
        %v1693 = vmul.f32 %v516, %v1687
        %v1694 = vmul.f32 %v517, %v1687
        %v1695 = vmul.f32 %v518, %v1687
        %v1696 = vmul.f32 %v519, %v1687
        %v1697 = vmul.f32 %v520, %v1687
        %v1698 = vmul.f32 %v521, %v1687
        %v1699 = vmul.f32 %v522, %v1687
        %v1700 = vmul.f32 %v523, %v1687
        %v1701 = vmul.f32 %v524, %v1687
        %v1702 = vmul.f32 %v525, %v1687
        %v1703 = vmul.f32 %v526, %v1687
        %v1704 = vmul.f32 %v527, %v1687
        %v1705 = vmul.f32 %v528, %v1687
        %v1706 = vmul.f32 %v529, %v1687
        %v1707 = vmul.f32 %v530, %v1687
        %v1708 = vmul.f32 %v531, %v1687
        %v1709 = vmul.f32 %v532, %v1687
        %v1710 = vmul.f32 %v533, %v1687
        %v1711 = vmul.f32 %v534, %v1687
        %v1712 = vmul.f32 %v535, %v1687
        %v1713 = vmul.f32 %v536, %v1687
        %v1714 = vmul.f32 %v537, %v1687
        %v1715 = vmul.f32 %v538, %v1687
        %v1716 = vmul.f32 %v539, %v1687
        %v1717 = vmul.f32 %v540, %v1687
        %v1718 = vmul.f32 %v541, %v1687
        %v1719 = vmul.f32 %v542, %v1687
        %v1720 = vmul.f32 %v543, %v1687
        %v1721 = vmul.f32 %v544, %v1687
        %v1722 = vmul.f32 %v545, %v1687
        %v1723 = vmul.f32 %v546, %v1687
        %v1724 = vmul.f32 %v547, %v1687
        %v1725 = vmul.f32 %v548, %v1687
        %v1726 = vmul.f32 %v549, %v1687
        %v1727 = vmul.f32 %v550, %v1687
        %v1728 = vmul.f32 %v551, %v1687
        %v1729 = vmul.f32 %v552, %v1687
        %v1730 = vmul.f32 %v553, %v1687
        %v1731 = vmul.f32 %v554, %v1687
        %v1732 = vmul.f32 %v555, %v1687
        %v1733 = vmul.f32 %v556, %v1687
        %v1734 = vmul.f32 %v557, %v1687
        %v1735 = vmul.f32 %v558, %v1687
        %v1736 = vsel %vm781, %v1688, 0.0
        %1737 = vadd.xlane.f32.xlu0 %v1736
        %v1738 = vpop.xlane.xlu0 %1737
        %v1739 = vsel %vm597, %v1689, 0.0
        %1740 = vadd.xlane.f32.xlu0 %v1739
        %v1741 = vpop.xlane.xlu0 %1740
        %v1742 = vsel %vm788, %v1690, 0.0
        %1743 = vadd.xlane.f32.xlu0 %v1742
        %v1744 = vpop.xlane.xlu0 %1743
        %v1745 = vsel %vm781, %v1691, 0.0
        %1746 = vadd.xlane.f32.xlu0 %v1745
        %v1747 = vpop.xlane.xlu0 %1746
        %v1748 = vsel %vm597, %v1692, 0.0
        %1749 = vadd.xlane.f32.xlu0 %v1748
        %v1750 = vpop.xlane.xlu0 %1749
        %v1751 = vsel %vm788, %v1693, 0.0
        %1752 = vadd.xlane.f32.xlu0 %v1751
        %v1753 = vpop.xlane.xlu0 %1752
        %v1754 = vsel %vm781, %v1694, 0.0
        %1755 = vadd.xlane.f32.xlu0 %v1754
        %v1756 = vpop.xlane.xlu0 %1755
        %v1757 = vsel %vm597, %v1695, 0.0
        %1758 = vadd.xlane.f32.xlu0 %v1757
        %v1759 = vpop.xlane.xlu0 %1758
        %v1760 = vsel %vm788, %v1696, 0.0
        %1761 = vadd.xlane.f32.xlu0 %v1760
        %v1762 = vpop.xlane.xlu0 %1761
        %v1763 = vsel %vm781, %v1697, 0.0
        %1764 = vadd.xlane.f32.xlu0 %v1763
        %v1765 = vpop.xlane.xlu0 %1764
        %v1766 = vsel %vm597, %v1698, 0.0
        %1767 = vadd.xlane.f32.xlu0 %v1766
        %v1768 = vpop.xlane.xlu0 %1767
        %v1769 = vsel %vm788, %v1699, 0.0
        %1770 = vadd.xlane.f32.xlu0 %v1769
        %v1771 = vpop.xlane.xlu0 %1770
        %v1772 = vsel %vm781, %v1700, 0.0
        %1773 = vadd.xlane.f32.xlu0 %v1772
        %v1774 = vpop.xlane.xlu0 %1773
        %v1775 = vsel %vm597, %v1701, 0.0
        %1776 = vadd.xlane.f32.xlu0 %v1775
        %v1777 = vpop.xlane.xlu0 %1776
        %v1778 = vsel %vm788, %v1702, 0.0
        %1779 = vadd.xlane.f32.xlu0 %v1778
        %v1780 = vpop.xlane.xlu0 %1779
        %v1781 = vsel %vm781, %v1703, 0.0
        %1782 = vadd.xlane.f32.xlu0 %v1781
        %v1783 = vpop.xlane.xlu0 %1782
        %v1784 = vsel %vm597, %v1704, 0.0
        %1785 = vadd.xlane.f32.xlu0 %v1784
        %v1786 = vpop.xlane.xlu0 %1785
        %v1787 = vsel %vm788, %v1705, 0.0
        %1788 = vadd.xlane.f32.xlu0 %v1787
        %v1789 = vpop.xlane.xlu0 %1788
        %v1790 = vsel %vm781, %v1706, 0.0
        %1791 = vadd.xlane.f32.xlu0 %v1790
        %v1792 = vpop.xlane.xlu0 %1791
        %v1793 = vsel %vm597, %v1707, 0.0
        %1794 = vadd.xlane.f32.xlu0 %v1793
        %v1795 = vpop.xlane.xlu0 %1794
        %v1796 = vsel %vm788, %v1708, 0.0
        %1797 = vadd.xlane.f32.xlu0 %v1796
        %v1798 = vpop.xlane.xlu0 %1797
        %v1799 = vsel %vm781, %v1709, 0.0
        %1800 = vadd.xlane.f32.xlu0 %v1799
        %v1801 = vpop.xlane.xlu0 %1800
        %v1802 = vsel %vm597, %v1710, 0.0
        %1803 = vadd.xlane.f32.xlu0 %v1802
        %v1804 = vpop.xlane.xlu0 %1803
        %v1805 = vsel %vm788, %v1711, 0.0
        %1806 = vadd.xlane.f32.xlu0 %v1805
        %v1807 = vpop.xlane.xlu0 %1806
        %v1808 = vsel %vm781, %v1712, 0.0
        %1809 = vadd.xlane.f32.xlu0 %v1808
        %v1810 = vpop.xlane.xlu0 %1809
        %v1811 = vsel %vm597, %v1713, 0.0
        %1812 = vadd.xlane.f32.xlu0 %v1811
        %v1813 = vpop.xlane.xlu0 %1812
        %v1814 = vsel %vm788, %v1714, 0.0
        %1815 = vadd.xlane.f32.xlu0 %v1814
        %v1816 = vpop.xlane.xlu0 %1815
        %v1817 = vsel %vm781, %v1715, 0.0
        %1818 = vadd.xlane.f32.xlu0 %v1817
        %v1819 = vpop.xlane.xlu0 %1818
        %v1820 = vsel %vm597, %v1716, 0.0
        %1821 = vadd.xlane.f32.xlu0 %v1820
        %v1822 = vpop.xlane.xlu0 %1821
        %v1823 = vsel %vm788, %v1717, 0.0
        %1824 = vadd.xlane.f32.xlu0 %v1823
        %v1825 = vpop.xlane.xlu0 %1824
        %v1826 = vsel %vm781, %v1718, 0.0
        %1827 = vadd.xlane.f32.xlu0 %v1826
        %v1828 = vpop.xlane.xlu0 %1827
        %v1829 = vsel %vm597, %v1719, 0.0
        %1830 = vadd.xlane.f32.xlu0 %v1829
        %v1831 = vpop.xlane.xlu0 %1830
        %v1832 = vsel %vm788, %v1720, 0.0
        %1833 = vadd.xlane.f32.xlu0 %v1832
        %v1834 = vpop.xlane.xlu0 %1833
        %v1835 = vsel %vm781, %v1721, 0.0
        %1836 = vadd.xlane.f32.xlu0 %v1835
        %v1837 = vpop.xlane.xlu0 %1836
        %v1838 = vsel %vm597, %v1722, 0.0
        %1839 = vadd.xlane.f32.xlu0 %v1838
        %v1840 = vpop.xlane.xlu0 %1839
        %v1841 = vsel %vm788, %v1723, 0.0
        %1842 = vadd.xlane.f32.xlu0 %v1841
        %v1843 = vpop.xlane.xlu0 %1842
        %v1844 = vsel %vm781, %v1724, 0.0
        %1845 = vadd.xlane.f32.xlu0 %v1844
        %v1846 = vpop.xlane.xlu0 %1845
        %v1847 = vsel %vm597, %v1725, 0.0
        %1848 = vadd.xlane.f32.xlu0 %v1847
        %v1849 = vpop.xlane.xlu0 %1848
        %v1850 = vsel %vm788, %v1726, 0.0
        %1851 = vadd.xlane.f32.xlu0 %v1850
        %v1852 = vpop.xlane.xlu0 %1851
        %v1853 = vsel %vm781, %v1727, 0.0
        %1854 = vadd.xlane.f32.xlu0 %v1853
        %v1855 = vpop.xlane.xlu0 %1854
        %v1856 = vsel %vm597, %v1728, 0.0
        %1857 = vadd.xlane.f32.xlu0 %v1856
        %v1858 = vpop.xlane.xlu0 %1857
        %v1859 = vsel %vm788, %v1729, 0.0
        %1860 = vadd.xlane.f32.xlu0 %v1859
        %v1861 = vpop.xlane.xlu0 %1860
        %v1862 = vsel %vm781, %v1730, 0.0
        %1863 = vadd.xlane.f32.xlu0 %v1862
        %v1864 = vpop.xlane.xlu0 %1863
        %v1865 = vsel %vm597, %v1731, 0.0
        %1866 = vadd.xlane.f32.xlu0 %v1865
        %v1867 = vpop.xlane.xlu0 %1866
        %v1868 = vsel %vm788, %v1732, 0.0
        %1869 = vadd.xlane.f32.xlu0 %v1868
        %v1870 = vpop.xlane.xlu0 %1869
        %v1871 = vsel %vm781, %v1733, 0.0
        %1872 = vadd.xlane.f32.xlu0 %v1871
        %v1873 = vpop.xlane.xlu0 %1872
        %v1874 = vsel %vm597, %v1734, 0.0
        %1875 = vadd.xlane.f32.xlu0 %v1874
        %v1876 = vpop.xlane.xlu0 %1875
        %v1877 = vsel %vm788, %v1735, 0.0
        %1878 = vadd.xlane.f32.xlu0 %v1877
        %v1879 = vpop.xlane.xlu0 %1878
        %v1928 = vrot.slane %v1738, 1
        %v1929 = vrot.slane %v1741, 1
        %v1930 = vsel %vm975, %v1928, %v1929
        %v1931 = vrot.slane %v1744, 1
        %v1932 = vsel %vm975, %v1929, %v1931
        %v1933 = vrot.slane %v1747, 1
        %v1934 = vrot.slane %v1750, 1
        %v1935 = vsel %vm975, %v1933, %v1934
        %v1936 = vrot.slane %v1753, 1
        %v1937 = vsel %vm975, %v1934, %v1936
        %v1938 = vrot.slane %v1756, 1
        %v1939 = vrot.slane %v1759, 1
        %v1940 = vsel %vm975, %v1938, %v1939
        %v1941 = vrot.slane %v1762, 1
        %v1942 = vsel %vm975, %v1939, %v1941
        %v1943 = vrot.slane %v1765, 1
        %v1944 = vrot.slane %v1768, 1
        %v1945 = vsel %vm975, %v1943, %v1944
        %v1946 = vrot.slane %v1771, 1
        %v1947 = vsel %vm975, %v1944, %v1946
        %v1948 = vrot.slane %v1774, 1
        %v1949 = vrot.slane %v1777, 1
        %v1950 = vsel %vm975, %v1948, %v1949
        %v1951 = vrot.slane %v1780, 1
        %v1952 = vsel %vm975, %v1949, %v1951
        %v1953 = vrot.slane %v1783, 1
        %v1954 = vrot.slane %v1786, 1
        %v1955 = vsel %vm975, %v1953, %v1954
        %v1956 = vrot.slane %v1789, 1
        %v1957 = vsel %vm975, %v1954, %v1956
        %v1958 = vrot.slane %v1792, 1
        %v1959 = vrot.slane %v1795, 1
        %v1960 = vsel %vm975, %v1958, %v1959
        %v1961 = vrot.slane %v1798, 1
        %v1962 = vsel %vm975, %v1959, %v1961
        %v1963 = vrot.slane %v1801, 1
        %v1964 = vrot.slane %v1804, 1
        %v1965 = vsel %vm975, %v1963, %v1964
        %v1966 = vrot.slane %v1807, 1
        %v1967 = vsel %vm975, %v1964, %v1966
        %v1968 = vrot.slane %v1810, 1
        %v1969 = vrot.slane %v1813, 1
        %v1970 = vsel %vm975, %v1968, %v1969
        %v1971 = vrot.slane %v1816, 1
        %v1972 = vsel %vm975, %v1969, %v1971
        %v1973 = vrot.slane %v1819, 1
        %v1974 = vrot.slane %v1822, 1
        %v1975 = vsel %vm975, %v1973, %v1974
        %v1976 = vrot.slane %v1825, 1
        %v1977 = vsel %vm975, %v1974, %v1976
        %v1978 = vrot.slane %v1828, 1
        %v1979 = vrot.slane %v1831, 1
        %v1980 = vsel %vm975, %v1978, %v1979
        %v1981 = vrot.slane %v1834, 1
        %v1982 = vsel %vm975, %v1979, %v1981
        %v1983 = vrot.slane %v1837, 1
        %v1984 = vrot.slane %v1840, 1
        %v1985 = vsel %vm975, %v1983, %v1984
        %v1986 = vrot.slane %v1843, 1
        %v1987 = vsel %vm975, %v1984, %v1986
        %v1988 = vrot.slane %v1846, 1
        %v1989 = vrot.slane %v1849, 1
        %v1990 = vsel %vm975, %v1988, %v1989
        %v1991 = vrot.slane %v1852, 1
        %v1992 = vsel %vm975, %v1989, %v1991
        %v1993 = vrot.slane %v1855, 1
        %v1994 = vrot.slane %v1858, 1
        %v1995 = vsel %vm975, %v1993, %v1994
        %v1996 = vrot.slane %v1861, 1
        %v1997 = vsel %vm975, %v1994, %v1996
        %v1998 = vrot.slane %v1864, 1
        %v1999 = vrot.slane %v1867, 1
        %v2000 = vsel %vm975, %v1998, %v1999
        %v2001 = vrot.slane %v1870, 1
        %v2002 = vsel %vm975, %v1999, %v2001
        %v2003 = vrot.slane %v1873, 1
        %v2004 = vrot.slane %v1876, 1
        %v2005 = vsel %vm975, %v2003, %v2004
        %v2006 = vrot.slane %v1879, 1
        %v2007 = vsel %vm975, %v2004, %v2006
        %v2040 = vadd.f32 %v1649, %v1930
        %v2041 = vadd.f32 %v1650, %v1932
        %v2042 = vadd.f32 %v1651, %v1935
        %v2043 = vadd.f32 %v1652, %v1937
        %v2044 = vadd.f32 %v1653, %v1940
        %v2045 = vadd.f32 %v1654, %v1942
        %v2046 = vadd.f32 %v1655, %v1945
        %v2047 = vadd.f32 %v1656, %v1947
        %v2048 = vadd.f32 %v1657, %v1950
        %v2049 = vadd.f32 %v1658, %v1952
        %v2050 = vadd.f32 %v1659, %v1955
        %v2051 = vadd.f32 %v1660, %v1957
        %v2052 = vadd.f32 %v1661, %v1960
        %v2053 = vadd.f32 %v1662, %v1962
        %v2054 = vadd.f32 %v1663, %v1965
        %v2055 = vadd.f32 %v1664, %v1967
        %v2056 = vadd.f32 %v1665, %v1970
        %v2057 = vadd.f32 %v1666, %v1972
        %v2058 = vadd.f32 %v1667, %v1975
        %v2059 = vadd.f32 %v1668, %v1977
        %v2060 = vadd.f32 %v1669, %v1980
        %v2061 = vadd.f32 %v1670, %v1982
        %v2062 = vadd.f32 %v1671, %v1985
        %v2063 = vadd.f32 %v1672, %v1987
        %v2064 = vadd.f32 %v1673, %v1990
        %v2065 = vadd.f32 %v1674, %v1992
        %v2066 = vadd.f32 %v1675, %v1995
        %v2067 = vadd.f32 %v1676, %v1997
        %v2068 = vadd.f32 %v1677, %v2000
        %v2069 = vadd.f32 %v1678, %v2002
        %v2070 = vadd.f32 %v1679, %v2005
        %v2071 = vadd.f32 %v1680, %v2007
        %s2072 = scalar_lea.vmem [#allocation6], 5
        %v2073 = vld [vmem:[%s2072] sm:$0x1]
        %v2074 = vunpack.c.l.bf16 %v2073
        %v2075 = vlaneseq
        %v2076 = vshrl.u32 %v2075, 7
        %v2077 = vsub.s32 0, %v2076
        %v2078 = vrot.slane %v2074, %v2077
        %v2079 = vmul.f32 %v511, %v2078
        %v2080 = vmul.f32 %v512, %v2078
        %v2081 = vmul.f32 %v513, %v2078
        %v2082 = vmul.f32 %v514, %v2078
        %v2083 = vmul.f32 %v515, %v2078
        %v2084 = vmul.f32 %v516, %v2078
        %v2085 = vmul.f32 %v517, %v2078
        %v2086 = vmul.f32 %v518, %v2078
        %v2087 = vmul.f32 %v519, %v2078
        %v2088 = vmul.f32 %v520, %v2078
        %v2089 = vmul.f32 %v521, %v2078
        %v2090 = vmul.f32 %v522, %v2078
        %v2091 = vmul.f32 %v523, %v2078
        %v2092 = vmul.f32 %v524, %v2078
        %v2093 = vmul.f32 %v525, %v2078
        %v2094 = vmul.f32 %v526, %v2078
        %v2095 = vmul.f32 %v527, %v2078
        %v2096 = vmul.f32 %v528, %v2078
        %v2097 = vmul.f32 %v529, %v2078
        %v2098 = vmul.f32 %v530, %v2078
        %v2099 = vmul.f32 %v531, %v2078
        %v2100 = vmul.f32 %v532, %v2078
        %v2101 = vmul.f32 %v533, %v2078
        %v2102 = vmul.f32 %v534, %v2078
        %v2103 = vmul.f32 %v535, %v2078
        %v2104 = vmul.f32 %v536, %v2078
        %v2105 = vmul.f32 %v537, %v2078
        %v2106 = vmul.f32 %v538, %v2078
        %v2107 = vmul.f32 %v539, %v2078
        %v2108 = vmul.f32 %v540, %v2078
        %v2109 = vmul.f32 %v541, %v2078
        %v2110 = vmul.f32 %v542, %v2078
        %v2111 = vmul.f32 %v543, %v2078
        %v2112 = vmul.f32 %v544, %v2078
        %v2113 = vmul.f32 %v545, %v2078
        %v2114 = vmul.f32 %v546, %v2078
        %v2115 = vmul.f32 %v547, %v2078
        %v2116 = vmul.f32 %v548, %v2078
        %v2117 = vmul.f32 %v549, %v2078
        %v2118 = vmul.f32 %v550, %v2078
        %v2119 = vmul.f32 %v551, %v2078
        %v2120 = vmul.f32 %v552, %v2078
        %v2121 = vmul.f32 %v553, %v2078
        %v2122 = vmul.f32 %v554, %v2078
        %v2123 = vmul.f32 %v555, %v2078
        %v2124 = vmul.f32 %v556, %v2078
        %v2125 = vmul.f32 %v557, %v2078
        %v2126 = vmul.f32 %v558, %v2078
        %v2127 = vsel %vm1175, %v2079, 0.0
        %2128 = vadd.xlane.f32.xlu0 %v2127
        %v2129 = vpop.xlane.xlu0 %2128
        %v2130 = vsel %vm597, %v2080, 0.0
        %2131 = vadd.xlane.f32.xlu0 %v2130
        %v2132 = vpop.xlane.xlu0 %2131
        %v2133 = vsel %vm1182, %v2081, 0.0
        %2134 = vadd.xlane.f32.xlu0 %v2133
        %v2135 = vpop.xlane.xlu0 %2134
        %v2136 = vsel %vm1175, %v2082, 0.0
        %2137 = vadd.xlane.f32.xlu0 %v2136
        %v2138 = vpop.xlane.xlu0 %2137
        %v2139 = vsel %vm597, %v2083, 0.0
        %2140 = vadd.xlane.f32.xlu0 %v2139
        %v2141 = vpop.xlane.xlu0 %2140
        %v2142 = vsel %vm1182, %v2084, 0.0
        %2143 = vadd.xlane.f32.xlu0 %v2142
        %v2144 = vpop.xlane.xlu0 %2143
        %v2145 = vsel %vm1175, %v2085, 0.0
        %2146 = vadd.xlane.f32.xlu0 %v2145
        %v2147 = vpop.xlane.xlu0 %2146
        %v2148 = vsel %vm597, %v2086, 0.0
        %2149 = vadd.xlane.f32.xlu0 %v2148
        %v2150 = vpop.xlane.xlu0 %2149
        %v2151 = vsel %vm1182, %v2087, 0.0
        %2152 = vadd.xlane.f32.xlu0 %v2151
        %v2153 = vpop.xlane.xlu0 %2152
        %v2154 = vsel %vm1175, %v2088, 0.0
        %2155 = vadd.xlane.f32.xlu0 %v2154
        %v2156 = vpop.xlane.xlu0 %2155
        %v2157 = vsel %vm597, %v2089, 0.0
        %2158 = vadd.xlane.f32.xlu0 %v2157
        %v2159 = vpop.xlane.xlu0 %2158
        %v2160 = vsel %vm1182, %v2090, 0.0
        %2161 = vadd.xlane.f32.xlu0 %v2160
        %v2162 = vpop.xlane.xlu0 %2161
        %v2163 = vsel %vm1175, %v2091, 0.0
        %2164 = vadd.xlane.f32.xlu0 %v2163
        %v2165 = vpop.xlane.xlu0 %2164
        %v2166 = vsel %vm597, %v2092, 0.0
        %2167 = vadd.xlane.f32.xlu0 %v2166
        %v2168 = vpop.xlane.xlu0 %2167
        %v2169 = vsel %vm1182, %v2093, 0.0
        %2170 = vadd.xlane.f32.xlu0 %v2169
        %v2171 = vpop.xlane.xlu0 %2170
        %v2172 = vsel %vm1175, %v2094, 0.0
        %2173 = vadd.xlane.f32.xlu0 %v2172
        %v2174 = vpop.xlane.xlu0 %2173
        %v2175 = vsel %vm597, %v2095, 0.0
        %2176 = vadd.xlane.f32.xlu0 %v2175
        %v2177 = vpop.xlane.xlu0 %2176
        %v2178 = vsel %vm1182, %v2096, 0.0
        %2179 = vadd.xlane.f32.xlu0 %v2178
        %v2180 = vpop.xlane.xlu0 %2179
        %v2181 = vsel %vm1175, %v2097, 0.0
        %2182 = vadd.xlane.f32.xlu0 %v2181
        %v2183 = vpop.xlane.xlu0 %2182
        %v2184 = vsel %vm597, %v2098, 0.0
        %2185 = vadd.xlane.f32.xlu0 %v2184
        %v2186 = vpop.xlane.xlu0 %2185
        %v2187 = vsel %vm1182, %v2099, 0.0
        %2188 = vadd.xlane.f32.xlu0 %v2187
        %v2189 = vpop.xlane.xlu0 %2188
        %v2190 = vsel %vm1175, %v2100, 0.0
        %2191 = vadd.xlane.f32.xlu0 %v2190
        %v2192 = vpop.xlane.xlu0 %2191
        %v2193 = vsel %vm597, %v2101, 0.0
        %2194 = vadd.xlane.f32.xlu0 %v2193
        %v2195 = vpop.xlane.xlu0 %2194
        %v2196 = vsel %vm1182, %v2102, 0.0
        %2197 = vadd.xlane.f32.xlu0 %v2196
        %v2198 = vpop.xlane.xlu0 %2197
        %v2199 = vsel %vm1175, %v2103, 0.0
        %2200 = vadd.xlane.f32.xlu0 %v2199
        %v2201 = vpop.xlane.xlu0 %2200
        %v2202 = vsel %vm597, %v2104, 0.0
        %2203 = vadd.xlane.f32.xlu0 %v2202
        %v2204 = vpop.xlane.xlu0 %2203
        %v2205 = vsel %vm1182, %v2105, 0.0
        %2206 = vadd.xlane.f32.xlu0 %v2205
        %v2207 = vpop.xlane.xlu0 %2206
        %v2208 = vsel %vm1175, %v2106, 0.0
        %2209 = vadd.xlane.f32.xlu0 %v2208
        %v2210 = vpop.xlane.xlu0 %2209
        %v2211 = vsel %vm597, %v2107, 0.0
        %2212 = vadd.xlane.f32.xlu0 %v2211
        %v2213 = vpop.xlane.xlu0 %2212
        %v2214 = vsel %vm1182, %v2108, 0.0
        %2215 = vadd.xlane.f32.xlu0 %v2214
        %v2216 = vpop.xlane.xlu0 %2215
        %v2217 = vsel %vm1175, %v2109, 0.0
        %2218 = vadd.xlane.f32.xlu0 %v2217
        %v2219 = vpop.xlane.xlu0 %2218
        %v2220 = vsel %vm597, %v2110, 0.0
        %2221 = vadd.xlane.f32.xlu0 %v2220
        %v2222 = vpop.xlane.xlu0 %2221
        %v2223 = vsel %vm1182, %v2111, 0.0
        %2224 = vadd.xlane.f32.xlu0 %v2223
        %v2225 = vpop.xlane.xlu0 %2224
        %v2226 = vsel %vm1175, %v2112, 0.0
        %2227 = vadd.xlane.f32.xlu0 %v2226
        %v2228 = vpop.xlane.xlu0 %2227
        %v2229 = vsel %vm597, %v2113, 0.0
        %2230 = vadd.xlane.f32.xlu0 %v2229
        %v2231 = vpop.xlane.xlu0 %2230
        %v2232 = vsel %vm1182, %v2114, 0.0
        %2233 = vadd.xlane.f32.xlu0 %v2232
        %v2234 = vpop.xlane.xlu0 %2233
        %v2235 = vsel %vm1175, %v2115, 0.0
        %2236 = vadd.xlane.f32.xlu0 %v2235
        %v2237 = vpop.xlane.xlu0 %2236
        %v2238 = vsel %vm597, %v2116, 0.0
        %2239 = vadd.xlane.f32.xlu0 %v2238
        %v2240 = vpop.xlane.xlu0 %2239
        %v2241 = vsel %vm1182, %v2117, 0.0
        %2242 = vadd.xlane.f32.xlu0 %v2241
        %v2243 = vpop.xlane.xlu0 %2242
        %v2244 = vsel %vm1175, %v2118, 0.0
        %2245 = vadd.xlane.f32.xlu0 %v2244
        %v2246 = vpop.xlane.xlu0 %2245
        %v2247 = vsel %vm597, %v2119, 0.0
        %2248 = vadd.xlane.f32.xlu0 %v2247
        %v2249 = vpop.xlane.xlu0 %2248
        %v2250 = vsel %vm1182, %v2120, 0.0
        %2251 = vadd.xlane.f32.xlu0 %v2250
        %v2252 = vpop.xlane.xlu0 %2251
        %v2253 = vsel %vm1175, %v2121, 0.0
        %2254 = vadd.xlane.f32.xlu0 %v2253
        %v2255 = vpop.xlane.xlu0 %2254
        %v2256 = vsel %vm597, %v2122, 0.0
        %2257 = vadd.xlane.f32.xlu0 %v2256
        %v2258 = vpop.xlane.xlu0 %2257
        %v2259 = vsel %vm1182, %v2123, 0.0
        %2260 = vadd.xlane.f32.xlu0 %v2259
        %v2261 = vpop.xlane.xlu0 %2260
        %v2262 = vsel %vm1175, %v2124, 0.0
        %2263 = vadd.xlane.f32.xlu0 %v2262
        %v2264 = vpop.xlane.xlu0 %2263
        %v2265 = vsel %vm597, %v2125, 0.0
        %2266 = vadd.xlane.f32.xlu0 %v2265
        %v2267 = vpop.xlane.xlu0 %2266
        %v2268 = vsel %vm1182, %v2126, 0.0
        %2269 = vadd.xlane.f32.xlu0 %v2268
        %v2270 = vpop.xlane.xlu0 %2269
        %v2319 = vrot.slane %v2129, 2
        %v2320 = vrot.slane %v2132, 2
        %v2321 = vsel %vm1369, %v2319, %v2320
        %v2322 = vrot.slane %v2135, 2
        %v2323 = vsel %vm1369, %v2320, %v2322
        %v2324 = vrot.slane %v2138, 2
        %v2325 = vrot.slane %v2141, 2
        %v2326 = vsel %vm1369, %v2324, %v2325
        %v2327 = vrot.slane %v2144, 2
        %v2328 = vsel %vm1369, %v2325, %v2327
        %v2329 = vrot.slane %v2147, 2
        %v2330 = vrot.slane %v2150, 2
        %v2331 = vsel %vm1369, %v2329, %v2330
        %v2332 = vrot.slane %v2153, 2
        %v2333 = vsel %vm1369, %v2330, %v2332
        %v2334 = vrot.slane %v2156, 2
        %v2335 = vrot.slane %v2159, 2
        %v2336 = vsel %vm1369, %v2334, %v2335
        %v2337 = vrot.slane %v2162, 2
        %v2338 = vsel %vm1369, %v2335, %v2337
        %v2339 = vrot.slane %v2165, 2
        %v2340 = vrot.slane %v2168, 2
        %v2341 = vsel %vm1369, %v2339, %v2340
        %v2342 = vrot.slane %v2171, 2
        %v2343 = vsel %vm1369, %v2340, %v2342
        %v2344 = vrot.slane %v2174, 2
        %v2345 = vrot.slane %v2177, 2
        %v2346 = vsel %vm1369, %v2344, %v2345
        %v2347 = vrot.slane %v2180, 2
        %v2348 = vsel %vm1369, %v2345, %v2347
        %v2349 = vrot.slane %v2183, 2
        %v2350 = vrot.slane %v2186, 2
        %v2351 = vsel %vm1369, %v2349, %v2350
        %v2352 = vrot.slane %v2189, 2
        %v2353 = vsel %vm1369, %v2350, %v2352
        %v2354 = vrot.slane %v2192, 2
        %v2355 = vrot.slane %v2195, 2
        %v2356 = vsel %vm1369, %v2354, %v2355
        %v2357 = vrot.slane %v2198, 2
        %v2358 = vsel %vm1369, %v2355, %v2357
        %v2359 = vrot.slane %v2201, 2
        %v2360 = vrot.slane %v2204, 2
        %v2361 = vsel %vm1369, %v2359, %v2360
        %v2362 = vrot.slane %v2207, 2
        %v2363 = vsel %vm1369, %v2360, %v2362
        %v2364 = vrot.slane %v2210, 2
        %v2365 = vrot.slane %v2213, 2
        %v2366 = vsel %vm1369, %v2364, %v2365
        %v2367 = vrot.slane %v2216, 2
        %v2368 = vsel %vm1369, %v2365, %v2367
        %v2369 = vrot.slane %v2219, 2
        %v2370 = vrot.slane %v2222, 2
        %v2371 = vsel %vm1369, %v2369, %v2370
        %v2372 = vrot.slane %v2225, 2
        %v2373 = vsel %vm1369, %v2370, %v2372
        %v2374 = vrot.slane %v2228, 2
        %v2375 = vrot.slane %v2231, 2
        %v2376 = vsel %vm1369, %v2374, %v2375
        %v2377 = vrot.slane %v2234, 2
        %v2378 = vsel %vm1369, %v2375, %v2377
        %v2379 = vrot.slane %v2237, 2
        %v2380 = vrot.slane %v2240, 2
        %v2381 = vsel %vm1369, %v2379, %v2380
        %v2382 = vrot.slane %v2243, 2
        %v2383 = vsel %vm1369, %v2380, %v2382
        %v2384 = vrot.slane %v2246, 2
        %v2385 = vrot.slane %v2249, 2
        %v2386 = vsel %vm1369, %v2384, %v2385
        %v2387 = vrot.slane %v2252, 2
        %v2388 = vsel %vm1369, %v2385, %v2387
        %v2389 = vrot.slane %v2255, 2
        %v2390 = vrot.slane %v2258, 2
        %v2391 = vsel %vm1369, %v2389, %v2390
        %v2392 = vrot.slane %v2261, 2
        %v2393 = vsel %vm1369, %v2390, %v2392
        %v2394 = vrot.slane %v2264, 2
        %v2395 = vrot.slane %v2267, 2
        %v2396 = vsel %vm1369, %v2394, %v2395
        %v2397 = vrot.slane %v2270, 2
        %v2398 = vsel %vm1369, %v2395, %v2397
        %v2431 = vadd.f32 %v2040, %v2321
        %v2432 = vadd.f32 %v2041, %v2323
        %v2433 = vadd.f32 %v2042, %v2326
        %v2434 = vadd.f32 %v2043, %v2328
        %v2435 = vadd.f32 %v2044, %v2331
        %v2436 = vadd.f32 %v2045, %v2333
        %v2437 = vadd.f32 %v2046, %v2336
        %v2438 = vadd.f32 %v2047, %v2338
        %v2439 = vadd.f32 %v2048, %v2341
        %v2440 = vadd.f32 %v2049, %v2343
        %v2441 = vadd.f32 %v2050, %v2346
        %v2442 = vadd.f32 %v2051, %v2348
        %v2443 = vadd.f32 %v2052, %v2351
        %v2444 = vadd.f32 %v2053, %v2353
        %v2445 = vadd.f32 %v2054, %v2356
        %v2446 = vadd.f32 %v2055, %v2358
        %v2447 = vadd.f32 %v2056, %v2361
        %v2448 = vadd.f32 %v2057, %v2363
        %v2449 = vadd.f32 %v2058, %v2366
        %v2450 = vadd.f32 %v2059, %v2368
        %v2451 = vadd.f32 %v2060, %v2371
        %v2452 = vadd.f32 %v2061, %v2373
        %v2453 = vadd.f32 %v2062, %v2376
        %v2454 = vadd.f32 %v2063, %v2378
        %v2455 = vadd.f32 %v2064, %v2381
        %v2456 = vadd.f32 %v2065, %v2383
        %v2457 = vadd.f32 %v2066, %v2386
        %v2458 = vadd.f32 %v2067, %v2388
        %v2459 = vadd.f32 %v2068, %v2391
        %v2460 = vadd.f32 %v2069, %v2393
        %v2461 = vadd.f32 %v2070, %v2396
        %v2462 = vadd.f32 %v2071, %v2398
        %s2463 = scalar_lea.vmem [#allocation6], 6
        %v2464 = vld [vmem:[%s2463] sm:$0x1]
        %v2465 = vunpack.c.l.bf16 %v2464
        %v2466 = vlaneseq
        %v2467 = vshrl.u32 %v2466, 7
        %v2468 = vsub.s32 0, %v2467
        %v2469 = vrot.slane %v2465, %v2468
        %v2470 = vmul.f32 %v514, %v2469
        %v2471 = vmul.f32 %v515, %v2469
        %v2472 = vmul.f32 %v517, %v2469
        %v2473 = vmul.f32 %v518, %v2469
        %v2474 = vmul.f32 %v520, %v2469
        %v2475 = vmul.f32 %v521, %v2469
        %v2476 = vmul.f32 %v523, %v2469
        %v2477 = vmul.f32 %v524, %v2469
        %v2478 = vmul.f32 %v526, %v2469
        %v2479 = vmul.f32 %v527, %v2469
        %v2480 = vmul.f32 %v529, %v2469
        %v2481 = vmul.f32 %v530, %v2469
        %v2482 = vmul.f32 %v532, %v2469
        %v2483 = vmul.f32 %v533, %v2469
        %v2484 = vmul.f32 %v535, %v2469
        %v2485 = vmul.f32 %v536, %v2469
        %v2486 = vmul.f32 %v538, %v2469
        %v2487 = vmul.f32 %v539, %v2469
        %v2488 = vmul.f32 %v541, %v2469
        %v2489 = vmul.f32 %v542, %v2469
        %v2490 = vmul.f32 %v544, %v2469
        %v2491 = vmul.f32 %v545, %v2469
        %v2492 = vmul.f32 %v547, %v2469
        %v2493 = vmul.f32 %v548, %v2469
        %v2494 = vmul.f32 %v550, %v2469
        %v2495 = vmul.f32 %v551, %v2469
        %v2496 = vmul.f32 %v553, %v2469
        %v2497 = vmul.f32 %v554, %v2469
        %v2498 = vmul.f32 %v556, %v2469
        %v2499 = vmul.f32 %v557, %v2469
        %v2500 = vmul.f32 %v508, %v2469
        %v2501 = vmul.f32 %v509, %v2469
        %v2502 = vsel %vm597, %v2470, 0.0
        %2503 = vadd.xlane.f32.xlu0 %v2502
        %v2504 = vpop.xlane.xlu0 %2503
        %v2505 = vsel %vm597, %v2471, 0.0
        %2506 = vadd.xlane.f32.xlu0 %v2505
        %v2507 = vpop.xlane.xlu0 %2506
        %v2508 = vsel %vm597, %v2472, 0.0
        %2509 = vadd.xlane.f32.xlu0 %v2508
        %v2510 = vpop.xlane.xlu0 %2509
        %v2511 = vsel %vm597, %v2473, 0.0
        %2512 = vadd.xlane.f32.xlu0 %v2511
        %v2513 = vpop.xlane.xlu0 %2512
        %v2514 = vsel %vm597, %v2474, 0.0
        %2515 = vadd.xlane.f32.xlu0 %v2514
        %v2516 = vpop.xlane.xlu0 %2515
        %v2517 = vsel %vm597, %v2475, 0.0
        %2518 = vadd.xlane.f32.xlu0 %v2517
        %v2519 = vpop.xlane.xlu0 %2518
        %v2520 = vsel %vm597, %v2476, 0.0
        %2521 = vadd.xlane.f32.xlu0 %v2520
        %v2522 = vpop.xlane.xlu0 %2521
        %v2523 = vsel %vm597, %v2477, 0.0
        %2524 = vadd.xlane.f32.xlu0 %v2523
        %v2525 = vpop.xlane.xlu0 %2524
        %v2526 = vsel %vm597, %v2478, 0.0
        %2527 = vadd.xlane.f32.xlu0 %v2526
        %v2528 = vpop.xlane.xlu0 %2527
        %v2529 = vsel %vm597, %v2479, 0.0
        %2530 = vadd.xlane.f32.xlu0 %v2529
        %v2531 = vpop.xlane.xlu0 %2530
        %v2532 = vsel %vm597, %v2480, 0.0
        %2533 = vadd.xlane.f32.xlu0 %v2532
        %v2534 = vpop.xlane.xlu0 %2533
        %v2535 = vsel %vm597, %v2481, 0.0
        %2536 = vadd.xlane.f32.xlu0 %v2535
        %v2537 = vpop.xlane.xlu0 %2536
        %v2538 = vsel %vm597, %v2482, 0.0
        %2539 = vadd.xlane.f32.xlu0 %v2538
        %v2540 = vpop.xlane.xlu0 %2539
        %v2541 = vsel %vm597, %v2483, 0.0
        %2542 = vadd.xlane.f32.xlu0 %v2541
        %v2543 = vpop.xlane.xlu0 %2542
        %v2544 = vsel %vm597, %v2484, 0.0
        %2545 = vadd.xlane.f32.xlu0 %v2544
        %v2546 = vpop.xlane.xlu0 %2545
        %v2547 = vsel %vm597, %v2485, 0.0
        %2548 = vadd.xlane.f32.xlu0 %v2547
        %v2549 = vpop.xlane.xlu0 %2548
        %v2550 = vsel %vm597, %v2486, 0.0
        %2551 = vadd.xlane.f32.xlu0 %v2550
        %v2552 = vpop.xlane.xlu0 %2551
        %v2553 = vsel %vm597, %v2487, 0.0
        %2554 = vadd.xlane.f32.xlu0 %v2553
        %v2555 = vpop.xlane.xlu0 %2554
        %v2556 = vsel %vm597, %v2488, 0.0
        %2557 = vadd.xlane.f32.xlu0 %v2556
        %v2558 = vpop.xlane.xlu0 %2557
        %v2559 = vsel %vm597, %v2489, 0.0
        %2560 = vadd.xlane.f32.xlu0 %v2559
        %v2561 = vpop.xlane.xlu0 %2560
        %v2562 = vsel %vm597, %v2490, 0.0
        %2563 = vadd.xlane.f32.xlu0 %v2562
        %v2564 = vpop.xlane.xlu0 %2563
        %v2565 = vsel %vm597, %v2491, 0.0
        %2566 = vadd.xlane.f32.xlu0 %v2565
        %v2567 = vpop.xlane.xlu0 %2566
        %v2568 = vsel %vm597, %v2492, 0.0
        %2569 = vadd.xlane.f32.xlu0 %v2568
        %v2570 = vpop.xlane.xlu0 %2569
        %v2571 = vsel %vm597, %v2493, 0.0
        %2572 = vadd.xlane.f32.xlu0 %v2571
        %v2573 = vpop.xlane.xlu0 %2572
        %v2574 = vsel %vm597, %v2494, 0.0
        %2575 = vadd.xlane.f32.xlu0 %v2574
        %v2576 = vpop.xlane.xlu0 %2575
        %v2577 = vsel %vm597, %v2495, 0.0
        %2578 = vadd.xlane.f32.xlu0 %v2577
        %v2579 = vpop.xlane.xlu0 %2578
        %v2580 = vsel %vm597, %v2496, 0.0
        %2581 = vadd.xlane.f32.xlu0 %v2580
        %v2582 = vpop.xlane.xlu0 %2581
        %v2583 = vsel %vm597, %v2497, 0.0
        %2584 = vadd.xlane.f32.xlu0 %v2583
        %v2585 = vpop.xlane.xlu0 %2584
        %v2586 = vsel %vm597, %v2498, 0.0
        %2587 = vadd.xlane.f32.xlu0 %v2586
        %v2588 = vpop.xlane.xlu0 %2587
        %v2589 = vsel %vm597, %v2499, 0.0
        %2590 = vadd.xlane.f32.xlu0 %v2589
        %v2591 = vpop.xlane.xlu0 %2590
        %v2592 = vsel %vm597, %v2500, 0.0
        %2593 = vadd.xlane.f32.xlu0 %v2592
        %v2594 = vpop.xlane.xlu0 %2593
        %v2595 = vsel %vm597, %v2501, 0.0
        %2596 = vadd.xlane.f32.xlu0 %v2595
        %v2597 = vpop.xlane.xlu0 %2596
        %v2598 = vadd.f32 %v2431, %v2504
        %v2599 = vadd.f32 %v2432, %v2507
        %v2600 = vadd.f32 %v2433, %v2510
        %v2601 = vadd.f32 %v2434, %v2513
        %v2602 = vadd.f32 %v2435, %v2516
        %v2603 = vadd.f32 %v2436, %v2519
        %v2604 = vadd.f32 %v2437, %v2522
        %v2605 = vadd.f32 %v2438, %v2525
        %v2606 = vadd.f32 %v2439, %v2528
        %v2607 = vadd.f32 %v2440, %v2531
        %v2608 = vadd.f32 %v2441, %v2534
        %v2609 = vadd.f32 %v2442, %v2537
        %v2610 = vadd.f32 %v2443, %v2540
        %v2611 = vadd.f32 %v2444, %v2543
        %v2612 = vadd.f32 %v2445, %v2546
        %v2613 = vadd.f32 %v2446, %v2549
        %v2614 = vadd.f32 %v2447, %v2552
        %v2615 = vadd.f32 %v2448, %v2555
        %v2616 = vadd.f32 %v2449, %v2558
        %v2617 = vadd.f32 %v2450, %v2561
        %v2618 = vadd.f32 %v2451, %v2564
        %v2619 = vadd.f32 %v2452, %v2567
        %v2620 = vadd.f32 %v2453, %v2570
        %v2621 = vadd.f32 %v2454, %v2573
        %v2622 = vadd.f32 %v2455, %v2576
        %v2623 = vadd.f32 %v2456, %v2579
        %v2624 = vadd.f32 %v2457, %v2582
        %v2625 = vadd.f32 %v2458, %v2585
        %v2626 = vadd.f32 %v2459, %v2588
        %v2627 = vadd.f32 %v2460, %v2591
        %v2628 = vadd.f32 %v2461, %v2594
        %v2629 = vadd.f32 %v2462, %v2597
        %s2630 = scalar_lea.vmem [#allocation6], 7
        %v2631 = vld [vmem:[%s2630] sm:$0x1]
        %v2632 = vunpack.c.l.bf16 %v2631
        %v2633 = vlaneseq
        %v2634 = vshrl.u32 %v2633, 7
        %v2635 = vsub.s32 0, %v2634
        %v2636 = vrot.slane %v2632, %v2635
        %v2637 = vmul.f32 %v514, %v2636
        %v2638 = vmul.f32 %v515, %v2636
        %v2639 = vmul.f32 %v516, %v2636
        %v2640 = vmul.f32 %v517, %v2636
        %v2641 = vmul.f32 %v518, %v2636
        %v2642 = vmul.f32 %v519, %v2636
        %v2643 = vmul.f32 %v520, %v2636
        %v2644 = vmul.f32 %v521, %v2636
        %v2645 = vmul.f32 %v522, %v2636
        %v2646 = vmul.f32 %v523, %v2636
        %v2647 = vmul.f32 %v524, %v2636
        %v2648 = vmul.f32 %v525, %v2636
        %v2649 = vmul.f32 %v526, %v2636
        %v2650 = vmul.f32 %v527, %v2636
        %v2651 = vmul.f32 %v528, %v2636
        %v2652 = vmul.f32 %v529, %v2636
        %v2653 = vmul.f32 %v530, %v2636
        %v2654 = vmul.f32 %v531, %v2636
        %v2655 = vmul.f32 %v532, %v2636
        %v2656 = vmul.f32 %v533, %v2636
        %v2657 = vmul.f32 %v534, %v2636
        %v2658 = vmul.f32 %v535, %v2636
        %v2659 = vmul.f32 %v536, %v2636
        %v2660 = vmul.f32 %v537, %v2636
        %v2661 = vmul.f32 %v538, %v2636
        %v2662 = vmul.f32 %v539, %v2636
        %v2663 = vmul.f32 %v540, %v2636
        %v2664 = vmul.f32 %v541, %v2636
        %v2665 = vmul.f32 %v542, %v2636
        %v2666 = vmul.f32 %v543, %v2636
        %v2667 = vmul.f32 %v544, %v2636
        %v2668 = vmul.f32 %v545, %v2636
        %v2669 = vmul.f32 %v546, %v2636
        %v2670 = vmul.f32 %v547, %v2636
        %v2671 = vmul.f32 %v548, %v2636
        %v2672 = vmul.f32 %v549, %v2636
        %v2673 = vmul.f32 %v550, %v2636
        %v2674 = vmul.f32 %v551, %v2636
        %v2675 = vmul.f32 %v552, %v2636
        %v2676 = vmul.f32 %v553, %v2636
        %v2677 = vmul.f32 %v554, %v2636
        %v2678 = vmul.f32 %v555, %v2636
        %v2679 = vmul.f32 %v556, %v2636
        %v2680 = vmul.f32 %v557, %v2636
        %v2681 = vmul.f32 %v558, %v2636
        %v2682 = vmul.f32 %v508, %v2636
        %v2683 = vmul.f32 %v509, %v2636
        %v2684 = vmul.f32 %v510, %v2636
        %v2685 = vsel %vm781, %v2637, 0.0
        %2686 = vadd.xlane.f32.xlu0 %v2685
        %v2687 = vpop.xlane.xlu0 %2686
        %v2688 = vsel %vm597, %v2638, 0.0
        %2689 = vadd.xlane.f32.xlu0 %v2688
        %v2690 = vpop.xlane.xlu0 %2689
        %v2691 = vsel %vm788, %v2639, 0.0
        %2692 = vadd.xlane.f32.xlu0 %v2691
        %v2693 = vpop.xlane.xlu0 %2692
        %v2694 = vsel %vm781, %v2640, 0.0
        %2695 = vadd.xlane.f32.xlu0 %v2694
        %v2696 = vpop.xlane.xlu0 %2695
        %v2697 = vsel %vm597, %v2641, 0.0
        %2698 = vadd.xlane.f32.xlu0 %v2697
        %v2699 = vpop.xlane.xlu0 %2698
        %v2700 = vsel %vm788, %v2642, 0.0
        %2701 = vadd.xlane.f32.xlu0 %v2700
        %v2702 = vpop.xlane.xlu0 %2701
        %v2703 = vsel %vm781, %v2643, 0.0
        %2704 = vadd.xlane.f32.xlu0 %v2703
        %v2705 = vpop.xlane.xlu0 %2704
        %v2706 = vsel %vm597, %v2644, 0.0
        %2707 = vadd.xlane.f32.xlu0 %v2706
        %v2708 = vpop.xlane.xlu0 %2707
        %v2709 = vsel %vm788, %v2645, 0.0
        %2710 = vadd.xlane.f32.xlu0 %v2709
        %v2711 = vpop.xlane.xlu0 %2710
        %v2712 = vsel %vm781, %v2646, 0.0
        %2713 = vadd.xlane.f32.xlu0 %v2712
        %v2714 = vpop.xlane.xlu0 %2713
        %v2715 = vsel %vm597, %v2647, 0.0
        %2716 = vadd.xlane.f32.xlu0 %v2715
        %v2717 = vpop.xlane.xlu0 %2716
        %v2718 = vsel %vm788, %v2648, 0.0
        %2719 = vadd.xlane.f32.xlu0 %v2718
        %v2720 = vpop.xlane.xlu0 %2719
        %v2721 = vsel %vm781, %v2649, 0.0
        %2722 = vadd.xlane.f32.xlu0 %v2721
        %v2723 = vpop.xlane.xlu0 %2722
        %v2724 = vsel %vm597, %v2650, 0.0
        %2725 = vadd.xlane.f32.xlu0 %v2724
        %v2726 = vpop.xlane.xlu0 %2725
        %v2727 = vsel %vm788, %v2651, 0.0
        %2728 = vadd.xlane.f32.xlu0 %v2727
        %v2729 = vpop.xlane.xlu0 %2728
        %v2730 = vsel %vm781, %v2652, 0.0
        %2731 = vadd.xlane.f32.xlu0 %v2730
        %v2732 = vpop.xlane.xlu0 %2731
        %v2733 = vsel %vm597, %v2653, 0.0
        %2734 = vadd.xlane.f32.xlu0 %v2733
        %v2735 = vpop.xlane.xlu0 %2734
        %v2736 = vsel %vm788, %v2654, 0.0
        %2737 = vadd.xlane.f32.xlu0 %v2736
        %v2738 = vpop.xlane.xlu0 %2737
        %v2739 = vsel %vm781, %v2655, 0.0
        %2740 = vadd.xlane.f32.xlu0 %v2739
        %v2741 = vpop.xlane.xlu0 %2740
        %v2742 = vsel %vm597, %v2656, 0.0
        %2743 = vadd.xlane.f32.xlu0 %v2742
        %v2744 = vpop.xlane.xlu0 %2743
        %v2745 = vsel %vm788, %v2657, 0.0
        %2746 = vadd.xlane.f32.xlu0 %v2745
        %v2747 = vpop.xlane.xlu0 %2746
        %v2748 = vsel %vm781, %v2658, 0.0
        %2749 = vadd.xlane.f32.xlu0 %v2748
        %v2750 = vpop.xlane.xlu0 %2749
        %v2751 = vsel %vm597, %v2659, 0.0
        %2752 = vadd.xlane.f32.xlu0 %v2751
        %v2753 = vpop.xlane.xlu0 %2752
        %v2754 = vsel %vm788, %v2660, 0.0
        %2755 = vadd.xlane.f32.xlu0 %v2754
        %v2756 = vpop.xlane.xlu0 %2755
        %v2757 = vsel %vm781, %v2661, 0.0
        %2758 = vadd.xlane.f32.xlu0 %v2757
        %v2759 = vpop.xlane.xlu0 %2758
        %v2760 = vsel %vm597, %v2662, 0.0
        %2761 = vadd.xlane.f32.xlu0 %v2760
        %v2762 = vpop.xlane.xlu0 %2761
        %v2763 = vsel %vm788, %v2663, 0.0
        %2764 = vadd.xlane.f32.xlu0 %v2763
        %v2765 = vpop.xlane.xlu0 %2764
        %v2766 = vsel %vm781, %v2664, 0.0
        %2767 = vadd.xlane.f32.xlu0 %v2766
        %v2768 = vpop.xlane.xlu0 %2767
        %v2769 = vsel %vm597, %v2665, 0.0
        %2770 = vadd.xlane.f32.xlu0 %v2769
        %v2771 = vpop.xlane.xlu0 %2770
        %v2772 = vsel %vm788, %v2666, 0.0
        %2773 = vadd.xlane.f32.xlu0 %v2772
        %v2774 = vpop.xlane.xlu0 %2773
        %v2775 = vsel %vm781, %v2667, 0.0
        %2776 = vadd.xlane.f32.xlu0 %v2775
        %v2777 = vpop.xlane.xlu0 %2776
        %v2778 = vsel %vm597, %v2668, 0.0
        %2779 = vadd.xlane.f32.xlu0 %v2778
        %v2780 = vpop.xlane.xlu0 %2779
        %v2781 = vsel %vm788, %v2669, 0.0
        %2782 = vadd.xlane.f32.xlu0 %v2781
        %v2783 = vpop.xlane.xlu0 %2782
        %v2784 = vsel %vm781, %v2670, 0.0
        %2785 = vadd.xlane.f32.xlu0 %v2784
        %v2786 = vpop.xlane.xlu0 %2785
        %v2787 = vsel %vm597, %v2671, 0.0
        %2788 = vadd.xlane.f32.xlu0 %v2787
        %v2789 = vpop.xlane.xlu0 %2788
        %v2790 = vsel %vm788, %v2672, 0.0
        %2791 = vadd.xlane.f32.xlu0 %v2790
        %v2792 = vpop.xlane.xlu0 %2791
        %v2793 = vsel %vm781, %v2673, 0.0
        %2794 = vadd.xlane.f32.xlu0 %v2793
        %v2795 = vpop.xlane.xlu0 %2794
        %v2796 = vsel %vm597, %v2674, 0.0
        %2797 = vadd.xlane.f32.xlu0 %v2796
        %v2798 = vpop.xlane.xlu0 %2797
        %v2799 = vsel %vm788, %v2675, 0.0
        %2800 = vadd.xlane.f32.xlu0 %v2799
        %v2801 = vpop.xlane.xlu0 %2800
        %v2802 = vsel %vm781, %v2676, 0.0
        %2803 = vadd.xlane.f32.xlu0 %v2802
        %v2804 = vpop.xlane.xlu0 %2803
        %v2805 = vsel %vm597, %v2677, 0.0
        %2806 = vadd.xlane.f32.xlu0 %v2805
        %v2807 = vpop.xlane.xlu0 %2806
        %v2808 = vsel %vm788, %v2678, 0.0
        %2809 = vadd.xlane.f32.xlu0 %v2808
        %v2810 = vpop.xlane.xlu0 %2809
        %v2811 = vsel %vm781, %v2679, 0.0
        %2812 = vadd.xlane.f32.xlu0 %v2811
        %v2813 = vpop.xlane.xlu0 %2812
        %v2814 = vsel %vm597, %v2680, 0.0
        %2815 = vadd.xlane.f32.xlu0 %v2814
        %v2816 = vpop.xlane.xlu0 %2815
        %v2817 = vsel %vm788, %v2681, 0.0
        %2818 = vadd.xlane.f32.xlu0 %v2817
        %v2819 = vpop.xlane.xlu0 %2818
        %v2820 = vsel %vm781, %v2682, 0.0
        %2821 = vadd.xlane.f32.xlu0 %v2820
        %v2822 = vpop.xlane.xlu0 %2821
        %v2823 = vsel %vm597, %v2683, 0.0
        %2824 = vadd.xlane.f32.xlu0 %v2823
        %v2825 = vpop.xlane.xlu0 %2824
        %v2826 = vsel %vm788, %v2684, 0.0
        %2827 = vadd.xlane.f32.xlu0 %v2826
        %v2828 = vpop.xlane.xlu0 %2827
        %v2877 = vrot.slane %v2687, 1
        %v2878 = vrot.slane %v2690, 1
        %v2879 = vsel %vm975, %v2877, %v2878
        %v2880 = vrot.slane %v2693, 1
        %v2881 = vsel %vm975, %v2878, %v2880
        %v2882 = vrot.slane %v2696, 1
        %v2883 = vrot.slane %v2699, 1
        %v2884 = vsel %vm975, %v2882, %v2883
        %v2885 = vrot.slane %v2702, 1
        %v2886 = vsel %vm975, %v2883, %v2885
        %v2887 = vrot.slane %v2705, 1
        %v2888 = vrot.slane %v2708, 1
        %v2889 = vsel %vm975, %v2887, %v2888
        %v2890 = vrot.slane %v2711, 1
        %v2891 = vsel %vm975, %v2888, %v2890
        %v2892 = vrot.slane %v2714, 1
        %v2893 = vrot.slane %v2717, 1
        %v2894 = vsel %vm975, %v2892, %v2893
        %v2895 = vrot.slane %v2720, 1
        %v2896 = vsel %vm975, %v2893, %v2895
        %v2897 = vrot.slane %v2723, 1
        %v2898 = vrot.slane %v2726, 1
        %v2899 = vsel %vm975, %v2897, %v2898
        %v2900 = vrot.slane %v2729, 1
        %v2901 = vsel %vm975, %v2898, %v2900
        %v2902 = vrot.slane %v2732, 1
        %v2903 = vrot.slane %v2735, 1
        %v2904 = vsel %vm975, %v2902, %v2903
        %v2905 = vrot.slane %v2738, 1
        %v2906 = vsel %vm975, %v2903, %v2905
        %v2907 = vrot.slane %v2741, 1
        %v2908 = vrot.slane %v2744, 1
        %v2909 = vsel %vm975, %v2907, %v2908
        %v2910 = vrot.slane %v2747, 1
        %v2911 = vsel %vm975, %v2908, %v2910
        %v2912 = vrot.slane %v2750, 1
        %v2913 = vrot.slane %v2753, 1
        %v2914 = vsel %vm975, %v2912, %v2913
        %v2915 = vrot.slane %v2756, 1
        %v2916 = vsel %vm975, %v2913, %v2915
        %v2917 = vrot.slane %v2759, 1
        %v2918 = vrot.slane %v2762, 1
        %v2919 = vsel %vm975, %v2917, %v2918
        %v2920 = vrot.slane %v2765, 1
        %v2921 = vsel %vm975, %v2918, %v2920
        %v2922 = vrot.slane %v2768, 1
        %v2923 = vrot.slane %v2771, 1
        %v2924 = vsel %vm975, %v2922, %v2923
        %v2925 = vrot.slane %v2774, 1
        %v2926 = vsel %vm975, %v2923, %v2925
        %v2927 = vrot.slane %v2777, 1
        %v2928 = vrot.slane %v2780, 1
        %v2929 = vsel %vm975, %v2927, %v2928
        %v2930 = vrot.slane %v2783, 1
        %v2931 = vsel %vm975, %v2928, %v2930
        %v2932 = vrot.slane %v2786, 1
        %v2933 = vrot.slane %v2789, 1
        %v2934 = vsel %vm975, %v2932, %v2933
        %v2935 = vrot.slane %v2792, 1
        %v2936 = vsel %vm975, %v2933, %v2935
        %v2937 = vrot.slane %v2795, 1
        %v2938 = vrot.slane %v2798, 1
        %v2939 = vsel %vm975, %v2937, %v2938
        %v2940 = vrot.slane %v2801, 1
        %v2941 = vsel %vm975, %v2938, %v2940
        %v2942 = vrot.slane %v2804, 1
        %v2943 = vrot.slane %v2807, 1
        %v2944 = vsel %vm975, %v2942, %v2943
        %v2945 = vrot.slane %v2810, 1
        %v2946 = vsel %vm975, %v2943, %v2945
        %v2947 = vrot.slane %v2813, 1
        %v2948 = vrot.slane %v2816, 1
        %v2949 = vsel %vm975, %v2947, %v2948
        %v2950 = vrot.slane %v2819, 1
        %v2951 = vsel %vm975, %v2948, %v2950
        %v2952 = vrot.slane %v2822, 1
        %v2953 = vrot.slane %v2825, 1
        %v2954 = vsel %vm975, %v2952, %v2953
        %v2955 = vrot.slane %v2828, 1
        %v2956 = vsel %vm975, %v2953, %v2955
        %v2989 = vadd.f32 %v2598, %v2879
        %v2990 = vadd.f32 %v2599, %v2881
        %v2991 = vadd.f32 %v2600, %v2884
        %v2992 = vadd.f32 %v2601, %v2886
        %v2993 = vadd.f32 %v2602, %v2889
        %v2994 = vadd.f32 %v2603, %v2891
        %v2995 = vadd.f32 %v2604, %v2894
        %v2996 = vadd.f32 %v2605, %v2896
        %v2997 = vadd.f32 %v2606, %v2899
        %v2998 = vadd.f32 %v2607, %v2901
        %v2999 = vadd.f32 %v2608, %v2904
        %v3000 = vadd.f32 %v2609, %v2906
        %v3001 = vadd.f32 %v2610, %v2909
        %v3002 = vadd.f32 %v2611, %v2911
        %v3003 = vadd.f32 %v2612, %v2914
        %v3004 = vadd.f32 %v2613, %v2916
        %v3005 = vadd.f32 %v2614, %v2919
        %v3006 = vadd.f32 %v2615, %v2921
        %v3007 = vadd.f32 %v2616, %v2924
        %v3008 = vadd.f32 %v2617, %v2926
        %v3009 = vadd.f32 %v2618, %v2929
        %v3010 = vadd.f32 %v2619, %v2931
        %v3011 = vadd.f32 %v2620, %v2934
        %v3012 = vadd.f32 %v2621, %v2936
        %v3013 = vadd.f32 %v2622, %v2939
        %v3014 = vadd.f32 %v2623, %v2941
        %v3015 = vadd.f32 %v2624, %v2944
        %v3016 = vadd.f32 %v2625, %v2946
        %v3017 = vadd.f32 %v2626, %v2949
        %v3018 = vadd.f32 %v2627, %v2951
        %v3019 = vadd.f32 %v2628, %v2954
        %v3020 = vadd.f32 %v2629, %v2956
        %s3021 = scalar_lea.vmem [#allocation6], 8
        %v3022 = vld [vmem:[%s3021] sm:$0x1]
        %v3023 = vunpack.c.l.bf16 %v3022
        %v3024 = vlaneseq
        %v3025 = vshrl.u32 %v3024, 7
        %v3026 = vsub.s32 0, %v3025
        %v3027 = vrot.slane %v3023, %v3026
        %v3028 = vmul.f32 %v514, %v3027
        %v3029 = vmul.f32 %v515, %v3027
        %v3030 = vmul.f32 %v516, %v3027
        %v3031 = vmul.f32 %v517, %v3027
        %v3032 = vmul.f32 %v518, %v3027
        %v3033 = vmul.f32 %v519, %v3027
        %v3034 = vmul.f32 %v520, %v3027
        %v3035 = vmul.f32 %v521, %v3027
        %v3036 = vmul.f32 %v522, %v3027
        %v3037 = vmul.f32 %v523, %v3027
        %v3038 = vmul.f32 %v524, %v3027
        %v3039 = vmul.f32 %v525, %v3027
        %v3040 = vmul.f32 %v526, %v3027
        %v3041 = vmul.f32 %v527, %v3027
        %v3042 = vmul.f32 %v528, %v3027
        %v3043 = vmul.f32 %v529, %v3027
        %v3044 = vmul.f32 %v530, %v3027
        %v3045 = vmul.f32 %v531, %v3027
        %v3046 = vmul.f32 %v532, %v3027
        %v3047 = vmul.f32 %v533, %v3027
        %v3048 = vmul.f32 %v534, %v3027
        %v3049 = vmul.f32 %v535, %v3027
        %v3050 = vmul.f32 %v536, %v3027
        %v3051 = vmul.f32 %v537, %v3027
        %v3052 = vmul.f32 %v538, %v3027
        %v3053 = vmul.f32 %v539, %v3027
        %v3054 = vmul.f32 %v540, %v3027
        %v3055 = vmul.f32 %v541, %v3027
        %v3056 = vmul.f32 %v542, %v3027
        %v3057 = vmul.f32 %v543, %v3027
        %v3058 = vmul.f32 %v544, %v3027
        %v3059 = vmul.f32 %v545, %v3027
        %v3060 = vmul.f32 %v546, %v3027
        %v3061 = vmul.f32 %v547, %v3027
        %v3062 = vmul.f32 %v548, %v3027
        %v3063 = vmul.f32 %v549, %v3027
        %v3064 = vmul.f32 %v550, %v3027
        %v3065 = vmul.f32 %v551, %v3027
        %v3066 = vmul.f32 %v552, %v3027
        %v3067 = vmul.f32 %v553, %v3027
        %v3068 = vmul.f32 %v554, %v3027
        %v3069 = vmul.f32 %v555, %v3027
        %v3070 = vmul.f32 %v556, %v3027
        %v3071 = vmul.f32 %v557, %v3027
        %v3072 = vmul.f32 %v558, %v3027
        %v3073 = vmul.f32 %v508, %v3027
        %v3074 = vmul.f32 %v509, %v3027
        %v3075 = vmul.f32 %v510, %v3027
        %v3076 = vsel %vm1175, %v3028, 0.0
        %3077 = vadd.xlane.f32.xlu0 %v3076
        %v3078 = vpop.xlane.xlu0 %3077
        %v3079 = vsel %vm597, %v3029, 0.0
        %3080 = vadd.xlane.f32.xlu0 %v3079
        %v3081 = vpop.xlane.xlu0 %3080
        %v3082 = vsel %vm1182, %v3030, 0.0
        %3083 = vadd.xlane.f32.xlu0 %v3082
        %v3084 = vpop.xlane.xlu0 %3083
        %v3085 = vsel %vm1175, %v3031, 0.0
        %3086 = vadd.xlane.f32.xlu0 %v3085
        %v3087 = vpop.xlane.xlu0 %3086
        %v3088 = vsel %vm597, %v3032, 0.0
        %3089 = vadd.xlane.f32.xlu0 %v3088
        %v3090 = vpop.xlane.xlu0 %3089
        %v3091 = vsel %vm1182, %v3033, 0.0
        %3092 = vadd.xlane.f32.xlu0 %v3091
        %v3093 = vpop.xlane.xlu0 %3092
        %v3094 = vsel %vm1175, %v3034, 0.0
        %3095 = vadd.xlane.f32.xlu0 %v3094
        %v3096 = vpop.xlane.xlu0 %3095
        %v3097 = vsel %vm597, %v3035, 0.0
        %3098 = vadd.xlane.f32.xlu0 %v3097
        %v3099 = vpop.xlane.xlu0 %3098
        %v3100 = vsel %vm1182, %v3036, 0.0
        %3101 = vadd.xlane.f32.xlu0 %v3100
        %v3102 = vpop.xlane.xlu0 %3101
        %v3103 = vsel %vm1175, %v3037, 0.0
        %3104 = vadd.xlane.f32.xlu0 %v3103
        %v3105 = vpop.xlane.xlu0 %3104
        %v3106 = vsel %vm597, %v3038, 0.0
        %3107 = vadd.xlane.f32.xlu0 %v3106
        %v3108 = vpop.xlane.xlu0 %3107
        %v3109 = vsel %vm1182, %v3039, 0.0
        %3110 = vadd.xlane.f32.xlu0 %v3109
        %v3111 = vpop.xlane.xlu0 %3110
        %v3112 = vsel %vm1175, %v3040, 0.0
        %3113 = vadd.xlane.f32.xlu0 %v3112
        %v3114 = vpop.xlane.xlu0 %3113
        %v3115 = vsel %vm597, %v3041, 0.0
        %3116 = vadd.xlane.f32.xlu0 %v3115
        %v3117 = vpop.xlane.xlu0 %3116
        %v3118 = vsel %vm1182, %v3042, 0.0
        %3119 = vadd.xlane.f32.xlu0 %v3118
        %v3120 = vpop.xlane.xlu0 %3119
        %v3121 = vsel %vm1175, %v3043, 0.0
        %3122 = vadd.xlane.f32.xlu0 %v3121
        %v3123 = vpop.xlane.xlu0 %3122
        %v3124 = vsel %vm597, %v3044, 0.0
        %3125 = vadd.xlane.f32.xlu0 %v3124
        %v3126 = vpop.xlane.xlu0 %3125
        %v3127 = vsel %vm1182, %v3045, 0.0
        %3128 = vadd.xlane.f32.xlu0 %v3127
        %v3129 = vpop.xlane.xlu0 %3128
        %v3130 = vsel %vm1175, %v3046, 0.0
        %3131 = vadd.xlane.f32.xlu0 %v3130
        %v3132 = vpop.xlane.xlu0 %3131
        %v3133 = vsel %vm597, %v3047, 0.0
        %3134 = vadd.xlane.f32.xlu0 %v3133
        %v3135 = vpop.xlane.xlu0 %3134
        %v3136 = vsel %vm1182, %v3048, 0.0
        %3137 = vadd.xlane.f32.xlu0 %v3136
        %v3138 = vpop.xlane.xlu0 %3137
        %v3139 = vsel %vm1175, %v3049, 0.0
        %3140 = vadd.xlane.f32.xlu0 %v3139
        %v3141 = vpop.xlane.xlu0 %3140
        %v3142 = vsel %vm597, %v3050, 0.0
        %3143 = vadd.xlane.f32.xlu0 %v3142
        %v3144 = vpop.xlane.xlu0 %3143
        %v3145 = vsel %vm1182, %v3051, 0.0
        %3146 = vadd.xlane.f32.xlu0 %v3145
        %v3147 = vpop.xlane.xlu0 %3146
        %v3148 = vsel %vm1175, %v3052, 0.0
        %3149 = vadd.xlane.f32.xlu0 %v3148
        %v3150 = vpop.xlane.xlu0 %3149
        %v3151 = vsel %vm597, %v3053, 0.0
        %3152 = vadd.xlane.f32.xlu0 %v3151
        %v3153 = vpop.xlane.xlu0 %3152
        %v3154 = vsel %vm1182, %v3054, 0.0
        %3155 = vadd.xlane.f32.xlu0 %v3154
        %v3156 = vpop.xlane.xlu0 %3155
        %v3157 = vsel %vm1175, %v3055, 0.0
        %3158 = vadd.xlane.f32.xlu0 %v3157
        %v3159 = vpop.xlane.xlu0 %3158
        %v3160 = vsel %vm597, %v3056, 0.0
        %3161 = vadd.xlane.f32.xlu0 %v3160
        %v3162 = vpop.xlane.xlu0 %3161
        %v3163 = vsel %vm1182, %v3057, 0.0
        %3164 = vadd.xlane.f32.xlu0 %v3163
        %v3165 = vpop.xlane.xlu0 %3164
        %v3166 = vsel %vm1175, %v3058, 0.0
        %3167 = vadd.xlane.f32.xlu0 %v3166
        %v3168 = vpop.xlane.xlu0 %3167
        %v3169 = vsel %vm597, %v3059, 0.0
        %3170 = vadd.xlane.f32.xlu0 %v3169
        %v3171 = vpop.xlane.xlu0 %3170
        %v3172 = vsel %vm1182, %v3060, 0.0
        %3173 = vadd.xlane.f32.xlu0 %v3172
        %v3174 = vpop.xlane.xlu0 %3173
        %v3175 = vsel %vm1175, %v3061, 0.0
        %3176 = vadd.xlane.f32.xlu0 %v3175
        %v3177 = vpop.xlane.xlu0 %3176
        %v3178 = vsel %vm597, %v3062, 0.0
        %3179 = vadd.xlane.f32.xlu0 %v3178
        %v3180 = vpop.xlane.xlu0 %3179
        %v3181 = vsel %vm1182, %v3063, 0.0
        %3182 = vadd.xlane.f32.xlu0 %v3181
        %v3183 = vpop.xlane.xlu0 %3182
        %v3184 = vsel %vm1175, %v3064, 0.0
        %3185 = vadd.xlane.f32.xlu0 %v3184
        %v3186 = vpop.xlane.xlu0 %3185
        %v3187 = vsel %vm597, %v3065, 0.0
        %3188 = vadd.xlane.f32.xlu0 %v3187
        %v3189 = vpop.xlane.xlu0 %3188
        %v3190 = vsel %vm1182, %v3066, 0.0
        %3191 = vadd.xlane.f32.xlu0 %v3190
        %v3192 = vpop.xlane.xlu0 %3191
        %v3193 = vsel %vm1175, %v3067, 0.0
        %3194 = vadd.xlane.f32.xlu0 %v3193
        %v3195 = vpop.xlane.xlu0 %3194
        %v3196 = vsel %vm597, %v3068, 0.0
        %3197 = vadd.xlane.f32.xlu0 %v3196
        %v3198 = vpop.xlane.xlu0 %3197
        %v3199 = vsel %vm1182, %v3069, 0.0
        %3200 = vadd.xlane.f32.xlu0 %v3199
        %v3201 = vpop.xlane.xlu0 %3200
        %v3202 = vsel %vm1175, %v3070, 0.0
        %3203 = vadd.xlane.f32.xlu0 %v3202
        %v3204 = vpop.xlane.xlu0 %3203
        %v3205 = vsel %vm597, %v3071, 0.0
        %3206 = vadd.xlane.f32.xlu0 %v3205
        %v3207 = vpop.xlane.xlu0 %3206
        %v3208 = vsel %vm1182, %v3072, 0.0
        %3209 = vadd.xlane.f32.xlu0 %v3208
        %v3210 = vpop.xlane.xlu0 %3209
        %v3211 = vsel %vm1175, %v3073, 0.0
        %3212 = vadd.xlane.f32.xlu0 %v3211
        %v3213 = vpop.xlane.xlu0 %3212
        %v3214 = vsel %vm597, %v3074, 0.0
        %3215 = vadd.xlane.f32.xlu0 %v3214
        %v3216 = vpop.xlane.xlu0 %3215
        %v3217 = vsel %vm1182, %v3075, 0.0
        %3218 = vadd.xlane.f32.xlu0 %v3217
        %v3219 = vpop.xlane.xlu0 %3218
        %v3268 = vrot.slane %v3078, 2
        %v3269 = vrot.slane %v3081, 2
        %v3270 = vsel %vm1369, %v3268, %v3269
        %v3271 = vrot.slane %v3084, 2
        %v3272 = vsel %vm1369, %v3269, %v3271
        %v3273 = vrot.slane %v3087, 2
        %v3274 = vrot.slane %v3090, 2
        %v3275 = vsel %vm1369, %v3273, %v3274
        %v3276 = vrot.slane %v3093, 2
        %v3277 = vsel %vm1369, %v3274, %v3276
        %v3278 = vrot.slane %v3096, 2
        %v3279 = vrot.slane %v3099, 2
        %v3280 = vsel %vm1369, %v3278, %v3279
        %v3281 = vrot.slane %v3102, 2
        %v3282 = vsel %vm1369, %v3279, %v3281
        %v3283 = vrot.slane %v3105, 2
        %v3284 = vrot.slane %v3108, 2
        %v3285 = vsel %vm1369, %v3283, %v3284
        %v3286 = vrot.slane %v3111, 2
        %v3287 = vsel %vm1369, %v3284, %v3286
        %v3288 = vrot.slane %v3114, 2
        %v3289 = vrot.slane %v3117, 2
        %v3290 = vsel %vm1369, %v3288, %v3289
        %v3291 = vrot.slane %v3120, 2
        %v3292 = vsel %vm1369, %v3289, %v3291
        %v3293 = vrot.slane %v3123, 2
        %v3294 = vrot.slane %v3126, 2
        %v3295 = vsel %vm1369, %v3293, %v3294
        %v3296 = vrot.slane %v3129, 2
        %v3297 = vsel %vm1369, %v3294, %v3296
        %v3298 = vrot.slane %v3132, 2
        %v3299 = vrot.slane %v3135, 2
        %v3300 = vsel %vm1369, %v3298, %v3299
        %v3301 = vrot.slane %v3138, 2
        %v3302 = vsel %vm1369, %v3299, %v3301
        %v3303 = vrot.slane %v3141, 2
        %v3304 = vrot.slane %v3144, 2
        %v3305 = vsel %vm1369, %v3303, %v3304
        %v3306 = vrot.slane %v3147, 2
        %v3307 = vsel %vm1369, %v3304, %v3306
        %v3308 = vrot.slane %v3150, 2
        %v3309 = vrot.slane %v3153, 2
        %v3310 = vsel %vm1369, %v3308, %v3309
        %v3311 = vrot.slane %v3156, 2
        %v3312 = vsel %vm1369, %v3309, %v3311
        %v3313 = vrot.slane %v3159, 2
        %v3314 = vrot.slane %v3162, 2
        %v3315 = vsel %vm1369, %v3313, %v3314
        %v3316 = vrot.slane %v3165, 2
        %v3317 = vsel %vm1369, %v3314, %v3316
        %v3318 = vrot.slane %v3168, 2
        %v3319 = vrot.slane %v3171, 2
        %v3320 = vsel %vm1369, %v3318, %v3319
        %v3321 = vrot.slane %v3174, 2
        %v3322 = vsel %vm1369, %v3319, %v3321
        %v3323 = vrot.slane %v3177, 2
        %v3324 = vrot.slane %v3180, 2
        %v3325 = vsel %vm1369, %v3323, %v3324
        %v3326 = vrot.slane %v3183, 2
        %v3327 = vsel %vm1369, %v3324, %v3326
        %v3328 = vrot.slane %v3186, 2
        %v3329 = vrot.slane %v3189, 2
        %v3330 = vsel %vm1369, %v3328, %v3329
        %v3331 = vrot.slane %v3192, 2
        %v3332 = vsel %vm1369, %v3329, %v3331
        %v3333 = vrot.slane %v3195, 2
        %v3334 = vrot.slane %v3198, 2
        %v3335 = vsel %vm1369, %v3333, %v3334
        %v3336 = vrot.slane %v3201, 2
        %v3337 = vsel %vm1369, %v3334, %v3336
        %v3338 = vrot.slane %v3204, 2
        %v3339 = vrot.slane %v3207, 2
        %v3340 = vsel %vm1369, %v3338, %v3339
        %v3341 = vrot.slane %v3210, 2
        %v3342 = vsel %vm1369, %v3339, %v3341
        %v3343 = vrot.slane %v3213, 2
        %v3344 = vrot.slane %v3216, 2
        %v3345 = vsel %vm1369, %v3343, %v3344
        %v3346 = vrot.slane %v3219, 2
        %v3347 = vsel %vm1369, %v3344, %v3346
        %v3380 = vadd.f32 %v2989, %v3270
        %v3381 = vadd.f32 %v2990, %v3272
        %v3382 = vadd.f32 %v2991, %v3275
        %v3383 = vadd.f32 %v2992, %v3277
        %v3384 = vadd.f32 %v2993, %v3280
        %v3385 = vadd.f32 %v2994, %v3282
        %v3386 = vadd.f32 %v2995, %v3285
        %v3387 = vadd.f32 %v2996, %v3287
        %v3388 = vadd.f32 %v2997, %v3290
        %v3389 = vadd.f32 %v2998, %v3292
        %v3390 = vadd.f32 %v2999, %v3295
        %v3391 = vadd.f32 %v3000, %v3297
        %v3392 = vadd.f32 %v3001, %v3300
        %v3393 = vadd.f32 %v3002, %v3302
        %v3394 = vadd.f32 %v3003, %v3305
        %v3395 = vadd.f32 %v3004, %v3307
        %v3396 = vadd.f32 %v3005, %v3310
        %v3397 = vadd.f32 %v3006, %v3312
        %v3398 = vadd.f32 %v3007, %v3315
        %v3399 = vadd.f32 %v3008, %v3317
        %v3400 = vadd.f32 %v3009, %v3320
        %v3401 = vadd.f32 %v3010, %v3322
        %v3402 = vadd.f32 %v3011, %v3325
        %v3403 = vadd.f32 %v3012, %v3327
        %v3404 = vadd.f32 %v3013, %v3330
        %v3405 = vadd.f32 %v3014, %v3332
        %v3406 = vadd.f32 %v3015, %v3335
        %v3407 = vadd.f32 %v3016, %v3337
        %v3408 = vadd.f32 %v3017, %v3340
        %v3409 = vadd.f32 %v3018, %v3342
        %v3410 = vadd.f32 %v3019, %v3345
        %v3411 = vadd.f32 %v3020, %v3347
        %s3412 = sld [smem:[#allocation2]]
        %v3413 = vstv %s3412
        %v3414 = vadd.f32 %v3380, %v3413
        %v3415 = vadd.f32 %v3381, %v3413
        %v3416 = vadd.f32 %v3382, %v3413
        %v3417 = vadd.f32 %v3383, %v3413
        %v3418 = vadd.f32 %v3384, %v3413
        %v3419 = vadd.f32 %v3385, %v3413
        %v3420 = vadd.f32 %v3386, %v3413
        %v3421 = vadd.f32 %v3387, %v3413
        %v3422 = vadd.f32 %v3388, %v3413
        %v3423 = vadd.f32 %v3389, %v3413
        %v3424 = vadd.f32 %v3390, %v3413
        %v3425 = vadd.f32 %v3391, %v3413
        %v3426 = vadd.f32 %v3392, %v3413
        %v3427 = vadd.f32 %v3393, %v3413
        %v3428 = vadd.f32 %v3394, %v3413
        %v3429 = vadd.f32 %v3395, %v3413
        %v3430 = vadd.f32 %v3396, %v3413
        %v3431 = vadd.f32 %v3397, %v3413
        %v3432 = vadd.f32 %v3398, %v3413
        %v3433 = vadd.f32 %v3399, %v3413
        %v3434 = vadd.f32 %v3400, %v3413
        %v3435 = vadd.f32 %v3401, %v3413
        %v3436 = vadd.f32 %v3402, %v3413
        %v3437 = vadd.f32 %v3403, %v3413
        %v3438 = vadd.f32 %v3404, %v3413
        %v3439 = vadd.f32 %v3405, %v3413
        %v3440 = vadd.f32 %v3406, %v3413
        %v3441 = vadd.f32 %v3407, %v3413
        %v3442 = vadd.f32 %v3408, %v3413
        %v3443 = vadd.f32 %v3409, %v3413
        %v3444 = vadd.f32 %v3410, %v3413
        %v3445 = vadd.f32 %v3411, %v3413
        %3478 = vset.pattern.permute.xlu0 0
        %3479 = vperm.xlu0 %3478, %v3414
        %v3480 = vpop.permute.xlu0 %3479
        %3481 = vset.pattern.permute.xlu0 0
        %3482 = vperm.xlu0 %3481, %v3415
        %v3483 = vpop.permute.xlu0 %3482
        %3484 = vset.pattern.permute.xlu0 0
        %3485 = vperm.xlu0 %3484, %v3416
        %v3486 = vpop.permute.xlu0 %3485
        %3487 = vset.pattern.permute.xlu0 0
        %3488 = vperm.xlu0 %3487, %v3417
        %v3489 = vpop.permute.xlu0 %3488
        %3490 = vset.pattern.permute.xlu0 0
        %3491 = vperm.xlu0 %3490, %v3418
        %v3492 = vpop.permute.xlu0 %3491
        %3493 = vset.pattern.permute.xlu0 0
        %3494 = vperm.xlu0 %3493, %v3419
        %v3495 = vpop.permute.xlu0 %3494
        %3496 = vset.pattern.permute.xlu0 0
        %3497 = vperm.xlu0 %3496, %v3420
        %v3498 = vpop.permute.xlu0 %3497
        %3499 = vset.pattern.permute.xlu0 0
        %3500 = vperm.xlu0 %3499, %v3421
        %v3501 = vpop.permute.xlu0 %3500
        %3502 = vset.pattern.permute.xlu0 0
        %3503 = vperm.xlu0 %3502, %v3422
        %v3504 = vpop.permute.xlu0 %3503
        %3505 = vset.pattern.permute.xlu0 0
        %3506 = vperm.xlu0 %3505, %v3423
        %v3507 = vpop.permute.xlu0 %3506
        %3508 = vset.pattern.permute.xlu0 0
        %3509 = vperm.xlu0 %3508, %v3424
        %v3510 = vpop.permute.xlu0 %3509
        %3511 = vset.pattern.permute.xlu0 0
        %3512 = vperm.xlu0 %3511, %v3425
        %v3513 = vpop.permute.xlu0 %3512
        %3514 = vset.pattern.permute.xlu0 0
        %3515 = vperm.xlu0 %3514, %v3426
        %v3516 = vpop.permute.xlu0 %3515
        %3517 = vset.pattern.permute.xlu0 0
        %3518 = vperm.xlu0 %3517, %v3427
        %v3519 = vpop.permute.xlu0 %3518
        %3520 = vset.pattern.permute.xlu0 0
        %3521 = vperm.xlu0 %3520, %v3428
        %v3522 = vpop.permute.xlu0 %3521
        %3523 = vset.pattern.permute.xlu0 0
        %3524 = vperm.xlu0 %3523, %v3429
        %v3525 = vpop.permute.xlu0 %3524
        %3526 = vset.pattern.permute.xlu0 0
        %3527 = vperm.xlu0 %3526, %v3430
        %v3528 = vpop.permute.xlu0 %3527
        %3529 = vset.pattern.permute.xlu0 0
        %3530 = vperm.xlu0 %3529, %v3431
        %v3531 = vpop.permute.xlu0 %3530
        %3532 = vset.pattern.permute.xlu0 0
        %3533 = vperm.xlu0 %3532, %v3432
        %v3534 = vpop.permute.xlu0 %3533
        %3535 = vset.pattern.permute.xlu0 0
        %3536 = vperm.xlu0 %3535, %v3433
        %v3537 = vpop.permute.xlu0 %3536
        %3538 = vset.pattern.permute.xlu0 0
        %3539 = vperm.xlu0 %3538, %v3434
        %v3540 = vpop.permute.xlu0 %3539
        %3541 = vset.pattern.permute.xlu0 0
        %3542 = vperm.xlu0 %3541, %v3435
        %v3543 = vpop.permute.xlu0 %3542
        %3544 = vset.pattern.permute.xlu0 0
        %3545 = vperm.xlu0 %3544, %v3436
        %v3546 = vpop.permute.xlu0 %3545
        %3547 = vset.pattern.permute.xlu0 0
        %3548 = vperm.xlu0 %3547, %v3437
        %v3549 = vpop.permute.xlu0 %3548
        %3550 = vset.pattern.permute.xlu0 0
        %3551 = vperm.xlu0 %3550, %v3438
        %v3552 = vpop.permute.xlu0 %3551
        %3553 = vset.pattern.permute.xlu0 0
        %3554 = vperm.xlu0 %3553, %v3439
        %v3555 = vpop.permute.xlu0 %3554
        %3556 = vset.pattern.permute.xlu0 0
        %3557 = vperm.xlu0 %3556, %v3440
        %v3558 = vpop.permute.xlu0 %3557
        %3559 = vset.pattern.permute.xlu0 0
        %3560 = vperm.xlu0 %3559, %v3441
        %v3561 = vpop.permute.xlu0 %3560
        %3562 = vset.pattern.permute.xlu0 0
        %3563 = vperm.xlu0 %3562, %v3442
        %v3564 = vpop.permute.xlu0 %3563
        %3565 = vset.pattern.permute.xlu0 0
        %3566 = vperm.xlu0 %3565, %v3443
        %v3567 = vpop.permute.xlu0 %3566
        %3568 = vset.pattern.permute.xlu0 0
        %3569 = vperm.xlu0 %3568, %v3444
        %v3570 = vpop.permute.xlu0 %3569
        %3571 = vset.pattern.permute.xlu0 0
        %3572 = vperm.xlu0 %3571, %v3445
        %v3573 = vpop.permute.xlu0 %3572
        %v3574 = vlaneseq
        %v3575 = vand.u32 %v3574, 127
        %v3576 = vlaneseq
        %v3577 = vshrl.u32 %v3576, 7
        %v3578 = vsub.s32 %v3575, %v3577
        %v3579 = vrot.slane %v3480, %v3578
        %v3580 = vadd.s32 %v3575, 4294967288
        %v3581 = vlaneseq
        %v3582 = vshrl.u32 %v3581, 7
        %v3583 = vsub.s32 %v3580, %v3582
        %v3584 = vrot.slane %v3483, %v3583
        %vm3585 = vcmask 130112
        %v3586 = vsel %vm3585, %v3584, %v3579
        %v3587 = vlaneseq
        %v3588 = vshrl.u32 %v3587, 7
        %v3589 = vsub.s32 %v3575, %v3588
        %v3590 = vrot.slane %v3486, %v3589
        %v3591 = vlaneseq
        %v3592 = vshrl.u32 %v3591, 7
        %v3593 = vsub.s32 %v3580, %v3592
        %v3594 = vrot.slane %v3489, %v3593
        %v3595 = vsel %vm3585, %v3594, %v3590
        %v3596 = vlaneseq
        %v3597 = vshrl.u32 %v3596, 7
        %v3598 = vsub.s32 %v3575, %v3597
        %v3599 = vrot.slane %v3492, %v3598
        %v3600 = vlaneseq
        %v3601 = vshrl.u32 %v3600, 7
        %v3602 = vsub.s32 %v3580, %v3601
        %v3603 = vrot.slane %v3495, %v3602
        %v3604 = vsel %vm3585, %v3603, %v3599
        %v3605 = vlaneseq
        %v3606 = vshrl.u32 %v3605, 7
        %v3607 = vsub.s32 %v3575, %v3606
        %v3608 = vrot.slane %v3498, %v3607
        %v3609 = vlaneseq
        %v3610 = vshrl.u32 %v3609, 7
        %v3611 = vsub.s32 %v3580, %v3610
        %v3612 = vrot.slane %v3501, %v3611
        %v3613 = vsel %vm3585, %v3612, %v3608
        %v3614 = vlaneseq
        %v3615 = vshrl.u32 %v3614, 7
        %v3616 = vsub.s32 %v3575, %v3615
        %v3617 = vrot.slane %v3504, %v3616
        %v3618 = vlaneseq
        %v3619 = vshrl.u32 %v3618, 7
        %v3620 = vsub.s32 %v3580, %v3619
        %v3621 = vrot.slane %v3507, %v3620
        %v3622 = vsel %vm3585, %v3621, %v3617
        %v3623 = vlaneseq
        %v3624 = vshrl.u32 %v3623, 7
        %v3625 = vsub.s32 %v3575, %v3624
        %v3626 = vrot.slane %v3510, %v3625
        %v3627 = vlaneseq
        %v3628 = vshrl.u32 %v3627, 7
        %v3629 = vsub.s32 %v3580, %v3628
        %v3630 = vrot.slane %v3513, %v3629
        %v3631 = vsel %vm3585, %v3630, %v3626
        %v3632 = vlaneseq
        %v3633 = vshrl.u32 %v3632, 7
        %v3634 = vsub.s32 %v3575, %v3633
        %v3635 = vrot.slane %v3516, %v3634
        %v3636 = vlaneseq
        %v3637 = vshrl.u32 %v3636, 7
        %v3638 = vsub.s32 %v3580, %v3637
        %v3639 = vrot.slane %v3519, %v3638
        %v3640 = vsel %vm3585, %v3639, %v3635
        %v3641 = vlaneseq
        %v3642 = vshrl.u32 %v3641, 7
        %v3643 = vsub.s32 %v3575, %v3642
        %v3644 = vrot.slane %v3522, %v3643
        %v3645 = vlaneseq
        %v3646 = vshrl.u32 %v3645, 7
        %v3647 = vsub.s32 %v3580, %v3646
        %v3648 = vrot.slane %v3525, %v3647
        %v3649 = vsel %vm3585, %v3648, %v3644
        %v3650 = vlaneseq
        %v3651 = vshrl.u32 %v3650, 7
        %v3652 = vsub.s32 %v3575, %v3651
        %v3653 = vrot.slane %v3528, %v3652
        %v3654 = vlaneseq
        %v3655 = vshrl.u32 %v3654, 7
        %v3656 = vsub.s32 %v3580, %v3655
        %v3657 = vrot.slane %v3531, %v3656
        %v3658 = vsel %vm3585, %v3657, %v3653
        %v3659 = vlaneseq
        %v3660 = vshrl.u32 %v3659, 7
        %v3661 = vsub.s32 %v3575, %v3660
        %v3662 = vrot.slane %v3534, %v3661
        %v3663 = vlaneseq
        %v3664 = vshrl.u32 %v3663, 7
        %v3665 = vsub.s32 %v3580, %v3664
        %v3666 = vrot.slane %v3537, %v3665
        %v3667 = vsel %vm3585, %v3666, %v3662
        %v3668 = vlaneseq
        %v3669 = vshrl.u32 %v3668, 7
        %v3670 = vsub.s32 %v3575, %v3669
        %v3671 = vrot.slane %v3540, %v3670
        %v3672 = vlaneseq
        %v3673 = vshrl.u32 %v3672, 7
        %v3674 = vsub.s32 %v3580, %v3673
        %v3675 = vrot.slane %v3543, %v3674
        %v3676 = vsel %vm3585, %v3675, %v3671
        %v3677 = vlaneseq
        %v3678 = vshrl.u32 %v3677, 7
        %v3679 = vsub.s32 %v3575, %v3678
        %v3680 = vrot.slane %v3546, %v3679
        %v3681 = vlaneseq
        %v3682 = vshrl.u32 %v3681, 7
        %v3683 = vsub.s32 %v3580, %v3682
        %v3684 = vrot.slane %v3549, %v3683
        %v3685 = vsel %vm3585, %v3684, %v3680
        %v3686 = vlaneseq
        %v3687 = vshrl.u32 %v3686, 7
        %v3688 = vsub.s32 %v3575, %v3687
        %v3689 = vrot.slane %v3552, %v3688
        %v3690 = vlaneseq
        %v3691 = vshrl.u32 %v3690, 7
        %v3692 = vsub.s32 %v3580, %v3691
        %v3693 = vrot.slane %v3555, %v3692
        %v3694 = vsel %vm3585, %v3693, %v3689
        %v3695 = vlaneseq
        %v3696 = vshrl.u32 %v3695, 7
        %v3697 = vsub.s32 %v3575, %v3696
        %v3698 = vrot.slane %v3558, %v3697
        %v3699 = vlaneseq
        %v3700 = vshrl.u32 %v3699, 7
        %v3701 = vsub.s32 %v3580, %v3700
        %v3702 = vrot.slane %v3561, %v3701
        %v3703 = vsel %vm3585, %v3702, %v3698
        %v3704 = vlaneseq
        %v3705 = vshrl.u32 %v3704, 7
        %v3706 = vsub.s32 %v3575, %v3705
        %v3707 = vrot.slane %v3564, %v3706
        %v3708 = vlaneseq
        %v3709 = vshrl.u32 %v3708, 7
        %v3710 = vsub.s32 %v3580, %v3709
        %v3711 = vrot.slane %v3567, %v3710
        %v3712 = vsel %vm3585, %v3711, %v3707
        %v3713 = vlaneseq
        %v3714 = vshrl.u32 %v3713, 7
        %v3715 = vsub.s32 %v3575, %v3714
        %v3716 = vrot.slane %v3570, %v3715
        %v3717 = vlaneseq
        %v3718 = vshrl.u32 %v3717, 7
        %v3719 = vsub.s32 %v3580, %v3718
        %v3720 = vrot.slane %v3573, %v3719
        %v3721 = vsel %vm3585, %v3720, %v3716
        %vm3722 = vcmask 1041409
        %v3723 = vsel %vm3722, %v3595, %v3586
        %vm3724 = vcmask 1042434
        %v3725 = vsel %vm3724, %v3604, %v3723
        %vm3726 = vcmask 1043459
        %v3727 = vsel %vm3726, %v3613, %v3725
        %vm3728 = vcmask 1044484
        %v3729 = vsel %vm3728, %v3622, %v3727
        %vm3730 = vcmask 1045509
        %v3731 = vsel %vm3730, %v3631, %v3729
        %vm3732 = vcmask 1046534
        %v3733 = vsel %vm3732, %v3640, %v3731
        %vm3734 = vcmask 1047559
        %v3735 = vsel %vm3734, %v3649, %v3733
        %v3736 = vsel %vm3722, %v3667, %v3658
        %v3737 = vsel %vm3724, %v3676, %v3736
        %v3738 = vsel %vm3726, %v3685, %v3737
        %v3739 = vsel %vm3728, %v3694, %v3738
        %v3740 = vsel %vm3730, %v3703, %v3739
        %v3741 = vsel %vm3732, %v3712, %v3740
        %v3742 = vsel %vm3734, %v3721, %v3741
        %vm3745 = vcmask 130048
        %3746 = vst.msk [vmem:[%s204] sm:$0xff] %vm3745, %v3735
        %3747 = vst.msk [vmem:[%s204 + $0x8] sm:$0xff] %vm3745, %v3742
        %s3748 = sand.u32 %s98, 1
        %s3749 = scalar_lea.sflag [#allocation5], %s3748
        %s3750 = sand.u32 %s98, 1
        %s3751 = smul.addr %s3750, 16
        %s3752 = scalar_lea.vmem [#allocation8], %s3751
        // Predicated region
        $region41: #{decoder_forward.5} parent=31 // pred_check
          %p3753 = pneg %p108
        $region42: #{decoder_forward.5} parent=31 // pred_check_branch
          %3755 = sbr.rel (%p3753) target = $region44
        $region43: #{decoder_forward.5} parent=31 // pred_region
          %s3757 = ssub.s32 256, 256
          %3758 = vsyncadd %s3749, %s3757
          %s3759 = smul.addr %s22, 2
          %s3760 = smul.addr %s3759, 128
          %s3761 = scalar_lea.hbm %s3, %s3760
          %s3762 = sshll.u32 %s3752, 4
          %s3763 = int_to_ptr.vmem [resolvable:$true] %s3762
          %3768 = dma.vmem_to_hbm [thread:$0]  %s3763, 256, %s3761, %s3749, 128, 128, 8
        $region44: #{decoder_forward.5} parent=31 // pred_fallthru
          _
      $region32: #{decoder_forward.5} parent=5 // pred_fallthru
        _
      %p3769 = scmp.le.s32.totalorder 2, %s17
      // Predicated region
      $region45: #{decoder_forward.5} parent=5 // pred_check
        %p3770 = pneg %p3769
      $region46: #{decoder_forward.5} parent=5 // pred_check_branch
        %3772 = sbr.rel (%p3770) target = $region48
      $region47: #{decoder_forward.5} parent=5 // pred_region
        %s3773 = ssub.s32 %s17, 2
        // Predicated region
        $region49: #{decoder_forward.5} parent=47 // pred_check
          %p3774 = pneg %p114
        $region50: #{decoder_forward.5} parent=47 // pred_check_branch
          %3776 = sbr.rel (%p3774) target = $region52
        $region51: #{decoder_forward.5} parent=47 // pred_region
          %s3777 = sand.u32 %s99, 1
          %s3778 = scalar_lea.sflag [#allocation5], %s3777
          %s3779 = sand.u32 %s99, 1
          %s3780 = smul.addr %s3779, 16
          %s3781 = scalar_lea.vmem [#allocation8], %s3780
          %3782 = dma.done %s3778, 256
        $region52: #{decoder_forward.5} parent=47 // pred_fallthru
          _
      $region48: #{decoder_forward.5} parent=5 // pred_fallthru
        _
    $region6: #{decoder_forward.5} parent=1 // loop_footer
      %s21 = sadd.s32 1, %s17
    $region7: #{decoder_forward.5} parent=1 // loop_footer_branch
      %16 = sbr.rel target = $region3
    $region8: #{decoder_forward.5} parent=1 // loop_exit
      _
    %3783 = vsyncpa [#allocation4], 1
    %s3784 = scalar_lea.sflag [#allocation4], 1
    %3785 = vsyncpa %s3784, 1
    %3786 = vsyncpa [#allocation7], 1
    %3787 = vsyncpa [#allocation5], 1
    %s3788 = scalar_lea.sflag [#allocation5], 1
    %3789 = vsyncpa %s3788, 1

</llo_original>
